<compile_context>
chip_gen: v6e
topology: v6e:2x2x1
jax: 0.10.0
libtpu: 0.0.40
codegen_flags: <defaults>
</compile_context>

<pallas_src>
import functools

import numpy as np

import jax
import jax.numpy as jnp
from jax.experimental import pallas as pl
from jax.experimental.pallas import tpu as pltpu


def _round_up(x, m):
    return (x + m - 1) // m * m


# --------------------------------- kernel -----------------------------------

def _triple_input_kernel(x_ref, m_ref, w1_ref, w2_ref, w3_ref, b_ref,
                         o_ref, h_ref, *, img_w, Cp, Fp, F):
    """One grid step = one lane-packed group of images.

    x_ref : (1, 3*Cp, Pg) f32   x|y|xk stacked on sublanes, pixels on lanes
    m_ref : (9, 3*Cp, Pg) f32   0/1 validity mask per 3x3 tap (pre-broadcast)
    w1_ref: (3, 3, Fp, 3*Cp) bf16  per-branch conv1 weights, 3 taps per chunk
    w2_ref: (9, 3*Cp, 3*Fp) bf16   per-tap block-diagonal fused conv2 weights
    w3_ref: (9, Fp, 3*Cp) bf16     per-tap down-conv weights
    b_ref : (3*Fp + 3*Cp + Fp, 1) f32  coalesced biases
    o_ref : (1, F, Pg)
    h_ref : (3*Fp, Pg) f32 VMEM scratch holding the three conv1 outputs
    """
    C3p, F3p = 3 * Cp, 3 * Fp
    Pg = x_ref.shape[2]
    f32, bf16 = jnp.float32, jnp.bfloat16

    def taps(lo=0, hi=9):
        for k in range(lo, hi):
            oy, ox = k // 3 - 1, k % 3 - 1
            # np.roll semantics: rolled[p] = x[p + oy*W + ox]
            yield k, (oy == 0 and ox == 0), (-(oy * img_w + ox)) % Pg

    xin = x_ref[0]                                            # (3*Cp, Pg) f32

    # ---- stage 1: the three branch conv_1's (3-tap K-chunks, 3 dots each) ---
    for b in range(3):
        src = xin[b * Cp:(b + 1) * Cp]                        # (Cp, Pg)
        hb = None
        for g in range(3):
            cols = []
            for k, center, shift in taps(3 * g, 3 * g + 3):
                if center:
                    cols.append(src)                          # no shift / no mask
                else:
                    cols.append(pltpu.roll(src, shift, 1) * m_ref[k][:Cp])
            chunk = jnp.concatenate(cols, axis=0).astype(bf16)   # (3*Cp, Pg)
            d = jnp.dot(w1_ref[b, g], chunk, preferred_element_type=f32)
            hb = d if hb is None else hb + d
        hb = hb + b_ref[b * Fp:(b + 1) * Fp, :]
        h_ref[b * Fp:(b + 1) * Fp, :] = jnp.maximum(hb, 0.0)  # (Fp, Pg)

    # ---- stage 2: fused conv_2 of all 3 branches (block-diag, per-tap K) ----
    # Output of this stage IS torch.cat([x, y, xk], 1): no concat needed.
    # Mask commutes with the contraction -> applied to the small output.
    acc2 = None
    for k, center, shift in taps():
        hv = h_ref[...]                                       # (3*Fp, Pg) f32
        col = hv if center else pltpu.roll(hv, shift, 1)
        d = jnp.dot(w2_ref[k], col.astype(bf16),
                    preferred_element_type=f32)               # (3*Cp, Pg)
        if not center:
            d = d * m_ref[k]
        acc2 = d if acc2 is None else acc2 + d
    cat = jnp.maximum(acc2 + b_ref[F3p:F3p + C3p, :], 0.0)    # (3*Cp, Pg) f32

    # ---- stage 3: down conv, per-tap K-chunked ------------------------------
    acc3 = None
    for k, center, shift in taps():
        col = cat if center else pltpu.roll(cat, shift, 1) * m_ref[k]
        d = jnp.dot(w3_ref[k], col.astype(bf16),
                    preferred_element_type=f32)               # (Fp, Pg)
        acc3 = d if acc3 is None else acc3 + d
    out = acc3 + b_ref[F3p + C3p:F3p + C3p + Fp, :]           # no ReLU on down
    o_ref[0] = out[:F].astype(o_ref.dtype)                    # lane-dense store


# ------------------------------ operand packing ------------------------------

def _pack_params(params, C, F, Cp, Fp):
    """Pack all conv weights/biases into 4 MXU-ready operands (bf16 weights)."""
    C3p, F3p = 3 * Cp, 3 * Fp
    names = ("convlayer_x", "convlayer_y", "convlayer_xk")

    w1 = jnp.zeros((3, 3, Fp, C3p), jnp.float32)   # [branch, tap-chunk, M, 3*Cp]
    w2 = jnp.zeros((9, C3p, F3p), jnp.float32)     # [tap, 3*Cp, 3*Fp] block-diag
    b1 = jnp.zeros((F3p, 1), jnp.float32)
    b2 = jnp.zeros((C3p, 1), jnp.float32)
    for bi, name in enumerate(names):
        p = params[name]
        # conv1 HWIO (3,3,C,F); chunk g holds taps 3g..3g+2, K = tap_in_chunk*Cp + cin
        t1 = jnp.zeros((9, Cp, Fp), jnp.float32)
        t1 = t1.at[:, :C, :F].set(p["w1"].reshape(9, C, F))
        t1 = jnp.transpose(t1.reshape(3, 3, Cp, Fp), (0, 3, 1, 2)).reshape(3, Fp, C3p)
        w1 = w1.at[bi].set(t1)
        b1 = b1.at[bi * Fp:bi * Fp + F, 0].set(p["b1"])
        # conv2 HWIO (3,3,F,C); per-tap (C, F) block on the branch diagonal
        t2 = jnp.transpose(p["w2"].reshape(9, F, C), (0, 2, 1))      # (9, C, F)
        w2 = w2.at[:, bi * Cp:bi * Cp + C, bi * Fp:bi * Fp + F].set(t2)
        b2 = b2.at[bi * Cp:bi * Cp + C, 0].set(p["b2"])

    # down conv HWIO (3,3,3C,F); per-tap (F, 3*Cp) honouring torch.cat order
    dw = params["down_w"].reshape(9, 3 * C, F)
    w3 = jnp.zeros((9, Fp, C3p), jnp.float32)
    for bi in range(3):
        blk = jnp.transpose(dw[:, bi * C:(bi + 1) * C, :], (0, 2, 1))  # (9, F, C)
        w3 = w3.at[:, :F, bi * Cp:bi * Cp + C].set(blk)
    b3 = jnp.zeros((Fp, 1), jnp.float32).at[:F, 0].set(params["down_b"])

    bias = jnp.concatenate([b1, b2, b3], axis=0)               # coalesced biases
    return (w1.astype(jnp.bfloat16), w2.astype(jnp.bfloat16),
            w3.astype(jnp.bfloat16), bias)


def _tap_masks(H, W, rows, ips):
    """(9, rows, ips*H*W) 0/1 masks, pre-broadcast on sublanes, tiled per image."""
    P = H * W
    hh, ww = np.divmod(np.arange(P), W)
    m = np.zeros((9, rows, P), np.float32)
    for k in range(9):
        oy, ox = k // 3 - 1, k % 3 - 1
        valid = ((hh + oy >= 0) & (hh + oy < H) &
                 (ww + ox >= 0) & (ww + ox < W)).astype(np.float32)
        m[k] = valid[None, :]
    return jnp.asarray(np.tile(m, (1, 1, ips)))


# --------------------------------- wrapper -----------------------------------

def _grid_steps_for_device(batch):
    """>=2 parallel steps on dual-TensorCore chips (v4/v5p megacore, v7x);
    single lane-packed step on single-TC chips (v5e/v6e)."""
    kind = ""
    try:
        kind = jax.devices()[0].device_kind.lower()
    except Exception:
        pass
    dual_tc = any(t in kind for t in ("v7", "7x", "v4", "v5p"))
    return min(batch, 2) if dual_tc else 1


def triple_input_fwd(x, y, xk, params):
    """TripleInput forward, PyTorch NCHW convention."""
    return _triple_input_impl(x, y, xk, params,
                              grid_steps=_grid_steps_for_device(x.shape[0]))


@functools.partial(jax.jit, static_argnames=("grid_steps",))
def _triple_input_impl(x, y, xk, params, *, grid_steps):
    N, C, H, W = x.shape
    P = H * W
    assert P % 128 == 0, "H*W must be a multiple of 128 (lane tile)"
    F = params["down_b"].shape[0]
    Cp, Fp = _round_up(C, 8), _round_up(F, 8)
    C3p, F3p = 3 * Cp, 3 * Fp

    # Lane-pack `ips` images per grid step (cap slab width so VMEM stays small).
    G = max(1, min(grid_steps, N))
    ips = -(-N // G)
    ips = max(1, min(ips, max(1, 4096 // P)))
    G = -(-N // ips)
    Npad = G * ips
    Pg = ips * P

    # NCHW -> (G, 3*Cp, ips*P): channels on sublanes, all pixels on lanes.
    def prep(a):
        a = a.reshape(N, C, P).astype(jnp.float32)
        return jnp.pad(a, ((0, Npad - N), (0, Cp - C), (0, 0)))

    stacked = jnp.concatenate([prep(x), prep(y), prep(xk)], axis=1)  # (Npad,3Cp,P)
    stacked = stacked.reshape(G, ips, C3p, P).transpose(0, 2, 1, 3).reshape(G, C3p, Pg)

    masks = _tap_masks(H, W, C3p, ips)                               # (9, 3Cp, Pg)
    w1, w2, w3, bias = _pack_params(params, C, F, Cp, Fp)

    kernel = functools.partial(_triple_input_kernel,
                               img_w=W, Cp=Cp, Fp=Fp, F=F)

    def const(shape):
        return pl.BlockSpec(shape, lambda g, _s=len(shape): (0,) * _s)

    out = pl.pallas_call(
        kernel,
        out_shape=jax.ShapeDtypeStruct((G, F, Pg), x.dtype),
        grid_spec=pltpu.PrefetchScalarGridSpec(
            num_scalar_prefetch=0,
            grid=(G,),
            in_specs=[pl.BlockSpec((1, C3p, Pg), lambda g: (g, 0, 0)),
                      const(masks.shape), const(w1.shape), const(w2.shape),
                      const(w3.shape), const(bias.shape)],
            out_specs=pl.BlockSpec((1, F, Pg), lambda g: (g, 0, 0)),
            scratch_shapes=[pltpu.VMEM((F3p, Pg), jnp.float32)],
        ),
        compiler_params=pltpu.CompilerParams(
            dimension_semantics=("parallel",),
            vmem_limit_bytes=32 * 1024 * 1024),
    )(stacked, masks, w1, w2, w3, bias)

    out = out.reshape(G, F, ips, P).transpose(0, 2, 1, 3).reshape(Npad, F, P)
    return out[:N].reshape(N, F, H, W)


# ------------------------------ parameter init ------------------------------

def _init_conv(key, cin, cout, k=3, scale=0.1):
    kw_, kb = jax.random.split(key)
    w = scale * jax.random.normal(kw_, (k, k, cin, cout), jnp.float32)  # HWIO
    b = scale * jax.random.normal(kb, (cout,), jnp.float32)
    return w, b


def init_params(key, channel, num_feature):
    keys = jax.random.split(key, 7)
    params = {}
    for name, k2 in zip(("convlayer_x", "convlayer_y", "convlayer_xk"), keys[:3]):
        k_a, k_b = jax.random.split(k2)
        w1, b1 = _init_conv(k_a, channel, num_feature)
        w2, b2 = _init_conv(k_b, num_feature, channel)
        params[name] = {"w1": w1, "b1": b1, "w2": w2, "b2": b2}
    dw, db = _init_conv(keys[3], channel * 3, num_feature)
    params["down_w"] = dw
    params["down_b"] = db
    return params


# --------------------------------- reference ---------------------------------

def _ref_conv3x3(x_nhwc, w_hwio, b, apply_relu):
    out = jax.lax.conv_general_dilated(
        x_nhwc, w_hwio, window_strides=(1, 1), padding="SAME",
        dimension_numbers=("NHWC", "HWIO", "NHWC"))
    out = out + b
    return jnp.maximum(out, 0.0) if apply_relu else out


def _ref_forward(x, y, xk, params):
    to_nhwc = lambda a: jnp.transpose(a, (0, 2, 3, 1))

    def layer(a, p):
        a = _ref_conv3x3(a, p["w1"], p["b1"], True)
        return _ref_conv3x3(a, p["w2"], p["b2"], True)

    xs = layer(to_nhwc(x), params["convlayer_x"])
    ys = layer(to_nhwc(y), params["convlayer_y"])
    ks = layer(to_nhwc(xk), params["convlayer_xk"])
    cat = jnp.concatenate([xs, ys, ks], axis=-1)
    out = _ref_conv3x3(cat, params["down_w"], params["down_b"], False)
    return jnp.transpose(out, (0, 3, 1, 2))


if __name__ == "__main__":
    channel, num_feature, H, W, N = 4, 32, 16, 16, 2

    key = jax.random.PRNGKey(0)
    k_params, k_x, k_y, k_xk = jax.random.split(key, 4)
    params = init_params(k_params, channel, num_feature)

    # NCHW inputs, matching the PyTorch module's convention.
    x = jax.random.normal(k_x, (N, channel, H, W), jnp.float32)
    y = jax.random.normal(k_y, (N, channel, H, W), jnp.float32)
    xk = jax.random.normal(k_xk, (N, channel, H, W), jnp.float32)

    out = jax.block_until_ready(triple_input_fwd(x, y, xk, params))
    assert out.shape == (N, num_feature, H, W), out.shape

    ref = jax.block_until_ready(_ref_forward(x, y, xk, params))
    err = float(jnp.max(jnp.abs(out - ref)))
    # bf16 MXU operands (f32 accumulation) -> slightly looser tolerance vs f32 ref.
    assert jnp.allclose(out, ref, atol=5e-2, rtol=5e-2), f"max abs err = {err}"

    print("KERNEL_OK")
</pallas_src>

<mosaic_0001>
module attributes {stable_mosaic.version = 11 : i64} {
  func.func @_triple_input_kernel(%arg0: i32, %arg1: memref<1x24x512xf32, #tpu.memory_space<vmem>>, %arg2: memref<9x24x512xf32, #tpu.memory_space<vmem>>, %arg3: memref<3x3x32x24xbf16, #tpu.memory_space<vmem>>, %arg4: memref<9x24x96xbf16, #tpu.memory_space<vmem>>, %arg5: memref<9x32x24xbf16, #tpu.memory_space<vmem>>, %arg6: memref<152x1xf32, #tpu.memory_space<vmem>>, %arg7: memref<1x32x512xf32, #tpu.memory_space<vmem>>, %arg8: memref<96x512xf32, #tpu.memory_space<vmem>>) attributes {dimension_semantics = [#tpu.dimension_semantics<parallel>], iteration_bounds = array<i64: 1>, scalar_prefetch = 0 : i64, scratch_operands = 1 : i64, tpu.core_type = #tpu.core_type<tc>, window_params = [{transform_indices = @transform_0, window_bounds = array<i64: 1, 24, 512>}, {pipeline_mode = #tpu.pipeline_mode<synchronous>, transform_indices = @transform_1, window_bounds = array<i64: 9, 24, 512>}, {pipeline_mode = #tpu.pipeline_mode<synchronous>, transform_indices = @transform_2, window_bounds = array<i64: 3, 3, 32, 24>}, {pipeline_mode = #tpu.pipeline_mode<synchronous>, transform_indices = @transform_3, window_bounds = array<i64: 9, 24, 96>}, {pipeline_mode = #tpu.pipeline_mode<synchronous>, transform_indices = @transform_4, window_bounds = array<i64: 9, 32, 24>}, {pipeline_mode = #tpu.pipeline_mode<synchronous>, transform_indices = @transform_5, window_bounds = array<i64: 152, 1>}, {transform_indices = @transform_6, window_bounds = array<i64: 1, 32, 512>}]} {
    %c0 = arith.constant 0 : index
    %c0_0 = arith.constant 0 : index
    %c0_1 = arith.constant 0 : index
    %0 = vector.load %arg1[%c0, %c0_0, %c0_1] : memref<1x24x512xf32, #tpu.memory_space<vmem>>, vector<1x24x512xf32>
    %1 = vector.shape_cast %0 : vector<1x24x512xf32> to vector<24x512xf32>
    %2 = vector.extract_strided_slice %1 {offsets = [0, 0], sizes = [8, 512], strides = [1, 1]} : vector<24x512xf32> to vector<8x512xf32>
    %c17_i32 = arith.constant 17 : i32
    %3 = tpu.dynamic_rotate %2 by %c17_i32 dim 1 : vector<8x512xf32>, i32 -> vector<8x512xf32>
    %c0_2 = arith.constant 0 : index
    %c0_3 = arith.constant 0 : index
    %c0_4 = arith.constant 0 : index
    %4 = vector.load %arg2[%c0_2, %c0_3, %c0_4] : memref<9x24x512xf32, #tpu.memory_space<vmem>>, vector<1x24x512xf32>
    %5 = vector.shape_cast %4 : vector<1x24x512xf32> to vector<24x512xf32>
    %6 = vector.extract_strided_slice %5 {offsets = [0, 0], sizes = [8, 512], strides = [1, 1]} : vector<24x512xf32> to vector<8x512xf32>
    %7 = arith.mulf %3, %6 : vector<8x512xf32>
    %c16_i32 = arith.constant 16 : i32
    %8 = tpu.dynamic_rotate %2 by %c16_i32 dim 1 : vector<8x512xf32>, i32 -> vector<8x512xf32>
    %c1 = arith.constant 1 : index
    %c0_5 = arith.constant 0 : index
    %c0_6 = arith.constant 0 : index
    %9 = vector.load %arg2[%c1, %c0_5, %c0_6] : memref<9x24x512xf32, #tpu.memory_space<vmem>>, vector<1x24x512xf32>
    %10 = vector.shape_cast %9 : vector<1x24x512xf32> to vector<24x512xf32>
    %11 = vector.extract_strided_slice %10 {offsets = [0, 0], sizes = [8, 512], strides = [1, 1]} : vector<24x512xf32> to vector<8x512xf32>
    %12 = arith.mulf %8, %11 : vector<8x512xf32>
    %c15_i32 = arith.constant 15 : i32
    %13 = tpu.dynamic_rotate %2 by %c15_i32 dim 1 : vector<8x512xf32>, i32 -> vector<8x512xf32>
    %c2 = arith.constant 2 : index
    %c0_7 = arith.constant 0 : index
    %c0_8 = arith.constant 0 : index
    %14 = vector.load %arg2[%c2, %c0_7, %c0_8] : memref<9x24x512xf32, #tpu.memory_space<vmem>>, vector<1x24x512xf32>
    %15 = vector.shape_cast %14 : vector<1x24x512xf32> to vector<24x512xf32>
    %16 = vector.extract_strided_slice %15 {offsets = [0, 0], sizes = [8, 512], strides = [1, 1]} : vector<24x512xf32> to vector<8x512xf32>
    %17 = arith.mulf %13, %16 : vector<8x512xf32>
    %18 = tpu.concatenate %7, %12, %17 in 0 : vector<8x512xf32>, vector<8x512xf32>, vector<8x512xf32> -> vector<24x512xf32>
    %19 = arith.truncf %18 : vector<24x512xf32> to vector<24x512xbf16>
    %c0_9 = arith.constant 0 : index
    %c0_10 = arith.constant 0 : index
    %c0_11 = arith.constant 0 : index
    %c0_12 = arith.constant 0 : index
    %20 = vector.load %arg3[%c0_9, %c0_10, %c0_11, %c0_12] : memref<3x3x32x24xbf16, #tpu.memory_space<vmem>>, vector<1x1x32x24xbf16>
    %21 = vector.shape_cast %20 : vector<1x1x32x24xbf16> to vector<32x24xbf16>
    %cst = arith.constant dense<0.000000e+00> : vector<32x512xf32>
    %22 = tpu.matmul %21, %19, %cst {dimension_numbers = #tpu.dot_dimension_numbers<[1], [0], [0], [1], [0, 0, 1, 1], [], []>} : vector<32x24xbf16>, vector<24x512xbf16>, vector<32x512xf32> -> vector<32x512xf32>
    %c1_i32 = arith.constant 1 : i32
    %23 = tpu.dynamic_rotate %2 by %c1_i32 dim 1 : vector<8x512xf32>, i32 -> vector<8x512xf32>
    %c3 = arith.constant 3 : index
    %c0_13 = arith.constant 0 : index
    %c0_14 = arith.constant 0 : index
    %24 = vector.load %arg2[%c3, %c0_13, %c0_14] : memref<9x24x512xf32, #tpu.memory_space<vmem>>, vector<1x24x512xf32>
    %25 = vector.shape_cast %24 : vector<1x24x512xf32> to vector<24x512xf32>
    %26 = vector.extract_strided_slice %25 {offsets = [0, 0], sizes = [8, 512], strides = [1, 1]} : vector<24x512xf32> to vector<8x512xf32>
    %27 = arith.mulf %23, %26 : vector<8x512xf32>
    %c511_i32 = arith.constant 511 : i32
    %28 = tpu.dynamic_rotate %2 by %c511_i32 dim 1 : vector<8x512xf32>, i32 -> vector<8x512xf32>
    %c5 = arith.constant 5 : index
    %c0_15 = arith.constant 0 : index
    %c0_16 = arith.constant 0 : index
    %29 = vector.load %arg2[%c5, %c0_15, %c0_16] : memref<9x24x512xf32, #tpu.memory_space<vmem>>, vector<1x24x512xf32>
    %30 = vector.shape_cast %29 : vector<1x24x512xf32> to vector<24x512xf32>
    %31 = vector.extract_strided_slice %30 {offsets = [0, 0], sizes = [8, 512], strides = [1, 1]} : vector<24x512xf32> to vector<8x512xf32>
    %32 = arith.mulf %28, %31 : vector<8x512xf32>
    %33 = tpu.concatenate %27, %2, %32 in 0 : vector<8x512xf32>, vector<8x512xf32>, vector<8x512xf32> -> vector<24x512xf32>
    %34 = arith.truncf %33 : vector<24x512xf32> to vector<24x512xbf16>
    %c0_17 = arith.constant 0 : index
    %c1_18 = arith.constant 1 : index
    %c0_19 = arith.constant 0 : index
    %c0_20 = arith.constant 0 : index
    %35 = vector.load %arg3[%c0_17, %c1_18, %c0_19, %c0_20] : memref<3x3x32x24xbf16, #tpu.memory_space<vmem>>, vector<1x1x32x24xbf16>
    %36 = vector.shape_cast %35 : vector<1x1x32x24xbf16> to vector<32x24xbf16>
    %cst_21 = arith.constant dense<0.000000e+00> : vector<32x512xf32>
    %37 = tpu.matmul %36, %34, %cst_21 {dimension_numbers = #tpu.dot_dimension_numbers<[1], [0], [0], [1], [0, 0, 1, 1], [], []>} : vector<32x24xbf16>, vector<24x512xbf16>, vector<32x512xf32> -> vector<32x512xf32>
    %38 = arith.addf %22, %37 : vector<32x512xf32>
    %c497_i32 = arith.constant 497 : i32
    %39 = tpu.dynamic_rotate %2 by %c497_i32 dim 1 : vector<8x512xf32>, i32 -> vector<8x512xf32>
    %c6 = arith.constant 6 : index
    %c0_22 = arith.constant 0 : index
    %c0_23 = arith.constant 0 : index
    %40 = vector.load %arg2[%c6, %c0_22, %c0_23] : memref<9x24x512xf32, #tpu.memory_space<vmem>>, vector<1x24x512xf32>
    %41 = vector.shape_cast %40 : vector<1x24x512xf32> to vector<24x512xf32>
    %42 = vector.extract_strided_slice %41 {offsets = [0, 0], sizes = [8, 512], strides = [1, 1]} : vector<24x512xf32> to vector<8x512xf32>
    %43 = arith.mulf %39, %42 : vector<8x512xf32>
    %c496_i32 = arith.constant 496 : i32
    %44 = tpu.dynamic_rotate %2 by %c496_i32 dim 1 : vector<8x512xf32>, i32 -> vector<8x512xf32>
    %c7 = arith.constant 7 : index
    %c0_24 = arith.constant 0 : index
    %c0_25 = arith.constant 0 : index
    %45 = vector.load %arg2[%c7, %c0_24, %c0_25] : memref<9x24x512xf32, #tpu.memory_space<vmem>>, vector<1x24x512xf32>
    %46 = vector.shape_cast %45 : vector<1x24x512xf32> to vector<24x512xf32>
    %47 = vector.extract_strided_slice %46 {offsets = [0, 0], sizes = [8, 512], strides = [1, 1]} : vector<24x512xf32> to vector<8x512xf32>
    %48 = arith.mulf %44, %47 : vector<8x512xf32>
    %c495_i32 = arith.constant 495 : i32
    %49 = tpu.dynamic_rotate %2 by %c495_i32 dim 1 : vector<8x512xf32>, i32 -> vector<8x512xf32>
    %c8 = arith.constant 8 : index
    %c0_26 = arith.constant 0 : index
    %c0_27 = arith.constant 0 : index
    %50 = vector.load %arg2[%c8, %c0_26, %c0_27] : memref<9x24x512xf32, #tpu.memory_space<vmem>>, vector<1x24x512xf32>
    %51 = vector.shape_cast %50 : vector<1x24x512xf32> to vector<24x512xf32>
    %52 = vector.extract_strided_slice %51 {offsets = [0, 0], sizes = [8, 512], strides = [1, 1]} : vector<24x512xf32> to vector<8x512xf32>
    %53 = arith.mulf %49, %52 : vector<8x512xf32>
    %54 = tpu.concatenate %43, %48, %53 in 0 : vector<8x512xf32>, vector<8x512xf32>, vector<8x512xf32> -> vector<24x512xf32>
    %55 = arith.truncf %54 : vector<24x512xf32> to vector<24x512xbf16>
    %c0_28 = arith.constant 0 : index
    %c2_29 = arith.constant 2 : index
    %c0_30 = arith.constant 0 : index
    %c0_31 = arith.constant 0 : index
    %56 = vector.load %arg3[%c0_28, %c2_29, %c0_30, %c0_31] : memref<3x3x32x24xbf16, #tpu.memory_space<vmem>>, vector<1x1x32x24xbf16>
    %57 = vector.shape_cast %56 : vector<1x1x32x24xbf16> to vector<32x24xbf16>
    %cst_32 = arith.constant dense<0.000000e+00> : vector<32x512xf32>
    %58 = tpu.matmul %57, %55, %cst_32 {dimension_numbers = #tpu.dot_dimension_numbers<[1], [0], [0], [1], [0, 0, 1, 1], [], []>} : vector<32x24xbf16>, vector<24x512xbf16>, vector<32x512xf32> -> vector<32x512xf32>
    %59 = arith.addf %38, %58 : vector<32x512xf32>
    %c0_33 = arith.constant 0 : index
    %c0_34 = arith.constant 0 : index
    %60 = vector.load %arg6[%c0_33, %c0_34] : memref<152x1xf32, #tpu.memory_space<vmem>>, vector<32x1xf32>
    %61 = vector.broadcast %60 : vector<32x1xf32> to vector<32x512xf32>
    %62 = arith.addf %59, %61 : vector<32x512xf32>
    %cst_35 = arith.constant 0.000000e+00 : f32
    %63 = vector.broadcast %cst_35 : f32 to vector<32x512xf32>
    %64 = arith.maximumf %62, %63 : vector<32x512xf32>
    %c0_36 = arith.constant 0 : index
    %c0_37 = arith.constant 0 : index
    %65 = vector.load %arg8[%c0_36, %c0_37] : memref<96x512xf32, #tpu.memory_space<vmem>>, vector<32x512xf32>
    tpu.vector_store %arg8[%c0_36, %c0_37], %64 {strides = array<i32>} : memref<96x512xf32, #tpu.memory_space<vmem>>, vector<32x512xf32>,
    %66 = vector.extract_strided_slice %1 {offsets = [8, 0], sizes = [8, 512], strides = [1, 1]} : vector<24x512xf32> to vector<8x512xf32>
    %c17_i32_38 = arith.constant 17 : i32
    %67 = tpu.dynamic_rotate %66 by %c17_i32_38 dim 1 : vector<8x512xf32>, i32 -> vector<8x512xf32>
    %c0_39 = arith.constant 0 : index
    %c0_40 = arith.constant 0 : index
    %c0_41 = arith.constant 0 : index
    %68 = vector.load %arg2[%c0_39, %c0_40, %c0_41] : memref<9x24x512xf32, #tpu.memory_space<vmem>>, vector<1x24x512xf32>
    %69 = vector.shape_cast %68 : vector<1x24x512xf32> to vector<24x512xf32>
    %70 = vector.extract_strided_slice %69 {offsets = [0, 0], sizes = [8, 512], strides = [1, 1]} : vector<24x512xf32> to vector<8x512xf32>
    %71 = arith.mulf %67, %70 : vector<8x512xf32>
    %c16_i32_42 = arith.constant 16 : i32
    %72 = tpu.dynamic_rotate %66 by %c16_i32_42 dim 1 : vector<8x512xf32>, i32 -> vector<8x512xf32>
    %c1_43 = arith.constant 1 : index
    %c0_44 = arith.constant 0 : index
    %c0_45 = arith.constant 0 : index
    %73 = vector.load %arg2[%c1_43, %c0_44, %c0_45] : memref<9x24x512xf32, #tpu.memory_space<vmem>>, vector<1x24x512xf32>
    %74 = vector.shape_cast %73 : vector<1x24x512xf32> to vector<24x512xf32>
    %75 = vector.extract_strided_slice %74 {offsets = [0, 0], sizes = [8, 512], strides = [1, 1]} : vector<24x512xf32> to vector<8x512xf32>
    %76 = arith.mulf %72, %75 : vector<8x512xf32>
    %c15_i32_46 = arith.constant 15 : i32
    %77 = tpu.dynamic_rotate %66 by %c15_i32_46 dim 1 : vector<8x512xf32>, i32 -> vector<8x512xf32>
    %c2_47 = arith.constant 2 : index
    %c0_48 = arith.constant 0 : index
    %c0_49 = arith.constant 0 : index
    %78 = vector.load %arg2[%c2_47, %c0_48, %c0_49] : memref<9x24x512xf32, #tpu.memory_space<vmem>>, vector<1x24x512xf32>
    %79 = vector.shape_cast %78 : vector<1x24x512xf32> to vector<24x512xf32>
    %80 = vector.extract_strided_slice %79 {offsets = [0, 0], sizes = [8, 512], strides = [1, 1]} : vector<24x512xf32> to vector<8x512xf32>
    %81 = arith.mulf %77, %80 : vector<8x512xf32>
    %82 = tpu.concatenate %71, %76, %81 in 0 : vector<8x512xf32>, vector<8x512xf32>, vector<8x512xf32> -> vector<24x512xf32>
    %83 = arith.truncf %82 : vector<24x512xf32> to vector<24x512xbf16>
    %c1_50 = arith.constant 1 : index
    %c0_51 = arith.constant 0 : index
    %c0_52 = arith.constant 0 : index
    %c0_53 = arith.constant 0 : index
    %84 = vector.load %arg3[%c1_50, %c0_51, %c0_52, %c0_53] : memref<3x3x32x24xbf16, #tpu.memory_space<vmem>>, vector<1x1x32x24xbf16>
    %85 = vector.shape_cast %84 : vector<1x1x32x24xbf16> to vector<32x24xbf16>
    %cst_54 = arith.constant dense<0.000000e+00> : vector<32x512xf32>
    %86 = tpu.matmul %85, %83, %cst_54 {dimension_numbers = #tpu.dot_dimension_numbers<[1], [0], [0], [1], [0, 0, 1, 1], [], []>} : vector<32x24xbf16>, vector<24x512xbf16>, vector<32x512xf32> -> vector<32x512xf32>
    %c1_i32_55 = arith.constant 1 : i32
    %87 = tpu.dynamic_rotate %66 by %c1_i32_55 dim 1 : vector<8x512xf32>, i32 -> vector<8x512xf32>
    %c3_56 = arith.constant 3 : index
    %c0_57 = arith.constant 0 : index
    %c0_58 = arith.constant 0 : index
    %88 = vector.load %arg2[%c3_56, %c0_57, %c0_58] : memref<9x24x512xf32, #tpu.memory_space<vmem>>, vector<1x24x512xf32>
    %89 = vector.shape_cast %88 : vector<1x24x512xf32> to vector<24x512xf32>
    %90 = vector.extract_strided_slice %89 {offsets = [0, 0], sizes = [8, 512], strides = [1, 1]} : vector<24x512xf32> to vector<8x512xf32>
    %91 = arith.mulf %87, %90 : vector<8x512xf32>
    %c511_i32_59 = arith.constant 511 : i32
    %92 = tpu.dynamic_rotate %66 by %c511_i32_59 dim 1 : vector<8x512xf32>, i32 -> vector<8x512xf32>
    %c5_60 = arith.constant 5 : index
    %c0_61 = arith.constant 0 : index
    %c0_62 = arith.constant 0 : index
    %93 = vector.load %arg2[%c5_60, %c0_61, %c0_62] : memref<9x24x512xf32, #tpu.memory_space<vmem>>, vector<1x24x512xf32>
    %94 = vector.shape_cast %93 : vector<1x24x512xf32> to vector<24x512xf32>
    %95 = vector.extract_strided_slice %94 {offsets = [0, 0], sizes = [8, 512], strides = [1, 1]} : vector<24x512xf32> to vector<8x512xf32>
    %96 = arith.mulf %92, %95 : vector<8x512xf32>
    %97 = tpu.concatenate %91, %66, %96 in 0 : vector<8x512xf32>, vector<8x512xf32>, vector<8x512xf32> -> vector<24x512xf32>
    %98 = arith.truncf %97 : vector<24x512xf32> to vector<24x512xbf16>
    %c1_63 = arith.constant 1 : index
    %c1_64 = arith.constant 1 : index
    %c0_65 = arith.constant 0 : index
    %c0_66 = arith.constant 0 : index
    %99 = vector.load %arg3[%c1_63, %c1_64, %c0_65, %c0_66] : memref<3x3x32x24xbf16, #tpu.memory_space<vmem>>, vector<1x1x32x24xbf16>
    %100 = vector.shape_cast %99 : vector<1x1x32x24xbf16> to vector<32x24xbf16>
    %cst_67 = arith.constant dense<0.000000e+00> : vector<32x512xf32>
    %101 = tpu.matmul %100, %98, %cst_67 {dimension_numbers = #tpu.dot_dimension_numbers<[1], [0], [0], [1], [0, 0, 1, 1], [], []>} : vector<32x24xbf16>, vector<24x512xbf16>, vector<32x512xf32> -> vector<32x512xf32>
    %102 = arith.addf %86, %101 : vector<32x512xf32>
    %c497_i32_68 = arith.constant 497 : i32
    %103 = tpu.dynamic_rotate %66 by %c497_i32_68 dim 1 : vector<8x512xf32>, i32 -> vector<8x512xf32>
    %c6_69 = arith.constant 6 : index
    %c0_70 = arith.constant 0 : index
    %c0_71 = arith.constant 0 : index
    %104 = vector.load %arg2[%c6_69, %c0_70, %c0_71] : memref<9x24x512xf32, #tpu.memory_space<vmem>>, vector<1x24x512xf32>
    %105 = vector.shape_cast %104 : vector<1x24x512xf32> to vector<24x512xf32>
    %106 = vector.extract_strided_slice %105 {offsets = [0, 0], sizes = [8, 512], strides = [1, 1]} : vector<24x512xf32> to vector<8x512xf32>
    %107 = arith.mulf %103, %106 : vector<8x512xf32>
    %c496_i32_72 = arith.constant 496 : i32
    %108 = tpu.dynamic_rotate %66 by %c496_i32_72 dim 1 : vector<8x512xf32>, i32 -> vector<8x512xf32>
    %c7_73 = arith.constant 7 : index
    %c0_74 = arith.constant 0 : index
    %c0_75 = arith.constant 0 : index
    %109 = vector.load %arg2[%c7_73, %c0_74, %c0_75] : memref<9x24x512xf32, #tpu.memory_space<vmem>>, vector<1x24x512xf32>
    %110 = vector.shape_cast %109 : vector<1x24x512xf32> to vector<24x512xf32>
    %111 = vector.extract_strided_slice %110 {offsets = [0, 0], sizes = [8, 512], strides = [1, 1]} : vector<24x512xf32> to vector<8x512xf32>
    %112 = arith.mulf %108, %111 : vector<8x512xf32>
    %c495_i32_76 = arith.constant 495 : i32
    %113 = tpu.dynamic_rotate %66 by %c495_i32_76 dim 1 : vector<8x512xf32>, i32 -> vector<8x512xf32>
    %c8_77 = arith.constant 8 : index
    %c0_78 = arith.constant 0 : index
    %c0_79 = arith.constant 0 : index
    %114 = vector.load %arg2[%c8_77, %c0_78, %c0_79] : memref<9x24x512xf32, #tpu.memory_space<vmem>>, vector<1x24x512xf32>
    %115 = vector.shape_cast %114 : vector<1x24x512xf32> to vector<24x512xf32>
    %116 = vector.extract_strided_slice %115 {offsets = [0, 0], sizes = [8, 512], strides = [1, 1]} : vector<24x512xf32> to vector<8x512xf32>
    %117 = arith.mulf %113, %116 : vector<8x512xf32>
    %118 = tpu.concatenate %107, %112, %117 in 0 : vector<8x512xf32>, vector<8x512xf32>, vector<8x512xf32> -> vector<24x512xf32>
    %119 = arith.truncf %118 : vector<24x512xf32> to vector<24x512xbf16>
    %c1_80 = arith.constant 1 : index
    %c2_81 = arith.constant 2 : index
    %c0_82 = arith.constant 0 : index
    %c0_83 = arith.constant 0 : index
    %120 = vector.load %arg3[%c1_80, %c2_81, %c0_82, %c0_83] : memref<3x3x32x24xbf16, #tpu.memory_space<vmem>>, vector<1x1x32x24xbf16>
    %121 = vector.shape_cast %120 : vector<1x1x32x24xbf16> to vector<32x24xbf16>
    %cst_84 = arith.constant dense<0.000000e+00> : vector<32x512xf32>
    %122 = tpu.matmul %121, %119, %cst_84 {dimension_numbers = #tpu.dot_dimension_numbers<[1], [0], [0], [1], [0, 0, 1, 1], [], []>} : vector<32x24xbf16>, vector<24x512xbf16>, vector<32x512xf32> -> vector<32x512xf32>
    %123 = arith.addf %102, %122 : vector<32x512xf32>
    %c32 = arith.constant 32 : index
    %c0_85 = arith.constant 0 : index
    %124 = vector.load %arg6[%c32, %c0_85] : memref<152x1xf32, #tpu.memory_space<vmem>>, vector<32x1xf32>
    %125 = vector.broadcast %124 : vector<32x1xf32> to vector<32x512xf32>
    %126 = arith.addf %123, %125 : vector<32x512xf32>
    %cst_86 = arith.constant 0.000000e+00 : f32
    %127 = vector.broadcast %cst_86 : f32 to vector<32x512xf32>
    %128 = arith.maximumf %126, %127 : vector<32x512xf32>
    %c32_87 = arith.constant 32 : index
    %c0_88 = arith.constant 0 : index
    %129 = vector.load %arg8[%c32_87, %c0_88] : memref<96x512xf32, #tpu.memory_space<vmem>>, vector<32x512xf32>
    tpu.vector_store %arg8[%c32_87, %c0_88], %128 {strides = array<i32>} : memref<96x512xf32, #tpu.memory_space<vmem>>, vector<32x512xf32>,
    %130 = vector.extract_strided_slice %1 {offsets = [16, 0], sizes = [8, 512], strides = [1, 1]} : vector<24x512xf32> to vector<8x512xf32>
    %c17_i32_89 = arith.constant 17 : i32
    %131 = tpu.dynamic_rotate %130 by %c17_i32_89 dim 1 : vector<8x512xf32>, i32 -> vector<8x512xf32>
    %c0_90 = arith.constant 0 : index
    %c0_91 = arith.constant 0 : index
    %c0_92 = arith.constant 0 : index
    %132 = vector.load %arg2[%c0_90, %c0_91, %c0_92] : memref<9x24x512xf32, #tpu.memory_space<vmem>>, vector<1x24x512xf32>
    %133 = vector.shape_cast %132 : vector<1x24x512xf32> to vector<24x512xf32>
    %134 = vector.extract_strided_slice %133 {offsets = [0, 0], sizes = [8, 512], strides = [1, 1]} : vector<24x512xf32> to vector<8x512xf32>
    %135 = arith.mulf %131, %134 : vector<8x512xf32>
    %c16_i32_93 = arith.constant 16 : i32
    %136 = tpu.dynamic_rotate %130 by %c16_i32_93 dim 1 : vector<8x512xf32>, i32 -> vector<8x512xf32>
    %c1_94 = arith.constant 1 : index
    %c0_95 = arith.constant 0 : index
    %c0_96 = arith.constant 0 : index
    %137 = vector.load %arg2[%c1_94, %c0_95, %c0_96] : memref<9x24x512xf32, #tpu.memory_space<vmem>>, vector<1x24x512xf32>
    %138 = vector.shape_cast %137 : vector<1x24x512xf32> to vector<24x512xf32>
    %139 = vector.extract_strided_slice %138 {offsets = [0, 0], sizes = [8, 512], strides = [1, 1]} : vector<24x512xf32> to vector<8x512xf32>
    %140 = arith.mulf %136, %139 : vector<8x512xf32>
    %c15_i32_97 = arith.constant 15 : i32
    %141 = tpu.dynamic_rotate %130 by %c15_i32_97 dim 1 : vector<8x512xf32>, i32 -> vector<8x512xf32>
    %c2_98 = arith.constant 2 : index
    %c0_99 = arith.constant 0 : index
    %c0_100 = arith.constant 0 : index
    %142 = vector.load %arg2[%c2_98, %c0_99, %c0_100] : memref<9x24x512xf32, #tpu.memory_space<vmem>>, vector<1x24x512xf32>
    %143 = vector.shape_cast %142 : vector<1x24x512xf32> to vector<24x512xf32>
    %144 = vector.extract_strided_slice %143 {offsets = [0, 0], sizes = [8, 512], strides = [1, 1]} : vector<24x512xf32> to vector<8x512xf32>
    %145 = arith.mulf %141, %144 : vector<8x512xf32>
    %146 = tpu.concatenate %135, %140, %145 in 0 : vector<8x512xf32>, vector<8x512xf32>, vector<8x512xf32> -> vector<24x512xf32>
    %147 = arith.truncf %146 : vector<24x512xf32> to vector<24x512xbf16>
    %c2_101 = arith.constant 2 : index
    %c0_102 = arith.constant 0 : index
    %c0_103 = arith.constant 0 : index
    %c0_104 = arith.constant 0 : index
    %148 = vector.load %arg3[%c2_101, %c0_102, %c0_103, %c0_104] : memref<3x3x32x24xbf16, #tpu.memory_space<vmem>>, vector<1x1x32x24xbf16>
    %149 = vector.shape_cast %148 : vector<1x1x32x24xbf16> to vector<32x24xbf16>
    %cst_105 = arith.constant dense<0.000000e+00> : vector<32x512xf32>
    %150 = tpu.matmul %149, %147, %cst_105 {dimension_numbers = #tpu.dot_dimension_numbers<[1], [0], [0], [1], [0, 0, 1, 1], [], []>} : vector<32x24xbf16>, vector<24x512xbf16>, vector<32x512xf32> -> vector<32x512xf32>
    %c1_i32_106 = arith.constant 1 : i32
    %151 = tpu.dynamic_rotate %130 by %c1_i32_106 dim 1 : vector<8x512xf32>, i32 -> vector<8x512xf32>
    %c3_107 = arith.constant 3 : index
    %c0_108 = arith.constant 0 : index
    %c0_109 = arith.constant 0 : index
    %152 = vector.load %arg2[%c3_107, %c0_108, %c0_109] : memref<9x24x512xf32, #tpu.memory_space<vmem>>, vector<1x24x512xf32>
    %153 = vector.shape_cast %152 : vector<1x24x512xf32> to vector<24x512xf32>
    %154 = vector.extract_strided_slice %153 {offsets = [0, 0], sizes = [8, 512], strides = [1, 1]} : vector<24x512xf32> to vector<8x512xf32>
    %155 = arith.mulf %151, %154 : vector<8x512xf32>
    %c511_i32_110 = arith.constant 511 : i32
    %156 = tpu.dynamic_rotate %130 by %c511_i32_110 dim 1 : vector<8x512xf32>, i32 -> vector<8x512xf32>
    %c5_111 = arith.constant 5 : index
    %c0_112 = arith.constant 0 : index
    %c0_113 = arith.constant 0 : index
    %157 = vector.load %arg2[%c5_111, %c0_112, %c0_113] : memref<9x24x512xf32, #tpu.memory_space<vmem>>, vector<1x24x512xf32>
    %158 = vector.shape_cast %157 : vector<1x24x512xf32> to vector<24x512xf32>
    %159 = vector.extract_strided_slice %158 {offsets = [0, 0], sizes = [8, 512], strides = [1, 1]} : vector<24x512xf32> to vector<8x512xf32>
    %160 = arith.mulf %156, %159 : vector<8x512xf32>
    %161 = tpu.concatenate %155, %130, %160 in 0 : vector<8x512xf32>, vector<8x512xf32>, vector<8x512xf32> -> vector<24x512xf32>
    %162 = arith.truncf %161 : vector<24x512xf32> to vector<24x512xbf16>
    %c2_114 = arith.constant 2 : index
    %c1_115 = arith.constant 1 : index
    %c0_116 = arith.constant 0 : index
    %c0_117 = arith.constant 0 : index
    %163 = vector.load %arg3[%c2_114, %c1_115, %c0_116, %c0_117] : memref<3x3x32x24xbf16, #tpu.memory_space<vmem>>, vector<1x1x32x24xbf16>
    %164 = vector.shape_cast %163 : vector<1x1x32x24xbf16> to vector<32x24xbf16>
    %cst_118 = arith.constant dense<0.000000e+00> : vector<32x512xf32>
    %165 = tpu.matmul %164, %162, %cst_118 {dimension_numbers = #tpu.dot_dimension_numbers<[1], [0], [0], [1], [0, 0, 1, 1], [], []>} : vector<32x24xbf16>, vector<24x512xbf16>, vector<32x512xf32> -> vector<32x512xf32>
    %166 = arith.addf %150, %165 : vector<32x512xf32>
    %c497_i32_119 = arith.constant 497 : i32
    %167 = tpu.dynamic_rotate %130 by %c497_i32_119 dim 1 : vector<8x512xf32>, i32 -> vector<8x512xf32>
    %c6_120 = arith.constant 6 : index
    %c0_121 = arith.constant 0 : index
    %c0_122 = arith.constant 0 : index
    %168 = vector.load %arg2[%c6_120, %c0_121, %c0_122] : memref<9x24x512xf32, #tpu.memory_space<vmem>>, vector<1x24x512xf32>
    %169 = vector.shape_cast %168 : vector<1x24x512xf32> to vector<24x512xf32>
    %170 = vector.extract_strided_slice %169 {offsets = [0, 0], sizes = [8, 512], strides = [1, 1]} : vector<24x512xf32> to vector<8x512xf32>
    %171 = arith.mulf %167, %170 : vector<8x512xf32>
    %c496_i32_123 = arith.constant 496 : i32
    %172 = tpu.dynamic_rotate %130 by %c496_i32_123 dim 1 : vector<8x512xf32>, i32 -> vector<8x512xf32>
    %c7_124 = arith.constant 7 : index
    %c0_125 = arith.constant 0 : index
    %c0_126 = arith.constant 0 : index
    %173 = vector.load %arg2[%c7_124, %c0_125, %c0_126] : memref<9x24x512xf32, #tpu.memory_space<vmem>>, vector<1x24x512xf32>
    %174 = vector.shape_cast %173 : vector<1x24x512xf32> to vector<24x512xf32>
    %175 = vector.extract_strided_slice %174 {offsets = [0, 0], sizes = [8, 512], strides = [1, 1]} : vector<24x512xf32> to vector<8x512xf32>
    %176 = arith.mulf %172, %175 : vector<8x512xf32>
    %c495_i32_127 = arith.constant 495 : i32
    %177 = tpu.dynamic_rotate %130 by %c495_i32_127 dim 1 : vector<8x512xf32>, i32 -> vector<8x512xf32>
    %c8_128 = arith.constant 8 : index
    %c0_129 = arith.constant 0 : index
    %c0_130 = arith.constant 0 : index
    %178 = vector.load %arg2[%c8_128, %c0_129, %c0_130] : memref<9x24x512xf32, #tpu.memory_space<vmem>>, vector<1x24x512xf32>
    %179 = vector.shape_cast %178 : vector<1x24x512xf32> to vector<24x512xf32>
    %180 = vector.extract_strided_slice %179 {offsets = [0, 0], sizes = [8, 512], strides = [1, 1]} : vector<24x512xf32> to vector<8x512xf32>
    %181 = arith.mulf %177, %180 : vector<8x512xf32>
    %182 = tpu.concatenate %171, %176, %181 in 0 : vector<8x512xf32>, vector<8x512xf32>, vector<8x512xf32> -> vector<24x512xf32>
    %183 = arith.truncf %182 : vector<24x512xf32> to vector<24x512xbf16>
    %c2_131 = arith.constant 2 : index
    %c2_132 = arith.constant 2 : index
    %c0_133 = arith.constant 0 : index
    %c0_134 = arith.constant 0 : index
    %184 = vector.load %arg3[%c2_131, %c2_132, %c0_133, %c0_134] : memref<3x3x32x24xbf16, #tpu.memory_space<vmem>>, vector<1x1x32x24xbf16>
    %185 = vector.shape_cast %184 : vector<1x1x32x24xbf16> to vector<32x24xbf16>
    %cst_135 = arith.constant dense<0.000000e+00> : vector<32x512xf32>
    %186 = tpu.matmul %185, %183, %cst_135 {dimension_numbers = #tpu.dot_dimension_numbers<[1], [0], [0], [1], [0, 0, 1, 1], [], []>} : vector<32x24xbf16>, vector<24x512xbf16>, vector<32x512xf32> -> vector<32x512xf32>
    %187 = arith.addf %166, %186 : vector<32x512xf32>
    %c64 = arith.constant 64 : index
    %c0_136 = arith.constant 0 : index
    %188 = vector.load %arg6[%c64, %c0_136] : memref<152x1xf32, #tpu.memory_space<vmem>>, vector<32x1xf32>
    %189 = vector.broadcast %188 : vector<32x1xf32> to vector<32x512xf32>
    %190 = arith.addf %187, %189 : vector<32x512xf32>
    %cst_137 = arith.constant 0.000000e+00 : f32
    %191 = vector.broadcast %cst_137 : f32 to vector<32x512xf32>
    %192 = arith.maximumf %190, %191 : vector<32x512xf32>
    %c64_138 = arith.constant 64 : index
    %c0_139 = arith.constant 0 : index
    %193 = vector.load %arg8[%c64_138, %c0_139] : memref<96x512xf32, #tpu.memory_space<vmem>>, vector<32x512xf32>
    tpu.vector_store %arg8[%c64_138, %c0_139], %192 {strides = array<i32>} : memref<96x512xf32, #tpu.memory_space<vmem>>, vector<32x512xf32>,
    %c0_140 = arith.constant 0 : index
    %c0_141 = arith.constant 0 : index
    %194 = vector.load %arg8[%c0_140, %c0_141] : memref<96x512xf32, #tpu.memory_space<vmem>>, vector<96x512xf32>
    %c17_i32_142 = arith.constant 17 : i32
    %195 = tpu.dynamic_rotate %194 by %c17_i32_142 dim 1 : vector<96x512xf32>, i32 -> vector<96x512xf32>
    %c0_143 = arith.constant 0 : index
    %c0_144 = arith.constant 0 : index
    %c0_145 = arith.constant 0 : index
    %196 = vector.load %arg4[%c0_143, %c0_144, %c0_145] : memref<9x24x96xbf16, #tpu.memory_space<vmem>>, vector<1x24x96xbf16>
    %197 = vector.shape_cast %196 : vector<1x24x96xbf16> to vector<24x96xbf16>
    %198 = arith.truncf %195 : vector<96x512xf32> to vector<96x512xbf16>
    %cst_146 = arith.constant dense<0.000000e+00> : vector<24x512xf32>
    %199 = tpu.matmul %197, %198, %cst_146 {dimension_numbers = #tpu.dot_dimension_numbers<[1], [0], [0], [1], [0, 0, 1, 1], [], []>} : vector<24x96xbf16>, vector<96x512xbf16>, vector<24x512xf32> -> vector<24x512xf32>
    %c0_147 = arith.constant 0 : index
    %c0_148 = arith.constant 0 : index
    %c0_149 = arith.constant 0 : index
    %200 = vector.load %arg2[%c0_147, %c0_148, %c0_149] : memref<9x24x512xf32, #tpu.memory_space<vmem>>, vector<1x24x512xf32>
    %201 = vector.shape_cast %200 : vector<1x24x512xf32> to vector<24x512xf32>
    %202 = arith.mulf %199, %201 : vector<24x512xf32>
    %c0_150 = arith.constant 0 : index
    %c0_151 = arith.constant 0 : index
    %203 = vector.load %arg8[%c0_150, %c0_151] : memref<96x512xf32, #tpu.memory_space<vmem>>, vector<96x512xf32>
    %c16_i32_152 = arith.constant 16 : i32
    %204 = tpu.dynamic_rotate %203 by %c16_i32_152 dim 1 : vector<96x512xf32>, i32 -> vector<96x512xf32>
    %c1_153 = arith.constant 1 : index
    %c0_154 = arith.constant 0 : index
    %c0_155 = arith.constant 0 : index
    %205 = vector.load %arg4[%c1_153, %c0_154, %c0_155] : memref<9x24x96xbf16, #tpu.memory_space<vmem>>, vector<1x24x96xbf16>
    %206 = vector.shape_cast %205 : vector<1x24x96xbf16> to vector<24x96xbf16>
    %207 = arith.truncf %204 : vector<96x512xf32> to vector<96x512xbf16>
    %cst_156 = arith.constant dense<0.000000e+00> : vector<24x512xf32>
    %208 = tpu.matmul %206, %207, %cst_156 {dimension_numbers = #tpu.dot_dimension_numbers<[1], [0], [0], [1], [0, 0, 1, 1], [], []>} : vector<24x96xbf16>, vector<96x512xbf16>, vector<24x512xf32> -> vector<24x512xf32>
    %c1_157 = arith.constant 1 : index
    %c0_158 = arith.constant 0 : index
    %c0_159 = arith.constant 0 : index
    %209 = vector.load %arg2[%c1_157, %c0_158, %c0_159] : memref<9x24x512xf32, #tpu.memory_space<vmem>>, vector<1x24x512xf32>
    %210 = vector.shape_cast %209 : vector<1x24x512xf32> to vector<24x512xf32>
    %211 = arith.mulf %208, %210 : vector<24x512xf32>
    %212 = arith.addf %202, %211 : vector<24x512xf32>
    %c0_160 = arith.constant 0 : index
    %c0_161 = arith.constant 0 : index
    %213 = vector.load %arg8[%c0_160, %c0_161] : memref<96x512xf32, #tpu.memory_space<vmem>>, vector<96x512xf32>
    %c15_i32_162 = arith.constant 15 : i32
    %214 = tpu.dynamic_rotate %213 by %c15_i32_162 dim 1 : vector<96x512xf32>, i32 -> vector<96x512xf32>
    %c2_163 = arith.constant 2 : index
    %c0_164 = arith.constant 0 : index
    %c0_165 = arith.constant 0 : index
    %215 = vector.load %arg4[%c2_163, %c0_164, %c0_165] : memref<9x24x96xbf16, #tpu.memory_space<vmem>>, vector<1x24x96xbf16>
    %216 = vector.shape_cast %215 : vector<1x24x96xbf16> to vector<24x96xbf16>
    %217 = arith.truncf %214 : vector<96x512xf32> to vector<96x512xbf16>
    %cst_166 = arith.constant dense<0.000000e+00> : vector<24x512xf32>
    %218 = tpu.matmul %216, %217, %cst_166 {dimension_numbers = #tpu.dot_dimension_numbers<[1], [0], [0], [1], [0, 0, 1, 1], [], []>} : vector<24x96xbf16>, vector<96x512xbf16>, vector<24x512xf32> -> vector<24x512xf32>
    %c2_167 = arith.constant 2 : index
    %c0_168 = arith.constant 0 : index
    %c0_169 = arith.constant 0 : index
    %219 = vector.load %arg2[%c2_167, %c0_168, %c0_169] : memref<9x24x512xf32, #tpu.memory_space<vmem>>, vector<1x24x512xf32>
    %220 = vector.shape_cast %219 : vector<1x24x512xf32> to vector<24x512xf32>
    %221 = arith.mulf %218, %220 : vector<24x512xf32>
    %222 = arith.addf %212, %221 : vector<24x512xf32>
    %c0_170 = arith.constant 0 : index
    %c0_171 = arith.constant 0 : index
    %223 = vector.load %arg8[%c0_170, %c0_171] : memref<96x512xf32, #tpu.memory_space<vmem>>, vector<96x512xf32>
    %c1_i32_172 = arith.constant 1 : i32
    %224 = tpu.dynamic_rotate %223 by %c1_i32_172 dim 1 : vector<96x512xf32>, i32 -> vector<96x512xf32>
    %c3_173 = arith.constant 3 : index
    %c0_174 = arith.constant 0 : index
    %c0_175 = arith.constant 0 : index
    %225 = vector.load %arg4[%c3_173, %c0_174, %c0_175] : memref<9x24x96xbf16, #tpu.memory_space<vmem>>, vector<1x24x96xbf16>
    %226 = vector.shape_cast %225 : vector<1x24x96xbf16> to vector<24x96xbf16>
    %227 = arith.truncf %224 : vector<96x512xf32> to vector<96x512xbf16>
    %cst_176 = arith.constant dense<0.000000e+00> : vector<24x512xf32>
    %228 = tpu.matmul %226, %227, %cst_176 {dimension_numbers = #tpu.dot_dimension_numbers<[1], [0], [0], [1], [0, 0, 1, 1], [], []>} : vector<24x96xbf16>, vector<96x512xbf16>, vector<24x512xf32> -> vector<24x512xf32>
    %c3_177 = arith.constant 3 : index
    %c0_178 = arith.constant 0 : index
    %c0_179 = arith.constant 0 : index
    %229 = vector.load %arg2[%c3_177, %c0_178, %c0_179] : memref<9x24x512xf32, #tpu.memory_space<vmem>>, vector<1x24x512xf32>
    %230 = vector.shape_cast %229 : vector<1x24x512xf32> to vector<24x512xf32>
    %231 = arith.mulf %228, %230 : vector<24x512xf32>
    %232 = arith.addf %222, %231 : vector<24x512xf32>
    %c0_180 = arith.constant 0 : index
    %c0_181 = arith.constant 0 : index
    %233 = vector.load %arg8[%c0_180, %c0_181] : memref<96x512xf32, #tpu.memory_space<vmem>>, vector<96x512xf32>
    %c4 = arith.constant 4 : index
    %c0_182 = arith.constant 0 : index
    %c0_183 = arith.constant 0 : index
    %234 = vector.load %arg4[%c4, %c0_182, %c0_183] : memref<9x24x96xbf16, #tpu.memory_space<vmem>>, vector<1x24x96xbf16>
    %235 = vector.shape_cast %234 : vector<1x24x96xbf16> to vector<24x96xbf16>
    %236 = arith.truncf %233 : vector<96x512xf32> to vector<96x512xbf16>
    %cst_184 = arith.constant dense<0.000000e+00> : vector<24x512xf32>
    %237 = tpu.matmul %235, %236, %cst_184 {dimension_numbers = #tpu.dot_dimension_numbers<[1], [0], [0], [1], [0, 0, 1, 1], [], []>} : vector<24x96xbf16>, vector<96x512xbf16>, vector<24x512xf32> -> vector<24x512xf32>
    %238 = arith.addf %232, %237 : vector<24x512xf32>
    %c0_185 = arith.constant 0 : index
    %c0_186 = arith.constant 0 : index
    %239 = vector.load %arg8[%c0_185, %c0_186] : memref<96x512xf32, #tpu.memory_space<vmem>>, vector<96x512xf32>
    %c511_i32_187 = arith.constant 511 : i32
    %240 = tpu.dynamic_rotate %239 by %c511_i32_187 dim 1 : vector<96x512xf32>, i32 -> vector<96x512xf32>
    %c5_188 = arith.constant 5 : index
    %c0_189 = arith.constant 0 : index
    %c0_190 = arith.constant 0 : index
    %241 = vector.load %arg4[%c5_188, %c0_189, %c0_190] : memref<9x24x96xbf16, #tpu.memory_space<vmem>>, vector<1x24x96xbf16>
    %242 = vector.shape_cast %241 : vector<1x24x96xbf16> to vector<24x96xbf16>
    %243 = arith.truncf %240 : vector<96x512xf32> to vector<96x512xbf16>
    %cst_191 = arith.constant dense<0.000000e+00> : vector<24x512xf32>
    %244 = tpu.matmul %242, %243, %cst_191 {dimension_numbers = #tpu.dot_dimension_numbers<[1], [0], [0], [1], [0, 0, 1, 1], [], []>} : vector<24x96xbf16>, vector<96x512xbf16>, vector<24x512xf32> -> vector<24x512xf32>
    %c5_192 = arith.constant 5 : index
    %c0_193 = arith.constant 0 : index
    %c0_194 = arith.constant 0 : index
    %245 = vector.load %arg2[%c5_192, %c0_193, %c0_194] : memref<9x24x512xf32, #tpu.memory_space<vmem>>, vector<1x24x512xf32>
    %246 = vector.shape_cast %245 : vector<1x24x512xf32> to vector<24x512xf32>
    %247 = arith.mulf %244, %246 : vector<24x512xf32>
    %248 = arith.addf %238, %247 : vector<24x512xf32>
    %c0_195 = arith.constant 0 : index
    %c0_196 = arith.constant 0 : index
    %249 = vector.load %arg8[%c0_195, %c0_196] : memref<96x512xf32, #tpu.memory_space<vmem>>, vector<96x512xf32>
    %c497_i32_197 = arith.constant 497 : i32
    %250 = tpu.dynamic_rotate %249 by %c497_i32_197 dim 1 : vector<96x512xf32>, i32 -> vector<96x512xf32>
    %c6_198 = arith.constant 6 : index
    %c0_199 = arith.constant 0 : index
    %c0_200 = arith.constant 0 : index
    %251 = vector.load %arg4[%c6_198, %c0_199, %c0_200] : memref<9x24x96xbf16, #tpu.memory_space<vmem>>, vector<1x24x96xbf16>
    %252 = vector.shape_cast %251 : vector<1x24x96xbf16> to vector<24x96xbf16>
    %253 = arith.truncf %250 : vector<96x512xf32> to vector<96x512xbf16>
    %cst_201 = arith.constant dense<0.000000e+00> : vector<24x512xf32>
    %254 = tpu.matmul %252, %253, %cst_201 {dimension_numbers = #tpu.dot_dimension_numbers<[1], [0], [0], [1], [0, 0, 1, 1], [], []>} : vector<24x96xbf16>, vector<96x512xbf16>, vector<24x512xf32> -> vector<24x512xf32>
    %c6_202 = arith.constant 6 : index
    %c0_203 = arith.constant 0 : index
    %c0_204 = arith.constant 0 : index
    %255 = vector.load %arg2[%c6_202, %c0_203, %c0_204] : memref<9x24x512xf32, #tpu.memory_space<vmem>>, vector<1x24x512xf32>
    %256 = vector.shape_cast %255 : vector<1x24x512xf32> to vector<24x512xf32>
    %257 = arith.mulf %254, %256 : vector<24x512xf32>
    %258 = arith.addf %248, %257 : vector<24x512xf32>
    %c0_205 = arith.constant 0 : index
    %c0_206 = arith.constant 0 : index
    %259 = vector.load %arg8[%c0_205, %c0_206] : memref<96x512xf32, #tpu.memory_space<vmem>>, vector<96x512xf32>
    %c496_i32_207 = arith.constant 496 : i32
    %260 = tpu.dynamic_rotate %259 by %c496_i32_207 dim 1 : vector<96x512xf32>, i32 -> vector<96x512xf32>
    %c7_208 = arith.constant 7 : index
    %c0_209 = arith.constant 0 : index
    %c0_210 = arith.constant 0 : index
    %261 = vector.load %arg4[%c7_208, %c0_209, %c0_210] : memref<9x24x96xbf16, #tpu.memory_space<vmem>>, vector<1x24x96xbf16>
    %262 = vector.shape_cast %261 : vector<1x24x96xbf16> to vector<24x96xbf16>
    %263 = arith.truncf %260 : vector<96x512xf32> to vector<96x512xbf16>
    %cst_211 = arith.constant dense<0.000000e+00> : vector<24x512xf32>
    %264 = tpu.matmul %262, %263, %cst_211 {dimension_numbers = #tpu.dot_dimension_numbers<[1], [0], [0], [1], [0, 0, 1, 1], [], []>} : vector<24x96xbf16>, vector<96x512xbf16>, vector<24x512xf32> -> vector<24x512xf32>
    %c7_212 = arith.constant 7 : index
    %c0_213 = arith.constant 0 : index
    %c0_214 = arith.constant 0 : index
    %265 = vector.load %arg2[%c7_212, %c0_213, %c0_214] : memref<9x24x512xf32, #tpu.memory_space<vmem>>, vector<1x24x512xf32>
    %266 = vector.shape_cast %265 : vector<1x24x512xf32> to vector<24x512xf32>
    %267 = arith.mulf %264, %266 : vector<24x512xf32>
    %268 = arith.addf %258, %267 : vector<24x512xf32>
    %c0_215 = arith.constant 0 : index
    %c0_216 = arith.constant 0 : index
    %269 = vector.load %arg8[%c0_215, %c0_216] : memref<96x512xf32, #tpu.memory_space<vmem>>, vector<96x512xf32>
    %c495_i32_217 = arith.constant 495 : i32
    %270 = tpu.dynamic_rotate %269 by %c495_i32_217 dim 1 : vector<96x512xf32>, i32 -> vector<96x512xf32>
    %c8_218 = arith.constant 8 : index
    %c0_219 = arith.constant 0 : index
    %c0_220 = arith.constant 0 : index
    %271 = vector.load %arg4[%c8_218, %c0_219, %c0_220] : memref<9x24x96xbf16, #tpu.memory_space<vmem>>, vector<1x24x96xbf16>
    %272 = vector.shape_cast %271 : vector<1x24x96xbf16> to vector<24x96xbf16>
    %273 = arith.truncf %270 : vector<96x512xf32> to vector<96x512xbf16>
    %cst_221 = arith.constant dense<0.000000e+00> : vector<24x512xf32>
    %274 = tpu.matmul %272, %273, %cst_221 {dimension_numbers = #tpu.dot_dimension_numbers<[1], [0], [0], [1], [0, 0, 1, 1], [], []>} : vector<24x96xbf16>, vector<96x512xbf16>, vector<24x512xf32> -> vector<24x512xf32>
    %c8_222 = arith.constant 8 : index
    %c0_223 = arith.constant 0 : index
    %c0_224 = arith.constant 0 : index
    %275 = vector.load %arg2[%c8_222, %c0_223, %c0_224] : memref<9x24x512xf32, #tpu.memory_space<vmem>>, vector<1x24x512xf32>
    %276 = vector.shape_cast %275 : vector<1x24x512xf32> to vector<24x512xf32>
    %277 = arith.mulf %274, %276 : vector<24x512xf32>
    %278 = arith.addf %268, %277 : vector<24x512xf32>
    %c96 = arith.constant 96 : index
    %c0_225 = arith.constant 0 : index
    %279 = vector.load %arg6[%c96, %c0_225] : memref<152x1xf32, #tpu.memory_space<vmem>>, vector<24x1xf32>
    %280 = vector.broadcast %279 : vector<24x1xf32> to vector<24x512xf32>
    %281 = arith.addf %278, %280 : vector<24x512xf32>
    %cst_226 = arith.constant 0.000000e+00 : f32
    %282 = vector.broadcast %cst_226 : f32 to vector<24x512xf32>
    %283 = arith.maximumf %281, %282 : vector<24x512xf32>
    %c17_i32_227 = arith.constant 17 : i32
    %284 = tpu.dynamic_rotate %283 by %c17_i32_227 dim 1 : vector<24x512xf32>, i32 -> vector<24x512xf32>
    %c0_228 = arith.constant 0 : index
    %c0_229 = arith.constant 0 : index
    %c0_230 = arith.constant 0 : index
    %285 = vector.load %arg2[%c0_228, %c0_229, %c0_230] : memref<9x24x512xf32, #tpu.memory_space<vmem>>, vector<1x24x512xf32>
    %286 = vector.shape_cast %285 : vector<1x24x512xf32> to vector<24x512xf32>
    %287 = arith.mulf %284, %286 : vector<24x512xf32>
    %c0_231 = arith.constant 0 : index
    %c0_232 = arith.constant 0 : index
    %c0_233 = arith.constant 0 : index
    %288 = vector.load %arg5[%c0_231, %c0_232, %c0_233] : memref<9x32x24xbf16, #tpu.memory_space<vmem>>, vector<1x32x24xbf16>
    %289 = vector.shape_cast %288 : vector<1x32x24xbf16> to vector<32x24xbf16>
    %290 = arith.truncf %287 : vector<24x512xf32> to vector<24x512xbf16>
    %cst_234 = arith.constant dense<0.000000e+00> : vector<32x512xf32>
    %291 = tpu.matmul %289, %290, %cst_234 {dimension_numbers = #tpu.dot_dimension_numbers<[1], [0], [0], [1], [0, 0, 1, 1], [], []>} : vector<32x24xbf16>, vector<24x512xbf16>, vector<32x512xf32> -> vector<32x512xf32>
    %c16_i32_235 = arith.constant 16 : i32
    %292 = tpu.dynamic_rotate %283 by %c16_i32_235 dim 1 : vector<24x512xf32>, i32 -> vector<24x512xf32>
    %c1_236 = arith.constant 1 : index
    %c0_237 = arith.constant 0 : index
    %c0_238 = arith.constant 0 : index
    %293 = vector.load %arg2[%c1_236, %c0_237, %c0_238] : memref<9x24x512xf32, #tpu.memory_space<vmem>>, vector<1x24x512xf32>
    %294 = vector.shape_cast %293 : vector<1x24x512xf32> to vector<24x512xf32>
    %295 = arith.mulf %292, %294 : vector<24x512xf32>
    %c1_239 = arith.constant 1 : index
    %c0_240 = arith.constant 0 : index
    %c0_241 = arith.constant 0 : index
    %296 = vector.load %arg5[%c1_239, %c0_240, %c0_241] : memref<9x32x24xbf16, #tpu.memory_space<vmem>>, vector<1x32x24xbf16>
    %297 = vector.shape_cast %296 : vector<1x32x24xbf16> to vector<32x24xbf16>
    %298 = arith.truncf %295 : vector<24x512xf32> to vector<24x512xbf16>
    %cst_242 = arith.constant dense<0.000000e+00> : vector<32x512xf32>
    %299 = tpu.matmul %297, %298, %cst_242 {dimension_numbers = #tpu.dot_dimension_numbers<[1], [0], [0], [1], [0, 0, 1, 1], [], []>} : vector<32x24xbf16>, vector<24x512xbf16>, vector<32x512xf32> -> vector<32x512xf32>
    %300 = arith.addf %291, %299 : vector<32x512xf32>
    %c15_i32_243 = arith.constant 15 : i32
    %301 = tpu.dynamic_rotate %283 by %c15_i32_243 dim 1 : vector<24x512xf32>, i32 -> vector<24x512xf32>
    %c2_244 = arith.constant 2 : index
    %c0_245 = arith.constant 0 : index
    %c0_246 = arith.constant 0 : index
    %302 = vector.load %arg2[%c2_244, %c0_245, %c0_246] : memref<9x24x512xf32, #tpu.memory_space<vmem>>, vector<1x24x512xf32>
    %303 = vector.shape_cast %302 : vector<1x24x512xf32> to vector<24x512xf32>
    %304 = arith.mulf %301, %303 : vector<24x512xf32>
    %c2_247 = arith.constant 2 : index
    %c0_248 = arith.constant 0 : index
    %c0_249 = arith.constant 0 : index
    %305 = vector.load %arg5[%c2_247, %c0_248, %c0_249] : memref<9x32x24xbf16, #tpu.memory_space<vmem>>, vector<1x32x24xbf16>
    %306 = vector.shape_cast %305 : vector<1x32x24xbf16> to vector<32x24xbf16>
    %307 = arith.truncf %304 : vector<24x512xf32> to vector<24x512xbf16>
    %cst_250 = arith.constant dense<0.000000e+00> : vector<32x512xf32>
    %308 = tpu.matmul %306, %307, %cst_250 {dimension_numbers = #tpu.dot_dimension_numbers<[1], [0], [0], [1], [0, 0, 1, 1], [], []>} : vector<32x24xbf16>, vector<24x512xbf16>, vector<32x512xf32> -> vector<32x512xf32>
    %309 = arith.addf %300, %308 : vector<32x512xf32>
    %c1_i32_251 = arith.constant 1 : i32
    %310 = tpu.dynamic_rotate %283 by %c1_i32_251 dim 1 : vector<24x512xf32>, i32 -> vector<24x512xf32>
    %c3_252 = arith.constant 3 : index
    %c0_253 = arith.constant 0 : index
    %c0_254 = arith.constant 0 : index
    %311 = vector.load %arg2[%c3_252, %c0_253, %c0_254] : memref<9x24x512xf32, #tpu.memory_space<vmem>>, vector<1x24x512xf32>
    %312 = vector.shape_cast %311 : vector<1x24x512xf32> to vector<24x512xf32>
    %313 = arith.mulf %310, %312 : vector<24x512xf32>
    %c3_255 = arith.constant 3 : index
    %c0_256 = arith.constant 0 : index
    %c0_257 = arith.constant 0 : index
    %314 = vector.load %arg5[%c3_255, %c0_256, %c0_257] : memref<9x32x24xbf16, #tpu.memory_space<vmem>>, vector<1x32x24xbf16>
    %315 = vector.shape_cast %314 : vector<1x32x24xbf16> to vector<32x24xbf16>
    %316 = arith.truncf %313 : vector<24x512xf32> to vector<24x512xbf16>
    %cst_258 = arith.constant dense<0.000000e+00> : vector<32x512xf32>
    %317 = tpu.matmul %315, %316, %cst_258 {dimension_numbers = #tpu.dot_dimension_numbers<[1], [0], [0], [1], [0, 0, 1, 1], [], []>} : vector<32x24xbf16>, vector<24x512xbf16>, vector<32x512xf32> -> vector<32x512xf32>
    %318 = arith.addf %309, %317 : vector<32x512xf32>
    %c4_259 = arith.constant 4 : index
    %c0_260 = arith.constant 0 : index
    %c0_261 = arith.constant 0 : index
    %319 = vector.load %arg5[%c4_259, %c0_260, %c0_261] : memref<9x32x24xbf16, #tpu.memory_space<vmem>>, vector<1x32x24xbf16>
    %320 = vector.shape_cast %319 : vector<1x32x24xbf16> to vector<32x24xbf16>
    %321 = arith.truncf %283 : vector<24x512xf32> to vector<24x512xbf16>
    %cst_262 = arith.constant dense<0.000000e+00> : vector<32x512xf32>
    %322 = tpu.matmul %320, %321, %cst_262 {dimension_numbers = #tpu.dot_dimension_numbers<[1], [0], [0], [1], [0, 0, 1, 1], [], []>} : vector<32x24xbf16>, vector<24x512xbf16>, vector<32x512xf32> -> vector<32x512xf32>
    %323 = arith.addf %318, %322 : vector<32x512xf32>
    %c511_i32_263 = arith.constant 511 : i32
    %324 = tpu.dynamic_rotate %283 by %c511_i32_263 dim 1 : vector<24x512xf32>, i32 -> vector<24x512xf32>
    %c5_264 = arith.constant 5 : index
    %c0_265 = arith.constant 0 : index
    %c0_266 = arith.constant 0 : index
    %325 = vector.load %arg2[%c5_264, %c0_265, %c0_266] : memref<9x24x512xf32, #tpu.memory_space<vmem>>, vector<1x24x512xf32>
    %326 = vector.shape_cast %325 : vector<1x24x512xf32> to vector<24x512xf32>
    %327 = arith.mulf %324, %326 : vector<24x512xf32>
    %c5_267 = arith.constant 5 : index
    %c0_268 = arith.constant 0 : index
    %c0_269 = arith.constant 0 : index
    %328 = vector.load %arg5[%c5_267, %c0_268, %c0_269] : memref<9x32x24xbf16, #tpu.memory_space<vmem>>, vector<1x32x24xbf16>
    %329 = vector.shape_cast %328 : vector<1x32x24xbf16> to vector<32x24xbf16>
    %330 = arith.truncf %327 : vector<24x512xf32> to vector<24x512xbf16>
    %cst_270 = arith.constant dense<0.000000e+00> : vector<32x512xf32>
    %331 = tpu.matmul %329, %330, %cst_270 {dimension_numbers = #tpu.dot_dimension_numbers<[1], [0], [0], [1], [0, 0, 1, 1], [], []>} : vector<32x24xbf16>, vector<24x512xbf16>, vector<32x512xf32> -> vector<32x512xf32>
    %332 = arith.addf %323, %331 : vector<32x512xf32>
    %c497_i32_271 = arith.constant 497 : i32
    %333 = tpu.dynamic_rotate %283 by %c497_i32_271 dim 1 : vector<24x512xf32>, i32 -> vector<24x512xf32>
    %c6_272 = arith.constant 6 : index
    %c0_273 = arith.constant 0 : index
    %c0_274 = arith.constant 0 : index
    %334 = vector.load %arg2[%c6_272, %c0_273, %c0_274] : memref<9x24x512xf32, #tpu.memory_space<vmem>>, vector<1x24x512xf32>
    %335 = vector.shape_cast %334 : vector<1x24x512xf32> to vector<24x512xf32>
    %336 = arith.mulf %333, %335 : vector<24x512xf32>
    %c6_275 = arith.constant 6 : index
    %c0_276 = arith.constant 0 : index
    %c0_277 = arith.constant 0 : index
    %337 = vector.load %arg5[%c6_275, %c0_276, %c0_277] : memref<9x32x24xbf16, #tpu.memory_space<vmem>>, vector<1x32x24xbf16>
    %338 = vector.shape_cast %337 : vector<1x32x24xbf16> to vector<32x24xbf16>
    %339 = arith.truncf %336 : vector<24x512xf32> to vector<24x512xbf16>
    %cst_278 = arith.constant dense<0.000000e+00> : vector<32x512xf32>
    %340 = tpu.matmul %338, %339, %cst_278 {dimension_numbers = #tpu.dot_dimension_numbers<[1], [0], [0], [1], [0, 0, 1, 1], [], []>} : vector<32x24xbf16>, vector<24x512xbf16>, vector<32x512xf32> -> vector<32x512xf32>
    %341 = arith.addf %332, %340 : vector<32x512xf32>
    %c496_i32_279 = arith.constant 496 : i32
    %342 = tpu.dynamic_rotate %283 by %c496_i32_279 dim 1 : vector<24x512xf32>, i32 -> vector<24x512xf32>
    %c7_280 = arith.constant 7 : index
    %c0_281 = arith.constant 0 : index
    %c0_282 = arith.constant 0 : index
    %343 = vector.load %arg2[%c7_280, %c0_281, %c0_282] : memref<9x24x512xf32, #tpu.memory_space<vmem>>, vector<1x24x512xf32>
    %344 = vector.shape_cast %343 : vector<1x24x512xf32> to vector<24x512xf32>
    %345 = arith.mulf %342, %344 : vector<24x512xf32>
    %c7_283 = arith.constant 7 : index
    %c0_284 = arith.constant 0 : index
    %c0_285 = arith.constant 0 : index
    %346 = vector.load %arg5[%c7_283, %c0_284, %c0_285] : memref<9x32x24xbf16, #tpu.memory_space<vmem>>, vector<1x32x24xbf16>
    %347 = vector.shape_cast %346 : vector<1x32x24xbf16> to vector<32x24xbf16>
    %348 = arith.truncf %345 : vector<24x512xf32> to vector<24x512xbf16>
    %cst_286 = arith.constant dense<0.000000e+00> : vector<32x512xf32>
    %349 = tpu.matmul %347, %348, %cst_286 {dimension_numbers = #tpu.dot_dimension_numbers<[1], [0], [0], [1], [0, 0, 1, 1], [], []>} : vector<32x24xbf16>, vector<24x512xbf16>, vector<32x512xf32> -> vector<32x512xf32>
    %350 = arith.addf %341, %349 : vector<32x512xf32>
    %c495_i32_287 = arith.constant 495 : i32
    %351 = tpu.dynamic_rotate %283 by %c495_i32_287 dim 1 : vector<24x512xf32>, i32 -> vector<24x512xf32>
    %c8_288 = arith.constant 8 : index
    %c0_289 = arith.constant 0 : index
    %c0_290 = arith.constant 0 : index
    %352 = vector.load %arg2[%c8_288, %c0_289, %c0_290] : memref<9x24x512xf32, #tpu.memory_space<vmem>>, vector<1x24x512xf32>
    %353 = vector.shape_cast %352 : vector<1x24x512xf32> to vector<24x512xf32>
    %354 = arith.mulf %351, %353 : vector<24x512xf32>
    %c8_291 = arith.constant 8 : index
    %c0_292 = arith.constant 0 : index
    %c0_293 = arith.constant 0 : index
    %355 = vector.load %arg5[%c8_291, %c0_292, %c0_293] : memref<9x32x24xbf16, #tpu.memory_space<vmem>>, vector<1x32x24xbf16>
    %356 = vector.shape_cast %355 : vector<1x32x24xbf16> to vector<32x24xbf16>
    %357 = arith.truncf %354 : vector<24x512xf32> to vector<24x512xbf16>
    %cst_294 = arith.constant dense<0.000000e+00> : vector<32x512xf32>
    %358 = tpu.matmul %356, %357, %cst_294 {dimension_numbers = #tpu.dot_dimension_numbers<[1], [0], [0], [1], [0, 0, 1, 1], [], []>} : vector<32x24xbf16>, vector<24x512xbf16>, vector<32x512xf32> -> vector<32x512xf32>
    %359 = arith.addf %350, %358 : vector<32x512xf32>
    %c120 = arith.constant 120 : index
    %c0_295 = arith.constant 0 : index
    %360 = vector.load %arg6[%c120, %c0_295] : memref<152x1xf32, #tpu.memory_space<vmem>>, vector<32x1xf32>
    %361 = vector.broadcast %360 : vector<32x1xf32> to vector<32x512xf32>
    %362 = arith.addf %359, %361 : vector<32x512xf32>
    %c0_296 = arith.constant 0 : index
    %c0_297 = arith.constant 0 : index
    %c0_298 = arith.constant 0 : index
    %363 = vector.load %arg7[%c0_296, %c0_297, %c0_298] : memref<1x32x512xf32, #tpu.memory_space<vmem>>, vector<1x32x512xf32>
    %364 = vector.shape_cast %363 : vector<1x32x512xf32> to vector<32x512xf32>
    %365 = vector.shape_cast %362 : vector<32x512xf32> to vector<1x32x512xf32>
    tpu.vector_store %arg7[%c0_296, %c0_297, %c0_298], %365 {strides = array<i32>} : memref<1x32x512xf32, #tpu.memory_space<vmem>>, vector<1x32x512xf32>,
    return
  }
  func.func @transform_0(%arg0: i32) -> (i32, i32, i32) {
    %c0_i32 = arith.constant 0 : i32
    %c0_i32_0 = arith.constant 0 : i32
    %c0_i32_1 = arith.constant 0 : i32
    return %arg0, %c0_i32, %c0_i32_0 : i32, i32, i32
  }
  func.func @transform_1(%arg0: i32) -> (i32, i32, i32) {
    %c0_i32 = arith.constant 0 : i32
    %c0_i32_0 = arith.constant 0 : i32
    %c0_i32_1 = arith.constant 0 : i32
    %c0_i32_2 = arith.constant 0 : i32
    return %c0_i32, %c0_i32_0, %c0_i32_1 : i32, i32, i32
  }
  func.func @transform_2(%arg0: i32) -> (i32, i32, i32, i32) {
    %c0_i32 = arith.constant 0 : i32
    %c0_i32_0 = arith.constant 0 : i32
    %c0_i32_1 = arith.constant 0 : i32
    %c0_i32_2 = arith.constant 0 : i32
    %c0_i32_3 = arith.constant 0 : i32
    return %c0_i32, %c0_i32_0, %c0_i32_1, %c0_i32_2 : i32, i32, i32, i32
  }
  func.func @transform_3(%arg0: i32) -> (i32, i32, i32) {
    %c0_i32 = arith.constant 0 : i32
    %c0_i32_0 = arith.constant 0 : i32
    %c0_i32_1 = arith.constant 0 : i32
    %c0_i32_2 = arith.constant 0 : i32
    return %c0_i32, %c0_i32_0, %c0_i32_1 : i32, i32, i32
  }
  func.func @transform_4(%arg0: i32) -> (i32, i32, i32) {
    %c0_i32 = arith.constant 0 : i32
    %c0_i32_0 = arith.constant 0 : i32
    %c0_i32_1 = arith.constant 0 : i32
    %c0_i32_2 = arith.constant 0 : i32
    return %c0_i32, %c0_i32_0, %c0_i32_1 : i32, i32, i32
  }
  func.func @transform_5(%arg0: i32) -> (i32, i32) {
    %c0_i32 = arith.constant 0 : i32
    %c0_i32_0 = arith.constant 0 : i32
    %c0_i32_1 = arith.constant 0 : i32
    return %c0_i32, %c0_i32_0 : i32, i32
  }
  func.func @transform_6(%arg0: i32) -> (i32, i32, i32) {
    %c0_i32 = arith.constant 0 : i32
    %c0_i32_0 = arith.constant 0 : i32
    %c0_i32_1 = arith.constant 0 : i32
    return %arg0, %c0_i32, %c0_i32_0 : i32, i32, i32
  }
}

</mosaic_0001>

<llo_original>
// kernel: _triple_input_impl.1
$region0: #{_triple_input_impl.1}
  #allocation0 [shape = 'u32[]', space=smem, size = 0x4, offset = 0x4, fixed_abs, tag = 'smem constant byte address 0x4 - core index']
  #allocation1 [shape = 'u32[144,128]{1,0:T(1,128)}', space=vmem, size = 0x12000, scoped, tag = 'internal scratch']
  #allocation2 [shape = 'f32[96,512]{1,0:T(8,128)}', space=vmem, size = 0x30000, scoped, tag = 'scratch operand']
  %s0 = inlined_call_operand.vmem [shape: f32[1,24,512], index: 0, kind: input, shape index: {}]
  %s1 = inlined_call_operand.vmem [shape: f32[9,24,512], index: 1, kind: input, shape index: {}]
  %s2 = inlined_call_operand.vmem [shape: bf16[3,3,32,24], index: 2, kind: input, shape index: {}]
  %s3 = inlined_call_operand.vmem [shape: bf16[9,24,96], index: 3, kind: input, shape index: {}]
  %s4 = inlined_call_operand.vmem [shape: bf16[9,32,24], index: 4, kind: input, shape index: {}]
  %s5 = inlined_call_operand.vmem [shape: f32[152,1], index: 5, kind: input, shape index: {}]
  %s6 = inlined_call_operand.vmem [shape: f32[1,32,512], index: 6, kind: output, shape index: {}]
  %s7 = sld [smem:[#allocation0]]
  $region34: #{_triple_input_impl.1} parent=0
    _
  %s9 = ssub.s32 1, %s7
  %s10 = scalar_select 0, %s9, %s7
  // Predicated region
  $region2: #{_triple_input_impl.1} parent=0 // pred_check
    _
  $region3: #{_triple_input_impl.1} parent=0 // pred_check_branch
    %12 = sbr.rel (0) target = $region5
  $region4: #{_triple_input_impl.1} parent=0 // pred_region
    _
  $region5: #{_triple_input_impl.1} parent=0 // pred_fallthru
    _
  // Predicated region
  $region6: #{_triple_input_impl.1} parent=0 // pred_check
    _
  $region7: #{_triple_input_impl.1} parent=0 // pred_check_branch
    %14 = sbr.rel (0) target = $region9
  $region8: #{_triple_input_impl.1} parent=0 // pred_region
    _
  $region9: #{_triple_input_impl.1} parent=0 // pred_fallthru
    _
  // Predicated region
  $region10: #{_triple_input_impl.1} parent=0 // pred_check
    _
  $region11: #{_triple_input_impl.1} parent=0 // pred_check_branch
    %16 = sbr.rel (0) target = $region13
  $region12: #{_triple_input_impl.1} parent=0 // pred_region
    _
  $region13: #{_triple_input_impl.1} parent=0 // pred_fallthru
    _
  // Predicated region
  $region14: #{_triple_input_impl.1} parent=0 // pred_check
    _
  $region15: #{_triple_input_impl.1} parent=0 // pred_check_branch
    %18 = sbr.rel (0) target = $region17
  $region16: #{_triple_input_impl.1} parent=0 // pred_region
    _
  $region17: #{_triple_input_impl.1} parent=0 // pred_fallthru
    _
  // Predicated region
  $region18: #{_triple_input_impl.1} parent=0 // pred_check
    _
  $region19: #{_triple_input_impl.1} parent=0 // pred_check_branch
    %20 = sbr.rel (0) target = $region21
  $region20: #{_triple_input_impl.1} parent=0 // pred_region
    _
  $region21: #{_triple_input_impl.1} parent=0 // pred_fallthru
    _
  // Predicated region
  $region22: #{_triple_input_impl.1} parent=0 // pred_check
    _
  $region23: #{_triple_input_impl.1} parent=0 // pred_check_branch
    %22 = sbr.rel (0) target = $region25
  $region24: #{_triple_input_impl.1} parent=0 // pred_region
    _
  $region25: #{_triple_input_impl.1} parent=0 // pred_fallthru
    _
  %v24 = vld [vmem:[%s0] sm:$0xff]
  %v25 = vld [vmem:[%s0 + $0x8] sm:$0xff]
  %v26 = vld [vmem:[%s0 + $0x10] sm:$0xff]
  %v27 = vld [vmem:[%s0 + $0x18] sm:$0xff]
  %v28 = vld [vmem:[%s0 + $0x20] sm:$0xff]
  %v29 = vld [vmem:[%s0 + $0x28] sm:$0xff]
  %v30 = vld [vmem:[%s0 + $0x30] sm:$0xff]
  %v31 = vld [vmem:[%s0 + $0x38] sm:$0xff]
  %v32 = vld [vmem:[%s0 + $0x40] sm:$0xff]
  %v33 = vld [vmem:[%s0 + $0x48] sm:$0xff]
  %v34 = vld [vmem:[%s0 + $0x50] sm:$0xff]
  %v35 = vld [vmem:[%s0 + $0x58] sm:$0xff]
  %36 = vrot.lane.b32.xlu0 %v24, 17
  %v37 = vpop.permute.xlu0 %36
  %38 = vrot.lane.b32.xlu0 %v25, 17
  %v39 = vpop.permute.xlu0 %38
  %40 = vrot.lane.b32.xlu0 %v26, 17
  %v41 = vpop.permute.xlu0 %40
  %42 = vrot.lane.b32.xlu0 %v27, 17
  %v43 = vpop.permute.xlu0 %42
  %v44 = vlaneseq
  %v45 = vand.u32 %v44, 127
  %vm46 = vcmp.lt.s32.totalorder %v45, 17
  %v47 = vsel %vm46, %v41, %v43
  %v48 = vsel %vm46, %v39, %v41
  %v49 = vsel %vm46, %v37, %v39
  %v50 = vsel %vm46, %v43, %v37
  %v51 = vld [vmem:[%s1] sm:$0xff]
  %v52 = vld [vmem:[%s1 + $0x8] sm:$0xff]
  %v53 = vld [vmem:[%s1 + $0x10] sm:$0xff]
  %v54 = vld [vmem:[%s1 + $0x18] sm:$0xff]
  %v55 = vmul.f32 %v50, %v51
  %v56 = vmul.f32 %v49, %v52
  %v57 = vmul.f32 %v48, %v53
  %v58 = vmul.f32 %v47, %v54
  %59 = vrot.lane.b32.xlu0 %v24, 16
  %v60 = vpop.permute.xlu0 %59
  %61 = vrot.lane.b32.xlu0 %v25, 16
  %v62 = vpop.permute.xlu0 %61
  %63 = vrot.lane.b32.xlu0 %v26, 16
  %v64 = vpop.permute.xlu0 %63
  %65 = vrot.lane.b32.xlu0 %v27, 16
  %v66 = vpop.permute.xlu0 %65
  %vm67 = vcmp.lt.s32.totalorder %v45, 16
  %v68 = vsel %vm67, %v64, %v66
  %v69 = vsel %vm67, %v62, %v64
  %v70 = vsel %vm67, %v60, %v62
  %v71 = vsel %vm67, %v66, %v60
  %s72 = scalar_lea.vmem %s1, 96
  %v73 = vld [vmem:[%s72] sm:$0xff]
  %v74 = vld [vmem:[%s72 + $0x8] sm:$0xff]
  %v75 = vld [vmem:[%s72 + $0x10] sm:$0xff]
  %v76 = vld [vmem:[%s72 + $0x18] sm:$0xff]
  %v77 = vmul.f32 %v71, %v73
  %v78 = vmul.f32 %v70, %v74
  %v79 = vmul.f32 %v69, %v75
  %v80 = vmul.f32 %v68, %v76
  %81 = vrot.lane.b32.xlu0 %v24, 15
  %v82 = vpop.permute.xlu0 %81
  %83 = vrot.lane.b32.xlu0 %v25, 15
  %v84 = vpop.permute.xlu0 %83
  %85 = vrot.lane.b32.xlu0 %v26, 15
  %v86 = vpop.permute.xlu0 %85
  %87 = vrot.lane.b32.xlu0 %v27, 15
  %v88 = vpop.permute.xlu0 %87
  %vm89 = vcmp.lt.s32.totalorder %v45, 15
  %v90 = vsel %vm89, %v86, %v88
  %v91 = vsel %vm89, %v84, %v86
  %v92 = vsel %vm89, %v82, %v84
  %v93 = vsel %vm89, %v88, %v82
  %s94 = scalar_lea.vmem %s1, 192
  %v95 = vld [vmem:[%s94] sm:$0xff]
  %v96 = vld [vmem:[%s94 + $0x8] sm:$0xff]
  %v97 = vld [vmem:[%s94 + $0x10] sm:$0xff]
  %v98 = vld [vmem:[%s94 + $0x18] sm:$0xff]
  %v99 = vmul.f32 %v93, %v95
  %v100 = vmul.f32 %v92, %v96
  %v101 = vmul.f32 %v91, %v97
  %v102 = vmul.f32 %v90, %v98
  %v103 = vpack.c.bf16 %v77, %v55
  %v104 = vpack.c.bf16 %v78, %v56
  %v105 = vpack.c.bf16 %v79, %v57
  %v106 = vpack.c.bf16 %v80, %v58
  %v107 = vpack.c.bf16 %v99, %v99
  %v108 = vpack.c.bf16 %v100, %v100
  %v109 = vpack.c.bf16 %v101, %v101
  %v110 = vpack.c.bf16 %v102, %v102
  %v111 = vld [vmem:[%s2] sm:$0xf]
  %v112 = vld [vmem:[%s2 + $0x4] sm:$0xf]
  %v113 = vld [vmem:[%s2 + $0x8] sm:$0xf]
  %v114 = vld [vmem:[%s2 + $0xc] sm:$0xf]
  %115 = vrot.lane.b32.xlu0 %v24, 1
  %v116 = vpop.permute.xlu0 %115
  %117 = vrot.lane.b32.xlu0 %v25, 1
  %v118 = vpop.permute.xlu0 %117
  %119 = vrot.lane.b32.xlu0 %v26, 1
  %v120 = vpop.permute.xlu0 %119
  %121 = vrot.lane.b32.xlu0 %v27, 1
  %v122 = vpop.permute.xlu0 %121
  %vm123 = vcmp.lt.s32.totalorder %v45, 1
  %v124 = vsel %vm123, %v120, %v122
  %v125 = vsel %vm123, %v118, %v120
  %v126 = vsel %vm123, %v116, %v118
  %v127 = vsel %vm123, %v122, %v116
  %s128 = scalar_lea.vmem %s1, 288
  %v129 = vld [vmem:[%s128] sm:$0xff]
  %v130 = vld [vmem:[%s128 + $0x8] sm:$0xff]
  %v131 = vld [vmem:[%s128 + $0x10] sm:$0xff]
  %v132 = vld [vmem:[%s128 + $0x18] sm:$0xff]
  %v133 = vmul.f32 %v127, %v129
  %v134 = vmul.f32 %v126, %v130
  %v135 = vmul.f32 %v125, %v131
  %v136 = vmul.f32 %v124, %v132
  %137 = vrot.lane.b32.xlu0 %v24, 127
  %v138 = vpop.permute.xlu0 %137
  %139 = vrot.lane.b32.xlu0 %v25, 127
  %v140 = vpop.permute.xlu0 %139
  %141 = vrot.lane.b32.xlu0 %v26, 127
  %v142 = vpop.permute.xlu0 %141
  %143 = vrot.lane.b32.xlu0 %v27, 127
  %v144 = vpop.permute.xlu0 %143
  %vm145 = vcmp.lt.s32.totalorder %v45, 127
  %v146 = vsel %vm145, %v142, %v144
  %v147 = vsel %vm145, %v140, %v142
  %v148 = vsel %vm145, %v138, %v140
  %v149 = vsel %vm145, %v144, %v138
  %s150 = scalar_lea.vmem %s1, 480
  %v151 = vld [vmem:[%s150] sm:$0xff]
  %v152 = vld [vmem:[%s150 + $0x8] sm:$0xff]
  %v153 = vld [vmem:[%s150 + $0x10] sm:$0xff]
  %v154 = vld [vmem:[%s150 + $0x18] sm:$0xff]
  %v155 = vmul.f32 %v148, %v151
  %v156 = vmul.f32 %v147, %v152
  %v157 = vmul.f32 %v146, %v153
  %v158 = vmul.f32 %v149, %v154
  %v159 = vpack.c.bf16 %v24, %v133
  %v160 = vpack.c.bf16 %v25, %v134
  %v161 = vpack.c.bf16 %v26, %v135
  %v162 = vpack.c.bf16 %v27, %v136
  %v163 = vpack.c.bf16 %v155, %v155
  %v164 = vpack.c.bf16 %v156, %v156
  %v165 = vpack.c.bf16 %v157, %v157
  %v166 = vpack.c.bf16 %v158, %v158
  %s167 = scalar_lea.vmem %s2, 16
  %v168 = vld [vmem:[%s167] sm:$0xf]
  %v169 = vld [vmem:[%s167 + $0x4] sm:$0xf]
  %v170 = vld [vmem:[%s167 + $0x8] sm:$0xf]
  %v171 = vld [vmem:[%s167 + $0xc] sm:$0xf]
  %v176 = vunpack.c.l.b16 %v168
  %v177 = vunpack.c.l.b16 %v169
  %v178 = vunpack.c.l.b16 %v170
  %v179 = vunpack.c.l.b16 %v171
  %v180 = vpack.c.b16 %v177, %v176
  %v181 = vpack.c.b16 %v179, %v178
  %vm182 = vcmask 195584
  %v184 = vsel %vm182, %v180, 0
  %v187 = vsel %vm182, %v181, 0
  %vm189 = vcmask 1043456
  %v191 = vsel %vm189, %v163, 0
  %v194 = vsel %vm189, %v164, 0
  %v197 = vsel %vm189, %v165, 0
  %v200 = vsel %vm189, %v166, 0
  %202 = vmatprep.subr.bf16.mxu0 0
  %203 = vmatpush1.bf16.msra.mxu0 0
  %204 = vmatprep.subr.bf16.mxu0 0
  %205 = vmatpush1.bf16.msra.mxu0 0
  %206 = vmatprep.subr.bf16.mxu0 0
  %207 = vmatpush1.bf16.msra.mxu0 0
  %208 = vmatprep.subr.bf16.mxu0 0
  %209 = vmatpush1.bf16.msra.mxu0 0
  %210 = vmatprep.subr.bf16.mxu0 0
  %211 = vmatpush1.bf16.msra.mxu0 0
  %212 = vmatprep.subr.bf16.mxu0 0
  %213 = vmatpush1.bf16.msra.mxu0 0
  %214 = vmatprep.subr.bf16.mxu0 %v194
  %215 = vmatpush1.bf16.msra.mxu0 %v191
  %216 = vmatprep.subr.bf16.mxu0 %v160
  %217 = vmatpush1.bf16.msra.mxu0 %v159
  %218 = vmatprep.subr.bf16.mxu0 0
  %219 = vmatpush2.bf16.msra.mxu0 0
  %220 = vmatprep.subr.bf16.mxu0 0
  %221 = vmatpush2.bf16.msra.mxu0 0
  %222 = vmatprep.subr.bf16.mxu0 0
  %223 = vmatpush2.bf16.msra.mxu0 0
  %224 = vmatprep.subr.bf16.mxu0 0
  %225 = vmatpush2.bf16.msra.mxu0 0
  %226 = vmatprep.subr.bf16.mxu0 0
  %227 = vmatpush2.bf16.msra.mxu0 0
  %228 = vmatprep.subr.bf16.mxu0 0
  %229 = vmatpush2.bf16.msra.mxu0 0
  %230 = vmatprep.subr.bf16.mxu0 0
  %231 = vmatpush2.bf16.msra.mxu0 0
  %232 = vmatprep.subr.bf16.mxu0 0
  %233 = vmatpush2.bf16.msra.mxu0 0
  %234 = vmatprep.mubr.bf16.mxu0 0
  %235 = vmatmul.mubr.bf16.gmra.mxu0 %v184
  %v236 = vpop.f32.mrf.mxu0
  %v237 = vadd.f32 0.0, %v236
  %v238 = vpop.f32.mrf.mxu0
  %v239 = vadd.f32 0.0, %v238
  %v240 = vpop.f32.mrf.mxu0
  %v241 = vadd.f32 0.0, %v240
  %v242 = vpop.f32.mrf.mxu0
  %v243 = vadd.f32 0.0, %v242
  %244 = vmatprep.mubr.bf16.mxu0 0
  %245 = vmatmul.mubr.bf16.gmra.mxu0 %v187
  %v246 = vpop.f32.mrf.mxu0
  %v247 = vadd.f32 0.0, %v246
  %v248 = vpop.f32.mrf.mxu0
  %v249 = vadd.f32 0.0, %v248
  %v250 = vpop.f32.mrf.mxu0
  %v251 = vadd.f32 0.0, %v250
  %v252 = vpop.f32.mrf.mxu0
  %v253 = vadd.f32 0.0, %v252
  %254 = vdwg.mxu0
  %255 = vmatprep.subr.bf16.mxu0 0
  %256 = vmatpush1.bf16.msra.mxu0 0
  %257 = vmatprep.subr.bf16.mxu0 0
  %258 = vmatpush1.bf16.msra.mxu0 0
  %259 = vmatprep.subr.bf16.mxu0 0
  %260 = vmatpush1.bf16.msra.mxu0 0
  %261 = vmatprep.subr.bf16.mxu0 0
  %262 = vmatpush1.bf16.msra.mxu0 0
  %263 = vmatprep.subr.bf16.mxu0 0
  %264 = vmatpush1.bf16.msra.mxu0 0
  %265 = vmatprep.subr.bf16.mxu0 0
  %266 = vmatpush1.bf16.msra.mxu0 0
  %267 = vmatprep.subr.bf16.mxu0 %v200
  %268 = vmatpush1.bf16.msra.mxu0 %v197
  %269 = vmatprep.subr.bf16.mxu0 %v162
  %270 = vmatpush1.bf16.msra.mxu0 %v161
  %271 = vmatprep.subr.bf16.mxu0 0
  %272 = vmatpush2.bf16.msra.mxu0 0
  %273 = vmatprep.subr.bf16.mxu0 0
  %274 = vmatpush2.bf16.msra.mxu0 0
  %275 = vmatprep.subr.bf16.mxu0 0
  %276 = vmatpush2.bf16.msra.mxu0 0
  %277 = vmatprep.subr.bf16.mxu0 0
  %278 = vmatpush2.bf16.msra.mxu0 0
  %279 = vmatprep.subr.bf16.mxu0 0
  %280 = vmatpush2.bf16.msra.mxu0 0
  %281 = vmatprep.subr.bf16.mxu0 0
  %282 = vmatpush2.bf16.msra.mxu0 0
  %283 = vmatprep.subr.bf16.mxu0 0
  %284 = vmatpush2.bf16.msra.mxu0 0
  %285 = vmatprep.subr.bf16.mxu0 0
  %286 = vmatpush2.bf16.msra.mxu0 0
  %287 = vmatprep.mubr.bf16.mxu0 0
  %288 = vmatmul.mubr.bf16.gmra.mxu0 %v184
  %v289 = vpop.f32.mrf.mxu0
  %v290 = vadd.f32 0.0, %v289
  %v291 = vpop.f32.mrf.mxu0
  %v292 = vadd.f32 0.0, %v291
  %v293 = vpop.f32.mrf.mxu0
  %v294 = vadd.f32 0.0, %v293
  %v295 = vpop.f32.mrf.mxu0
  %v296 = vadd.f32 0.0, %v295
  %297 = vmatprep.mubr.bf16.mxu0 0
  %298 = vmatmul.mubr.bf16.gmra.mxu0 %v187
  %v299 = vpop.f32.mrf.mxu0
  %v300 = vadd.f32 0.0, %v299
  %v301 = vpop.f32.mrf.mxu0
  %v302 = vadd.f32 0.0, %v301
  %v303 = vpop.f32.mrf.mxu0
  %v304 = vadd.f32 0.0, %v303
  %v305 = vpop.f32.mrf.mxu0
  %v306 = vadd.f32 0.0, %v305
  %307 = vdwg.mxu0
  %v312 = vunpack.c.l.b16 %v111
  %v313 = vunpack.c.l.b16 %v112
  %v314 = vunpack.c.l.b16 %v113
  %v315 = vunpack.c.l.b16 %v114
  %v316 = vpack.c.b16 %v313, %v312
  %v317 = vpack.c.b16 %v315, %v314
  %v319 = vsel %vm182, %v316, 0
  %v322 = vsel %vm182, %v317, 0
  %v325 = vsel %vm189, %v107, 0
  %v328 = vsel %vm189, %v108, 0
  %v331 = vsel %vm189, %v109, 0
  %v334 = vsel %vm189, %v110, 0
  %336 = vmatprep.subr.bf16.mxu0 0
  %337 = vmatpush1.bf16.msra.mxu0 0
  %338 = vmatprep.subr.bf16.mxu0 0
  %339 = vmatpush1.bf16.msra.mxu0 0
  %340 = vmatprep.subr.bf16.mxu0 0
  %341 = vmatpush1.bf16.msra.mxu0 0
  %342 = vmatprep.subr.bf16.mxu0 0
  %343 = vmatpush1.bf16.msra.mxu0 0
  %344 = vmatprep.subr.bf16.mxu0 0
  %345 = vmatpush1.bf16.msra.mxu0 0
  %346 = vmatprep.subr.bf16.mxu0 0
  %347 = vmatpush1.bf16.msra.mxu0 0
  %348 = vmatprep.subr.bf16.mxu0 %v328
  %349 = vmatpush1.bf16.msra.mxu0 %v325
  %350 = vmatprep.subr.bf16.mxu0 %v104
  %351 = vmatpush1.bf16.msra.mxu0 %v103
  %352 = vmatprep.subr.bf16.mxu0 0
  %353 = vmatpush2.bf16.msra.mxu0 0
  %354 = vmatprep.subr.bf16.mxu0 0
  %355 = vmatpush2.bf16.msra.mxu0 0
  %356 = vmatprep.subr.bf16.mxu0 0
  %357 = vmatpush2.bf16.msra.mxu0 0
  %358 = vmatprep.subr.bf16.mxu0 0
  %359 = vmatpush2.bf16.msra.mxu0 0
  %360 = vmatprep.subr.bf16.mxu0 0
  %361 = vmatpush2.bf16.msra.mxu0 0
  %362 = vmatprep.subr.bf16.mxu0 0
  %363 = vmatpush2.bf16.msra.mxu0 0
  %364 = vmatprep.subr.bf16.mxu0 0
  %365 = vmatpush2.bf16.msra.mxu0 0
  %366 = vmatprep.subr.bf16.mxu0 0
  %367 = vmatpush2.bf16.msra.mxu0 0
  %368 = vmatprep.mubr.bf16.mxu0 0
  %369 = vmatmul.mubr.bf16.gmra.mxu0 %v319
  %v370 = vpop.f32.mrf.mxu0
  %v371 = vadd.f32 %v237, %v370
  %v372 = vpop.f32.mrf.mxu0
  %v373 = vadd.f32 %v239, %v372
  %v374 = vpop.f32.mrf.mxu0
  %v375 = vadd.f32 %v241, %v374
  %v376 = vpop.f32.mrf.mxu0
  %v377 = vadd.f32 %v243, %v376
  %378 = vmatprep.mubr.bf16.mxu0 0
  %379 = vmatmul.mubr.bf16.gmra.mxu0 %v322
  %v380 = vpop.f32.mrf.mxu0
  %v381 = vadd.f32 %v247, %v380
  %v382 = vpop.f32.mrf.mxu0
  %v383 = vadd.f32 %v249, %v382
  %v384 = vpop.f32.mrf.mxu0
  %v385 = vadd.f32 %v251, %v384
  %v386 = vpop.f32.mrf.mxu0
  %v387 = vadd.f32 %v253, %v386
  %388 = vdwg.mxu0
  %389 = vmatprep.subr.bf16.mxu0 0
  %390 = vmatpush1.bf16.msra.mxu0 0
  %391 = vmatprep.subr.bf16.mxu0 0
  %392 = vmatpush1.bf16.msra.mxu0 0
  %393 = vmatprep.subr.bf16.mxu0 0
  %394 = vmatpush1.bf16.msra.mxu0 0
  %395 = vmatprep.subr.bf16.mxu0 0
  %396 = vmatpush1.bf16.msra.mxu0 0
  %397 = vmatprep.subr.bf16.mxu0 0
  %398 = vmatpush1.bf16.msra.mxu0 0
  %399 = vmatprep.subr.bf16.mxu0 0
  %400 = vmatpush1.bf16.msra.mxu0 0
  %401 = vmatprep.subr.bf16.mxu0 %v334
  %402 = vmatpush1.bf16.msra.mxu0 %v331
  %403 = vmatprep.subr.bf16.mxu0 %v106
  %404 = vmatpush1.bf16.msra.mxu0 %v105
  %405 = vmatprep.subr.bf16.mxu0 0
  %406 = vmatpush2.bf16.msra.mxu0 0
  %407 = vmatprep.subr.bf16.mxu0 0
  %408 = vmatpush2.bf16.msra.mxu0 0
  %409 = vmatprep.subr.bf16.mxu0 0
  %410 = vmatpush2.bf16.msra.mxu0 0
  %411 = vmatprep.subr.bf16.mxu0 0
  %412 = vmatpush2.bf16.msra.mxu0 0
  %413 = vmatprep.subr.bf16.mxu0 0
  %414 = vmatpush2.bf16.msra.mxu0 0
  %415 = vmatprep.subr.bf16.mxu0 0
  %416 = vmatpush2.bf16.msra.mxu0 0
  %417 = vmatprep.subr.bf16.mxu0 0
  %418 = vmatpush2.bf16.msra.mxu0 0
  %419 = vmatprep.subr.bf16.mxu0 0
  %420 = vmatpush2.bf16.msra.mxu0 0
  %421 = vmatprep.mubr.bf16.mxu0 0
  %422 = vmatmul.mubr.bf16.gmra.mxu0 %v319
  %v423 = vpop.f32.mrf.mxu0
  %v424 = vadd.f32 %v290, %v423
  %v425 = vpop.f32.mrf.mxu0
  %v426 = vadd.f32 %v292, %v425
  %v427 = vpop.f32.mrf.mxu0
  %v428 = vadd.f32 %v294, %v427
  %v429 = vpop.f32.mrf.mxu0
  %v430 = vadd.f32 %v296, %v429
  %431 = vmatprep.mubr.bf16.mxu0 0
  %432 = vmatmul.mubr.bf16.gmra.mxu0 %v322
  %v433 = vpop.f32.mrf.mxu0
  %v434 = vadd.f32 %v300, %v433
  %v435 = vpop.f32.mrf.mxu0
  %v436 = vadd.f32 %v302, %v435
  %v437 = vpop.f32.mrf.mxu0
  %v438 = vadd.f32 %v304, %v437
  %v439 = vpop.f32.mrf.mxu0
  %v440 = vadd.f32 %v306, %v439
  %441 = vdwg.mxu0
  %442 = vrot.lane.b32.xlu0 %v24, 113
  %v443 = vpop.permute.xlu0 %442
  %444 = vrot.lane.b32.xlu0 %v25, 113
  %v445 = vpop.permute.xlu0 %444
  %446 = vrot.lane.b32.xlu0 %v26, 113
  %v447 = vpop.permute.xlu0 %446
  %448 = vrot.lane.b32.xlu0 %v27, 113
  %v449 = vpop.permute.xlu0 %448
  %vm450 = vcmp.lt.s32.totalorder %v45, 113
  %v451 = vsel %vm450, %v447, %v449
  %v452 = vsel %vm450, %v445, %v447
  %v453 = vsel %vm450, %v443, %v445
  %v454 = vsel %vm450, %v449, %v443
  %s455 = scalar_lea.vmem %s1, 576
  %v456 = vld [vmem:[%s455] sm:$0xff]
  %v457 = vld [vmem:[%s455 + $0x8] sm:$0xff]
  %v458 = vld [vmem:[%s455 + $0x10] sm:$0xff]
  %v459 = vld [vmem:[%s455 + $0x18] sm:$0xff]
  %v460 = vmul.f32 %v453, %v456
  %v461 = vmul.f32 %v452, %v457
  %v462 = vmul.f32 %v451, %v458
  %v463 = vmul.f32 %v454, %v459
  %464 = vrot.lane.b32.xlu0 %v24, 112
  %v465 = vpop.permute.xlu0 %464
  %466 = vrot.lane.b32.xlu0 %v25, 112
  %v467 = vpop.permute.xlu0 %466
  %468 = vrot.lane.b32.xlu0 %v26, 112
  %v469 = vpop.permute.xlu0 %468
  %470 = vrot.lane.b32.xlu0 %v27, 112
  %v471 = vpop.permute.xlu0 %470
  %vm472 = vcmp.lt.s32.totalorder %v45, 112
  %v473 = vsel %vm472, %v469, %v471
  %v474 = vsel %vm472, %v467, %v469
  %v475 = vsel %vm472, %v465, %v467
  %v476 = vsel %vm472, %v471, %v465
  %s477 = scalar_lea.vmem %s1, 672
  %v478 = vld [vmem:[%s477] sm:$0xff]
  %v479 = vld [vmem:[%s477 + $0x8] sm:$0xff]
  %v480 = vld [vmem:[%s477 + $0x10] sm:$0xff]
  %v481 = vld [vmem:[%s477 + $0x18] sm:$0xff]
  %v482 = vmul.f32 %v475, %v478
  %v483 = vmul.f32 %v474, %v479
  %v484 = vmul.f32 %v473, %v480
  %v485 = vmul.f32 %v476, %v481
  %486 = vrot.lane.b32.xlu0 %v24, 111
  %v487 = vpop.permute.xlu0 %486
  %488 = vrot.lane.b32.xlu0 %v25, 111
  %v489 = vpop.permute.xlu0 %488
  %490 = vrot.lane.b32.xlu0 %v26, 111
  %v491 = vpop.permute.xlu0 %490
  %492 = vrot.lane.b32.xlu0 %v27, 111
  %v493 = vpop.permute.xlu0 %492
  %vm494 = vcmp.lt.s32.totalorder %v45, 111
  %v495 = vsel %vm494, %v491, %v493
  %v496 = vsel %vm494, %v489, %v491
  %v497 = vsel %vm494, %v487, %v489
  %v498 = vsel %vm494, %v493, %v487
  %s499 = scalar_lea.vmem %s1, 768
  %v500 = vld [vmem:[%s499] sm:$0xff]
  %v501 = vld [vmem:[%s499 + $0x8] sm:$0xff]
  %v502 = vld [vmem:[%s499 + $0x10] sm:$0xff]
  %v503 = vld [vmem:[%s499 + $0x18] sm:$0xff]
  %v504 = vmul.f32 %v497, %v500
  %v505 = vmul.f32 %v496, %v501
  %v506 = vmul.f32 %v495, %v502
  %v507 = vmul.f32 %v498, %v503
  %v508 = vpack.c.bf16 %v482, %v460
  %v509 = vpack.c.bf16 %v483, %v461
  %v510 = vpack.c.bf16 %v484, %v462
  %v511 = vpack.c.bf16 %v485, %v463
  %v512 = vpack.c.bf16 %v504, %v504
  %v513 = vpack.c.bf16 %v505, %v505
  %v514 = vpack.c.bf16 %v506, %v506
  %v515 = vpack.c.bf16 %v507, %v507
  %s516 = scalar_lea.vmem %s2, 32
  %v517 = vld [vmem:[%s516] sm:$0xf]
  %v518 = vld [vmem:[%s516 + $0x4] sm:$0xf]
  %v519 = vld [vmem:[%s516 + $0x8] sm:$0xf]
  %v520 = vld [vmem:[%s516 + $0xc] sm:$0xf]
  %v525 = vunpack.c.l.b16 %v517
  %v526 = vunpack.c.l.b16 %v518
  %v527 = vunpack.c.l.b16 %v519
  %v528 = vunpack.c.l.b16 %v520
  %v529 = vpack.c.b16 %v526, %v525
  %v530 = vpack.c.b16 %v528, %v527
  %v532 = vsel %vm182, %v529, 0
  %v535 = vsel %vm182, %v530, 0
  %v538 = vsel %vm189, %v512, 0
  %v541 = vsel %vm189, %v513, 0
  %v544 = vsel %vm189, %v514, 0
  %v547 = vsel %vm189, %v515, 0
  %549 = vmatprep.subr.bf16.mxu0 0
  %550 = vmatpush1.bf16.msra.mxu0 0
  %551 = vmatprep.subr.bf16.mxu0 0
  %552 = vmatpush1.bf16.msra.mxu0 0
  %553 = vmatprep.subr.bf16.mxu0 0
  %554 = vmatpush1.bf16.msra.mxu0 0
  %555 = vmatprep.subr.bf16.mxu0 0
  %556 = vmatpush1.bf16.msra.mxu0 0
  %557 = vmatprep.subr.bf16.mxu0 0
  %558 = vmatpush1.bf16.msra.mxu0 0
  %559 = vmatprep.subr.bf16.mxu0 0
  %560 = vmatpush1.bf16.msra.mxu0 0
  %561 = vmatprep.subr.bf16.mxu0 %v541
  %562 = vmatpush1.bf16.msra.mxu0 %v538
  %563 = vmatprep.subr.bf16.mxu0 %v509
  %564 = vmatpush1.bf16.msra.mxu0 %v508
  %565 = vmatprep.subr.bf16.mxu0 0
  %566 = vmatpush2.bf16.msra.mxu0 0
  %567 = vmatprep.subr.bf16.mxu0 0
  %568 = vmatpush2.bf16.msra.mxu0 0
  %569 = vmatprep.subr.bf16.mxu0 0
  %570 = vmatpush2.bf16.msra.mxu0 0
  %571 = vmatprep.subr.bf16.mxu0 0
  %572 = vmatpush2.bf16.msra.mxu0 0
  %573 = vmatprep.subr.bf16.mxu0 0
  %574 = vmatpush2.bf16.msra.mxu0 0
  %575 = vmatprep.subr.bf16.mxu0 0
  %576 = vmatpush2.bf16.msra.mxu0 0
  %577 = vmatprep.subr.bf16.mxu0 0
  %578 = vmatpush2.bf16.msra.mxu0 0
  %579 = vmatprep.subr.bf16.mxu0 0
  %580 = vmatpush2.bf16.msra.mxu0 0
  %581 = vmatprep.mubr.bf16.mxu0 0
  %582 = vmatmul.mubr.bf16.gmra.mxu0 %v532
  %v583 = vpop.f32.mrf.mxu0
  %v584 = vadd.f32 0.0, %v583
  %v585 = vpop.f32.mrf.mxu0
  %v586 = vadd.f32 0.0, %v585
  %v587 = vpop.f32.mrf.mxu0
  %v588 = vadd.f32 0.0, %v587
  %v589 = vpop.f32.mrf.mxu0
  %v590 = vadd.f32 0.0, %v589
  %591 = vmatprep.mubr.bf16.mxu0 0
  %592 = vmatmul.mubr.bf16.gmra.mxu0 %v535
  %v593 = vpop.f32.mrf.mxu0
  %v594 = vadd.f32 0.0, %v593
  %v595 = vpop.f32.mrf.mxu0
  %v596 = vadd.f32 0.0, %v595
  %v597 = vpop.f32.mrf.mxu0
  %v598 = vadd.f32 0.0, %v597
  %v599 = vpop.f32.mrf.mxu0
  %v600 = vadd.f32 0.0, %v599
  %601 = vdwg.mxu0
  %602 = vmatprep.subr.bf16.mxu0 0
  %603 = vmatpush1.bf16.msra.mxu0 0
  %604 = vmatprep.subr.bf16.mxu0 0
  %605 = vmatpush1.bf16.msra.mxu0 0
  %606 = vmatprep.subr.bf16.mxu0 0
  %607 = vmatpush1.bf16.msra.mxu0 0
  %608 = vmatprep.subr.bf16.mxu0 0
  %609 = vmatpush1.bf16.msra.mxu0 0
  %610 = vmatprep.subr.bf16.mxu0 0
  %611 = vmatpush1.bf16.msra.mxu0 0
  %612 = vmatprep.subr.bf16.mxu0 0
  %613 = vmatpush1.bf16.msra.mxu0 0
  %614 = vmatprep.subr.bf16.mxu0 %v547
  %615 = vmatpush1.bf16.msra.mxu0 %v544
  %616 = vmatprep.subr.bf16.mxu0 %v511
  %617 = vmatpush1.bf16.msra.mxu0 %v510
  %618 = vmatprep.subr.bf16.mxu0 0
  %619 = vmatpush2.bf16.msra.mxu0 0
  %620 = vmatprep.subr.bf16.mxu0 0
  %621 = vmatpush2.bf16.msra.mxu0 0
  %622 = vmatprep.subr.bf16.mxu0 0
  %623 = vmatpush2.bf16.msra.mxu0 0
  %624 = vmatprep.subr.bf16.mxu0 0
  %625 = vmatpush2.bf16.msra.mxu0 0
  %626 = vmatprep.subr.bf16.mxu0 0
  %627 = vmatpush2.bf16.msra.mxu0 0
  %628 = vmatprep.subr.bf16.mxu0 0
  %629 = vmatpush2.bf16.msra.mxu0 0
  %630 = vmatprep.subr.bf16.mxu0 0
  %631 = vmatpush2.bf16.msra.mxu0 0
  %632 = vmatprep.subr.bf16.mxu0 0
  %633 = vmatpush2.bf16.msra.mxu0 0
  %634 = vmatprep.mubr.bf16.mxu0 0
  %635 = vmatmul.mubr.bf16.gmra.mxu0 %v532
  %v636 = vpop.f32.mrf.mxu0
  %v637 = vadd.f32 0.0, %v636
  %v638 = vpop.f32.mrf.mxu0
  %v639 = vadd.f32 0.0, %v638
  %v640 = vpop.f32.mrf.mxu0
  %v641 = vadd.f32 0.0, %v640
  %v642 = vpop.f32.mrf.mxu0
  %v643 = vadd.f32 0.0, %v642
  %644 = vmatprep.mubr.bf16.mxu0 0
  %645 = vmatmul.mubr.bf16.gmra.mxu0 %v535
  %v646 = vpop.f32.mrf.mxu0
  %v647 = vadd.f32 0.0, %v646
  %v648 = vpop.f32.mrf.mxu0
  %v649 = vadd.f32 0.0, %v648
  %v650 = vpop.f32.mrf.mxu0
  %v651 = vadd.f32 0.0, %v650
  %v652 = vpop.f32.mrf.mxu0
  %v653 = vadd.f32 0.0, %v652
  %654 = vdwg.mxu0
  %v655 = vadd.f32 %v371, %v584
  %v656 = vadd.f32 %v373, %v586
  %v657 = vadd.f32 %v424, %v637
  %v658 = vadd.f32 %v426, %v639
  %v659 = vadd.f32 %v375, %v588
  %v660 = vadd.f32 %v377, %v590
  %v661 = vadd.f32 %v428, %v641
  %v662 = vadd.f32 %v430, %v643
  %v663 = vadd.f32 %v381, %v594
  %v664 = vadd.f32 %v383, %v596
  %v665 = vadd.f32 %v434, %v647
  %v666 = vadd.f32 %v436, %v649
  %v667 = vadd.f32 %v385, %v598
  %v668 = vadd.f32 %v387, %v600
  %v669 = vadd.f32 %v438, %v651
  %v670 = vadd.f32 %v440, %v653
  %v671 = vld [vmem:[%s5] sm:$0xff]
  %v672 = vld [vmem:[%s5 + $0x8] sm:$0xff]
  %v673 = vld [vmem:[%s5 + $0x10] sm:$0xff]
  %v674 = vld [vmem:[%s5 + $0x18] sm:$0xff]
  %676 = vset.pattern.permute.xlu0 0
  %677 = vperm.xlu0 %676, %v671
  %v678 = vpop.permute.xlu0 %677
  %681 = vset.pattern.permute.xlu0 0
  %682 = vperm.xlu0 %681, %v672
  %v683 = vpop.permute.xlu0 %682
  %686 = vset.pattern.permute.xlu0 0
  %687 = vperm.xlu0 %686, %v673
  %v688 = vpop.permute.xlu0 %687
  %691 = vset.pattern.permute.xlu0 0
  %692 = vperm.xlu0 %691, %v674
  %v693 = vpop.permute.xlu0 %692
  %v695 = vadd.f32 %v655, %v678
  %v696 = vadd.f32 %v656, %v678
  %v697 = vadd.f32 %v657, %v678
  %v698 = vadd.f32 %v658, %v678
  %v699 = vadd.f32 %v659, %v683
  %v700 = vadd.f32 %v660, %v683
  %v701 = vadd.f32 %v661, %v683
  %v702 = vadd.f32 %v662, %v683
  %v703 = vadd.f32 %v663, %v688
  %v704 = vadd.f32 %v664, %v688
  %v705 = vadd.f32 %v665, %v688
  %v706 = vadd.f32 %v666, %v688
  %v707 = vadd.f32 %v667, %v693
  %v708 = vadd.f32 %v668, %v693
  %v709 = vadd.f32 %v669, %v693
  %v710 = vadd.f32 %v670, %v693
  %v711 = vmax.f32 %v695, 0.0
  %v712 = vmax.f32 %v696, 0.0
  %v713 = vmax.f32 %v697, 0.0
  %v714 = vmax.f32 %v698, 0.0
  %v715 = vmax.f32 %v699, 0.0
  %v716 = vmax.f32 %v700, 0.0
  %v717 = vmax.f32 %v701, 0.0
  %v718 = vmax.f32 %v702, 0.0
  %v719 = vmax.f32 %v703, 0.0
  %v720 = vmax.f32 %v704, 0.0
  %v721 = vmax.f32 %v705, 0.0
  %v722 = vmax.f32 %v706, 0.0
  %v723 = vmax.f32 %v707, 0.0
  %v724 = vmax.f32 %v708, 0.0
  %v725 = vmax.f32 %v709, 0.0
  %v726 = vmax.f32 %v710, 0.0
  %727 = vst [vmem:[#allocation2] sm:$0xff] %v711
  %728 = vst [vmem:[#allocation2 + $0x8] sm:$0xff] %v712
  %729 = vst [vmem:[#allocation2 + $0x10] sm:$0xff] %v713
  %730 = vst [vmem:[#allocation2 + $0x18] sm:$0xff] %v714
  %731 = vst [vmem:[#allocation2 + $0x20] sm:$0xff] %v715
  %732 = vst [vmem:[#allocation2 + $0x28] sm:$0xff] %v716
  %733 = vst [vmem:[#allocation2 + $0x30] sm:$0xff] %v717
  %734 = vst [vmem:[#allocation2 + $0x38] sm:$0xff] %v718
  %735 = vst [vmem:[#allocation2 + $0x40] sm:$0xff] %v719
  %736 = vst [vmem:[#allocation2 + $0x48] sm:$0xff] %v720
  %737 = vst [vmem:[#allocation2 + $0x50] sm:$0xff] %v721
  %738 = vst [vmem:[#allocation2 + $0x58] sm:$0xff] %v722
  %739 = vst [vmem:[#allocation2 + $0x60] sm:$0xff] %v723
  %740 = vst [vmem:[#allocation2 + $0x68] sm:$0xff] %v724
  %741 = vst [vmem:[#allocation2 + $0x70] sm:$0xff] %v725
  %742 = vst [vmem:[#allocation2 + $0x78] sm:$0xff] %v726
  %743 = vrot.lane.b32.xlu0 %v28, 17
  %v744 = vpop.permute.xlu0 %743
  %745 = vrot.lane.b32.xlu0 %v29, 17
  %v746 = vpop.permute.xlu0 %745
  %747 = vrot.lane.b32.xlu0 %v30, 17
  %v748 = vpop.permute.xlu0 %747
  %749 = vrot.lane.b32.xlu0 %v31, 17
  %v750 = vpop.permute.xlu0 %749
  %v751 = vsel %vm46, %v748, %v750
  %v752 = vsel %vm46, %v746, %v748
  %v753 = vsel %vm46, %v744, %v746
  %v754 = vsel %vm46, %v750, %v744
  %v755 = vld [vmem:[%s1] sm:$0xff]
  %v756 = vld [vmem:[%s1 + $0x8] sm:$0xff]
  %v757 = vld [vmem:[%s1 + $0x10] sm:$0xff]
  %v758 = vld [vmem:[%s1 + $0x18] sm:$0xff]
  %v759 = vmul.f32 %v754, %v755
  %v760 = vmul.f32 %v753, %v756
  %v761 = vmul.f32 %v752, %v757
  %v762 = vmul.f32 %v751, %v758
  %763 = vrot.lane.b32.xlu0 %v28, 16
  %v764 = vpop.permute.xlu0 %763
  %765 = vrot.lane.b32.xlu0 %v29, 16
  %v766 = vpop.permute.xlu0 %765
  %767 = vrot.lane.b32.xlu0 %v30, 16
  %v768 = vpop.permute.xlu0 %767
  %769 = vrot.lane.b32.xlu0 %v31, 16
  %v770 = vpop.permute.xlu0 %769
  %v771 = vsel %vm67, %v768, %v770
  %v772 = vsel %vm67, %v766, %v768
  %v773 = vsel %vm67, %v764, %v766
  %v774 = vsel %vm67, %v770, %v764
  %v775 = vld [vmem:[%s72] sm:$0xff]
  %v776 = vld [vmem:[%s72 + $0x8] sm:$0xff]
  %v777 = vld [vmem:[%s72 + $0x10] sm:$0xff]
  %v778 = vld [vmem:[%s72 + $0x18] sm:$0xff]
  %v779 = vmul.f32 %v774, %v775
  %v780 = vmul.f32 %v773, %v776
  %v781 = vmul.f32 %v772, %v777
  %v782 = vmul.f32 %v771, %v778
  %783 = vrot.lane.b32.xlu0 %v28, 15
  %v784 = vpop.permute.xlu0 %783
  %785 = vrot.lane.b32.xlu0 %v29, 15
  %v786 = vpop.permute.xlu0 %785
  %787 = vrot.lane.b32.xlu0 %v30, 15
  %v788 = vpop.permute.xlu0 %787
  %789 = vrot.lane.b32.xlu0 %v31, 15
  %v790 = vpop.permute.xlu0 %789
  %v791 = vsel %vm89, %v788, %v790
  %v792 = vsel %vm89, %v786, %v788
  %v793 = vsel %vm89, %v784, %v786
  %v794 = vsel %vm89, %v790, %v784
  %v795 = vld [vmem:[%s94] sm:$0xff]
  %v796 = vld [vmem:[%s94 + $0x8] sm:$0xff]
  %v797 = vld [vmem:[%s94 + $0x10] sm:$0xff]
  %v798 = vld [vmem:[%s94 + $0x18] sm:$0xff]
  %v799 = vmul.f32 %v794, %v795
  %v800 = vmul.f32 %v793, %v796
  %v801 = vmul.f32 %v792, %v797
  %v802 = vmul.f32 %v791, %v798
  %v803 = vpack.c.bf16 %v779, %v759
  %v804 = vpack.c.bf16 %v780, %v760
  %v805 = vpack.c.bf16 %v781, %v761
  %v806 = vpack.c.bf16 %v782, %v762
  %v807 = vpack.c.bf16 %v799, %v799
  %v808 = vpack.c.bf16 %v800, %v800
  %v809 = vpack.c.bf16 %v801, %v801
  %v810 = vpack.c.bf16 %v802, %v802
  %s811 = scalar_lea.vmem %s2, 48
  %v812 = vld [vmem:[%s811] sm:$0xf]
  %v813 = vld [vmem:[%s811 + $0x4] sm:$0xf]
  %v814 = vld [vmem:[%s811 + $0x8] sm:$0xf]
  %v815 = vld [vmem:[%s811 + $0xc] sm:$0xf]
  %816 = vrot.lane.b32.xlu0 %v28, 1
  %v817 = vpop.permute.xlu0 %816
  %818 = vrot.lane.b32.xlu0 %v29, 1
  %v819 = vpop.permute.xlu0 %818
  %820 = vrot.lane.b32.xlu0 %v30, 1
  %v821 = vpop.permute.xlu0 %820
  %822 = vrot.lane.b32.xlu0 %v31, 1
  %v823 = vpop.permute.xlu0 %822
  %v824 = vsel %vm123, %v821, %v823
  %v825 = vsel %vm123, %v819, %v821
  %v826 = vsel %vm123, %v817, %v819
  %v827 = vsel %vm123, %v823, %v817
  %v828 = vld [vmem:[%s128] sm:$0xff]
  %v829 = vld [vmem:[%s128 + $0x8] sm:$0xff]
  %v830 = vld [vmem:[%s128 + $0x10] sm:$0xff]
  %v831 = vld [vmem:[%s128 + $0x18] sm:$0xff]
  %v832 = vmul.f32 %v827, %v828
  %v833 = vmul.f32 %v826, %v829
  %v834 = vmul.f32 %v825, %v830
  %v835 = vmul.f32 %v824, %v831
  %836 = vrot.lane.b32.xlu0 %v28, 127
  %v837 = vpop.permute.xlu0 %836
  %838 = vrot.lane.b32.xlu0 %v29, 127
  %v839 = vpop.permute.xlu0 %838
  %840 = vrot.lane.b32.xlu0 %v30, 127
  %v841 = vpop.permute.xlu0 %840
  %842 = vrot.lane.b32.xlu0 %v31, 127
  %v843 = vpop.permute.xlu0 %842
  %v844 = vsel %vm145, %v841, %v843
  %v845 = vsel %vm145, %v839, %v841
  %v846 = vsel %vm145, %v837, %v839
  %v847 = vsel %vm145, %v843, %v837
  %v848 = vld [vmem:[%s150] sm:$0xff]
  %v849 = vld [vmem:[%s150 + $0x8] sm:$0xff]
  %v850 = vld [vmem:[%s150 + $0x10] sm:$0xff]
  %v851 = vld [vmem:[%s150 + $0x18] sm:$0xff]
  %v852 = vmul.f32 %v846, %v848
  %v853 = vmul.f32 %v845, %v849
  %v854 = vmul.f32 %v844, %v850
  %v855 = vmul.f32 %v847, %v851
  %v856 = vpack.c.bf16 %v28, %v832
  %v857 = vpack.c.bf16 %v29, %v833
  %v858 = vpack.c.bf16 %v30, %v834
  %v859 = vpack.c.bf16 %v31, %v835
  %v860 = vpack.c.bf16 %v852, %v852
  %v861 = vpack.c.bf16 %v853, %v853
  %v862 = vpack.c.bf16 %v854, %v854
  %v863 = vpack.c.bf16 %v855, %v855
  %s864 = scalar_lea.vmem %s2, 64
  %v865 = vld [vmem:[%s864] sm:$0xf]
  %v866 = vld [vmem:[%s864 + $0x4] sm:$0xf]
  %v867 = vld [vmem:[%s864 + $0x8] sm:$0xf]
  %v868 = vld [vmem:[%s864 + $0xc] sm:$0xf]
  %v873 = vunpack.c.l.b16 %v865
  %v874 = vunpack.c.l.b16 %v866
  %v875 = vunpack.c.l.b16 %v867
  %v876 = vunpack.c.l.b16 %v868
  %v877 = vpack.c.b16 %v874, %v873
  %v878 = vpack.c.b16 %v876, %v875
  %v880 = vsel %vm182, %v877, 0
  %v883 = vsel %vm182, %v878, 0
  %v886 = vsel %vm189, %v860, 0
  %v889 = vsel %vm189, %v861, 0
  %v892 = vsel %vm189, %v862, 0
  %v895 = vsel %vm189, %v863, 0
  %897 = vmatprep.subr.bf16.mxu0 0
  %898 = vmatpush1.bf16.msra.mxu0 0
  %899 = vmatprep.subr.bf16.mxu0 0
  %900 = vmatpush1.bf16.msra.mxu0 0
  %901 = vmatprep.subr.bf16.mxu0 0
  %902 = vmatpush1.bf16.msra.mxu0 0
  %903 = vmatprep.subr.bf16.mxu0 0
  %904 = vmatpush1.bf16.msra.mxu0 0
  %905 = vmatprep.subr.bf16.mxu0 0
  %906 = vmatpush1.bf16.msra.mxu0 0
  %907 = vmatprep.subr.bf16.mxu0 0
  %908 = vmatpush1.bf16.msra.mxu0 0
  %909 = vmatprep.subr.bf16.mxu0 %v889
  %910 = vmatpush1.bf16.msra.mxu0 %v886
  %911 = vmatprep.subr.bf16.mxu0 %v857
  %912 = vmatpush1.bf16.msra.mxu0 %v856
  %913 = vmatprep.subr.bf16.mxu0 0
  %914 = vmatpush2.bf16.msra.mxu0 0
  %915 = vmatprep.subr.bf16.mxu0 0
  %916 = vmatpush2.bf16.msra.mxu0 0
  %917 = vmatprep.subr.bf16.mxu0 0
  %918 = vmatpush2.bf16.msra.mxu0 0
  %919 = vmatprep.subr.bf16.mxu0 0
  %920 = vmatpush2.bf16.msra.mxu0 0
  %921 = vmatprep.subr.bf16.mxu0 0
  %922 = vmatpush2.bf16.msra.mxu0 0
  %923 = vmatprep.subr.bf16.mxu0 0
  %924 = vmatpush2.bf16.msra.mxu0 0
  %925 = vmatprep.subr.bf16.mxu0 0
  %926 = vmatpush2.bf16.msra.mxu0 0
  %927 = vmatprep.subr.bf16.mxu0 0
  %928 = vmatpush2.bf16.msra.mxu0 0
  %929 = vmatprep.mubr.bf16.mxu0 0
  %930 = vmatmul.mubr.bf16.gmra.mxu0 %v880
  %v931 = vpop.f32.mrf.mxu0
  %v932 = vadd.f32 0.0, %v931
  %v933 = vpop.f32.mrf.mxu0
  %v934 = vadd.f32 0.0, %v933
  %v935 = vpop.f32.mrf.mxu0
  %v936 = vadd.f32 0.0, %v935
  %v937 = vpop.f32.mrf.mxu0
  %v938 = vadd.f32 0.0, %v937
  %939 = vmatprep.mubr.bf16.mxu0 0
  %940 = vmatmul.mubr.bf16.gmra.mxu0 %v883
  %v941 = vpop.f32.mrf.mxu0
  %v942 = vadd.f32 0.0, %v941
  %v943 = vpop.f32.mrf.mxu0
  %v944 = vadd.f32 0.0, %v943
  %v945 = vpop.f32.mrf.mxu0
  %v946 = vadd.f32 0.0, %v945
  %v947 = vpop.f32.mrf.mxu0
  %v948 = vadd.f32 0.0, %v947
  %949 = vdwg.mxu0
  %950 = vmatprep.subr.bf16.mxu0 0
  %951 = vmatpush1.bf16.msra.mxu0 0
  %952 = vmatprep.subr.bf16.mxu0 0
  %953 = vmatpush1.bf16.msra.mxu0 0
  %954 = vmatprep.subr.bf16.mxu0 0
  %955 = vmatpush1.bf16.msra.mxu0 0
  %956 = vmatprep.subr.bf16.mxu0 0
  %957 = vmatpush1.bf16.msra.mxu0 0
  %958 = vmatprep.subr.bf16.mxu0 0
  %959 = vmatpush1.bf16.msra.mxu0 0
  %960 = vmatprep.subr.bf16.mxu0 0
  %961 = vmatpush1.bf16.msra.mxu0 0
  %962 = vmatprep.subr.bf16.mxu0 %v895
  %963 = vmatpush1.bf16.msra.mxu0 %v892
  %964 = vmatprep.subr.bf16.mxu0 %v859
  %965 = vmatpush1.bf16.msra.mxu0 %v858
  %966 = vmatprep.subr.bf16.mxu0 0
  %967 = vmatpush2.bf16.msra.mxu0 0
  %968 = vmatprep.subr.bf16.mxu0 0
  %969 = vmatpush2.bf16.msra.mxu0 0
  %970 = vmatprep.subr.bf16.mxu0 0
  %971 = vmatpush2.bf16.msra.mxu0 0
  %972 = vmatprep.subr.bf16.mxu0 0
  %973 = vmatpush2.bf16.msra.mxu0 0
  %974 = vmatprep.subr.bf16.mxu0 0
  %975 = vmatpush2.bf16.msra.mxu0 0
  %976 = vmatprep.subr.bf16.mxu0 0
  %977 = vmatpush2.bf16.msra.mxu0 0
  %978 = vmatprep.subr.bf16.mxu0 0
  %979 = vmatpush2.bf16.msra.mxu0 0
  %980 = vmatprep.subr.bf16.mxu0 0
  %981 = vmatpush2.bf16.msra.mxu0 0
  %982 = vmatprep.mubr.bf16.mxu0 0
  %983 = vmatmul.mubr.bf16.gmra.mxu0 %v880
  %v984 = vpop.f32.mrf.mxu0
  %v985 = vadd.f32 0.0, %v984
  %v986 = vpop.f32.mrf.mxu0
  %v987 = vadd.f32 0.0, %v986
  %v988 = vpop.f32.mrf.mxu0
  %v989 = vadd.f32 0.0, %v988
  %v990 = vpop.f32.mrf.mxu0
  %v991 = vadd.f32 0.0, %v990
  %992 = vmatprep.mubr.bf16.mxu0 0
  %993 = vmatmul.mubr.bf16.gmra.mxu0 %v883
  %v994 = vpop.f32.mrf.mxu0
  %v995 = vadd.f32 0.0, %v994
  %v996 = vpop.f32.mrf.mxu0
  %v997 = vadd.f32 0.0, %v996
  %v998 = vpop.f32.mrf.mxu0
  %v999 = vadd.f32 0.0, %v998
  %v1000 = vpop.f32.mrf.mxu0
  %v1001 = vadd.f32 0.0, %v1000
  %1002 = vdwg.mxu0
  %v1007 = vunpack.c.l.b16 %v812
  %v1008 = vunpack.c.l.b16 %v813
  %v1009 = vunpack.c.l.b16 %v814
  %v1010 = vunpack.c.l.b16 %v815
  %v1011 = vpack.c.b16 %v1008, %v1007
  %v1012 = vpack.c.b16 %v1010, %v1009
  %v1014 = vsel %vm182, %v1011, 0
  %v1017 = vsel %vm182, %v1012, 0
  %v1020 = vsel %vm189, %v807, 0
  %v1023 = vsel %vm189, %v808, 0
  %v1026 = vsel %vm189, %v809, 0
  %v1029 = vsel %vm189, %v810, 0
  %1031 = vmatprep.subr.bf16.mxu0 0
  %1032 = vmatpush1.bf16.msra.mxu0 0
  %1033 = vmatprep.subr.bf16.mxu0 0
  %1034 = vmatpush1.bf16.msra.mxu0 0
  %1035 = vmatprep.subr.bf16.mxu0 0
  %1036 = vmatpush1.bf16.msra.mxu0 0
  %1037 = vmatprep.subr.bf16.mxu0 0
  %1038 = vmatpush1.bf16.msra.mxu0 0
  %1039 = vmatprep.subr.bf16.mxu0 0
  %1040 = vmatpush1.bf16.msra.mxu0 0
  %1041 = vmatprep.subr.bf16.mxu0 0
  %1042 = vmatpush1.bf16.msra.mxu0 0
  %1043 = vmatprep.subr.bf16.mxu0 %v1023
  %1044 = vmatpush1.bf16.msra.mxu0 %v1020
  %1045 = vmatprep.subr.bf16.mxu0 %v804
  %1046 = vmatpush1.bf16.msra.mxu0 %v803
  %1047 = vmatprep.subr.bf16.mxu0 0
  %1048 = vmatpush2.bf16.msra.mxu0 0
  %1049 = vmatprep.subr.bf16.mxu0 0
  %1050 = vmatpush2.bf16.msra.mxu0 0
  %1051 = vmatprep.subr.bf16.mxu0 0
  %1052 = vmatpush2.bf16.msra.mxu0 0
  %1053 = vmatprep.subr.bf16.mxu0 0
  %1054 = vmatpush2.bf16.msra.mxu0 0
  %1055 = vmatprep.subr.bf16.mxu0 0
  %1056 = vmatpush2.bf16.msra.mxu0 0
  %1057 = vmatprep.subr.bf16.mxu0 0
  %1058 = vmatpush2.bf16.msra.mxu0 0
  %1059 = vmatprep.subr.bf16.mxu0 0
  %1060 = vmatpush2.bf16.msra.mxu0 0
  %1061 = vmatprep.subr.bf16.mxu0 0
  %1062 = vmatpush2.bf16.msra.mxu0 0
  %1063 = vmatprep.mubr.bf16.mxu0 0
  %1064 = vmatmul.mubr.bf16.gmra.mxu0 %v1014
  %v1065 = vpop.f32.mrf.mxu0
  %v1066 = vadd.f32 %v932, %v1065
  %v1067 = vpop.f32.mrf.mxu0
  %v1068 = vadd.f32 %v934, %v1067
  %v1069 = vpop.f32.mrf.mxu0
  %v1070 = vadd.f32 %v936, %v1069
  %v1071 = vpop.f32.mrf.mxu0
  %v1072 = vadd.f32 %v938, %v1071
  %1073 = vmatprep.mubr.bf16.mxu0 0
  %1074 = vmatmul.mubr.bf16.gmra.mxu0 %v1017
  %v1075 = vpop.f32.mrf.mxu0
  %v1076 = vadd.f32 %v942, %v1075
  %v1077 = vpop.f32.mrf.mxu0
  %v1078 = vadd.f32 %v944, %v1077
  %v1079 = vpop.f32.mrf.mxu0
  %v1080 = vadd.f32 %v946, %v1079
  %v1081 = vpop.f32.mrf.mxu0
  %v1082 = vadd.f32 %v948, %v1081
  %1083 = vdwg.mxu0
  %1084 = vmatprep.subr.bf16.mxu0 0
  %1085 = vmatpush1.bf16.msra.mxu0 0
  %1086 = vmatprep.subr.bf16.mxu0 0
  %1087 = vmatpush1.bf16.msra.mxu0 0
  %1088 = vmatprep.subr.bf16.mxu0 0
  %1089 = vmatpush1.bf16.msra.mxu0 0
  %1090 = vmatprep.subr.bf16.mxu0 0
  %1091 = vmatpush1.bf16.msra.mxu0 0
  %1092 = vmatprep.subr.bf16.mxu0 0
  %1093 = vmatpush1.bf16.msra.mxu0 0
  %1094 = vmatprep.subr.bf16.mxu0 0
  %1095 = vmatpush1.bf16.msra.mxu0 0
  %1096 = vmatprep.subr.bf16.mxu0 %v1029
  %1097 = vmatpush1.bf16.msra.mxu0 %v1026
  %1098 = vmatprep.subr.bf16.mxu0 %v806
  %1099 = vmatpush1.bf16.msra.mxu0 %v805
  %1100 = vmatprep.subr.bf16.mxu0 0
  %1101 = vmatpush2.bf16.msra.mxu0 0
  %1102 = vmatprep.subr.bf16.mxu0 0
  %1103 = vmatpush2.bf16.msra.mxu0 0
  %1104 = vmatprep.subr.bf16.mxu0 0
  %1105 = vmatpush2.bf16.msra.mxu0 0
  %1106 = vmatprep.subr.bf16.mxu0 0
  %1107 = vmatpush2.bf16.msra.mxu0 0
  %1108 = vmatprep.subr.bf16.mxu0 0
  %1109 = vmatpush2.bf16.msra.mxu0 0
  %1110 = vmatprep.subr.bf16.mxu0 0
  %1111 = vmatpush2.bf16.msra.mxu0 0
  %1112 = vmatprep.subr.bf16.mxu0 0
  %1113 = vmatpush2.bf16.msra.mxu0 0
  %1114 = vmatprep.subr.bf16.mxu0 0
  %1115 = vmatpush2.bf16.msra.mxu0 0
  %1116 = vmatprep.mubr.bf16.mxu0 0
  %1117 = vmatmul.mubr.bf16.gmra.mxu0 %v1014
  %v1118 = vpop.f32.mrf.mxu0
  %v1119 = vadd.f32 %v985, %v1118
  %v1120 = vpop.f32.mrf.mxu0
  %v1121 = vadd.f32 %v987, %v1120
  %v1122 = vpop.f32.mrf.mxu0
  %v1123 = vadd.f32 %v989, %v1122
  %v1124 = vpop.f32.mrf.mxu0
  %v1125 = vadd.f32 %v991, %v1124
  %1126 = vmatprep.mubr.bf16.mxu0 0
  %1127 = vmatmul.mubr.bf16.gmra.mxu0 %v1017
  %v1128 = vpop.f32.mrf.mxu0
  %v1129 = vadd.f32 %v995, %v1128
  %v1130 = vpop.f32.mrf.mxu0
  %v1131 = vadd.f32 %v997, %v1130
  %v1132 = vpop.f32.mrf.mxu0
  %v1133 = vadd.f32 %v999, %v1132
  %v1134 = vpop.f32.mrf.mxu0
  %v1135 = vadd.f32 %v1001, %v1134
  %1136 = vdwg.mxu0
  %1137 = vrot.lane.b32.xlu0 %v28, 113
  %v1138 = vpop.permute.xlu0 %1137
  %1139 = vrot.lane.b32.xlu0 %v29, 113
  %v1140 = vpop.permute.xlu0 %1139
  %1141 = vrot.lane.b32.xlu0 %v30, 113
  %v1142 = vpop.permute.xlu0 %1141
  %1143 = vrot.lane.b32.xlu0 %v31, 113
  %v1144 = vpop.permute.xlu0 %1143
  %v1145 = vsel %vm450, %v1142, %v1144
  %v1146 = vsel %vm450, %v1140, %v1142
  %v1147 = vsel %vm450, %v1138, %v1140
  %v1148 = vsel %vm450, %v1144, %v1138
  %v1149 = vld [vmem:[%s455] sm:$0xff]
  %v1150 = vld [vmem:[%s455 + $0x8] sm:$0xff]
  %v1151 = vld [vmem:[%s455 + $0x10] sm:$0xff]
  %v1152 = vld [vmem:[%s455 + $0x18] sm:$0xff]
  %v1153 = vmul.f32 %v1147, %v1149
  %v1154 = vmul.f32 %v1146, %v1150
  %v1155 = vmul.f32 %v1145, %v1151
  %v1156 = vmul.f32 %v1148, %v1152
  %1157 = vrot.lane.b32.xlu0 %v28, 112
  %v1158 = vpop.permute.xlu0 %1157
  %1159 = vrot.lane.b32.xlu0 %v29, 112
  %v1160 = vpop.permute.xlu0 %1159
  %1161 = vrot.lane.b32.xlu0 %v30, 112
  %v1162 = vpop.permute.xlu0 %1161
  %1163 = vrot.lane.b32.xlu0 %v31, 112
  %v1164 = vpop.permute.xlu0 %1163
  %v1165 = vsel %vm472, %v1162, %v1164
  %v1166 = vsel %vm472, %v1160, %v1162
  %v1167 = vsel %vm472, %v1158, %v1160
  %v1168 = vsel %vm472, %v1164, %v1158
  %v1169 = vld [vmem:[%s477] sm:$0xff]
  %v1170 = vld [vmem:[%s477 + $0x8] sm:$0xff]
  %v1171 = vld [vmem:[%s477 + $0x10] sm:$0xff]
  %v1172 = vld [vmem:[%s477 + $0x18] sm:$0xff]
  %v1173 = vmul.f32 %v1167, %v1169
  %v1174 = vmul.f32 %v1166, %v1170
  %v1175 = vmul.f32 %v1165, %v1171
  %v1176 = vmul.f32 %v1168, %v1172
  %1177 = vrot.lane.b32.xlu0 %v28, 111
  %v1178 = vpop.permute.xlu0 %1177
  %1179 = vrot.lane.b32.xlu0 %v29, 111
  %v1180 = vpop.permute.xlu0 %1179
  %1181 = vrot.lane.b32.xlu0 %v30, 111
  %v1182 = vpop.permute.xlu0 %1181
  %1183 = vrot.lane.b32.xlu0 %v31, 111
  %v1184 = vpop.permute.xlu0 %1183
  %v1185 = vsel %vm494, %v1182, %v1184
  %v1186 = vsel %vm494, %v1180, %v1182
  %v1187 = vsel %vm494, %v1178, %v1180
  %v1188 = vsel %vm494, %v1184, %v1178
  %v1189 = vld [vmem:[%s499] sm:$0xff]
  %v1190 = vld [vmem:[%s499 + $0x8] sm:$0xff]
  %v1191 = vld [vmem:[%s499 + $0x10] sm:$0xff]
  %v1192 = vld [vmem:[%s499 + $0x18] sm:$0xff]
  %v1193 = vmul.f32 %v1187, %v1189
  %v1194 = vmul.f32 %v1186, %v1190
  %v1195 = vmul.f32 %v1185, %v1191
  %v1196 = vmul.f32 %v1188, %v1192
  %v1197 = vpack.c.bf16 %v1173, %v1153
  %v1198 = vpack.c.bf16 %v1174, %v1154
  %v1199 = vpack.c.bf16 %v1175, %v1155
  %v1200 = vpack.c.bf16 %v1176, %v1156
  %v1201 = vpack.c.bf16 %v1193, %v1193
  %v1202 = vpack.c.bf16 %v1194, %v1194
  %v1203 = vpack.c.bf16 %v1195, %v1195
  %v1204 = vpack.c.bf16 %v1196, %v1196
  %s1205 = scalar_lea.vmem %s2, 80
  %v1206 = vld [vmem:[%s1205] sm:$0xf]
  %v1207 = vld [vmem:[%s1205 + $0x4] sm:$0xf]
  %v1208 = vld [vmem:[%s1205 + $0x8] sm:$0xf]
  %v1209 = vld [vmem:[%s1205 + $0xc] sm:$0xf]
  %v1214 = vunpack.c.l.b16 %v1206
  %v1215 = vunpack.c.l.b16 %v1207
  %v1216 = vunpack.c.l.b16 %v1208
  %v1217 = vunpack.c.l.b16 %v1209
  %v1218 = vpack.c.b16 %v1215, %v1214
  %v1219 = vpack.c.b16 %v1217, %v1216
  %v1221 = vsel %vm182, %v1218, 0
  %v1224 = vsel %vm182, %v1219, 0
  %v1227 = vsel %vm189, %v1201, 0
  %v1230 = vsel %vm189, %v1202, 0
  %v1233 = vsel %vm189, %v1203, 0
  %v1236 = vsel %vm189, %v1204, 0
  %1238 = vmatprep.subr.bf16.mxu0 0
  %1239 = vmatpush1.bf16.msra.mxu0 0
  %1240 = vmatprep.subr.bf16.mxu0 0
  %1241 = vmatpush1.bf16.msra.mxu0 0
  %1242 = vmatprep.subr.bf16.mxu0 0
  %1243 = vmatpush1.bf16.msra.mxu0 0
  %1244 = vmatprep.subr.bf16.mxu0 0
  %1245 = vmatpush1.bf16.msra.mxu0 0
  %1246 = vmatprep.subr.bf16.mxu0 0
  %1247 = vmatpush1.bf16.msra.mxu0 0
  %1248 = vmatprep.subr.bf16.mxu0 0
  %1249 = vmatpush1.bf16.msra.mxu0 0
  %1250 = vmatprep.subr.bf16.mxu0 %v1230
  %1251 = vmatpush1.bf16.msra.mxu0 %v1227
  %1252 = vmatprep.subr.bf16.mxu0 %v1198
  %1253 = vmatpush1.bf16.msra.mxu0 %v1197
  %1254 = vmatprep.subr.bf16.mxu0 0
  %1255 = vmatpush2.bf16.msra.mxu0 0
  %1256 = vmatprep.subr.bf16.mxu0 0
  %1257 = vmatpush2.bf16.msra.mxu0 0
  %1258 = vmatprep.subr.bf16.mxu0 0
  %1259 = vmatpush2.bf16.msra.mxu0 0
  %1260 = vmatprep.subr.bf16.mxu0 0
  %1261 = vmatpush2.bf16.msra.mxu0 0
  %1262 = vmatprep.subr.bf16.mxu0 0
  %1263 = vmatpush2.bf16.msra.mxu0 0
  %1264 = vmatprep.subr.bf16.mxu0 0
  %1265 = vmatpush2.bf16.msra.mxu0 0
  %1266 = vmatprep.subr.bf16.mxu0 0
  %1267 = vmatpush2.bf16.msra.mxu0 0
  %1268 = vmatprep.subr.bf16.mxu0 0
  %1269 = vmatpush2.bf16.msra.mxu0 0
  %1270 = vmatprep.mubr.bf16.mxu0 0
  %1271 = vmatmul.mubr.bf16.gmra.mxu0 %v1221
  %v1272 = vpop.f32.mrf.mxu0
  %v1273 = vadd.f32 0.0, %v1272
  %v1274 = vpop.f32.mrf.mxu0
  %v1275 = vadd.f32 0.0, %v1274
  %v1276 = vpop.f32.mrf.mxu0
  %v1277 = vadd.f32 0.0, %v1276
  %v1278 = vpop.f32.mrf.mxu0
  %v1279 = vadd.f32 0.0, %v1278
  %1280 = vmatprep.mubr.bf16.mxu0 0
  %1281 = vmatmul.mubr.bf16.gmra.mxu0 %v1224
  %v1282 = vpop.f32.mrf.mxu0
  %v1283 = vadd.f32 0.0, %v1282
  %v1284 = vpop.f32.mrf.mxu0
  %v1285 = vadd.f32 0.0, %v1284
  %v1286 = vpop.f32.mrf.mxu0
  %v1287 = vadd.f32 0.0, %v1286
  %v1288 = vpop.f32.mrf.mxu0
  %v1289 = vadd.f32 0.0, %v1288
  %1290 = vdwg.mxu0
  %1291 = vmatprep.subr.bf16.mxu0 0
  %1292 = vmatpush1.bf16.msra.mxu0 0
  %1293 = vmatprep.subr.bf16.mxu0 0
  %1294 = vmatpush1.bf16.msra.mxu0 0
  %1295 = vmatprep.subr.bf16.mxu0 0
  %1296 = vmatpush1.bf16.msra.mxu0 0
  %1297 = vmatprep.subr.bf16.mxu0 0
  %1298 = vmatpush1.bf16.msra.mxu0 0
  %1299 = vmatprep.subr.bf16.mxu0 0
  %1300 = vmatpush1.bf16.msra.mxu0 0
  %1301 = vmatprep.subr.bf16.mxu0 0
  %1302 = vmatpush1.bf16.msra.mxu0 0
  %1303 = vmatprep.subr.bf16.mxu0 %v1236
  %1304 = vmatpush1.bf16.msra.mxu0 %v1233
  %1305 = vmatprep.subr.bf16.mxu0 %v1200
  %1306 = vmatpush1.bf16.msra.mxu0 %v1199
  %1307 = vmatprep.subr.bf16.mxu0 0
  %1308 = vmatpush2.bf16.msra.mxu0 0
  %1309 = vmatprep.subr.bf16.mxu0 0
  %1310 = vmatpush2.bf16.msra.mxu0 0
  %1311 = vmatprep.subr.bf16.mxu0 0
  %1312 = vmatpush2.bf16.msra.mxu0 0
  %1313 = vmatprep.subr.bf16.mxu0 0
  %1314 = vmatpush2.bf16.msra.mxu0 0
  %1315 = vmatprep.subr.bf16.mxu0 0
  %1316 = vmatpush2.bf16.msra.mxu0 0
  %1317 = vmatprep.subr.bf16.mxu0 0
  %1318 = vmatpush2.bf16.msra.mxu0 0
  %1319 = vmatprep.subr.bf16.mxu0 0
  %1320 = vmatpush2.bf16.msra.mxu0 0
  %1321 = vmatprep.subr.bf16.mxu0 0
  %1322 = vmatpush2.bf16.msra.mxu0 0
  %1323 = vmatprep.mubr.bf16.mxu0 0
  %1324 = vmatmul.mubr.bf16.gmra.mxu0 %v1221
  %v1325 = vpop.f32.mrf.mxu0
  %v1326 = vadd.f32 0.0, %v1325
  %v1327 = vpop.f32.mrf.mxu0
  %v1328 = vadd.f32 0.0, %v1327
  %v1329 = vpop.f32.mrf.mxu0
  %v1330 = vadd.f32 0.0, %v1329
  %v1331 = vpop.f32.mrf.mxu0
  %v1332 = vadd.f32 0.0, %v1331
  %1333 = vmatprep.mubr.bf16.mxu0 0
  %1334 = vmatmul.mubr.bf16.gmra.mxu0 %v1224
  %v1335 = vpop.f32.mrf.mxu0
  %v1336 = vadd.f32 0.0, %v1335
  %v1337 = vpop.f32.mrf.mxu0
  %v1338 = vadd.f32 0.0, %v1337
  %v1339 = vpop.f32.mrf.mxu0
  %v1340 = vadd.f32 0.0, %v1339
  %v1341 = vpop.f32.mrf.mxu0
  %v1342 = vadd.f32 0.0, %v1341
  %1343 = vdwg.mxu0
  %v1344 = vadd.f32 %v1066, %v1273
  %v1345 = vadd.f32 %v1068, %v1275
  %v1346 = vadd.f32 %v1119, %v1326
  %v1347 = vadd.f32 %v1121, %v1328
  %v1348 = vadd.f32 %v1070, %v1277
  %v1349 = vadd.f32 %v1072, %v1279
  %v1350 = vadd.f32 %v1123, %v1330
  %v1351 = vadd.f32 %v1125, %v1332
  %v1352 = vadd.f32 %v1076, %v1283
  %v1353 = vadd.f32 %v1078, %v1285
  %v1354 = vadd.f32 %v1129, %v1336
  %v1355 = vadd.f32 %v1131, %v1338
  %v1356 = vadd.f32 %v1080, %v1287
  %v1357 = vadd.f32 %v1082, %v1289
  %v1358 = vadd.f32 %v1133, %v1340
  %v1359 = vadd.f32 %v1135, %v1342
  %v1360 = vld [vmem:[%s5 + $0x20] sm:$0xff]
  %v1361 = vld [vmem:[%s5 + $0x28] sm:$0xff]
  %v1362 = vld [vmem:[%s5 + $0x30] sm:$0xff]
  %v1363 = vld [vmem:[%s5 + $0x38] sm:$0xff]
  %1365 = vset.pattern.permute.xlu0 0
  %1366 = vperm.xlu0 %1365, %v1360
  %v1367 = vpop.permute.xlu0 %1366
  %1370 = vset.pattern.permute.xlu0 0
  %1371 = vperm.xlu0 %1370, %v1361
  %v1372 = vpop.permute.xlu0 %1371
  %1375 = vset.pattern.permute.xlu0 0
  %1376 = vperm.xlu0 %1375, %v1362
  %v1377 = vpop.permute.xlu0 %1376
  %1380 = vset.pattern.permute.xlu0 0
  %1381 = vperm.xlu0 %1380, %v1363
  %v1382 = vpop.permute.xlu0 %1381
  %v1384 = vadd.f32 %v1344, %v1367
  %v1385 = vadd.f32 %v1345, %v1367
  %v1386 = vadd.f32 %v1346, %v1367
  %v1387 = vadd.f32 %v1347, %v1367
  %v1388 = vadd.f32 %v1348, %v1372
  %v1389 = vadd.f32 %v1349, %v1372
  %v1390 = vadd.f32 %v1350, %v1372
  %v1391 = vadd.f32 %v1351, %v1372
  %v1392 = vadd.f32 %v1352, %v1377
  %v1393 = vadd.f32 %v1353, %v1377
  %v1394 = vadd.f32 %v1354, %v1377
  %v1395 = vadd.f32 %v1355, %v1377
  %v1396 = vadd.f32 %v1356, %v1382
  %v1397 = vadd.f32 %v1357, %v1382
  %v1398 = vadd.f32 %v1358, %v1382
  %v1399 = vadd.f32 %v1359, %v1382
  %v1400 = vmax.f32 %v1384, 0.0
  %v1401 = vmax.f32 %v1385, 0.0
  %v1402 = vmax.f32 %v1386, 0.0
  %v1403 = vmax.f32 %v1387, 0.0
  %v1404 = vmax.f32 %v1388, 0.0
  %v1405 = vmax.f32 %v1389, 0.0
  %v1406 = vmax.f32 %v1390, 0.0
  %v1407 = vmax.f32 %v1391, 0.0
  %v1408 = vmax.f32 %v1392, 0.0
  %v1409 = vmax.f32 %v1393, 0.0
  %v1410 = vmax.f32 %v1394, 0.0
  %v1411 = vmax.f32 %v1395, 0.0
  %v1412 = vmax.f32 %v1396, 0.0
  %v1413 = vmax.f32 %v1397, 0.0
  %v1414 = vmax.f32 %v1398, 0.0
  %v1415 = vmax.f32 %v1399, 0.0
  %1416 = vst [vmem:[#allocation2 + $0x80] sm:$0xff] %v1400
  %1417 = vst [vmem:[#allocation2 + $0x88] sm:$0xff] %v1401
  %1418 = vst [vmem:[#allocation2 + $0x90] sm:$0xff] %v1402
  %1419 = vst [vmem:[#allocation2 + $0x98] sm:$0xff] %v1403
  %1420 = vst [vmem:[#allocation2 + $0xa0] sm:$0xff] %v1404
  %1421 = vst [vmem:[#allocation2 + $0xa8] sm:$0xff] %v1405
  %1422 = vst [vmem:[#allocation2 + $0xb0] sm:$0xff] %v1406
  %1423 = vst [vmem:[#allocation2 + $0xb8] sm:$0xff] %v1407
  %1424 = vst [vmem:[#allocation2 + $0xc0] sm:$0xff] %v1408
  %1425 = vst [vmem:[#allocation2 + $0xc8] sm:$0xff] %v1409
  %1426 = vst [vmem:[#allocation2 + $0xd0] sm:$0xff] %v1410
  %1427 = vst [vmem:[#allocation2 + $0xd8] sm:$0xff] %v1411
  %1428 = vst [vmem:[#allocation2 + $0xe0] sm:$0xff] %v1412
  %1429 = vst [vmem:[#allocation2 + $0xe8] sm:$0xff] %v1413
  %1430 = vst [vmem:[#allocation2 + $0xf0] sm:$0xff] %v1414
  %1431 = vst [vmem:[#allocation2 + $0xf8] sm:$0xff] %v1415
  %1432 = vrot.lane.b32.xlu0 %v32, 17
  %v1433 = vpop.permute.xlu0 %1432
  %1434 = vrot.lane.b32.xlu0 %v33, 17
  %v1435 = vpop.permute.xlu0 %1434
  %1436 = vrot.lane.b32.xlu0 %v34, 17
  %v1437 = vpop.permute.xlu0 %1436
  %1438 = vrot.lane.b32.xlu0 %v35, 17
  %v1439 = vpop.permute.xlu0 %1438
  %v1440 = vsel %vm46, %v1437, %v1439
  %v1441 = vsel %vm46, %v1435, %v1437
  %v1442 = vsel %vm46, %v1433, %v1435
  %v1443 = vsel %vm46, %v1439, %v1433
  %v1444 = vld [vmem:[%s1] sm:$0xff]
  %v1445 = vld [vmem:[%s1 + $0x8] sm:$0xff]
  %v1446 = vld [vmem:[%s1 + $0x10] sm:$0xff]
  %v1447 = vld [vmem:[%s1 + $0x18] sm:$0xff]
  %v1448 = vmul.f32 %v1443, %v1444
  %v1449 = vmul.f32 %v1442, %v1445
  %v1450 = vmul.f32 %v1441, %v1446
  %v1451 = vmul.f32 %v1440, %v1447
  %1452 = vrot.lane.b32.xlu0 %v32, 16
  %v1453 = vpop.permute.xlu0 %1452
  %1454 = vrot.lane.b32.xlu0 %v33, 16
  %v1455 = vpop.permute.xlu0 %1454
  %1456 = vrot.lane.b32.xlu0 %v34, 16
  %v1457 = vpop.permute.xlu0 %1456
  %1458 = vrot.lane.b32.xlu0 %v35, 16
  %v1459 = vpop.permute.xlu0 %1458
  %v1460 = vsel %vm67, %v1457, %v1459
  %v1461 = vsel %vm67, %v1455, %v1457
  %v1462 = vsel %vm67, %v1453, %v1455
  %v1463 = vsel %vm67, %v1459, %v1453
  %v1464 = vld [vmem:[%s72] sm:$0xff]
  %v1465 = vld [vmem:[%s72 + $0x8] sm:$0xff]
  %v1466 = vld [vmem:[%s72 + $0x10] sm:$0xff]
  %v1467 = vld [vmem:[%s72 + $0x18] sm:$0xff]
  %v1468 = vmul.f32 %v1463, %v1464
  %v1469 = vmul.f32 %v1462, %v1465
  %v1470 = vmul.f32 %v1461, %v1466
  %v1471 = vmul.f32 %v1460, %v1467
  %1472 = vrot.lane.b32.xlu0 %v32, 15
  %v1473 = vpop.permute.xlu0 %1472
  %1474 = vrot.lane.b32.xlu0 %v33, 15
  %v1475 = vpop.permute.xlu0 %1474
  %1476 = vrot.lane.b32.xlu0 %v34, 15
  %v1477 = vpop.permute.xlu0 %1476
  %1478 = vrot.lane.b32.xlu0 %v35, 15
  %v1479 = vpop.permute.xlu0 %1478
  %v1480 = vsel %vm89, %v1477, %v1479
  %v1481 = vsel %vm89, %v1475, %v1477
  %v1482 = vsel %vm89, %v1473, %v1475
  %v1483 = vsel %vm89, %v1479, %v1473
  %v1484 = vld [vmem:[%s94] sm:$0xff]
  %v1485 = vld [vmem:[%s94 + $0x8] sm:$0xff]
  %v1486 = vld [vmem:[%s94 + $0x10] sm:$0xff]
  %v1487 = vld [vmem:[%s94 + $0x18] sm:$0xff]
  %v1488 = vmul.f32 %v1483, %v1484
  %v1489 = vmul.f32 %v1482, %v1485
  %v1490 = vmul.f32 %v1481, %v1486
  %v1491 = vmul.f32 %v1480, %v1487
  %v1492 = vpack.c.bf16 %v1468, %v1448
  %v1493 = vpack.c.bf16 %v1469, %v1449
  %v1494 = vpack.c.bf16 %v1470, %v1450
  %v1495 = vpack.c.bf16 %v1471, %v1451
  %v1496 = vpack.c.bf16 %v1488, %v1488
  %v1497 = vpack.c.bf16 %v1489, %v1489
  %v1498 = vpack.c.bf16 %v1490, %v1490
  %v1499 = vpack.c.bf16 %v1491, %v1491
  %s1500 = scalar_lea.vmem %s2, 96
  %v1501 = vld [vmem:[%s1500] sm:$0xf]
  %v1502 = vld [vmem:[%s1500 + $0x4] sm:$0xf]
  %v1503 = vld [vmem:[%s1500 + $0x8] sm:$0xf]
  %v1504 = vld [vmem:[%s1500 + $0xc] sm:$0xf]
  %1505 = vrot.lane.b32.xlu0 %v32, 1
  %v1506 = vpop.permute.xlu0 %1505
  %1507 = vrot.lane.b32.xlu0 %v33, 1
  %v1508 = vpop.permute.xlu0 %1507
  %1509 = vrot.lane.b32.xlu0 %v34, 1
  %v1510 = vpop.permute.xlu0 %1509
  %1511 = vrot.lane.b32.xlu0 %v35, 1
  %v1512 = vpop.permute.xlu0 %1511
  %v1513 = vsel %vm123, %v1510, %v1512
  %v1514 = vsel %vm123, %v1508, %v1510
  %v1515 = vsel %vm123, %v1506, %v1508
  %v1516 = vsel %vm123, %v1512, %v1506
  %v1517 = vld [vmem:[%s128] sm:$0xff]
  %v1518 = vld [vmem:[%s128 + $0x8] sm:$0xff]
  %v1519 = vld [vmem:[%s128 + $0x10] sm:$0xff]
  %v1520 = vld [vmem:[%s128 + $0x18] sm:$0xff]
  %v1521 = vmul.f32 %v1516, %v1517
  %v1522 = vmul.f32 %v1515, %v1518
  %v1523 = vmul.f32 %v1514, %v1519
  %v1524 = vmul.f32 %v1513, %v1520
  %1525 = vrot.lane.b32.xlu0 %v32, 127
  %v1526 = vpop.permute.xlu0 %1525
  %1527 = vrot.lane.b32.xlu0 %v33, 127
  %v1528 = vpop.permute.xlu0 %1527
  %1529 = vrot.lane.b32.xlu0 %v34, 127
  %v1530 = vpop.permute.xlu0 %1529
  %1531 = vrot.lane.b32.xlu0 %v35, 127
  %v1532 = vpop.permute.xlu0 %1531
  %v1533 = vsel %vm145, %v1530, %v1532
  %v1534 = vsel %vm145, %v1528, %v1530
  %v1535 = vsel %vm145, %v1526, %v1528
  %v1536 = vsel %vm145, %v1532, %v1526
  %v1537 = vld [vmem:[%s150] sm:$0xff]
  %v1538 = vld [vmem:[%s150 + $0x8] sm:$0xff]
  %v1539 = vld [vmem:[%s150 + $0x10] sm:$0xff]
  %v1540 = vld [vmem:[%s150 + $0x18] sm:$0xff]
  %v1541 = vmul.f32 %v1535, %v1537
  %v1542 = vmul.f32 %v1534, %v1538
  %v1543 = vmul.f32 %v1533, %v1539
  %v1544 = vmul.f32 %v1536, %v1540
  %v1545 = vpack.c.bf16 %v32, %v1521
  %v1546 = vpack.c.bf16 %v33, %v1522
  %v1547 = vpack.c.bf16 %v34, %v1523
  %v1548 = vpack.c.bf16 %v35, %v1524
  %v1549 = vpack.c.bf16 %v1541, %v1541
  %v1550 = vpack.c.bf16 %v1542, %v1542
  %v1551 = vpack.c.bf16 %v1543, %v1543
  %v1552 = vpack.c.bf16 %v1544, %v1544
  %s1553 = scalar_lea.vmem %s2, 112
  %v1554 = vld [vmem:[%s1553] sm:$0xf]
  %v1555 = vld [vmem:[%s1553 + $0x4] sm:$0xf]
  %v1556 = vld [vmem:[%s1553 + $0x8] sm:$0xf]
  %v1557 = vld [vmem:[%s1553 + $0xc] sm:$0xf]
  %v1562 = vunpack.c.l.b16 %v1554
  %v1563 = vunpack.c.l.b16 %v1555
  %v1564 = vunpack.c.l.b16 %v1556
  %v1565 = vunpack.c.l.b16 %v1557
  %v1566 = vpack.c.b16 %v1563, %v1562
  %v1567 = vpack.c.b16 %v1565, %v1564
  %v1569 = vsel %vm182, %v1566, 0
  %v1572 = vsel %vm182, %v1567, 0
  %v1575 = vsel %vm189, %v1549, 0
  %v1578 = vsel %vm189, %v1550, 0
  %v1581 = vsel %vm189, %v1551, 0
  %v1584 = vsel %vm189, %v1552, 0
  %1586 = vmatprep.subr.bf16.mxu0 0
  %1587 = vmatpush1.bf16.msra.mxu0 0
  %1588 = vmatprep.subr.bf16.mxu0 0
  %1589 = vmatpush1.bf16.msra.mxu0 0
  %1590 = vmatprep.subr.bf16.mxu0 0
  %1591 = vmatpush1.bf16.msra.mxu0 0
  %1592 = vmatprep.subr.bf16.mxu0 0
  %1593 = vmatpush1.bf16.msra.mxu0 0
  %1594 = vmatprep.subr.bf16.mxu0 0
  %1595 = vmatpush1.bf16.msra.mxu0 0
  %1596 = vmatprep.subr.bf16.mxu0 0
  %1597 = vmatpush1.bf16.msra.mxu0 0
  %1598 = vmatprep.subr.bf16.mxu0 %v1578
  %1599 = vmatpush1.bf16.msra.mxu0 %v1575
  %1600 = vmatprep.subr.bf16.mxu0 %v1546
  %1601 = vmatpush1.bf16.msra.mxu0 %v1545
  %1602 = vmatprep.subr.bf16.mxu0 0
  %1603 = vmatpush2.bf16.msra.mxu0 0
  %1604 = vmatprep.subr.bf16.mxu0 0
  %1605 = vmatpush2.bf16.msra.mxu0 0
  %1606 = vmatprep.subr.bf16.mxu0 0
  %1607 = vmatpush2.bf16.msra.mxu0 0
  %1608 = vmatprep.subr.bf16.mxu0 0
  %1609 = vmatpush2.bf16.msra.mxu0 0
  %1610 = vmatprep.subr.bf16.mxu0 0
  %1611 = vmatpush2.bf16.msra.mxu0 0
  %1612 = vmatprep.subr.bf16.mxu0 0
  %1613 = vmatpush2.bf16.msra.mxu0 0
  %1614 = vmatprep.subr.bf16.mxu0 0
  %1615 = vmatpush2.bf16.msra.mxu0 0
  %1616 = vmatprep.subr.bf16.mxu0 0
  %1617 = vmatpush2.bf16.msra.mxu0 0
  %1618 = vmatprep.mubr.bf16.mxu0 0
  %1619 = vmatmul.mubr.bf16.gmra.mxu0 %v1569
  %v1620 = vpop.f32.mrf.mxu0
  %v1621 = vadd.f32 0.0, %v1620
  %v1622 = vpop.f32.mrf.mxu0
  %v1623 = vadd.f32 0.0, %v1622
  %v1624 = vpop.f32.mrf.mxu0
  %v1625 = vadd.f32 0.0, %v1624
  %v1626 = vpop.f32.mrf.mxu0
  %v1627 = vadd.f32 0.0, %v1626
  %1628 = vmatprep.mubr.bf16.mxu0 0
  %1629 = vmatmul.mubr.bf16.gmra.mxu0 %v1572
  %v1630 = vpop.f32.mrf.mxu0
  %v1631 = vadd.f32 0.0, %v1630
  %v1632 = vpop.f32.mrf.mxu0
  %v1633 = vadd.f32 0.0, %v1632
  %v1634 = vpop.f32.mrf.mxu0
  %v1635 = vadd.f32 0.0, %v1634
  %v1636 = vpop.f32.mrf.mxu0
  %v1637 = vadd.f32 0.0, %v1636
  %1638 = vdwg.mxu0
  %1639 = vmatprep.subr.bf16.mxu0 0
  %1640 = vmatpush1.bf16.msra.mxu0 0
  %1641 = vmatprep.subr.bf16.mxu0 0
  %1642 = vmatpush1.bf16.msra.mxu0 0
  %1643 = vmatprep.subr.bf16.mxu0 0
  %1644 = vmatpush1.bf16.msra.mxu0 0
  %1645 = vmatprep.subr.bf16.mxu0 0
  %1646 = vmatpush1.bf16.msra.mxu0 0
  %1647 = vmatprep.subr.bf16.mxu0 0
  %1648 = vmatpush1.bf16.msra.mxu0 0
  %1649 = vmatprep.subr.bf16.mxu0 0
  %1650 = vmatpush1.bf16.msra.mxu0 0
  %1651 = vmatprep.subr.bf16.mxu0 %v1584
  %1652 = vmatpush1.bf16.msra.mxu0 %v1581
  %1653 = vmatprep.subr.bf16.mxu0 %v1548
  %1654 = vmatpush1.bf16.msra.mxu0 %v1547
  %1655 = vmatprep.subr.bf16.mxu0 0
  %1656 = vmatpush2.bf16.msra.mxu0 0
  %1657 = vmatprep.subr.bf16.mxu0 0
  %1658 = vmatpush2.bf16.msra.mxu0 0
  %1659 = vmatprep.subr.bf16.mxu0 0
  %1660 = vmatpush2.bf16.msra.mxu0 0
  %1661 = vmatprep.subr.bf16.mxu0 0
  %1662 = vmatpush2.bf16.msra.mxu0 0
  %1663 = vmatprep.subr.bf16.mxu0 0
  %1664 = vmatpush2.bf16.msra.mxu0 0
  %1665 = vmatprep.subr.bf16.mxu0 0
  %1666 = vmatpush2.bf16.msra.mxu0 0
  %1667 = vmatprep.subr.bf16.mxu0 0
  %1668 = vmatpush2.bf16.msra.mxu0 0
  %1669 = vmatprep.subr.bf16.mxu0 0
  %1670 = vmatpush2.bf16.msra.mxu0 0
  %1671 = vmatprep.mubr.bf16.mxu0 0
  %1672 = vmatmul.mubr.bf16.gmra.mxu0 %v1569
  %v1673 = vpop.f32.mrf.mxu0
  %v1674 = vadd.f32 0.0, %v1673
  %v1675 = vpop.f32.mrf.mxu0
  %v1676 = vadd.f32 0.0, %v1675
  %v1677 = vpop.f32.mrf.mxu0
  %v1678 = vadd.f32 0.0, %v1677
  %v1679 = vpop.f32.mrf.mxu0
  %v1680 = vadd.f32 0.0, %v1679
  %1681 = vmatprep.mubr.bf16.mxu0 0
  %1682 = vmatmul.mubr.bf16.gmra.mxu0 %v1572
  %v1683 = vpop.f32.mrf.mxu0
  %v1684 = vadd.f32 0.0, %v1683
  %v1685 = vpop.f32.mrf.mxu0
  %v1686 = vadd.f32 0.0, %v1685
  %v1687 = vpop.f32.mrf.mxu0
  %v1688 = vadd.f32 0.0, %v1687
  %v1689 = vpop.f32.mrf.mxu0
  %v1690 = vadd.f32 0.0, %v1689
  %1691 = vdwg.mxu0
  %v1696 = vunpack.c.l.b16 %v1501
  %v1697 = vunpack.c.l.b16 %v1502
  %v1698 = vunpack.c.l.b16 %v1503
  %v1699 = vunpack.c.l.b16 %v1504
  %v1700 = vpack.c.b16 %v1697, %v1696
  %v1701 = vpack.c.b16 %v1699, %v1698
  %v1703 = vsel %vm182, %v1700, 0
  %v1706 = vsel %vm182, %v1701, 0
  %v1709 = vsel %vm189, %v1496, 0
  %v1712 = vsel %vm189, %v1497, 0
  %v1715 = vsel %vm189, %v1498, 0
  %v1718 = vsel %vm189, %v1499, 0
  %1720 = vmatprep.subr.bf16.mxu0 0
  %1721 = vmatpush1.bf16.msra.mxu0 0
  %1722 = vmatprep.subr.bf16.mxu0 0
  %1723 = vmatpush1.bf16.msra.mxu0 0
  %1724 = vmatprep.subr.bf16.mxu0 0
  %1725 = vmatpush1.bf16.msra.mxu0 0
  %1726 = vmatprep.subr.bf16.mxu0 0
  %1727 = vmatpush1.bf16.msra.mxu0 0
  %1728 = vmatprep.subr.bf16.mxu0 0
  %1729 = vmatpush1.bf16.msra.mxu0 0
  %1730 = vmatprep.subr.bf16.mxu0 0
  %1731 = vmatpush1.bf16.msra.mxu0 0
  %1732 = vmatprep.subr.bf16.mxu0 %v1712
  %1733 = vmatpush1.bf16.msra.mxu0 %v1709
  %1734 = vmatprep.subr.bf16.mxu0 %v1493
  %1735 = vmatpush1.bf16.msra.mxu0 %v1492
  %1736 = vmatprep.subr.bf16.mxu0 0
  %1737 = vmatpush2.bf16.msra.mxu0 0
  %1738 = vmatprep.subr.bf16.mxu0 0
  %1739 = vmatpush2.bf16.msra.mxu0 0
  %1740 = vmatprep.subr.bf16.mxu0 0
  %1741 = vmatpush2.bf16.msra.mxu0 0
  %1742 = vmatprep.subr.bf16.mxu0 0
  %1743 = vmatpush2.bf16.msra.mxu0 0
  %1744 = vmatprep.subr.bf16.mxu0 0
  %1745 = vmatpush2.bf16.msra.mxu0 0
  %1746 = vmatprep.subr.bf16.mxu0 0
  %1747 = vmatpush2.bf16.msra.mxu0 0
  %1748 = vmatprep.subr.bf16.mxu0 0
  %1749 = vmatpush2.bf16.msra.mxu0 0
  %1750 = vmatprep.subr.bf16.mxu0 0
  %1751 = vmatpush2.bf16.msra.mxu0 0
  %1752 = vmatprep.mubr.bf16.mxu0 0
  %1753 = vmatmul.mubr.bf16.gmra.mxu0 %v1703
  %v1754 = vpop.f32.mrf.mxu0
  %v1755 = vadd.f32 %v1621, %v1754
  %v1756 = vpop.f32.mrf.mxu0
  %v1757 = vadd.f32 %v1623, %v1756
  %v1758 = vpop.f32.mrf.mxu0
  %v1759 = vadd.f32 %v1625, %v1758
  %v1760 = vpop.f32.mrf.mxu0
  %v1761 = vadd.f32 %v1627, %v1760
  %1762 = vmatprep.mubr.bf16.mxu0 0
  %1763 = vmatmul.mubr.bf16.gmra.mxu0 %v1706
  %v1764 = vpop.f32.mrf.mxu0
  %v1765 = vadd.f32 %v1631, %v1764
  %v1766 = vpop.f32.mrf.mxu0
  %v1767 = vadd.f32 %v1633, %v1766
  %v1768 = vpop.f32.mrf.mxu0
  %v1769 = vadd.f32 %v1635, %v1768
  %v1770 = vpop.f32.mrf.mxu0
  %v1771 = vadd.f32 %v1637, %v1770
  %1772 = vdwg.mxu0
  %1773 = vmatprep.subr.bf16.mxu0 0
  %1774 = vmatpush1.bf16.msra.mxu0 0
  %1775 = vmatprep.subr.bf16.mxu0 0
  %1776 = vmatpush1.bf16.msra.mxu0 0
  %1777 = vmatprep.subr.bf16.mxu0 0
  %1778 = vmatpush1.bf16.msra.mxu0 0
  %1779 = vmatprep.subr.bf16.mxu0 0
  %1780 = vmatpush1.bf16.msra.mxu0 0
  %1781 = vmatprep.subr.bf16.mxu0 0
  %1782 = vmatpush1.bf16.msra.mxu0 0
  %1783 = vmatprep.subr.bf16.mxu0 0
  %1784 = vmatpush1.bf16.msra.mxu0 0
  %1785 = vmatprep.subr.bf16.mxu0 %v1718
  %1786 = vmatpush1.bf16.msra.mxu0 %v1715
  %1787 = vmatprep.subr.bf16.mxu0 %v1495
  %1788 = vmatpush1.bf16.msra.mxu0 %v1494
  %1789 = vmatprep.subr.bf16.mxu0 0
  %1790 = vmatpush2.bf16.msra.mxu0 0
  %1791 = vmatprep.subr.bf16.mxu0 0
  %1792 = vmatpush2.bf16.msra.mxu0 0
  %1793 = vmatprep.subr.bf16.mxu0 0
  %1794 = vmatpush2.bf16.msra.mxu0 0
  %1795 = vmatprep.subr.bf16.mxu0 0
  %1796 = vmatpush2.bf16.msra.mxu0 0
  %1797 = vmatprep.subr.bf16.mxu0 0
  %1798 = vmatpush2.bf16.msra.mxu0 0
  %1799 = vmatprep.subr.bf16.mxu0 0
  %1800 = vmatpush2.bf16.msra.mxu0 0
  %1801 = vmatprep.subr.bf16.mxu0 0
  %1802 = vmatpush2.bf16.msra.mxu0 0
  %1803 = vmatprep.subr.bf16.mxu0 0
  %1804 = vmatpush2.bf16.msra.mxu0 0
  %1805 = vmatprep.mubr.bf16.mxu0 0
  %1806 = vmatmul.mubr.bf16.gmra.mxu0 %v1703
  %v1807 = vpop.f32.mrf.mxu0
  %v1808 = vadd.f32 %v1674, %v1807
  %v1809 = vpop.f32.mrf.mxu0
  %v1810 = vadd.f32 %v1676, %v1809
  %v1811 = vpop.f32.mrf.mxu0
  %v1812 = vadd.f32 %v1678, %v1811
  %v1813 = vpop.f32.mrf.mxu0
  %v1814 = vadd.f32 %v1680, %v1813
  %1815 = vmatprep.mubr.bf16.mxu0 0
  %1816 = vmatmul.mubr.bf16.gmra.mxu0 %v1706
  %v1817 = vpop.f32.mrf.mxu0
  %v1818 = vadd.f32 %v1684, %v1817
  %v1819 = vpop.f32.mrf.mxu0
  %v1820 = vadd.f32 %v1686, %v1819
  %v1821 = vpop.f32.mrf.mxu0
  %v1822 = vadd.f32 %v1688, %v1821
  %v1823 = vpop.f32.mrf.mxu0
  %v1824 = vadd.f32 %v1690, %v1823
  %1825 = vdwg.mxu0
  %1826 = vrot.lane.b32.xlu0 %v32, 113
  %v1827 = vpop.permute.xlu0 %1826
  %1828 = vrot.lane.b32.xlu0 %v33, 113
  %v1829 = vpop.permute.xlu0 %1828
  %1830 = vrot.lane.b32.xlu0 %v34, 113
  %v1831 = vpop.permute.xlu0 %1830
  %1832 = vrot.lane.b32.xlu0 %v35, 113
  %v1833 = vpop.permute.xlu0 %1832
  %v1834 = vsel %vm450, %v1831, %v1833
  %v1835 = vsel %vm450, %v1829, %v1831
  %v1836 = vsel %vm450, %v1827, %v1829
  %v1837 = vsel %vm450, %v1833, %v1827
  %v1838 = vld [vmem:[%s455] sm:$0xff]
  %v1839 = vld [vmem:[%s455 + $0x8] sm:$0xff]
  %v1840 = vld [vmem:[%s455 + $0x10] sm:$0xff]
  %v1841 = vld [vmem:[%s455 + $0x18] sm:$0xff]
  %v1842 = vmul.f32 %v1836, %v1838
  %v1843 = vmul.f32 %v1835, %v1839
  %v1844 = vmul.f32 %v1834, %v1840
  %v1845 = vmul.f32 %v1837, %v1841
  %1846 = vrot.lane.b32.xlu0 %v32, 112
  %v1847 = vpop.permute.xlu0 %1846
  %1848 = vrot.lane.b32.xlu0 %v33, 112
  %v1849 = vpop.permute.xlu0 %1848
  %1850 = vrot.lane.b32.xlu0 %v34, 112
  %v1851 = vpop.permute.xlu0 %1850
  %1852 = vrot.lane.b32.xlu0 %v35, 112
  %v1853 = vpop.permute.xlu0 %1852
  %v1854 = vsel %vm472, %v1851, %v1853
  %v1855 = vsel %vm472, %v1849, %v1851
  %v1856 = vsel %vm472, %v1847, %v1849
  %v1857 = vsel %vm472, %v1853, %v1847
  %v1858 = vld [vmem:[%s477] sm:$0xff]
  %v1859 = vld [vmem:[%s477 + $0x8] sm:$0xff]
  %v1860 = vld [vmem:[%s477 + $0x10] sm:$0xff]
  %v1861 = vld [vmem:[%s477 + $0x18] sm:$0xff]
  %v1862 = vmul.f32 %v1856, %v1858
  %v1863 = vmul.f32 %v1855, %v1859
  %v1864 = vmul.f32 %v1854, %v1860
  %v1865 = vmul.f32 %v1857, %v1861
  %1866 = vrot.lane.b32.xlu0 %v32, 111
  %v1867 = vpop.permute.xlu0 %1866
  %1868 = vrot.lane.b32.xlu0 %v33, 111
  %v1869 = vpop.permute.xlu0 %1868
  %1870 = vrot.lane.b32.xlu0 %v34, 111
  %v1871 = vpop.permute.xlu0 %1870
  %1872 = vrot.lane.b32.xlu0 %v35, 111
  %v1873 = vpop.permute.xlu0 %1872
  %v1874 = vsel %vm494, %v1871, %v1873
  %v1875 = vsel %vm494, %v1869, %v1871
  %v1876 = vsel %vm494, %v1867, %v1869
  %v1877 = vsel %vm494, %v1873, %v1867
  %v1878 = vld [vmem:[%s499] sm:$0xff]
  %v1879 = vld [vmem:[%s499 + $0x8] sm:$0xff]
  %v1880 = vld [vmem:[%s499 + $0x10] sm:$0xff]
  %v1881 = vld [vmem:[%s499 + $0x18] sm:$0xff]
  %v1882 = vmul.f32 %v1876, %v1878
  %v1883 = vmul.f32 %v1875, %v1879
  %v1884 = vmul.f32 %v1874, %v1880
  %v1885 = vmul.f32 %v1877, %v1881
  %v1886 = vpack.c.bf16 %v1862, %v1842
  %v1887 = vpack.c.bf16 %v1863, %v1843
  %v1888 = vpack.c.bf16 %v1864, %v1844
  %v1889 = vpack.c.bf16 %v1865, %v1845
  %v1890 = vpack.c.bf16 %v1882, %v1882
  %v1891 = vpack.c.bf16 %v1883, %v1883
  %v1892 = vpack.c.bf16 %v1884, %v1884
  %v1893 = vpack.c.bf16 %v1885, %v1885
  %s1894 = scalar_lea.vmem %s2, 128
  %v1895 = vld [vmem:[%s1894] sm:$0xf]
  %v1896 = vld [vmem:[%s1894 + $0x4] sm:$0xf]
  %v1897 = vld [vmem:[%s1894 + $0x8] sm:$0xf]
  %v1898 = vld [vmem:[%s1894 + $0xc] sm:$0xf]
  %v1903 = vunpack.c.l.b16 %v1895
  %v1904 = vunpack.c.l.b16 %v1896
  %v1905 = vunpack.c.l.b16 %v1897
  %v1906 = vunpack.c.l.b16 %v1898
  %v1907 = vpack.c.b16 %v1904, %v1903
  %v1908 = vpack.c.b16 %v1906, %v1905
  %v1910 = vsel %vm182, %v1907, 0
  %v1913 = vsel %vm182, %v1908, 0
  %v1916 = vsel %vm189, %v1890, 0
  %v1919 = vsel %vm189, %v1891, 0
  %v1922 = vsel %vm189, %v1892, 0
  %v1925 = vsel %vm189, %v1893, 0
  %1927 = vmatprep.subr.bf16.mxu0 0
  %1928 = vmatpush1.bf16.msra.mxu0 0
  %1929 = vmatprep.subr.bf16.mxu0 0
  %1930 = vmatpush1.bf16.msra.mxu0 0
  %1931 = vmatprep.subr.bf16.mxu0 0
  %1932 = vmatpush1.bf16.msra.mxu0 0
  %1933 = vmatprep.subr.bf16.mxu0 0
  %1934 = vmatpush1.bf16.msra.mxu0 0
  %1935 = vmatprep.subr.bf16.mxu0 0
  %1936 = vmatpush1.bf16.msra.mxu0 0
  %1937 = vmatprep.subr.bf16.mxu0 0
  %1938 = vmatpush1.bf16.msra.mxu0 0
  %1939 = vmatprep.subr.bf16.mxu0 %v1919
  %1940 = vmatpush1.bf16.msra.mxu0 %v1916
  %1941 = vmatprep.subr.bf16.mxu0 %v1887
  %1942 = vmatpush1.bf16.msra.mxu0 %v1886
  %1943 = vmatprep.subr.bf16.mxu0 0
  %1944 = vmatpush2.bf16.msra.mxu0 0
  %1945 = vmatprep.subr.bf16.mxu0 0
  %1946 = vmatpush2.bf16.msra.mxu0 0
  %1947 = vmatprep.subr.bf16.mxu0 0
  %1948 = vmatpush2.bf16.msra.mxu0 0
  %1949 = vmatprep.subr.bf16.mxu0 0
  %1950 = vmatpush2.bf16.msra.mxu0 0
  %1951 = vmatprep.subr.bf16.mxu0 0
  %1952 = vmatpush2.bf16.msra.mxu0 0
  %1953 = vmatprep.subr.bf16.mxu0 0
  %1954 = vmatpush2.bf16.msra.mxu0 0
  %1955 = vmatprep.subr.bf16.mxu0 0
  %1956 = vmatpush2.bf16.msra.mxu0 0
  %1957 = vmatprep.subr.bf16.mxu0 0
  %1958 = vmatpush2.bf16.msra.mxu0 0
  %1959 = vmatprep.mubr.bf16.mxu0 0
  %1960 = vmatmul.mubr.bf16.gmra.mxu0 %v1910
  %v1961 = vpop.f32.mrf.mxu0
  %v1962 = vadd.f32 0.0, %v1961
  %v1963 = vpop.f32.mrf.mxu0
  %v1964 = vadd.f32 0.0, %v1963
  %v1965 = vpop.f32.mrf.mxu0
  %v1966 = vadd.f32 0.0, %v1965
  %v1967 = vpop.f32.mrf.mxu0
  %v1968 = vadd.f32 0.0, %v1967
  %1969 = vmatprep.mubr.bf16.mxu0 0
  %1970 = vmatmul.mubr.bf16.gmra.mxu0 %v1913
  %v1971 = vpop.f32.mrf.mxu0
  %v1972 = vadd.f32 0.0, %v1971
  %v1973 = vpop.f32.mrf.mxu0
  %v1974 = vadd.f32 0.0, %v1973
  %v1975 = vpop.f32.mrf.mxu0
  %v1976 = vadd.f32 0.0, %v1975
  %v1977 = vpop.f32.mrf.mxu0
  %v1978 = vadd.f32 0.0, %v1977
  %1979 = vdwg.mxu0
  %1980 = vmatprep.subr.bf16.mxu0 0
  %1981 = vmatpush1.bf16.msra.mxu0 0
  %1982 = vmatprep.subr.bf16.mxu0 0
  %1983 = vmatpush1.bf16.msra.mxu0 0
  %1984 = vmatprep.subr.bf16.mxu0 0
  %1985 = vmatpush1.bf16.msra.mxu0 0
  %1986 = vmatprep.subr.bf16.mxu0 0
  %1987 = vmatpush1.bf16.msra.mxu0 0
  %1988 = vmatprep.subr.bf16.mxu0 0
  %1989 = vmatpush1.bf16.msra.mxu0 0
  %1990 = vmatprep.subr.bf16.mxu0 0
  %1991 = vmatpush1.bf16.msra.mxu0 0
  %1992 = vmatprep.subr.bf16.mxu0 %v1925
  %1993 = vmatpush1.bf16.msra.mxu0 %v1922
  %1994 = vmatprep.subr.bf16.mxu0 %v1889
  %1995 = vmatpush1.bf16.msra.mxu0 %v1888
  %1996 = vmatprep.subr.bf16.mxu0 0
  %1997 = vmatpush2.bf16.msra.mxu0 0
  %1998 = vmatprep.subr.bf16.mxu0 0
  %1999 = vmatpush2.bf16.msra.mxu0 0
  %2000 = vmatprep.subr.bf16.mxu0 0
  %2001 = vmatpush2.bf16.msra.mxu0 0
  %2002 = vmatprep.subr.bf16.mxu0 0
  %2003 = vmatpush2.bf16.msra.mxu0 0
  %2004 = vmatprep.subr.bf16.mxu0 0
  %2005 = vmatpush2.bf16.msra.mxu0 0
  %2006 = vmatprep.subr.bf16.mxu0 0
  %2007 = vmatpush2.bf16.msra.mxu0 0
  %2008 = vmatprep.subr.bf16.mxu0 0
  %2009 = vmatpush2.bf16.msra.mxu0 0
  %2010 = vmatprep.subr.bf16.mxu0 0
  %2011 = vmatpush2.bf16.msra.mxu0 0
  %2012 = vmatprep.mubr.bf16.mxu0 0
  %2013 = vmatmul.mubr.bf16.gmra.mxu0 %v1910
  %v2014 = vpop.f32.mrf.mxu0
  %v2015 = vadd.f32 0.0, %v2014
  %v2016 = vpop.f32.mrf.mxu0
  %v2017 = vadd.f32 0.0, %v2016
  %v2018 = vpop.f32.mrf.mxu0
  %v2019 = vadd.f32 0.0, %v2018
  %v2020 = vpop.f32.mrf.mxu0
  %v2021 = vadd.f32 0.0, %v2020
  %2022 = vmatprep.mubr.bf16.mxu0 0
  %2023 = vmatmul.mubr.bf16.gmra.mxu0 %v1913
  %v2024 = vpop.f32.mrf.mxu0
  %v2025 = vadd.f32 0.0, %v2024
  %v2026 = vpop.f32.mrf.mxu0
  %v2027 = vadd.f32 0.0, %v2026
  %v2028 = vpop.f32.mrf.mxu0
  %v2029 = vadd.f32 0.0, %v2028
  %v2030 = vpop.f32.mrf.mxu0
  %v2031 = vadd.f32 0.0, %v2030
  %2032 = vdwg.mxu0
  %v2033 = vadd.f32 %v1755, %v1962
  %v2034 = vadd.f32 %v1757, %v1964
  %v2035 = vadd.f32 %v1808, %v2015
  %v2036 = vadd.f32 %v1810, %v2017
  %v2037 = vadd.f32 %v1759, %v1966
  %v2038 = vadd.f32 %v1761, %v1968
  %v2039 = vadd.f32 %v1812, %v2019
  %v2040 = vadd.f32 %v1814, %v2021
  %v2041 = vadd.f32 %v1765, %v1972
  %v2042 = vadd.f32 %v1767, %v1974
  %v2043 = vadd.f32 %v1818, %v2025
  %v2044 = vadd.f32 %v1820, %v2027
  %v2045 = vadd.f32 %v1769, %v1976
  %v2046 = vadd.f32 %v1771, %v1978
  %v2047 = vadd.f32 %v1822, %v2029
  %v2048 = vadd.f32 %v1824, %v2031
  %v2049 = vld [vmem:[%s5 + $0x40] sm:$0xff]
  %v2050 = vld [vmem:[%s5 + $0x48] sm:$0xff]
  %v2051 = vld [vmem:[%s5 + $0x50] sm:$0xff]
  %v2052 = vld [vmem:[%s5 + $0x58] sm:$0xff]
  %2054 = vset.pattern.permute.xlu0 0
  %2055 = vperm.xlu0 %2054, %v2049
  %v2056 = vpop.permute.xlu0 %2055
  %2059 = vset.pattern.permute.xlu0 0
  %2060 = vperm.xlu0 %2059, %v2050
  %v2061 = vpop.permute.xlu0 %2060
  %2064 = vset.pattern.permute.xlu0 0
  %2065 = vperm.xlu0 %2064, %v2051
  %v2066 = vpop.permute.xlu0 %2065
  %2069 = vset.pattern.permute.xlu0 0
  %2070 = vperm.xlu0 %2069, %v2052
  %v2071 = vpop.permute.xlu0 %2070
  %v2073 = vadd.f32 %v2033, %v2056
  %v2074 = vadd.f32 %v2034, %v2056
  %v2075 = vadd.f32 %v2035, %v2056
  %v2076 = vadd.f32 %v2036, %v2056
  %v2077 = vadd.f32 %v2037, %v2061
  %v2078 = vadd.f32 %v2038, %v2061
  %v2079 = vadd.f32 %v2039, %v2061
  %v2080 = vadd.f32 %v2040, %v2061
  %v2081 = vadd.f32 %v2041, %v2066
  %v2082 = vadd.f32 %v2042, %v2066
  %v2083 = vadd.f32 %v2043, %v2066
  %v2084 = vadd.f32 %v2044, %v2066
  %v2085 = vadd.f32 %v2045, %v2071
  %v2086 = vadd.f32 %v2046, %v2071
  %v2087 = vadd.f32 %v2047, %v2071
  %v2088 = vadd.f32 %v2048, %v2071
  %v2089 = vmax.f32 %v2073, 0.0
  %v2090 = vmax.f32 %v2074, 0.0
  %v2091 = vmax.f32 %v2075, 0.0
  %v2092 = vmax.f32 %v2076, 0.0
  %v2093 = vmax.f32 %v2077, 0.0
  %v2094 = vmax.f32 %v2078, 0.0
  %v2095 = vmax.f32 %v2079, 0.0
  %v2096 = vmax.f32 %v2080, 0.0
  %v2097 = vmax.f32 %v2081, 0.0
  %v2098 = vmax.f32 %v2082, 0.0
  %v2099 = vmax.f32 %v2083, 0.0
  %v2100 = vmax.f32 %v2084, 0.0
  %v2101 = vmax.f32 %v2085, 0.0
  %v2102 = vmax.f32 %v2086, 0.0
  %v2103 = vmax.f32 %v2087, 0.0
  %v2104 = vmax.f32 %v2088, 0.0
  %2105 = vst [vmem:[#allocation2 + $0x100] sm:$0xff] %v2089
  %2106 = vst [vmem:[#allocation2 + $0x108] sm:$0xff] %v2090
  %2107 = vst [vmem:[#allocation2 + $0x110] sm:$0xff] %v2091
  %2108 = vst [vmem:[#allocation2 + $0x118] sm:$0xff] %v2092
  %2109 = vst [vmem:[#allocation2 + $0x120] sm:$0xff] %v2093
  %2110 = vst [vmem:[#allocation2 + $0x128] sm:$0xff] %v2094
  %2111 = vst [vmem:[#allocation2 + $0x130] sm:$0xff] %v2095
  %2112 = vst [vmem:[#allocation2 + $0x138] sm:$0xff] %v2096
  %2113 = vst [vmem:[#allocation2 + $0x140] sm:$0xff] %v2097
  %2114 = vst [vmem:[#allocation2 + $0x148] sm:$0xff] %v2098
  %2115 = vst [vmem:[#allocation2 + $0x150] sm:$0xff] %v2099
  %2116 = vst [vmem:[#allocation2 + $0x158] sm:$0xff] %v2100
  %2117 = vst [vmem:[#allocation2 + $0x160] sm:$0xff] %v2101
  %2118 = vst [vmem:[#allocation2 + $0x168] sm:$0xff] %v2102
  %2119 = vst [vmem:[#allocation2 + $0x170] sm:$0xff] %v2103
  %2120 = vst [vmem:[#allocation2 + $0x178] sm:$0xff] %v2104
  %v2121 = vld [vmem:[#allocation2] sm:$0xff]
  %v2122 = vld [vmem:[#allocation2 + $0x8] sm:$0xff]
  %v2123 = vld [vmem:[#allocation2 + $0x10] sm:$0xff]
  %v2124 = vld [vmem:[#allocation2 + $0x18] sm:$0xff]
  %v2125 = vld [vmem:[#allocation2 + $0x20] sm:$0xff]
  %v2126 = vld [vmem:[#allocation2 + $0x28] sm:$0xff]
  %v2127 = vld [vmem:[#allocation2 + $0x30] sm:$0xff]
  %v2128 = vld [vmem:[#allocation2 + $0x38] sm:$0xff]
  %v2129 = vld [vmem:[#allocation2 + $0x40] sm:$0xff]
  %v2130 = vld [vmem:[#allocation2 + $0x48] sm:$0xff]
  %v2131 = vld [vmem:[#allocation2 + $0x50] sm:$0xff]
  %v2132 = vld [vmem:[#allocation2 + $0x58] sm:$0xff]
  %v2133 = vld [vmem:[#allocation2 + $0x60] sm:$0xff]
  %v2134 = vld [vmem:[#allocation2 + $0x68] sm:$0xff]
  %v2135 = vld [vmem:[#allocation2 + $0x70] sm:$0xff]
  %v2136 = vld [vmem:[#allocation2 + $0x78] sm:$0xff]
  %v2137 = vld [vmem:[#allocation2 + $0x80] sm:$0xff]
  %v2138 = vld [vmem:[#allocation2 + $0x88] sm:$0xff]
  %v2139 = vld [vmem:[#allocation2 + $0x90] sm:$0xff]
  %v2140 = vld [vmem:[#allocation2 + $0x98] sm:$0xff]
  %v2141 = vld [vmem:[#allocation2 + $0xa0] sm:$0xff]
  %v2142 = vld [vmem:[#allocation2 + $0xa8] sm:$0xff]
  %v2143 = vld [vmem:[#allocation2 + $0xb0] sm:$0xff]
  %v2144 = vld [vmem:[#allocation2 + $0xb8] sm:$0xff]
  %v2145 = vld [vmem:[#allocation2 + $0xc0] sm:$0xff]
  %v2146 = vld [vmem:[#allocation2 + $0xc8] sm:$0xff]
  %v2147 = vld [vmem:[#allocation2 + $0xd0] sm:$0xff]
  %v2148 = vld [vmem:[#allocation2 + $0xd8] sm:$0xff]
  %v2149 = vld [vmem:[#allocation2 + $0xe0] sm:$0xff]
  %v2150 = vld [vmem:[#allocation2 + $0xe8] sm:$0xff]
  %v2151 = vld [vmem:[#allocation2 + $0xf0] sm:$0xff]
  %v2152 = vld [vmem:[#allocation2 + $0xf8] sm:$0xff]
  %v2153 = vld [vmem:[#allocation2 + $0x100] sm:$0xff]
  %v2154 = vld [vmem:[#allocation2 + $0x108] sm:$0xff]
  %v2155 = vld [vmem:[#allocation2 + $0x110] sm:$0xff]
  %v2156 = vld [vmem:[#allocation2 + $0x118] sm:$0xff]
  %v2157 = vld [vmem:[#allocation2 + $0x120] sm:$0xff]
  %v2158 = vld [vmem:[#allocation2 + $0x128] sm:$0xff]
  %v2159 = vld [vmem:[#allocation2 + $0x130] sm:$0xff]
  %v2160 = vld [vmem:[#allocation2 + $0x138] sm:$0xff]
  %v2161 = vld [vmem:[#allocation2 + $0x140] sm:$0xff]
  %v2162 = vld [vmem:[#allocation2 + $0x148] sm:$0xff]
  %v2163 = vld [vmem:[#allocation2 + $0x150] sm:$0xff]
  %v2164 = vld [vmem:[#allocation2 + $0x158] sm:$0xff]
  %v2165 = vld [vmem:[#allocation2 + $0x160] sm:$0xff]
  %v2166 = vld [vmem:[#allocation2 + $0x168] sm:$0xff]
  %v2167 = vld [vmem:[#allocation2 + $0x170] sm:$0xff]
  %v2168 = vld [vmem:[#allocation2 + $0x178] sm:$0xff]
  %2169 = vrot.lane.b32.xlu0 %v2121, 17
  %v2170 = vpop.permute.xlu0 %2169
  %2171 = vrot.lane.b32.xlu0 %v2125, 17
  %v2172 = vpop.permute.xlu0 %2171
  %2173 = vrot.lane.b32.xlu0 %v2129, 17
  %v2174 = vpop.permute.xlu0 %2173
  %2175 = vrot.lane.b32.xlu0 %v2133, 17
  %v2176 = vpop.permute.xlu0 %2175
  %2177 = vrot.lane.b32.xlu0 %v2137, 17
  %v2178 = vpop.permute.xlu0 %2177
  %2179 = vrot.lane.b32.xlu0 %v2141, 17
  %v2180 = vpop.permute.xlu0 %2179
  %2181 = vrot.lane.b32.xlu0 %v2145, 17
  %v2182 = vpop.permute.xlu0 %2181
  %2183 = vrot.lane.b32.xlu0 %v2149, 17
  %v2184 = vpop.permute.xlu0 %2183
  %2185 = vrot.lane.b32.xlu0 %v2153, 17
  %v2186 = vpop.permute.xlu0 %2185
  %2187 = vrot.lane.b32.xlu0 %v2157, 17
  %v2188 = vpop.permute.xlu0 %2187
  %2189 = vrot.lane.b32.xlu0 %v2161, 17
  %v2190 = vpop.permute.xlu0 %2189
  %2191 = vrot.lane.b32.xlu0 %v2165, 17
  %v2192 = vpop.permute.xlu0 %2191
  %2193 = vrot.lane.b32.xlu0 %v2122, 17
  %v2194 = vpop.permute.xlu0 %2193
  %2195 = vrot.lane.b32.xlu0 %v2126, 17
  %v2196 = vpop.permute.xlu0 %2195
  %2197 = vrot.lane.b32.xlu0 %v2130, 17
  %v2198 = vpop.permute.xlu0 %2197
  %2199 = vrot.lane.b32.xlu0 %v2134, 17
  %v2200 = vpop.permute.xlu0 %2199
  %2201 = vrot.lane.b32.xlu0 %v2138, 17
  %v2202 = vpop.permute.xlu0 %2201
  %2203 = vrot.lane.b32.xlu0 %v2142, 17
  %v2204 = vpop.permute.xlu0 %2203
  %2205 = vrot.lane.b32.xlu0 %v2146, 17
  %v2206 = vpop.permute.xlu0 %2205
  %2207 = vrot.lane.b32.xlu0 %v2150, 17
  %v2208 = vpop.permute.xlu0 %2207
  %2209 = vrot.lane.b32.xlu0 %v2154, 17
  %v2210 = vpop.permute.xlu0 %2209
  %2211 = vrot.lane.b32.xlu0 %v2158, 17
  %v2212 = vpop.permute.xlu0 %2211
  %2213 = vrot.lane.b32.xlu0 %v2162, 17
  %v2214 = vpop.permute.xlu0 %2213
  %2215 = vrot.lane.b32.xlu0 %v2166, 17
  %v2216 = vpop.permute.xlu0 %2215
  %2217 = vrot.lane.b32.xlu0 %v2123, 17
  %v2218 = vpop.permute.xlu0 %2217
  %2219 = vrot.lane.b32.xlu0 %v2127, 17
  %v2220 = vpop.permute.xlu0 %2219
  %2221 = vrot.lane.b32.xlu0 %v2131, 17
  %v2222 = vpop.permute.xlu0 %2221
  %2223 = vrot.lane.b32.xlu0 %v2135, 17
  %v2224 = vpop.permute.xlu0 %2223
  %2225 = vrot.lane.b32.xlu0 %v2139, 17
  %v2226 = vpop.permute.xlu0 %2225
  %2227 = vrot.lane.b32.xlu0 %v2143, 17
  %v2228 = vpop.permute.xlu0 %2227
  %2229 = vrot.lane.b32.xlu0 %v2147, 17
  %v2230 = vpop.permute.xlu0 %2229
  %2231 = vrot.lane.b32.xlu0 %v2151, 17
  %v2232 = vpop.permute.xlu0 %2231
  %2233 = vrot.lane.b32.xlu0 %v2155, 17
  %v2234 = vpop.permute.xlu0 %2233
  %2235 = vrot.lane.b32.xlu0 %v2159, 17
  %v2236 = vpop.permute.xlu0 %2235
  %2237 = vrot.lane.b32.xlu0 %v2163, 17
  %v2238 = vpop.permute.xlu0 %2237
  %2239 = vrot.lane.b32.xlu0 %v2167, 17
  %v2240 = vpop.permute.xlu0 %2239
  %2241 = vrot.lane.b32.xlu0 %v2124, 17
  %v2242 = vpop.permute.xlu0 %2241
  %2243 = vrot.lane.b32.xlu0 %v2128, 17
  %v2244 = vpop.permute.xlu0 %2243
  %2245 = vrot.lane.b32.xlu0 %v2132, 17
  %v2246 = vpop.permute.xlu0 %2245
  %2247 = vrot.lane.b32.xlu0 %v2136, 17
  %v2248 = vpop.permute.xlu0 %2247
  %2249 = vrot.lane.b32.xlu0 %v2140, 17
  %v2250 = vpop.permute.xlu0 %2249
  %2251 = vrot.lane.b32.xlu0 %v2144, 17
  %v2252 = vpop.permute.xlu0 %2251
  %2253 = vrot.lane.b32.xlu0 %v2148, 17
  %v2254 = vpop.permute.xlu0 %2253
  %2255 = vrot.lane.b32.xlu0 %v2152, 17
  %v2256 = vpop.permute.xlu0 %2255
  %2257 = vrot.lane.b32.xlu0 %v2156, 17
  %v2258 = vpop.permute.xlu0 %2257
  %2259 = vrot.lane.b32.xlu0 %v2160, 17
  %v2260 = vpop.permute.xlu0 %2259
  %2261 = vrot.lane.b32.xlu0 %v2164, 17
  %v2262 = vpop.permute.xlu0 %2261
  %2263 = vrot.lane.b32.xlu0 %v2168, 17
  %v2264 = vpop.permute.xlu0 %2263
  %v2265 = vsel %vm46, %v2218, %v2242
  %v2266 = vsel %vm46, %v2220, %v2244
  %v2267 = vsel %vm46, %v2222, %v2246
  %v2268 = vsel %vm46, %v2224, %v2248
  %v2269 = vsel %vm46, %v2226, %v2250
  %v2270 = vsel %vm46, %v2228, %v2252
  %v2271 = vsel %vm46, %v2230, %v2254
  %v2272 = vsel %vm46, %v2232, %v2256
  %v2273 = vsel %vm46, %v2234, %v2258
  %v2274 = vsel %vm46, %v2236, %v2260
  %v2275 = vsel %vm46, %v2238, %v2262
  %v2276 = vsel %vm46, %v2240, %v2264
  %v2277 = vsel %vm46, %v2194, %v2218
  %v2278 = vsel %vm46, %v2196, %v2220
  %v2279 = vsel %vm46, %v2198, %v2222
  %v2280 = vsel %vm46, %v2200, %v2224
  %v2281 = vsel %vm46, %v2202, %v2226
  %v2282 = vsel %vm46, %v2204, %v2228
  %v2283 = vsel %vm46, %v2206, %v2230
  %v2284 = vsel %vm46, %v2208, %v2232
  %v2285 = vsel %vm46, %v2210, %v2234
  %v2286 = vsel %vm46, %v2212, %v2236
  %v2287 = vsel %vm46, %v2214, %v2238
  %v2288 = vsel %vm46, %v2216, %v2240
  %v2289 = vsel %vm46, %v2170, %v2194
  %v2290 = vsel %vm46, %v2172, %v2196
  %v2291 = vsel %vm46, %v2174, %v2198
  %v2292 = vsel %vm46, %v2176, %v2200
  %v2293 = vsel %vm46, %v2178, %v2202
  %v2294 = vsel %vm46, %v2180, %v2204
  %v2295 = vsel %vm46, %v2182, %v2206
  %v2296 = vsel %vm46, %v2184, %v2208
  %v2297 = vsel %vm46, %v2186, %v2210
  %v2298 = vsel %vm46, %v2188, %v2212
  %v2299 = vsel %vm46, %v2190, %v2214
  %v2300 = vsel %vm46, %v2192, %v2216
  %v2301 = vsel %vm46, %v2242, %v2170
  %v2302 = vsel %vm46, %v2244, %v2172
  %v2303 = vsel %vm46, %v2246, %v2174
  %v2304 = vsel %vm46, %v2248, %v2176
  %v2305 = vsel %vm46, %v2250, %v2178
  %v2306 = vsel %vm46, %v2252, %v2180
  %v2307 = vsel %vm46, %v2254, %v2182
  %v2308 = vsel %vm46, %v2256, %v2184
  %v2309 = vsel %vm46, %v2258, %v2186
  %v2310 = vsel %vm46, %v2260, %v2188
  %v2311 = vsel %vm46, %v2262, %v2190
  %v2312 = vsel %vm46, %v2264, %v2192
  %v2313 = vld [vmem:[%s3] sm:$0xf]
  %v2314 = vld [vmem:[%s3 + $0x4] sm:$0xf]
  %v2315 = vld [vmem:[%s3 + $0x8] sm:$0xf]
  %v2316 = vpack.c.bf16 %v2302, %v2301
  %v2317 = vpack.c.bf16 %v2290, %v2289
  %v2318 = vpack.c.bf16 %v2278, %v2277
  %v2319 = vpack.c.bf16 %v2266, %v2265
  %v2320 = vpack.c.bf16 %v2304, %v2303
  %v2321 = vpack.c.bf16 %v2292, %v2291
  %v2322 = vpack.c.bf16 %v2280, %v2279
  %v2323 = vpack.c.bf16 %v2268, %v2267
  %v2324 = vpack.c.bf16 %v2306, %v2305
  %v2325 = vpack.c.bf16 %v2294, %v2293
  %v2326 = vpack.c.bf16 %v2282, %v2281
  %v2327 = vpack.c.bf16 %v2270, %v2269
  %v2328 = vpack.c.bf16 %v2308, %v2307
  %v2329 = vpack.c.bf16 %v2296, %v2295
  %v2330 = vpack.c.bf16 %v2284, %v2283
  %v2331 = vpack.c.bf16 %v2272, %v2271
  %v2332 = vpack.c.bf16 %v2310, %v2309
  %v2333 = vpack.c.bf16 %v2298, %v2297
  %v2334 = vpack.c.bf16 %v2286, %v2285
  %v2335 = vpack.c.bf16 %v2274, %v2273
  %v2336 = vpack.c.bf16 %v2312, %v2311
  %v2337 = vpack.c.bf16 %v2300, %v2299
  %v2338 = vpack.c.bf16 %v2288, %v2287
  %v2339 = vpack.c.bf16 %v2276, %v2275
  %v2343 = vunpack.c.l.b16 %v2313
  %v2344 = vunpack.c.l.b16 %v2314
  %v2345 = vunpack.c.l.b16 %v2315
  %v2346 = vpack.c.b16 %v2344, %v2343
  %v2347 = vpack.c.b16 %v2345, %v2345
  %vm2348 = vcmask 785408
  %v2350 = vsel %vm2348, %v2346, 0
  %v2353 = vsel %vm2348, %v2347, 0
  %2355 = vmatprep.subr.bf16.mxu0 0
  %2356 = vmatpush1.bf16.msra.mxu0 0
  %2357 = vmatprep.subr.bf16.mxu0 0
  %2358 = vmatpush1.bf16.msra.mxu0 0
  %2359 = vmatprep.subr.bf16.mxu0 %v2337
  %2360 = vmatpush1.bf16.msra.mxu0 %v2336
  %2361 = vmatprep.subr.bf16.mxu0 %v2333
  %2362 = vmatpush1.bf16.msra.mxu0 %v2332
  %2363 = vmatprep.subr.bf16.mxu0 %v2329
  %2364 = vmatpush1.bf16.msra.mxu0 %v2328
  %2365 = vmatprep.subr.bf16.mxu0 %v2325
  %2366 = vmatpush1.bf16.msra.mxu0 %v2324
  %2367 = vmatprep.subr.bf16.mxu0 %v2321
  %2368 = vmatpush1.bf16.msra.mxu0 %v2320
  %2369 = vmatprep.subr.bf16.mxu0 %v2317
  %2370 = vmatpush1.bf16.msra.mxu0 %v2316
  %2371 = vmatprep.subr.bf16.mxu0 0
  %2372 = vmatpush2.bf16.msra.mxu0 0
  %2373 = vmatprep.subr.bf16.mxu0 0
  %2374 = vmatpush2.bf16.msra.mxu0 0
  %2375 = vmatprep.subr.bf16.mxu0 0
  %2376 = vmatpush2.bf16.msra.mxu0 0
  %2377 = vmatprep.subr.bf16.mxu0 0
  %2378 = vmatpush2.bf16.msra.mxu0 0
  %2379 = vmatprep.subr.bf16.mxu0 0
  %2380 = vmatpush2.bf16.msra.mxu0 0
  %2381 = vmatprep.subr.bf16.mxu0 0
  %2382 = vmatpush2.bf16.msra.mxu0 0
  %2383 = vmatprep.subr.bf16.mxu0 0
  %2384 = vmatpush2.bf16.msra.mxu0 0
  %2385 = vmatprep.subr.bf16.mxu0 0
  %2386 = vmatpush2.bf16.msra.mxu0 0
  %2387 = vmatprep.mubr.bf16.mxu0 0
  %2388 = vmatmul.mubr.bf16.gmra.mxu0 %v2350
  %v2389 = vpop.f32.mrf.mxu0
  %v2390 = vadd.f32 0.0, %v2389
  %v2391 = vpop.f32.mrf.mxu0
  %v2392 = vadd.f32 0.0, %v2391
  %v2393 = vpop.f32.mrf.mxu0
  %v2394 = vadd.f32 0.0, %v2393
  %v2395 = vpop.f32.mrf.mxu0
  %v2396 = vadd.f32 0.0, %v2395
  %2397 = vmatprep.mubr.bf16.mxu0 0
  %2398 = vmatmul.mubr.bf16.gmra.mxu0 %v2353
  %v2399 = vpop.f32.mrf.mxu0
  %v2400 = vadd.f32 0.0, %v2399
  %v2401 = vpop.f32.mrf.mxu0
  %v2402 = vadd.f32 0.0, %v2401
  %v2403 = vpop.f32.mrf.mxu0
  %v2404 = vpop.f32.mrf.mxu0
  %2405 = vdwg.mxu0
  %2406 = vmatprep.subr.bf16.mxu0 0
  %2407 = vmatpush1.bf16.msra.mxu0 0
  %2408 = vmatprep.subr.bf16.mxu0 0
  %2409 = vmatpush1.bf16.msra.mxu0 0
  %2410 = vmatprep.subr.bf16.mxu0 %v2339
  %2411 = vmatpush1.bf16.msra.mxu0 %v2338
  %2412 = vmatprep.subr.bf16.mxu0 %v2335
  %2413 = vmatpush1.bf16.msra.mxu0 %v2334
  %2414 = vmatprep.subr.bf16.mxu0 %v2331
  %2415 = vmatpush1.bf16.msra.mxu0 %v2330
  %2416 = vmatprep.subr.bf16.mxu0 %v2327
  %2417 = vmatpush1.bf16.msra.mxu0 %v2326
  %2418 = vmatprep.subr.bf16.mxu0 %v2323
  %2419 = vmatpush1.bf16.msra.mxu0 %v2322
  %2420 = vmatprep.subr.bf16.mxu0 %v2319
  %2421 = vmatpush1.bf16.msra.mxu0 %v2318
  %2422 = vmatprep.subr.bf16.mxu0 0
  %2423 = vmatpush2.bf16.msra.mxu0 0
  %2424 = vmatprep.subr.bf16.mxu0 0
  %2425 = vmatpush2.bf16.msra.mxu0 0
  %2426 = vmatprep.subr.bf16.mxu0 0
  %2427 = vmatpush2.bf16.msra.mxu0 0
  %2428 = vmatprep.subr.bf16.mxu0 0
  %2429 = vmatpush2.bf16.msra.mxu0 0
  %2430 = vmatprep.subr.bf16.mxu0 0
  %2431 = vmatpush2.bf16.msra.mxu0 0
  %2432 = vmatprep.subr.bf16.mxu0 0
  %2433 = vmatpush2.bf16.msra.mxu0 0
  %2434 = vmatprep.subr.bf16.mxu0 0
  %2435 = vmatpush2.bf16.msra.mxu0 0
  %2436 = vmatprep.subr.bf16.mxu0 0
  %2437 = vmatpush2.bf16.msra.mxu0 0
  %2438 = vmatprep.mubr.bf16.mxu0 0
  %2439 = vmatmul.mubr.bf16.gmra.mxu0 %v2350
  %v2440 = vpop.f32.mrf.mxu0
  %v2441 = vadd.f32 0.0, %v2440
  %v2442 = vpop.f32.mrf.mxu0
  %v2443 = vadd.f32 0.0, %v2442
  %v2444 = vpop.f32.mrf.mxu0
  %v2445 = vadd.f32 0.0, %v2444
  %v2446 = vpop.f32.mrf.mxu0
  %v2447 = vadd.f32 0.0, %v2446
  %2448 = vmatprep.mubr.bf16.mxu0 0
  %2449 = vmatmul.mubr.bf16.gmra.mxu0 %v2353
  %v2450 = vpop.f32.mrf.mxu0
  %v2451 = vadd.f32 0.0, %v2450
  %v2452 = vpop.f32.mrf.mxu0
  %v2453 = vadd.f32 0.0, %v2452
  %v2454 = vpop.f32.mrf.mxu0
  %v2455 = vpop.f32.mrf.mxu0
  %2456 = vdwg.mxu0
  %v2457 = vld [vmem:[%s1] sm:$0xff]
  %v2458 = vld [vmem:[%s1 + $0x8] sm:$0xff]
  %v2459 = vld [vmem:[%s1 + $0x10] sm:$0xff]
  %v2460 = vld [vmem:[%s1 + $0x18] sm:$0xff]
  %v2461 = vld [vmem:[%s1 + $0x20] sm:$0xff]
  %v2462 = vld [vmem:[%s1 + $0x28] sm:$0xff]
  %v2463 = vld [vmem:[%s1 + $0x30] sm:$0xff]
  %v2464 = vld [vmem:[%s1 + $0x38] sm:$0xff]
  %v2465 = vld [vmem:[%s1 + $0x40] sm:$0xff]
  %v2466 = vld [vmem:[%s1 + $0x48] sm:$0xff]
  %v2467 = vld [vmem:[%s1 + $0x50] sm:$0xff]
  %v2468 = vld [vmem:[%s1 + $0x58] sm:$0xff]
  %v2469 = vmul.f32 %v2390, %v2457
  %v2470 = vmul.f32 %v2392, %v2458
  %v2471 = vmul.f32 %v2441, %v2459
  %v2472 = vmul.f32 %v2443, %v2460
  %v2473 = vmul.f32 %v2394, %v2461
  %v2474 = vmul.f32 %v2396, %v2462
  %v2475 = vmul.f32 %v2445, %v2463
  %v2476 = vmul.f32 %v2447, %v2464
  %v2477 = vmul.f32 %v2400, %v2465
  %v2478 = vmul.f32 %v2402, %v2466
  %v2479 = vmul.f32 %v2451, %v2467
  %v2480 = vmul.f32 %v2453, %v2468
  %2481 = vrot.lane.b32.xlu0 %v2121, 16
  %v2482 = vpop.permute.xlu0 %2481
  %2483 = vrot.lane.b32.xlu0 %v2125, 16
  %v2484 = vpop.permute.xlu0 %2483
  %2485 = vrot.lane.b32.xlu0 %v2129, 16
  %v2486 = vpop.permute.xlu0 %2485
  %2487 = vrot.lane.b32.xlu0 %v2133, 16
  %v2488 = vpop.permute.xlu0 %2487
  %2489 = vrot.lane.b32.xlu0 %v2137, 16
  %v2490 = vpop.permute.xlu0 %2489
  %2491 = vrot.lane.b32.xlu0 %v2141, 16
  %v2492 = vpop.permute.xlu0 %2491
  %2493 = vrot.lane.b32.xlu0 %v2145, 16
  %v2494 = vpop.permute.xlu0 %2493
  %2495 = vrot.lane.b32.xlu0 %v2149, 16
  %v2496 = vpop.permute.xlu0 %2495
  %2497 = vrot.lane.b32.xlu0 %v2153, 16
  %v2498 = vpop.permute.xlu0 %2497
  %2499 = vrot.lane.b32.xlu0 %v2157, 16
  %v2500 = vpop.permute.xlu0 %2499
  %2501 = vrot.lane.b32.xlu0 %v2161, 16
  %v2502 = vpop.permute.xlu0 %2501
  %2503 = vrot.lane.b32.xlu0 %v2165, 16
  %v2504 = vpop.permute.xlu0 %2503
  %2505 = vrot.lane.b32.xlu0 %v2122, 16
  %v2506 = vpop.permute.xlu0 %2505
  %2507 = vrot.lane.b32.xlu0 %v2126, 16
  %v2508 = vpop.permute.xlu0 %2507
  %2509 = vrot.lane.b32.xlu0 %v2130, 16
  %v2510 = vpop.permute.xlu0 %2509
  %2511 = vrot.lane.b32.xlu0 %v2134, 16
  %v2512 = vpop.permute.xlu0 %2511
  %2513 = vrot.lane.b32.xlu0 %v2138, 16
  %v2514 = vpop.permute.xlu0 %2513
  %2515 = vrot.lane.b32.xlu0 %v2142, 16
  %v2516 = vpop.permute.xlu0 %2515
  %2517 = vrot.lane.b32.xlu0 %v2146, 16
  %v2518 = vpop.permute.xlu0 %2517
  %2519 = vrot.lane.b32.xlu0 %v2150, 16
  %v2520 = vpop.permute.xlu0 %2519
  %2521 = vrot.lane.b32.xlu0 %v2154, 16
  %v2522 = vpop.permute.xlu0 %2521
  %2523 = vrot.lane.b32.xlu0 %v2158, 16
  %v2524 = vpop.permute.xlu0 %2523
  %2525 = vrot.lane.b32.xlu0 %v2162, 16
  %v2526 = vpop.permute.xlu0 %2525
  %2527 = vrot.lane.b32.xlu0 %v2166, 16
  %v2528 = vpop.permute.xlu0 %2527
  %2529 = vrot.lane.b32.xlu0 %v2123, 16
  %v2530 = vpop.permute.xlu0 %2529
  %2531 = vrot.lane.b32.xlu0 %v2127, 16
  %v2532 = vpop.permute.xlu0 %2531
  %2533 = vrot.lane.b32.xlu0 %v2131, 16
  %v2534 = vpop.permute.xlu0 %2533
  %2535 = vrot.lane.b32.xlu0 %v2135, 16
  %v2536 = vpop.permute.xlu0 %2535
  %2537 = vrot.lane.b32.xlu0 %v2139, 16
  %v2538 = vpop.permute.xlu0 %2537
  %2539 = vrot.lane.b32.xlu0 %v2143, 16
  %v2540 = vpop.permute.xlu0 %2539
  %2541 = vrot.lane.b32.xlu0 %v2147, 16
  %v2542 = vpop.permute.xlu0 %2541
  %2543 = vrot.lane.b32.xlu0 %v2151, 16
  %v2544 = vpop.permute.xlu0 %2543
  %2545 = vrot.lane.b32.xlu0 %v2155, 16
  %v2546 = vpop.permute.xlu0 %2545
  %2547 = vrot.lane.b32.xlu0 %v2159, 16
  %v2548 = vpop.permute.xlu0 %2547
  %2549 = vrot.lane.b32.xlu0 %v2163, 16
  %v2550 = vpop.permute.xlu0 %2549
  %2551 = vrot.lane.b32.xlu0 %v2167, 16
  %v2552 = vpop.permute.xlu0 %2551
  %2553 = vrot.lane.b32.xlu0 %v2124, 16
  %v2554 = vpop.permute.xlu0 %2553
  %2555 = vrot.lane.b32.xlu0 %v2128, 16
  %v2556 = vpop.permute.xlu0 %2555
  %2557 = vrot.lane.b32.xlu0 %v2132, 16
  %v2558 = vpop.permute.xlu0 %2557
  %2559 = vrot.lane.b32.xlu0 %v2136, 16
  %v2560 = vpop.permute.xlu0 %2559
  %2561 = vrot.lane.b32.xlu0 %v2140, 16
  %v2562 = vpop.permute.xlu0 %2561
  %2563 = vrot.lane.b32.xlu0 %v2144, 16
  %v2564 = vpop.permute.xlu0 %2563
  %2565 = vrot.lane.b32.xlu0 %v2148, 16
  %v2566 = vpop.permute.xlu0 %2565
  %2567 = vrot.lane.b32.xlu0 %v2152, 16
  %v2568 = vpop.permute.xlu0 %2567
  %2569 = vrot.lane.b32.xlu0 %v2156, 16
  %v2570 = vpop.permute.xlu0 %2569
  %2571 = vrot.lane.b32.xlu0 %v2160, 16
  %v2572 = vpop.permute.xlu0 %2571
  %2573 = vrot.lane.b32.xlu0 %v2164, 16
  %v2574 = vpop.permute.xlu0 %2573
  %2575 = vrot.lane.b32.xlu0 %v2168, 16
  %v2576 = vpop.permute.xlu0 %2575
  %v2577 = vsel %vm67, %v2530, %v2554
  %v2578 = vsel %vm67, %v2532, %v2556
  %v2579 = vsel %vm67, %v2534, %v2558
  %v2580 = vsel %vm67, %v2536, %v2560
  %v2581 = vsel %vm67, %v2538, %v2562
  %v2582 = vsel %vm67, %v2540, %v2564
  %v2583 = vsel %vm67, %v2542, %v2566
  %v2584 = vsel %vm67, %v2544, %v2568
  %v2585 = vsel %vm67, %v2546, %v2570
  %v2586 = vsel %vm67, %v2548, %v2572
  %v2587 = vsel %vm67, %v2550, %v2574
  %v2588 = vsel %vm67, %v2552, %v2576
  %v2589 = vsel %vm67, %v2506, %v2530
  %v2590 = vsel %vm67, %v2508, %v2532
  %v2591 = vsel %vm67, %v2510, %v2534
  %v2592 = vsel %vm67, %v2512, %v2536
  %v2593 = vsel %vm67, %v2514, %v2538
  %v2594 = vsel %vm67, %v2516, %v2540
  %v2595 = vsel %vm67, %v2518, %v2542
  %v2596 = vsel %vm67, %v2520, %v2544
  %v2597 = vsel %vm67, %v2522, %v2546
  %v2598 = vsel %vm67, %v2524, %v2548
  %v2599 = vsel %vm67, %v2526, %v2550
  %v2600 = vsel %vm67, %v2528, %v2552
  %v2601 = vsel %vm67, %v2482, %v2506
  %v2602 = vsel %vm67, %v2484, %v2508
  %v2603 = vsel %vm67, %v2486, %v2510
  %v2604 = vsel %vm67, %v2488, %v2512
  %v2605 = vsel %vm67, %v2490, %v2514
  %v2606 = vsel %vm67, %v2492, %v2516
  %v2607 = vsel %vm67, %v2494, %v2518
  %v2608 = vsel %vm67, %v2496, %v2520
  %v2609 = vsel %vm67, %v2498, %v2522
  %v2610 = vsel %vm67, %v2500, %v2524
  %v2611 = vsel %vm67, %v2502, %v2526
  %v2612 = vsel %vm67, %v2504, %v2528
  %v2613 = vsel %vm67, %v2554, %v2482
  %v2614 = vsel %vm67, %v2556, %v2484
  %v2615 = vsel %vm67, %v2558, %v2486
  %v2616 = vsel %vm67, %v2560, %v2488
  %v2617 = vsel %vm67, %v2562, %v2490
  %v2618 = vsel %vm67, %v2564, %v2492
  %v2619 = vsel %vm67, %v2566, %v2494
  %v2620 = vsel %vm67, %v2568, %v2496
  %v2621 = vsel %vm67, %v2570, %v2498
  %v2622 = vsel %vm67, %v2572, %v2500
  %v2623 = vsel %vm67, %v2574, %v2502
  %v2624 = vsel %vm67, %v2576, %v2504
  %s2625 = scalar_lea.vmem %s3, 12
  %v2626 = vld [vmem:[%s2625] sm:$0xf]
  %v2627 = vld [vmem:[%s2625 + $0x4] sm:$0xf]
  %v2628 = vld [vmem:[%s2625 + $0x8] sm:$0xf]
  %v2629 = vpack.c.bf16 %v2614, %v2613
  %v2630 = vpack.c.bf16 %v2602, %v2601
  %v2631 = vpack.c.bf16 %v2590, %v2589
  %v2632 = vpack.c.bf16 %v2578, %v2577
  %v2633 = vpack.c.bf16 %v2616, %v2615
  %v2634 = vpack.c.bf16 %v2604, %v2603
  %v2635 = vpack.c.bf16 %v2592, %v2591
  %v2636 = vpack.c.bf16 %v2580, %v2579
  %v2637 = vpack.c.bf16 %v2618, %v2617
  %v2638 = vpack.c.bf16 %v2606, %v2605
  %v2639 = vpack.c.bf16 %v2594, %v2593
  %v2640 = vpack.c.bf16 %v2582, %v2581
  %v2641 = vpack.c.bf16 %v2620, %v2619
  %v2642 = vpack.c.bf16 %v2608, %v2607
  %v2643 = vpack.c.bf16 %v2596, %v2595
  %v2644 = vpack.c.bf16 %v2584, %v2583
  %v2645 = vpack.c.bf16 %v2622, %v2621
  %v2646 = vpack.c.bf16 %v2610, %v2609
  %v2647 = vpack.c.bf16 %v2598, %v2597
  %v2648 = vpack.c.bf16 %v2586, %v2585
  %v2649 = vpack.c.bf16 %v2624, %v2623
  %v2650 = vpack.c.bf16 %v2612, %v2611
  %v2651 = vpack.c.bf16 %v2600, %v2599
  %v2652 = vpack.c.bf16 %v2588, %v2587
  %v2656 = vunpack.c.l.b16 %v2626
  %v2657 = vunpack.c.l.b16 %v2627
  %v2658 = vunpack.c.l.b16 %v2628
  %v2659 = vpack.c.b16 %v2657, %v2656
  %v2660 = vpack.c.b16 %v2658, %v2658
  %v2662 = vsel %vm2348, %v2659, 0
  %v2665 = vsel %vm2348, %v2660, 0
  %2667 = vmatprep.subr.bf16.mxu0 0
  %2668 = vmatpush1.bf16.msra.mxu0 0
  %2669 = vmatprep.subr.bf16.mxu0 0
  %2670 = vmatpush1.bf16.msra.mxu0 0
  %2671 = vmatprep.subr.bf16.mxu0 %v2650
  %2672 = vmatpush1.bf16.msra.mxu0 %v2649
  %2673 = vmatprep.subr.bf16.mxu0 %v2646
  %2674 = vmatpush1.bf16.msra.mxu0 %v2645
  %2675 = vmatprep.subr.bf16.mxu0 %v2642
  %2676 = vmatpush1.bf16.msra.mxu0 %v2641
  %2677 = vmatprep.subr.bf16.mxu0 %v2638
  %2678 = vmatpush1.bf16.msra.mxu0 %v2637
  %2679 = vmatprep.subr.bf16.mxu0 %v2634
  %2680 = vmatpush1.bf16.msra.mxu0 %v2633
  %2681 = vmatprep.subr.bf16.mxu0 %v2630
  %2682 = vmatpush1.bf16.msra.mxu0 %v2629
  %2683 = vmatprep.subr.bf16.mxu0 0
  %2684 = vmatpush2.bf16.msra.mxu0 0
  %2685 = vmatprep.subr.bf16.mxu0 0
  %2686 = vmatpush2.bf16.msra.mxu0 0
  %2687 = vmatprep.subr.bf16.mxu0 0
  %2688 = vmatpush2.bf16.msra.mxu0 0
  %2689 = vmatprep.subr.bf16.mxu0 0
  %2690 = vmatpush2.bf16.msra.mxu0 0
  %2691 = vmatprep.subr.bf16.mxu0 0
  %2692 = vmatpush2.bf16.msra.mxu0 0
  %2693 = vmatprep.subr.bf16.mxu0 0
  %2694 = vmatpush2.bf16.msra.mxu0 0
  %2695 = vmatprep.subr.bf16.mxu0 0
  %2696 = vmatpush2.bf16.msra.mxu0 0
  %2697 = vmatprep.subr.bf16.mxu0 0
  %2698 = vmatpush2.bf16.msra.mxu0 0
  %2699 = vmatprep.mubr.bf16.mxu0 0
  %2700 = vmatmul.mubr.bf16.gmra.mxu0 %v2662
  %v2701 = vpop.f32.mrf.mxu0
  %v2702 = vadd.f32 0.0, %v2701
  %v2703 = vpop.f32.mrf.mxu0
  %v2704 = vadd.f32 0.0, %v2703
  %v2705 = vpop.f32.mrf.mxu0
  %v2706 = vadd.f32 0.0, %v2705
  %v2707 = vpop.f32.mrf.mxu0
  %v2708 = vadd.f32 0.0, %v2707
  %2709 = vmatprep.mubr.bf16.mxu0 0
  %2710 = vmatmul.mubr.bf16.gmra.mxu0 %v2665
  %v2711 = vpop.f32.mrf.mxu0
  %v2712 = vadd.f32 0.0, %v2711
  %v2713 = vpop.f32.mrf.mxu0
  %v2714 = vadd.f32 0.0, %v2713
  %v2715 = vpop.f32.mrf.mxu0
  %v2716 = vpop.f32.mrf.mxu0
  %2717 = vdwg.mxu0
  %2718 = vmatprep.subr.bf16.mxu0 0
  %2719 = vmatpush1.bf16.msra.mxu0 0
  %2720 = vmatprep.subr.bf16.mxu0 0
  %2721 = vmatpush1.bf16.msra.mxu0 0
  %2722 = vmatprep.subr.bf16.mxu0 %v2652
  %2723 = vmatpush1.bf16.msra.mxu0 %v2651
  %2724 = vmatprep.subr.bf16.mxu0 %v2648
  %2725 = vmatpush1.bf16.msra.mxu0 %v2647
  %2726 = vmatprep.subr.bf16.mxu0 %v2644
  %2727 = vmatpush1.bf16.msra.mxu0 %v2643
  %2728 = vmatprep.subr.bf16.mxu0 %v2640
  %2729 = vmatpush1.bf16.msra.mxu0 %v2639
  %2730 = vmatprep.subr.bf16.mxu0 %v2636
  %2731 = vmatpush1.bf16.msra.mxu0 %v2635
  %2732 = vmatprep.subr.bf16.mxu0 %v2632
  %2733 = vmatpush1.bf16.msra.mxu0 %v2631
  %2734 = vmatprep.subr.bf16.mxu0 0
  %2735 = vmatpush2.bf16.msra.mxu0 0
  %2736 = vmatprep.subr.bf16.mxu0 0
  %2737 = vmatpush2.bf16.msra.mxu0 0
  %2738 = vmatprep.subr.bf16.mxu0 0
  %2739 = vmatpush2.bf16.msra.mxu0 0
  %2740 = vmatprep.subr.bf16.mxu0 0
  %2741 = vmatpush2.bf16.msra.mxu0 0
  %2742 = vmatprep.subr.bf16.mxu0 0
  %2743 = vmatpush2.bf16.msra.mxu0 0
  %2744 = vmatprep.subr.bf16.mxu0 0
  %2745 = vmatpush2.bf16.msra.mxu0 0
  %2746 = vmatprep.subr.bf16.mxu0 0
  %2747 = vmatpush2.bf16.msra.mxu0 0
  %2748 = vmatprep.subr.bf16.mxu0 0
  %2749 = vmatpush2.bf16.msra.mxu0 0
  %2750 = vmatprep.mubr.bf16.mxu0 0
  %2751 = vmatmul.mubr.bf16.gmra.mxu0 %v2662
  %v2752 = vpop.f32.mrf.mxu0
  %v2753 = vadd.f32 0.0, %v2752
  %v2754 = vpop.f32.mrf.mxu0
  %v2755 = vadd.f32 0.0, %v2754
  %v2756 = vpop.f32.mrf.mxu0
  %v2757 = vadd.f32 0.0, %v2756
  %v2758 = vpop.f32.mrf.mxu0
  %v2759 = vadd.f32 0.0, %v2758
  %2760 = vmatprep.mubr.bf16.mxu0 0
  %2761 = vmatmul.mubr.bf16.gmra.mxu0 %v2665
  %v2762 = vpop.f32.mrf.mxu0
  %v2763 = vadd.f32 0.0, %v2762
  %v2764 = vpop.f32.mrf.mxu0
  %v2765 = vadd.f32 0.0, %v2764
  %v2766 = vpop.f32.mrf.mxu0
  %v2767 = vpop.f32.mrf.mxu0
  %2768 = vdwg.mxu0
  %v2769 = vld [vmem:[%s72] sm:$0xff]
  %v2770 = vld [vmem:[%s72 + $0x8] sm:$0xff]
  %v2771 = vld [vmem:[%s72 + $0x10] sm:$0xff]
  %v2772 = vld [vmem:[%s72 + $0x18] sm:$0xff]
  %v2773 = vld [vmem:[%s72 + $0x20] sm:$0xff]
  %v2774 = vld [vmem:[%s72 + $0x28] sm:$0xff]
  %v2775 = vld [vmem:[%s72 + $0x30] sm:$0xff]
  %v2776 = vld [vmem:[%s72 + $0x38] sm:$0xff]
  %v2777 = vld [vmem:[%s72 + $0x40] sm:$0xff]
  %v2778 = vld [vmem:[%s72 + $0x48] sm:$0xff]
  %v2779 = vld [vmem:[%s72 + $0x50] sm:$0xff]
  %v2780 = vld [vmem:[%s72 + $0x58] sm:$0xff]
  %v2781 = vmul.f32 %v2702, %v2769
  %v2782 = vmul.f32 %v2704, %v2770
  %v2783 = vmul.f32 %v2753, %v2771
  %v2784 = vmul.f32 %v2755, %v2772
  %v2785 = vmul.f32 %v2706, %v2773
  %v2786 = vmul.f32 %v2708, %v2774
  %v2787 = vmul.f32 %v2757, %v2775
  %v2788 = vmul.f32 %v2759, %v2776
  %v2789 = vmul.f32 %v2712, %v2777
  %v2790 = vmul.f32 %v2714, %v2778
  %v2791 = vmul.f32 %v2763, %v2779
  %v2792 = vmul.f32 %v2765, %v2780
  %v2793 = vadd.f32 %v2469, %v2781
  %v2794 = vadd.f32 %v2470, %v2782
  %v2795 = vadd.f32 %v2471, %v2783
  %v2796 = vadd.f32 %v2472, %v2784
  %v2797 = vadd.f32 %v2473, %v2785
  %v2798 = vadd.f32 %v2474, %v2786
  %v2799 = vadd.f32 %v2475, %v2787
  %v2800 = vadd.f32 %v2476, %v2788
  %v2801 = vadd.f32 %v2477, %v2789
  %v2802 = vadd.f32 %v2478, %v2790
  %v2803 = vadd.f32 %v2479, %v2791
  %v2804 = vadd.f32 %v2480, %v2792
  %2805 = vrot.lane.b32.xlu0 %v2121, 15
  %v2806 = vpop.permute.xlu0 %2805
  %2807 = vrot.lane.b32.xlu0 %v2125, 15
  %v2808 = vpop.permute.xlu0 %2807
  %2809 = vrot.lane.b32.xlu0 %v2129, 15
  %v2810 = vpop.permute.xlu0 %2809
  %2811 = vrot.lane.b32.xlu0 %v2133, 15
  %v2812 = vpop.permute.xlu0 %2811
  %2813 = vrot.lane.b32.xlu0 %v2137, 15
  %v2814 = vpop.permute.xlu0 %2813
  %2815 = vrot.lane.b32.xlu0 %v2141, 15
  %v2816 = vpop.permute.xlu0 %2815
  %2817 = vrot.lane.b32.xlu0 %v2145, 15
  %v2818 = vpop.permute.xlu0 %2817
  %2819 = vrot.lane.b32.xlu0 %v2149, 15
  %v2820 = vpop.permute.xlu0 %2819
  %2821 = vrot.lane.b32.xlu0 %v2153, 15
  %v2822 = vpop.permute.xlu0 %2821
  %2823 = vrot.lane.b32.xlu0 %v2157, 15
  %v2824 = vpop.permute.xlu0 %2823
  %2825 = vrot.lane.b32.xlu0 %v2161, 15
  %v2826 = vpop.permute.xlu0 %2825
  %2827 = vrot.lane.b32.xlu0 %v2165, 15
  %v2828 = vpop.permute.xlu0 %2827
  %2829 = vrot.lane.b32.xlu0 %v2122, 15
  %v2830 = vpop.permute.xlu0 %2829
  %2831 = vrot.lane.b32.xlu0 %v2126, 15
  %v2832 = vpop.permute.xlu0 %2831
  %2833 = vrot.lane.b32.xlu0 %v2130, 15
  %v2834 = vpop.permute.xlu0 %2833
  %2835 = vrot.lane.b32.xlu0 %v2134, 15
  %v2836 = vpop.permute.xlu0 %2835
  %2837 = vrot.lane.b32.xlu0 %v2138, 15
  %v2838 = vpop.permute.xlu0 %2837
  %2839 = vrot.lane.b32.xlu0 %v2142, 15
  %v2840 = vpop.permute.xlu0 %2839
  %2841 = vrot.lane.b32.xlu0 %v2146, 15
  %v2842 = vpop.permute.xlu0 %2841
  %2843 = vrot.lane.b32.xlu0 %v2150, 15
  %v2844 = vpop.permute.xlu0 %2843
  %2845 = vrot.lane.b32.xlu0 %v2154, 15
  %v2846 = vpop.permute.xlu0 %2845
  %2847 = vrot.lane.b32.xlu0 %v2158, 15
  %v2848 = vpop.permute.xlu0 %2847
  %2849 = vrot.lane.b32.xlu0 %v2162, 15
  %v2850 = vpop.permute.xlu0 %2849
  %2851 = vrot.lane.b32.xlu0 %v2166, 15
  %v2852 = vpop.permute.xlu0 %2851
  %2853 = vrot.lane.b32.xlu0 %v2123, 15
  %v2854 = vpop.permute.xlu0 %2853
  %2855 = vrot.lane.b32.xlu0 %v2127, 15
  %v2856 = vpop.permute.xlu0 %2855
  %2857 = vrot.lane.b32.xlu0 %v2131, 15
  %v2858 = vpop.permute.xlu0 %2857
  %2859 = vrot.lane.b32.xlu0 %v2135, 15
  %v2860 = vpop.permute.xlu0 %2859
  %2861 = vrot.lane.b32.xlu0 %v2139, 15
  %v2862 = vpop.permute.xlu0 %2861
  %2863 = vrot.lane.b32.xlu0 %v2143, 15
  %v2864 = vpop.permute.xlu0 %2863
  %2865 = vrot.lane.b32.xlu0 %v2147, 15
  %v2866 = vpop.permute.xlu0 %2865
  %2867 = vrot.lane.b32.xlu0 %v2151, 15
  %v2868 = vpop.permute.xlu0 %2867
  %2869 = vrot.lane.b32.xlu0 %v2155, 15
  %v2870 = vpop.permute.xlu0 %2869
  %2871 = vrot.lane.b32.xlu0 %v2159, 15
  %v2872 = vpop.permute.xlu0 %2871
  %2873 = vrot.lane.b32.xlu0 %v2163, 15
  %v2874 = vpop.permute.xlu0 %2873
  %2875 = vrot.lane.b32.xlu0 %v2167, 15
  %v2876 = vpop.permute.xlu0 %2875
  %2877 = vrot.lane.b32.xlu0 %v2124, 15
  %v2878 = vpop.permute.xlu0 %2877
  %2879 = vrot.lane.b32.xlu0 %v2128, 15
  %v2880 = vpop.permute.xlu0 %2879
  %2881 = vrot.lane.b32.xlu0 %v2132, 15
  %v2882 = vpop.permute.xlu0 %2881
  %2883 = vrot.lane.b32.xlu0 %v2136, 15
  %v2884 = vpop.permute.xlu0 %2883
  %2885 = vrot.lane.b32.xlu0 %v2140, 15
  %v2886 = vpop.permute.xlu0 %2885
  %2887 = vrot.lane.b32.xlu0 %v2144, 15
  %v2888 = vpop.permute.xlu0 %2887
  %2889 = vrot.lane.b32.xlu0 %v2148, 15
  %v2890 = vpop.permute.xlu0 %2889
  %2891 = vrot.lane.b32.xlu0 %v2152, 15
  %v2892 = vpop.permute.xlu0 %2891
  %2893 = vrot.lane.b32.xlu0 %v2156, 15
  %v2894 = vpop.permute.xlu0 %2893
  %2895 = vrot.lane.b32.xlu0 %v2160, 15
  %v2896 = vpop.permute.xlu0 %2895
  %2897 = vrot.lane.b32.xlu0 %v2164, 15
  %v2898 = vpop.permute.xlu0 %2897
  %2899 = vrot.lane.b32.xlu0 %v2168, 15
  %v2900 = vpop.permute.xlu0 %2899
  %v2901 = vsel %vm89, %v2854, %v2878
  %v2902 = vsel %vm89, %v2856, %v2880
  %v2903 = vsel %vm89, %v2858, %v2882
  %v2904 = vsel %vm89, %v2860, %v2884
  %v2905 = vsel %vm89, %v2862, %v2886
  %v2906 = vsel %vm89, %v2864, %v2888
  %v2907 = vsel %vm89, %v2866, %v2890
  %v2908 = vsel %vm89, %v2868, %v2892
  %v2909 = vsel %vm89, %v2870, %v2894
  %v2910 = vsel %vm89, %v2872, %v2896
  %v2911 = vsel %vm89, %v2874, %v2898
  %v2912 = vsel %vm89, %v2876, %v2900
  %v2913 = vsel %vm89, %v2830, %v2854
  %v2914 = vsel %vm89, %v2832, %v2856
  %v2915 = vsel %vm89, %v2834, %v2858
  %v2916 = vsel %vm89, %v2836, %v2860
  %v2917 = vsel %vm89, %v2838, %v2862
  %v2918 = vsel %vm89, %v2840, %v2864
  %v2919 = vsel %vm89, %v2842, %v2866
  %v2920 = vsel %vm89, %v2844, %v2868
  %v2921 = vsel %vm89, %v2846, %v2870
  %v2922 = vsel %vm89, %v2848, %v2872
  %v2923 = vsel %vm89, %v2850, %v2874
  %v2924 = vsel %vm89, %v2852, %v2876
  %v2925 = vsel %vm89, %v2806, %v2830
  %v2926 = vsel %vm89, %v2808, %v2832
  %v2927 = vsel %vm89, %v2810, %v2834
  %v2928 = vsel %vm89, %v2812, %v2836
  %v2929 = vsel %vm89, %v2814, %v2838
  %v2930 = vsel %vm89, %v2816, %v2840
  %v2931 = vsel %vm89, %v2818, %v2842
  %v2932 = vsel %vm89, %v2820, %v2844
  %v2933 = vsel %vm89, %v2822, %v2846
  %v2934 = vsel %vm89, %v2824, %v2848
  %v2935 = vsel %vm89, %v2826, %v2850
  %v2936 = vsel %vm89, %v2828, %v2852
  %v2937 = vsel %vm89, %v2878, %v2806
  %v2938 = vsel %vm89, %v2880, %v2808
  %v2939 = vsel %vm89, %v2882, %v2810
  %v2940 = vsel %vm89, %v2884, %v2812
  %v2941 = vsel %vm89, %v2886, %v2814
  %v2942 = vsel %vm89, %v2888, %v2816
  %v2943 = vsel %vm89, %v2890, %v2818
  %v2944 = vsel %vm89, %v2892, %v2820
  %v2945 = vsel %vm89, %v2894, %v2822
  %v2946 = vsel %vm89, %v2896, %v2824
  %v2947 = vsel %vm89, %v2898, %v2826
  %v2948 = vsel %vm89, %v2900, %v2828
  %s2949 = scalar_lea.vmem %s3, 24
  %v2950 = vld [vmem:[%s2949] sm:$0xf]
  %v2951 = vld [vmem:[%s2949 + $0x4] sm:$0xf]
  %v2952 = vld [vmem:[%s2949 + $0x8] sm:$0xf]
  %v2953 = vpack.c.bf16 %v2938, %v2937
  %v2954 = vpack.c.bf16 %v2926, %v2925
  %v2955 = vpack.c.bf16 %v2914, %v2913
  %v2956 = vpack.c.bf16 %v2902, %v2901
  %v2957 = vpack.c.bf16 %v2940, %v2939
  %v2958 = vpack.c.bf16 %v2928, %v2927
  %v2959 = vpack.c.bf16 %v2916, %v2915
  %v2960 = vpack.c.bf16 %v2904, %v2903
  %v2961 = vpack.c.bf16 %v2942, %v2941
  %v2962 = vpack.c.bf16 %v2930, %v2929
  %v2963 = vpack.c.bf16 %v2918, %v2917
  %v2964 = vpack.c.bf16 %v2906, %v2905
  %v2965 = vpack.c.bf16 %v2944, %v2943
  %v2966 = vpack.c.bf16 %v2932, %v2931
  %v2967 = vpack.c.bf16 %v2920, %v2919
  %v2968 = vpack.c.bf16 %v2908, %v2907
  %v2969 = vpack.c.bf16 %v2946, %v2945
  %v2970 = vpack.c.bf16 %v2934, %v2933
  %v2971 = vpack.c.bf16 %v2922, %v2921
  %v2972 = vpack.c.bf16 %v2910, %v2909
  %v2973 = vpack.c.bf16 %v2948, %v2947
  %v2974 = vpack.c.bf16 %v2936, %v2935
  %v2975 = vpack.c.bf16 %v2924, %v2923
  %v2976 = vpack.c.bf16 %v2912, %v2911
  %v2980 = vunpack.c.l.b16 %v2950
  %v2981 = vunpack.c.l.b16 %v2951
  %v2982 = vunpack.c.l.b16 %v2952
  %v2983 = vpack.c.b16 %v2981, %v2980
  %v2984 = vpack.c.b16 %v2982, %v2982
  %v2986 = vsel %vm2348, %v2983, 0
  %v2989 = vsel %vm2348, %v2984, 0
  %2991 = vmatprep.subr.bf16.mxu0 0
  %2992 = vmatpush1.bf16.msra.mxu0 0
  %2993 = vmatprep.subr.bf16.mxu0 0
  %2994 = vmatpush1.bf16.msra.mxu0 0
  %2995 = vmatprep.subr.bf16.mxu0 %v2974
  %2996 = vmatpush1.bf16.msra.mxu0 %v2973
  %2997 = vmatprep.subr.bf16.mxu0 %v2970
  %2998 = vmatpush1.bf16.msra.mxu0 %v2969
  %2999 = vmatprep.subr.bf16.mxu0 %v2966
  %3000 = vmatpush1.bf16.msra.mxu0 %v2965
  %3001 = vmatprep.subr.bf16.mxu0 %v2962
  %3002 = vmatpush1.bf16.msra.mxu0 %v2961
  %3003 = vmatprep.subr.bf16.mxu0 %v2958
  %3004 = vmatpush1.bf16.msra.mxu0 %v2957
  %3005 = vmatprep.subr.bf16.mxu0 %v2954
  %3006 = vmatpush1.bf16.msra.mxu0 %v2953
  %3007 = vmatprep.subr.bf16.mxu0 0
  %3008 = vmatpush2.bf16.msra.mxu0 0
  %3009 = vmatprep.subr.bf16.mxu0 0
  %3010 = vmatpush2.bf16.msra.mxu0 0
  %3011 = vmatprep.subr.bf16.mxu0 0
  %3012 = vmatpush2.bf16.msra.mxu0 0
  %3013 = vmatprep.subr.bf16.mxu0 0
  %3014 = vmatpush2.bf16.msra.mxu0 0
  %3015 = vmatprep.subr.bf16.mxu0 0
  %3016 = vmatpush2.bf16.msra.mxu0 0
  %3017 = vmatprep.subr.bf16.mxu0 0
  %3018 = vmatpush2.bf16.msra.mxu0 0
  %3019 = vmatprep.subr.bf16.mxu0 0
  %3020 = vmatpush2.bf16.msra.mxu0 0
  %3021 = vmatprep.subr.bf16.mxu0 0
  %3022 = vmatpush2.bf16.msra.mxu0 0
  %3023 = vmatprep.mubr.bf16.mxu0 0
  %3024 = vmatmul.mubr.bf16.gmra.mxu0 %v2986
  %v3025 = vpop.f32.mrf.mxu0
  %v3026 = vadd.f32 0.0, %v3025
  %v3027 = vpop.f32.mrf.mxu0
  %v3028 = vadd.f32 0.0, %v3027
  %v3029 = vpop.f32.mrf.mxu0
  %v3030 = vadd.f32 0.0, %v3029
  %v3031 = vpop.f32.mrf.mxu0
  %v3032 = vadd.f32 0.0, %v3031
  %3033 = vmatprep.mubr.bf16.mxu0 0
  %3034 = vmatmul.mubr.bf16.gmra.mxu0 %v2989
  %v3035 = vpop.f32.mrf.mxu0
  %v3036 = vadd.f32 0.0, %v3035
  %v3037 = vpop.f32.mrf.mxu0
  %v3038 = vadd.f32 0.0, %v3037
  %v3039 = vpop.f32.mrf.mxu0
  %v3040 = vpop.f32.mrf.mxu0
  %3041 = vdwg.mxu0
  %3042 = vmatprep.subr.bf16.mxu0 0
  %3043 = vmatpush1.bf16.msra.mxu0 0
  %3044 = vmatprep.subr.bf16.mxu0 0
  %3045 = vmatpush1.bf16.msra.mxu0 0
  %3046 = vmatprep.subr.bf16.mxu0 %v2976
  %3047 = vmatpush1.bf16.msra.mxu0 %v2975
  %3048 = vmatprep.subr.bf16.mxu0 %v2972
  %3049 = vmatpush1.bf16.msra.mxu0 %v2971
  %3050 = vmatprep.subr.bf16.mxu0 %v2968
  %3051 = vmatpush1.bf16.msra.mxu0 %v2967
  %3052 = vmatprep.subr.bf16.mxu0 %v2964
  %3053 = vmatpush1.bf16.msra.mxu0 %v2963
  %3054 = vmatprep.subr.bf16.mxu0 %v2960
  %3055 = vmatpush1.bf16.msra.mxu0 %v2959
  %3056 = vmatprep.subr.bf16.mxu0 %v2956
  %3057 = vmatpush1.bf16.msra.mxu0 %v2955
  %3058 = vmatprep.subr.bf16.mxu0 0
  %3059 = vmatpush2.bf16.msra.mxu0 0
  %3060 = vmatprep.subr.bf16.mxu0 0
  %3061 = vmatpush2.bf16.msra.mxu0 0
  %3062 = vmatprep.subr.bf16.mxu0 0
  %3063 = vmatpush2.bf16.msra.mxu0 0
  %3064 = vmatprep.subr.bf16.mxu0 0
  %3065 = vmatpush2.bf16.msra.mxu0 0
  %3066 = vmatprep.subr.bf16.mxu0 0
  %3067 = vmatpush2.bf16.msra.mxu0 0
  %3068 = vmatprep.subr.bf16.mxu0 0
  %3069 = vmatpush2.bf16.msra.mxu0 0
  %3070 = vmatprep.subr.bf16.mxu0 0
  %3071 = vmatpush2.bf16.msra.mxu0 0
  %3072 = vmatprep.subr.bf16.mxu0 0
  %3073 = vmatpush2.bf16.msra.mxu0 0
  %3074 = vmatprep.mubr.bf16.mxu0 0
  %3075 = vmatmul.mubr.bf16.gmra.mxu0 %v2986
  %v3076 = vpop.f32.mrf.mxu0
  %v3077 = vadd.f32 0.0, %v3076
  %v3078 = vpop.f32.mrf.mxu0
  %v3079 = vadd.f32 0.0, %v3078
  %v3080 = vpop.f32.mrf.mxu0
  %v3081 = vadd.f32 0.0, %v3080
  %v3082 = vpop.f32.mrf.mxu0
  %v3083 = vadd.f32 0.0, %v3082
  %3084 = vmatprep.mubr.bf16.mxu0 0
  %3085 = vmatmul.mubr.bf16.gmra.mxu0 %v2989
  %v3086 = vpop.f32.mrf.mxu0
  %v3087 = vadd.f32 0.0, %v3086
  %v3088 = vpop.f32.mrf.mxu0
  %v3089 = vadd.f32 0.0, %v3088
  %v3090 = vpop.f32.mrf.mxu0
  %v3091 = vpop.f32.mrf.mxu0
  %3092 = vdwg.mxu0
  %v3093 = vld [vmem:[%s94] sm:$0xff]
  %v3094 = vld [vmem:[%s94 + $0x8] sm:$0xff]
  %v3095 = vld [vmem:[%s94 + $0x10] sm:$0xff]
  %v3096 = vld [vmem:[%s94 + $0x18] sm:$0xff]
  %v3097 = vld [vmem:[%s94 + $0x20] sm:$0xff]
  %v3098 = vld [vmem:[%s94 + $0x28] sm:$0xff]
  %v3099 = vld [vmem:[%s94 + $0x30] sm:$0xff]
  %v3100 = vld [vmem:[%s94 + $0x38] sm:$0xff]
  %v3101 = vld [vmem:[%s94 + $0x40] sm:$0xff]
  %v3102 = vld [vmem:[%s94 + $0x48] sm:$0xff]
  %v3103 = vld [vmem:[%s94 + $0x50] sm:$0xff]
  %v3104 = vld [vmem:[%s94 + $0x58] sm:$0xff]
  %v3105 = vmul.f32 %v3026, %v3093
  %v3106 = vmul.f32 %v3028, %v3094
  %v3107 = vmul.f32 %v3077, %v3095
  %v3108 = vmul.f32 %v3079, %v3096
  %v3109 = vmul.f32 %v3030, %v3097
  %v3110 = vmul.f32 %v3032, %v3098
  %v3111 = vmul.f32 %v3081, %v3099
  %v3112 = vmul.f32 %v3083, %v3100
  %v3113 = vmul.f32 %v3036, %v3101
  %v3114 = vmul.f32 %v3038, %v3102
  %v3115 = vmul.f32 %v3087, %v3103
  %v3116 = vmul.f32 %v3089, %v3104
  %v3117 = vadd.f32 %v2793, %v3105
  %v3118 = vadd.f32 %v2794, %v3106
  %v3119 = vadd.f32 %v2795, %v3107
  %v3120 = vadd.f32 %v2796, %v3108
  %v3121 = vadd.f32 %v2797, %v3109
  %v3122 = vadd.f32 %v2798, %v3110
  %v3123 = vadd.f32 %v2799, %v3111
  %v3124 = vadd.f32 %v2800, %v3112
  %v3125 = vadd.f32 %v2801, %v3113
  %v3126 = vadd.f32 %v2802, %v3114
  %v3127 = vadd.f32 %v2803, %v3115
  %v3128 = vadd.f32 %v2804, %v3116
  %3129 = vrot.lane.b32.xlu0 %v2121, 1
  %v3130 = vpop.permute.xlu0 %3129
  %3131 = vrot.lane.b32.xlu0 %v2125, 1
  %v3132 = vpop.permute.xlu0 %3131
  %3133 = vrot.lane.b32.xlu0 %v2129, 1
  %v3134 = vpop.permute.xlu0 %3133
  %3135 = vrot.lane.b32.xlu0 %v2133, 1
  %v3136 = vpop.permute.xlu0 %3135
  %3137 = vrot.lane.b32.xlu0 %v2137, 1
  %v3138 = vpop.permute.xlu0 %3137
  %3139 = vrot.lane.b32.xlu0 %v2141, 1
  %v3140 = vpop.permute.xlu0 %3139
  %3141 = vrot.lane.b32.xlu0 %v2145, 1
  %v3142 = vpop.permute.xlu0 %3141
  %3143 = vrot.lane.b32.xlu0 %v2149, 1
  %v3144 = vpop.permute.xlu0 %3143
  %3145 = vrot.lane.b32.xlu0 %v2153, 1
  %v3146 = vpop.permute.xlu0 %3145
  %3147 = vrot.lane.b32.xlu0 %v2157, 1
  %v3148 = vpop.permute.xlu0 %3147
  %3149 = vrot.lane.b32.xlu0 %v2161, 1
  %v3150 = vpop.permute.xlu0 %3149
  %3151 = vrot.lane.b32.xlu0 %v2165, 1
  %v3152 = vpop.permute.xlu0 %3151
  %3153 = vrot.lane.b32.xlu0 %v2122, 1
  %v3154 = vpop.permute.xlu0 %3153
  %3155 = vrot.lane.b32.xlu0 %v2126, 1
  %v3156 = vpop.permute.xlu0 %3155
  %3157 = vrot.lane.b32.xlu0 %v2130, 1
  %v3158 = vpop.permute.xlu0 %3157
  %3159 = vrot.lane.b32.xlu0 %v2134, 1
  %v3160 = vpop.permute.xlu0 %3159
  %3161 = vrot.lane.b32.xlu0 %v2138, 1
  %v3162 = vpop.permute.xlu0 %3161
  %3163 = vrot.lane.b32.xlu0 %v2142, 1
  %v3164 = vpop.permute.xlu0 %3163
  %3165 = vrot.lane.b32.xlu0 %v2146, 1
  %v3166 = vpop.permute.xlu0 %3165
  %3167 = vrot.lane.b32.xlu0 %v2150, 1
  %v3168 = vpop.permute.xlu0 %3167
  %3169 = vrot.lane.b32.xlu0 %v2154, 1
  %v3170 = vpop.permute.xlu0 %3169
  %3171 = vrot.lane.b32.xlu0 %v2158, 1
  %v3172 = vpop.permute.xlu0 %3171
  %3173 = vrot.lane.b32.xlu0 %v2162, 1
  %v3174 = vpop.permute.xlu0 %3173
  %3175 = vrot.lane.b32.xlu0 %v2166, 1
  %v3176 = vpop.permute.xlu0 %3175
  %3177 = vrot.lane.b32.xlu0 %v2123, 1
  %v3178 = vpop.permute.xlu0 %3177
  %3179 = vrot.lane.b32.xlu0 %v2127, 1
  %v3180 = vpop.permute.xlu0 %3179
  %3181 = vrot.lane.b32.xlu0 %v2131, 1
  %v3182 = vpop.permute.xlu0 %3181
  %3183 = vrot.lane.b32.xlu0 %v2135, 1
  %v3184 = vpop.permute.xlu0 %3183
  %3185 = vrot.lane.b32.xlu0 %v2139, 1
  %v3186 = vpop.permute.xlu0 %3185
  %3187 = vrot.lane.b32.xlu0 %v2143, 1
  %v3188 = vpop.permute.xlu0 %3187
  %3189 = vrot.lane.b32.xlu0 %v2147, 1
  %v3190 = vpop.permute.xlu0 %3189
  %3191 = vrot.lane.b32.xlu0 %v2151, 1
  %v3192 = vpop.permute.xlu0 %3191
  %3193 = vrot.lane.b32.xlu0 %v2155, 1
  %v3194 = vpop.permute.xlu0 %3193
  %3195 = vrot.lane.b32.xlu0 %v2159, 1
  %v3196 = vpop.permute.xlu0 %3195
  %3197 = vrot.lane.b32.xlu0 %v2163, 1
  %v3198 = vpop.permute.xlu0 %3197
  %3199 = vrot.lane.b32.xlu0 %v2167, 1
  %v3200 = vpop.permute.xlu0 %3199
  %3201 = vrot.lane.b32.xlu0 %v2124, 1
  %v3202 = vpop.permute.xlu0 %3201
  %3203 = vrot.lane.b32.xlu0 %v2128, 1
  %v3204 = vpop.permute.xlu0 %3203
  %3205 = vrot.lane.b32.xlu0 %v2132, 1
  %v3206 = vpop.permute.xlu0 %3205
  %3207 = vrot.lane.b32.xlu0 %v2136, 1
  %v3208 = vpop.permute.xlu0 %3207
  %3209 = vrot.lane.b32.xlu0 %v2140, 1
  %v3210 = vpop.permute.xlu0 %3209
  %3211 = vrot.lane.b32.xlu0 %v2144, 1
  %v3212 = vpop.permute.xlu0 %3211
  %3213 = vrot.lane.b32.xlu0 %v2148, 1
  %v3214 = vpop.permute.xlu0 %3213
  %3215 = vrot.lane.b32.xlu0 %v2152, 1
  %v3216 = vpop.permute.xlu0 %3215
  %3217 = vrot.lane.b32.xlu0 %v2156, 1
  %v3218 = vpop.permute.xlu0 %3217
  %3219 = vrot.lane.b32.xlu0 %v2160, 1
  %v3220 = vpop.permute.xlu0 %3219
  %3221 = vrot.lane.b32.xlu0 %v2164, 1
  %v3222 = vpop.permute.xlu0 %3221
  %3223 = vrot.lane.b32.xlu0 %v2168, 1
  %v3224 = vpop.permute.xlu0 %3223
  %v3225 = vsel %vm123, %v3178, %v3202
  %v3226 = vsel %vm123, %v3180, %v3204
  %v3227 = vsel %vm123, %v3182, %v3206
  %v3228 = vsel %vm123, %v3184, %v3208
  %v3229 = vsel %vm123, %v3186, %v3210
  %v3230 = vsel %vm123, %v3188, %v3212
  %v3231 = vsel %vm123, %v3190, %v3214
  %v3232 = vsel %vm123, %v3192, %v3216
  %v3233 = vsel %vm123, %v3194, %v3218
  %v3234 = vsel %vm123, %v3196, %v3220
  %v3235 = vsel %vm123, %v3198, %v3222
  %v3236 = vsel %vm123, %v3200, %v3224
  %v3237 = vsel %vm123, %v3154, %v3178
  %v3238 = vsel %vm123, %v3156, %v3180
  %v3239 = vsel %vm123, %v3158, %v3182
  %v3240 = vsel %vm123, %v3160, %v3184
  %v3241 = vsel %vm123, %v3162, %v3186
  %v3242 = vsel %vm123, %v3164, %v3188
  %v3243 = vsel %vm123, %v3166, %v3190
  %v3244 = vsel %vm123, %v3168, %v3192
  %v3245 = vsel %vm123, %v3170, %v3194
  %v3246 = vsel %vm123, %v3172, %v3196
  %v3247 = vsel %vm123, %v3174, %v3198
  %v3248 = vsel %vm123, %v3176, %v3200
  %v3249 = vsel %vm123, %v3130, %v3154
  %v3250 = vsel %vm123, %v3132, %v3156
  %v3251 = vsel %vm123, %v3134, %v3158
  %v3252 = vsel %vm123, %v3136, %v3160
  %v3253 = vsel %vm123, %v3138, %v3162
  %v3254 = vsel %vm123, %v3140, %v3164
  %v3255 = vsel %vm123, %v3142, %v3166
  %v3256 = vsel %vm123, %v3144, %v3168
  %v3257 = vsel %vm123, %v3146, %v3170
  %v3258 = vsel %vm123, %v3148, %v3172
  %v3259 = vsel %vm123, %v3150, %v3174
  %v3260 = vsel %vm123, %v3152, %v3176
  %v3261 = vsel %vm123, %v3202, %v3130
  %v3262 = vsel %vm123, %v3204, %v3132
  %v3263 = vsel %vm123, %v3206, %v3134
  %v3264 = vsel %vm123, %v3208, %v3136
  %v3265 = vsel %vm123, %v3210, %v3138
  %v3266 = vsel %vm123, %v3212, %v3140
  %v3267 = vsel %vm123, %v3214, %v3142
  %v3268 = vsel %vm123, %v3216, %v3144
  %v3269 = vsel %vm123, %v3218, %v3146
  %v3270 = vsel %vm123, %v3220, %v3148
  %v3271 = vsel %vm123, %v3222, %v3150
  %v3272 = vsel %vm123, %v3224, %v3152
  %s3273 = scalar_lea.vmem %s3, 36
  %v3274 = vld [vmem:[%s3273] sm:$0xf]
  %v3275 = vld [vmem:[%s3273 + $0x4] sm:$0xf]
  %v3276 = vld [vmem:[%s3273 + $0x8] sm:$0xf]
  %v3277 = vpack.c.bf16 %v3262, %v3261
  %v3278 = vpack.c.bf16 %v3250, %v3249
  %v3279 = vpack.c.bf16 %v3238, %v3237
  %v3280 = vpack.c.bf16 %v3226, %v3225
  %v3281 = vpack.c.bf16 %v3264, %v3263
  %v3282 = vpack.c.bf16 %v3252, %v3251
  %v3283 = vpack.c.bf16 %v3240, %v3239
  %v3284 = vpack.c.bf16 %v3228, %v3227
  %v3285 = vpack.c.bf16 %v3266, %v3265
  %v3286 = vpack.c.bf16 %v3254, %v3253
  %v3287 = vpack.c.bf16 %v3242, %v3241
  %v3288 = vpack.c.bf16 %v3230, %v3229
  %v3289 = vpack.c.bf16 %v3268, %v3267
  %v3290 = vpack.c.bf16 %v3256, %v3255
  %v3291 = vpack.c.bf16 %v3244, %v3243
  %v3292 = vpack.c.bf16 %v3232, %v3231
  %v3293 = vpack.c.bf16 %v3270, %v3269
  %v3294 = vpack.c.bf16 %v3258, %v3257
  %v3295 = vpack.c.bf16 %v3246, %v3245
  %v3296 = vpack.c.bf16 %v3234, %v3233
  %v3297 = vpack.c.bf16 %v3272, %v3271
  %v3298 = vpack.c.bf16 %v3260, %v3259
  %v3299 = vpack.c.bf16 %v3248, %v3247
  %v3300 = vpack.c.bf16 %v3236, %v3235
  %v3304 = vunpack.c.l.b16 %v3274
  %v3305 = vunpack.c.l.b16 %v3275
  %v3306 = vunpack.c.l.b16 %v3276
  %v3307 = vpack.c.b16 %v3305, %v3304
  %v3308 = vpack.c.b16 %v3306, %v3306
  %v3310 = vsel %vm2348, %v3307, 0
  %v3313 = vsel %vm2348, %v3308, 0
  %3315 = vmatprep.subr.bf16.mxu0 0
  %3316 = vmatpush1.bf16.msra.mxu0 0
  %3317 = vmatprep.subr.bf16.mxu0 0
  %3318 = vmatpush1.bf16.msra.mxu0 0
  %3319 = vmatprep.subr.bf16.mxu0 %v3298
  %3320 = vmatpush1.bf16.msra.mxu0 %v3297
  %3321 = vmatprep.subr.bf16.mxu0 %v3294
  %3322 = vmatpush1.bf16.msra.mxu0 %v3293
  %3323 = vmatprep.subr.bf16.mxu0 %v3290
  %3324 = vmatpush1.bf16.msra.mxu0 %v3289
  %3325 = vmatprep.subr.bf16.mxu0 %v3286
  %3326 = vmatpush1.bf16.msra.mxu0 %v3285
  %3327 = vmatprep.subr.bf16.mxu0 %v3282
  %3328 = vmatpush1.bf16.msra.mxu0 %v3281
  %3329 = vmatprep.subr.bf16.mxu0 %v3278
  %3330 = vmatpush1.bf16.msra.mxu0 %v3277
  %3331 = vmatprep.subr.bf16.mxu0 0
  %3332 = vmatpush2.bf16.msra.mxu0 0
  %3333 = vmatprep.subr.bf16.mxu0 0
  %3334 = vmatpush2.bf16.msra.mxu0 0
  %3335 = vmatprep.subr.bf16.mxu0 0
  %3336 = vmatpush2.bf16.msra.mxu0 0
  %3337 = vmatprep.subr.bf16.mxu0 0
  %3338 = vmatpush2.bf16.msra.mxu0 0
  %3339 = vmatprep.subr.bf16.mxu0 0
  %3340 = vmatpush2.bf16.msra.mxu0 0
  %3341 = vmatprep.subr.bf16.mxu0 0
  %3342 = vmatpush2.bf16.msra.mxu0 0
  %3343 = vmatprep.subr.bf16.mxu0 0
  %3344 = vmatpush2.bf16.msra.mxu0 0
  %3345 = vmatprep.subr.bf16.mxu0 0
  %3346 = vmatpush2.bf16.msra.mxu0 0
  %3347 = vmatprep.mubr.bf16.mxu0 0
  %3348 = vmatmul.mubr.bf16.gmra.mxu0 %v3310
  %v3349 = vpop.f32.mrf.mxu0
  %v3350 = vadd.f32 0.0, %v3349
  %v3351 = vpop.f32.mrf.mxu0
  %v3352 = vadd.f32 0.0, %v3351
  %v3353 = vpop.f32.mrf.mxu0
  %v3354 = vadd.f32 0.0, %v3353
  %v3355 = vpop.f32.mrf.mxu0
  %v3356 = vadd.f32 0.0, %v3355
  %3357 = vmatprep.mubr.bf16.mxu0 0
  %3358 = vmatmul.mubr.bf16.gmra.mxu0 %v3313
  %v3359 = vpop.f32.mrf.mxu0
  %v3360 = vadd.f32 0.0, %v3359
  %v3361 = vpop.f32.mrf.mxu0
  %v3362 = vadd.f32 0.0, %v3361
  %v3363 = vpop.f32.mrf.mxu0
  %v3364 = vpop.f32.mrf.mxu0
  %3365 = vdwg.mxu0
  %3366 = vmatprep.subr.bf16.mxu0 0
  %3367 = vmatpush1.bf16.msra.mxu0 0
  %3368 = vmatprep.subr.bf16.mxu0 0
  %3369 = vmatpush1.bf16.msra.mxu0 0
  %3370 = vmatprep.subr.bf16.mxu0 %v3300
  %3371 = vmatpush1.bf16.msra.mxu0 %v3299
  %3372 = vmatprep.subr.bf16.mxu0 %v3296
  %3373 = vmatpush1.bf16.msra.mxu0 %v3295
  %3374 = vmatprep.subr.bf16.mxu0 %v3292
  %3375 = vmatpush1.bf16.msra.mxu0 %v3291
  %3376 = vmatprep.subr.bf16.mxu0 %v3288
  %3377 = vmatpush1.bf16.msra.mxu0 %v3287
  %3378 = vmatprep.subr.bf16.mxu0 %v3284
  %3379 = vmatpush1.bf16.msra.mxu0 %v3283
  %3380 = vmatprep.subr.bf16.mxu0 %v3280
  %3381 = vmatpush1.bf16.msra.mxu0 %v3279
  %3382 = vmatprep.subr.bf16.mxu0 0
  %3383 = vmatpush2.bf16.msra.mxu0 0
  %3384 = vmatprep.subr.bf16.mxu0 0
  %3385 = vmatpush2.bf16.msra.mxu0 0
  %3386 = vmatprep.subr.bf16.mxu0 0
  %3387 = vmatpush2.bf16.msra.mxu0 0
  %3388 = vmatprep.subr.bf16.mxu0 0
  %3389 = vmatpush2.bf16.msra.mxu0 0
  %3390 = vmatprep.subr.bf16.mxu0 0
  %3391 = vmatpush2.bf16.msra.mxu0 0
  %3392 = vmatprep.subr.bf16.mxu0 0
  %3393 = vmatpush2.bf16.msra.mxu0 0
  %3394 = vmatprep.subr.bf16.mxu0 0
  %3395 = vmatpush2.bf16.msra.mxu0 0
  %3396 = vmatprep.subr.bf16.mxu0 0
  %3397 = vmatpush2.bf16.msra.mxu0 0
  %3398 = vmatprep.mubr.bf16.mxu0 0
  %3399 = vmatmul.mubr.bf16.gmra.mxu0 %v3310
  %v3400 = vpop.f32.mrf.mxu0
  %v3401 = vadd.f32 0.0, %v3400
  %v3402 = vpop.f32.mrf.mxu0
  %v3403 = vadd.f32 0.0, %v3402
  %v3404 = vpop.f32.mrf.mxu0
  %v3405 = vadd.f32 0.0, %v3404
  %v3406 = vpop.f32.mrf.mxu0
  %v3407 = vadd.f32 0.0, %v3406
  %3408 = vmatprep.mubr.bf16.mxu0 0
  %3409 = vmatmul.mubr.bf16.gmra.mxu0 %v3313
  %v3410 = vpop.f32.mrf.mxu0
  %v3411 = vadd.f32 0.0, %v3410
  %v3412 = vpop.f32.mrf.mxu0
  %v3413 = vadd.f32 0.0, %v3412
  %v3414 = vpop.f32.mrf.mxu0
  %v3415 = vpop.f32.mrf.mxu0
  %3416 = vdwg.mxu0
  %v3417 = vld [vmem:[%s128] sm:$0xff]
  %v3418 = vld [vmem:[%s128 + $0x8] sm:$0xff]
  %v3419 = vld [vmem:[%s128 + $0x10] sm:$0xff]
  %v3420 = vld [vmem:[%s128 + $0x18] sm:$0xff]
  %v3421 = vld [vmem:[%s128 + $0x20] sm:$0xff]
  %v3422 = vld [vmem:[%s128 + $0x28] sm:$0xff]
  %v3423 = vld [vmem:[%s128 + $0x30] sm:$0xff]
  %v3424 = vld [vmem:[%s128 + $0x38] sm:$0xff]
  %v3425 = vld [vmem:[%s128 + $0x40] sm:$0xff]
  %v3426 = vld [vmem:[%s128 + $0x48] sm:$0xff]
  %v3427 = vld [vmem:[%s128 + $0x50] sm:$0xff]
  %v3428 = vld [vmem:[%s128 + $0x58] sm:$0xff]
  %v3429 = vmul.f32 %v3350, %v3417
  %v3430 = vmul.f32 %v3352, %v3418
  %v3431 = vmul.f32 %v3401, %v3419
  %v3432 = vmul.f32 %v3403, %v3420
  %v3433 = vmul.f32 %v3354, %v3421
  %v3434 = vmul.f32 %v3356, %v3422
  %v3435 = vmul.f32 %v3405, %v3423
  %v3436 = vmul.f32 %v3407, %v3424
  %v3437 = vmul.f32 %v3360, %v3425
  %v3438 = vmul.f32 %v3362, %v3426
  %v3439 = vmul.f32 %v3411, %v3427
  %v3440 = vmul.f32 %v3413, %v3428
  %v3441 = vadd.f32 %v3117, %v3429
  %v3442 = vadd.f32 %v3118, %v3430
  %v3443 = vadd.f32 %v3119, %v3431
  %v3444 = vadd.f32 %v3120, %v3432
  %v3445 = vadd.f32 %v3121, %v3433
  %v3446 = vadd.f32 %v3122, %v3434
  %v3447 = vadd.f32 %v3123, %v3435
  %v3448 = vadd.f32 %v3124, %v3436
  %v3449 = vadd.f32 %v3125, %v3437
  %v3450 = vadd.f32 %v3126, %v3438
  %v3451 = vadd.f32 %v3127, %v3439
  %v3452 = vadd.f32 %v3128, %v3440
  %s3453 = scalar_lea.vmem %s3, 48
  %v3454 = vld [vmem:[%s3453] sm:$0xf]
  %v3455 = vld [vmem:[%s3453 + $0x4] sm:$0xf]
  %v3456 = vld [vmem:[%s3453 + $0x8] sm:$0xf]
  %v3457 = vpack.c.bf16 %v2125, %v2121
  %v3458 = vpack.c.bf16 %v2126, %v2122
  %v3459 = vpack.c.bf16 %v2127, %v2123
  %v3460 = vpack.c.bf16 %v2128, %v2124
  %v3461 = vpack.c.bf16 %v2133, %v2129
  %v3462 = vpack.c.bf16 %v2134, %v2130
  %v3463 = vpack.c.bf16 %v2135, %v2131
  %v3464 = vpack.c.bf16 %v2136, %v2132
  %v3465 = vpack.c.bf16 %v2141, %v2137
  %v3466 = vpack.c.bf16 %v2142, %v2138
  %v3467 = vpack.c.bf16 %v2143, %v2139
  %v3468 = vpack.c.bf16 %v2144, %v2140
  %v3469 = vpack.c.bf16 %v2149, %v2145
  %v3470 = vpack.c.bf16 %v2150, %v2146
  %v3471 = vpack.c.bf16 %v2151, %v2147
  %v3472 = vpack.c.bf16 %v2152, %v2148
  %v3473 = vpack.c.bf16 %v2157, %v2153
  %v3474 = vpack.c.bf16 %v2158, %v2154
  %v3475 = vpack.c.bf16 %v2159, %v2155
  %v3476 = vpack.c.bf16 %v2160, %v2156
  %v3477 = vpack.c.bf16 %v2165, %v2161
  %v3478 = vpack.c.bf16 %v2166, %v2162
  %v3479 = vpack.c.bf16 %v2167, %v2163
  %v3480 = vpack.c.bf16 %v2168, %v2164
  %v3484 = vunpack.c.l.b16 %v3454
  %v3485 = vunpack.c.l.b16 %v3455
  %v3486 = vunpack.c.l.b16 %v3456
  %v3487 = vpack.c.b16 %v3485, %v3484
  %v3488 = vpack.c.b16 %v3486, %v3486
  %v3490 = vsel %vm2348, %v3487, 0
  %v3493 = vsel %vm2348, %v3488, 0
  %3495 = vmatprep.subr.bf16.mxu0 0
  %3496 = vmatpush1.bf16.msra.mxu0 0
  %3497 = vmatprep.subr.bf16.mxu0 0
  %3498 = vmatpush1.bf16.msra.mxu0 0
  %3499 = vmatprep.subr.bf16.mxu0 %v3478
  %3500 = vmatpush1.bf16.msra.mxu0 %v3477
  %3501 = vmatprep.subr.bf16.mxu0 %v3474
  %3502 = vmatpush1.bf16.msra.mxu0 %v3473
  %3503 = vmatprep.subr.bf16.mxu0 %v3470
  %3504 = vmatpush1.bf16.msra.mxu0 %v3469
  %3505 = vmatprep.subr.bf16.mxu0 %v3466
  %3506 = vmatpush1.bf16.msra.mxu0 %v3465
  %3507 = vmatprep.subr.bf16.mxu0 %v3462
  %3508 = vmatpush1.bf16.msra.mxu0 %v3461
  %3509 = vmatprep.subr.bf16.mxu0 %v3458
  %3510 = vmatpush1.bf16.msra.mxu0 %v3457
  %3511 = vmatprep.subr.bf16.mxu0 0
  %3512 = vmatpush2.bf16.msra.mxu0 0
  %3513 = vmatprep.subr.bf16.mxu0 0
  %3514 = vmatpush2.bf16.msra.mxu0 0
  %3515 = vmatprep.subr.bf16.mxu0 0
  %3516 = vmatpush2.bf16.msra.mxu0 0
  %3517 = vmatprep.subr.bf16.mxu0 0
  %3518 = vmatpush2.bf16.msra.mxu0 0
  %3519 = vmatprep.subr.bf16.mxu0 0
  %3520 = vmatpush2.bf16.msra.mxu0 0
  %3521 = vmatprep.subr.bf16.mxu0 0
  %3522 = vmatpush2.bf16.msra.mxu0 0
  %3523 = vmatprep.subr.bf16.mxu0 0
  %3524 = vmatpush2.bf16.msra.mxu0 0
  %3525 = vmatprep.subr.bf16.mxu0 0
  %3526 = vmatpush2.bf16.msra.mxu0 0
  %3527 = vmatprep.mubr.bf16.mxu0 0
  %3528 = vmatmul.mubr.bf16.gmra.mxu0 %v3490
  %v3529 = vpop.f32.mrf.mxu0
  %v3530 = vadd.f32 0.0, %v3529
  %v3531 = vpop.f32.mrf.mxu0
  %v3532 = vadd.f32 0.0, %v3531
  %v3533 = vpop.f32.mrf.mxu0
  %v3534 = vadd.f32 0.0, %v3533
  %v3535 = vpop.f32.mrf.mxu0
  %v3536 = vadd.f32 0.0, %v3535
  %3537 = vmatprep.mubr.bf16.mxu0 0
  %3538 = vmatmul.mubr.bf16.gmra.mxu0 %v3493
  %v3539 = vpop.f32.mrf.mxu0
  %v3540 = vadd.f32 0.0, %v3539
  %v3541 = vpop.f32.mrf.mxu0
  %v3542 = vadd.f32 0.0, %v3541
  %v3543 = vpop.f32.mrf.mxu0
  %v3544 = vpop.f32.mrf.mxu0
  %3545 = vdwg.mxu0
  %3546 = vmatprep.subr.bf16.mxu0 0
  %3547 = vmatpush1.bf16.msra.mxu0 0
  %3548 = vmatprep.subr.bf16.mxu0 0
  %3549 = vmatpush1.bf16.msra.mxu0 0
  %3550 = vmatprep.subr.bf16.mxu0 %v3480
  %3551 = vmatpush1.bf16.msra.mxu0 %v3479
  %3552 = vmatprep.subr.bf16.mxu0 %v3476
  %3553 = vmatpush1.bf16.msra.mxu0 %v3475
  %3554 = vmatprep.subr.bf16.mxu0 %v3472
  %3555 = vmatpush1.bf16.msra.mxu0 %v3471
  %3556 = vmatprep.subr.bf16.mxu0 %v3468
  %3557 = vmatpush1.bf16.msra.mxu0 %v3467
  %3558 = vmatprep.subr.bf16.mxu0 %v3464
  %3559 = vmatpush1.bf16.msra.mxu0 %v3463
  %3560 = vmatprep.subr.bf16.mxu0 %v3460
  %3561 = vmatpush1.bf16.msra.mxu0 %v3459
  %3562 = vmatprep.subr.bf16.mxu0 0
  %3563 = vmatpush2.bf16.msra.mxu0 0
  %3564 = vmatprep.subr.bf16.mxu0 0
  %3565 = vmatpush2.bf16.msra.mxu0 0
  %3566 = vmatprep.subr.bf16.mxu0 0
  %3567 = vmatpush2.bf16.msra.mxu0 0
  %3568 = vmatprep.subr.bf16.mxu0 0
  %3569 = vmatpush2.bf16.msra.mxu0 0
  %3570 = vmatprep.subr.bf16.mxu0 0
  %3571 = vmatpush2.bf16.msra.mxu0 0
  %3572 = vmatprep.subr.bf16.mxu0 0
  %3573 = vmatpush2.bf16.msra.mxu0 0
  %3574 = vmatprep.subr.bf16.mxu0 0
  %3575 = vmatpush2.bf16.msra.mxu0 0
  %3576 = vmatprep.subr.bf16.mxu0 0
  %3577 = vmatpush2.bf16.msra.mxu0 0
  %3578 = vmatprep.mubr.bf16.mxu0 0
  %3579 = vmatmul.mubr.bf16.gmra.mxu0 %v3490
  %v3580 = vpop.f32.mrf.mxu0
  %v3581 = vadd.f32 0.0, %v3580
  %v3582 = vpop.f32.mrf.mxu0
  %v3583 = vadd.f32 0.0, %v3582
  %v3584 = vpop.f32.mrf.mxu0
  %v3585 = vadd.f32 0.0, %v3584
  %v3586 = vpop.f32.mrf.mxu0
  %v3587 = vadd.f32 0.0, %v3586
  %3588 = vmatprep.mubr.bf16.mxu0 0
  %3589 = vmatmul.mubr.bf16.gmra.mxu0 %v3493
  %v3590 = vpop.f32.mrf.mxu0
  %v3591 = vadd.f32 0.0, %v3590
  %v3592 = vpop.f32.mrf.mxu0
  %v3593 = vadd.f32 0.0, %v3592
  %v3594 = vpop.f32.mrf.mxu0
  %v3595 = vpop.f32.mrf.mxu0
  %3596 = vdwg.mxu0
  %v3597 = vadd.f32 %v3441, %v3530
  %v3598 = vadd.f32 %v3442, %v3532
  %v3599 = vadd.f32 %v3443, %v3581
  %v3600 = vadd.f32 %v3444, %v3583
  %v3601 = vadd.f32 %v3445, %v3534
  %v3602 = vadd.f32 %v3446, %v3536
  %v3603 = vadd.f32 %v3447, %v3585
  %v3604 = vadd.f32 %v3448, %v3587
  %v3605 = vadd.f32 %v3449, %v3540
  %v3606 = vadd.f32 %v3450, %v3542
  %v3607 = vadd.f32 %v3451, %v3591
  %v3608 = vadd.f32 %v3452, %v3593
  %3609 = vrot.lane.b32.xlu0 %v2121, 127
  %v3610 = vpop.permute.xlu0 %3609
  %3611 = vrot.lane.b32.xlu0 %v2125, 127
  %v3612 = vpop.permute.xlu0 %3611
  %3613 = vrot.lane.b32.xlu0 %v2129, 127
  %v3614 = vpop.permute.xlu0 %3613
  %3615 = vrot.lane.b32.xlu0 %v2133, 127
  %v3616 = vpop.permute.xlu0 %3615
  %3617 = vrot.lane.b32.xlu0 %v2137, 127
  %v3618 = vpop.permute.xlu0 %3617
  %3619 = vrot.lane.b32.xlu0 %v2141, 127
  %v3620 = vpop.permute.xlu0 %3619
  %3621 = vrot.lane.b32.xlu0 %v2145, 127
  %v3622 = vpop.permute.xlu0 %3621
  %3623 = vrot.lane.b32.xlu0 %v2149, 127
  %v3624 = vpop.permute.xlu0 %3623
  %3625 = vrot.lane.b32.xlu0 %v2153, 127
  %v3626 = vpop.permute.xlu0 %3625
  %3627 = vrot.lane.b32.xlu0 %v2157, 127
  %v3628 = vpop.permute.xlu0 %3627
  %3629 = vrot.lane.b32.xlu0 %v2161, 127
  %v3630 = vpop.permute.xlu0 %3629
  %3631 = vrot.lane.b32.xlu0 %v2165, 127
  %v3632 = vpop.permute.xlu0 %3631
  %3633 = vrot.lane.b32.xlu0 %v2122, 127
  %v3634 = vpop.permute.xlu0 %3633
  %3635 = vrot.lane.b32.xlu0 %v2126, 127
  %v3636 = vpop.permute.xlu0 %3635
  %3637 = vrot.lane.b32.xlu0 %v2130, 127
  %v3638 = vpop.permute.xlu0 %3637
  %3639 = vrot.lane.b32.xlu0 %v2134, 127
  %v3640 = vpop.permute.xlu0 %3639
  %3641 = vrot.lane.b32.xlu0 %v2138, 127
  %v3642 = vpop.permute.xlu0 %3641
  %3643 = vrot.lane.b32.xlu0 %v2142, 127
  %v3644 = vpop.permute.xlu0 %3643
  %3645 = vrot.lane.b32.xlu0 %v2146, 127
  %v3646 = vpop.permute.xlu0 %3645
  %3647 = vrot.lane.b32.xlu0 %v2150, 127
  %v3648 = vpop.permute.xlu0 %3647
  %3649 = vrot.lane.b32.xlu0 %v2154, 127
  %v3650 = vpop.permute.xlu0 %3649
  %3651 = vrot.lane.b32.xlu0 %v2158, 127
  %v3652 = vpop.permute.xlu0 %3651
  %3653 = vrot.lane.b32.xlu0 %v2162, 127
  %v3654 = vpop.permute.xlu0 %3653
  %3655 = vrot.lane.b32.xlu0 %v2166, 127
  %v3656 = vpop.permute.xlu0 %3655
  %3657 = vrot.lane.b32.xlu0 %v2123, 127
  %v3658 = vpop.permute.xlu0 %3657
  %3659 = vrot.lane.b32.xlu0 %v2127, 127
  %v3660 = vpop.permute.xlu0 %3659
  %3661 = vrot.lane.b32.xlu0 %v2131, 127
  %v3662 = vpop.permute.xlu0 %3661
  %3663 = vrot.lane.b32.xlu0 %v2135, 127
  %v3664 = vpop.permute.xlu0 %3663
  %3665 = vrot.lane.b32.xlu0 %v2139, 127
  %v3666 = vpop.permute.xlu0 %3665
  %3667 = vrot.lane.b32.xlu0 %v2143, 127
  %v3668 = vpop.permute.xlu0 %3667
  %3669 = vrot.lane.b32.xlu0 %v2147, 127
  %v3670 = vpop.permute.xlu0 %3669
  %3671 = vrot.lane.b32.xlu0 %v2151, 127
  %v3672 = vpop.permute.xlu0 %3671
  %3673 = vrot.lane.b32.xlu0 %v2155, 127
  %v3674 = vpop.permute.xlu0 %3673
  %3675 = vrot.lane.b32.xlu0 %v2159, 127
  %v3676 = vpop.permute.xlu0 %3675
  %3677 = vrot.lane.b32.xlu0 %v2163, 127
  %v3678 = vpop.permute.xlu0 %3677
  %3679 = vrot.lane.b32.xlu0 %v2167, 127
  %v3680 = vpop.permute.xlu0 %3679
  %3681 = vrot.lane.b32.xlu0 %v2124, 127
  %v3682 = vpop.permute.xlu0 %3681
  %3683 = vrot.lane.b32.xlu0 %v2128, 127
  %v3684 = vpop.permute.xlu0 %3683
  %3685 = vrot.lane.b32.xlu0 %v2132, 127
  %v3686 = vpop.permute.xlu0 %3685
  %3687 = vrot.lane.b32.xlu0 %v2136, 127
  %v3688 = vpop.permute.xlu0 %3687
  %3689 = vrot.lane.b32.xlu0 %v2140, 127
  %v3690 = vpop.permute.xlu0 %3689
  %3691 = vrot.lane.b32.xlu0 %v2144, 127
  %v3692 = vpop.permute.xlu0 %3691
  %3693 = vrot.lane.b32.xlu0 %v2148, 127
  %v3694 = vpop.permute.xlu0 %3693
  %3695 = vrot.lane.b32.xlu0 %v2152, 127
  %v3696 = vpop.permute.xlu0 %3695
  %3697 = vrot.lane.b32.xlu0 %v2156, 127
  %v3698 = vpop.permute.xlu0 %3697
  %3699 = vrot.lane.b32.xlu0 %v2160, 127
  %v3700 = vpop.permute.xlu0 %3699
  %3701 = vrot.lane.b32.xlu0 %v2164, 127
  %v3702 = vpop.permute.xlu0 %3701
  %3703 = vrot.lane.b32.xlu0 %v2168, 127
  %v3704 = vpop.permute.xlu0 %3703
  %v3705 = vsel %vm145, %v3658, %v3682
  %v3706 = vsel %vm145, %v3660, %v3684
  %v3707 = vsel %vm145, %v3662, %v3686
  %v3708 = vsel %vm145, %v3664, %v3688
  %v3709 = vsel %vm145, %v3666, %v3690
  %v3710 = vsel %vm145, %v3668, %v3692
  %v3711 = vsel %vm145, %v3670, %v3694
  %v3712 = vsel %vm145, %v3672, %v3696
  %v3713 = vsel %vm145, %v3674, %v3698
  %v3714 = vsel %vm145, %v3676, %v3700
  %v3715 = vsel %vm145, %v3678, %v3702
  %v3716 = vsel %vm145, %v3680, %v3704
  %v3717 = vsel %vm145, %v3634, %v3658
  %v3718 = vsel %vm145, %v3636, %v3660
  %v3719 = vsel %vm145, %v3638, %v3662
  %v3720 = vsel %vm145, %v3640, %v3664
  %v3721 = vsel %vm145, %v3642, %v3666
  %v3722 = vsel %vm145, %v3644, %v3668
  %v3723 = vsel %vm145, %v3646, %v3670
  %v3724 = vsel %vm145, %v3648, %v3672
  %v3725 = vsel %vm145, %v3650, %v3674
  %v3726 = vsel %vm145, %v3652, %v3676
  %v3727 = vsel %vm145, %v3654, %v3678
  %v3728 = vsel %vm145, %v3656, %v3680
  %v3729 = vsel %vm145, %v3610, %v3634
  %v3730 = vsel %vm145, %v3612, %v3636
  %v3731 = vsel %vm145, %v3614, %v3638
  %v3732 = vsel %vm145, %v3616, %v3640
  %v3733 = vsel %vm145, %v3618, %v3642
  %v3734 = vsel %vm145, %v3620, %v3644
  %v3735 = vsel %vm145, %v3622, %v3646
  %v3736 = vsel %vm145, %v3624, %v3648
  %v3737 = vsel %vm145, %v3626, %v3650
  %v3738 = vsel %vm145, %v3628, %v3652
  %v3739 = vsel %vm145, %v3630, %v3654
  %v3740 = vsel %vm145, %v3632, %v3656
  %v3741 = vsel %vm145, %v3682, %v3610
  %v3742 = vsel %vm145, %v3684, %v3612
  %v3743 = vsel %vm145, %v3686, %v3614
  %v3744 = vsel %vm145, %v3688, %v3616
  %v3745 = vsel %vm145, %v3690, %v3618
  %v3746 = vsel %vm145, %v3692, %v3620
  %v3747 = vsel %vm145, %v3694, %v3622
  %v3748 = vsel %vm145, %v3696, %v3624
  %v3749 = vsel %vm145, %v3698, %v3626
  %v3750 = vsel %vm145, %v3700, %v3628
  %v3751 = vsel %vm145, %v3702, %v3630
  %v3752 = vsel %vm145, %v3704, %v3632
  %s3753 = scalar_lea.vmem %s3, 60
  %v3754 = vld [vmem:[%s3753] sm:$0xf]
  %v3755 = vld [vmem:[%s3753 + $0x4] sm:$0xf]
  %v3756 = vld [vmem:[%s3753 + $0x8] sm:$0xf]
  %v3757 = vpack.c.bf16 %v3730, %v3729
  %v3758 = vpack.c.bf16 %v3718, %v3717
  %v3759 = vpack.c.bf16 %v3706, %v3705
  %v3760 = vpack.c.bf16 %v3742, %v3741
  %v3761 = vpack.c.bf16 %v3732, %v3731
  %v3762 = vpack.c.bf16 %v3720, %v3719
  %v3763 = vpack.c.bf16 %v3708, %v3707
  %v3764 = vpack.c.bf16 %v3744, %v3743
  %v3765 = vpack.c.bf16 %v3734, %v3733
  %v3766 = vpack.c.bf16 %v3722, %v3721
  %v3767 = vpack.c.bf16 %v3710, %v3709
  %v3768 = vpack.c.bf16 %v3746, %v3745
  %v3769 = vpack.c.bf16 %v3736, %v3735
  %v3770 = vpack.c.bf16 %v3724, %v3723
  %v3771 = vpack.c.bf16 %v3712, %v3711
  %v3772 = vpack.c.bf16 %v3748, %v3747
  %v3773 = vpack.c.bf16 %v3738, %v3737
  %v3774 = vpack.c.bf16 %v3726, %v3725
  %v3775 = vpack.c.bf16 %v3714, %v3713
  %v3776 = vpack.c.bf16 %v3750, %v3749
  %v3777 = vpack.c.bf16 %v3740, %v3739
  %v3778 = vpack.c.bf16 %v3728, %v3727
  %v3779 = vpack.c.bf16 %v3716, %v3715
  %v3780 = vpack.c.bf16 %v3752, %v3751
  %v3784 = vunpack.c.l.b16 %v3754
  %v3785 = vunpack.c.l.b16 %v3755
  %v3786 = vunpack.c.l.b16 %v3756
  %v3787 = vpack.c.b16 %v3785, %v3784
  %v3788 = vpack.c.b16 %v3786, %v3786
  %v3790 = vsel %vm2348, %v3787, 0
  %v3793 = vsel %vm2348, %v3788, 0
  %3795 = vmatprep.subr.bf16.mxu0 0
  %3796 = vmatpush1.bf16.msra.mxu0 0
  %3797 = vmatprep.subr.bf16.mxu0 0
  %3798 = vmatpush1.bf16.msra.mxu0 0
  %3799 = vmatprep.subr.bf16.mxu0 %v3778
  %3800 = vmatpush1.bf16.msra.mxu0 %v3777
  %3801 = vmatprep.subr.bf16.mxu0 %v3774
  %3802 = vmatpush1.bf16.msra.mxu0 %v3773
  %3803 = vmatprep.subr.bf16.mxu0 %v3770
  %3804 = vmatpush1.bf16.msra.mxu0 %v3769
  %3805 = vmatprep.subr.bf16.mxu0 %v3766
  %3806 = vmatpush1.bf16.msra.mxu0 %v3765
  %3807 = vmatprep.subr.bf16.mxu0 %v3762
  %3808 = vmatpush1.bf16.msra.mxu0 %v3761
  %3809 = vmatprep.subr.bf16.mxu0 %v3758
  %3810 = vmatpush1.bf16.msra.mxu0 %v3757
  %3811 = vmatprep.subr.bf16.mxu0 0
  %3812 = vmatpush2.bf16.msra.mxu0 0
  %3813 = vmatprep.subr.bf16.mxu0 0
  %3814 = vmatpush2.bf16.msra.mxu0 0
  %3815 = vmatprep.subr.bf16.mxu0 0
  %3816 = vmatpush2.bf16.msra.mxu0 0
  %3817 = vmatprep.subr.bf16.mxu0 0
  %3818 = vmatpush2.bf16.msra.mxu0 0
  %3819 = vmatprep.subr.bf16.mxu0 0
  %3820 = vmatpush2.bf16.msra.mxu0 0
  %3821 = vmatprep.subr.bf16.mxu0 0
  %3822 = vmatpush2.bf16.msra.mxu0 0
  %3823 = vmatprep.subr.bf16.mxu0 0
  %3824 = vmatpush2.bf16.msra.mxu0 0
  %3825 = vmatprep.subr.bf16.mxu0 0
  %3826 = vmatpush2.bf16.msra.mxu0 0
  %3827 = vmatprep.mubr.bf16.mxu0 0
  %3828 = vmatmul.mubr.bf16.gmra.mxu0 %v3790
  %v3829 = vpop.f32.mrf.mxu0
  %v3830 = vadd.f32 0.0, %v3829
  %v3831 = vpop.f32.mrf.mxu0
  %v3832 = vadd.f32 0.0, %v3831
  %v3833 = vpop.f32.mrf.mxu0
  %v3834 = vadd.f32 0.0, %v3833
  %v3835 = vpop.f32.mrf.mxu0
  %v3836 = vadd.f32 0.0, %v3835
  %3837 = vmatprep.mubr.bf16.mxu0 0
  %3838 = vmatmul.mubr.bf16.gmra.mxu0 %v3793
  %v3839 = vpop.f32.mrf.mxu0
  %v3840 = vadd.f32 0.0, %v3839
  %v3841 = vpop.f32.mrf.mxu0
  %v3842 = vadd.f32 0.0, %v3841
  %v3843 = vpop.f32.mrf.mxu0
  %v3844 = vpop.f32.mrf.mxu0
  %3845 = vdwg.mxu0
  %3846 = vmatprep.subr.bf16.mxu0 0
  %3847 = vmatpush1.bf16.msra.mxu0 0
  %3848 = vmatprep.subr.bf16.mxu0 0
  %3849 = vmatpush1.bf16.msra.mxu0 0
  %3850 = vmatprep.subr.bf16.mxu0 %v3780
  %3851 = vmatpush1.bf16.msra.mxu0 %v3779
  %3852 = vmatprep.subr.bf16.mxu0 %v3776
  %3853 = vmatpush1.bf16.msra.mxu0 %v3775
  %3854 = vmatprep.subr.bf16.mxu0 %v3772
  %3855 = vmatpush1.bf16.msra.mxu0 %v3771
  %3856 = vmatprep.subr.bf16.mxu0 %v3768
  %3857 = vmatpush1.bf16.msra.mxu0 %v3767
  %3858 = vmatprep.subr.bf16.mxu0 %v3764
  %3859 = vmatpush1.bf16.msra.mxu0 %v3763
  %3860 = vmatprep.subr.bf16.mxu0 %v3760
  %3861 = vmatpush1.bf16.msra.mxu0 %v3759
  %3862 = vmatprep.subr.bf16.mxu0 0
  %3863 = vmatpush2.bf16.msra.mxu0 0
  %3864 = vmatprep.subr.bf16.mxu0 0
  %3865 = vmatpush2.bf16.msra.mxu0 0
  %3866 = vmatprep.subr.bf16.mxu0 0
  %3867 = vmatpush2.bf16.msra.mxu0 0
  %3868 = vmatprep.subr.bf16.mxu0 0
  %3869 = vmatpush2.bf16.msra.mxu0 0
  %3870 = vmatprep.subr.bf16.mxu0 0
  %3871 = vmatpush2.bf16.msra.mxu0 0
  %3872 = vmatprep.subr.bf16.mxu0 0
  %3873 = vmatpush2.bf16.msra.mxu0 0
  %3874 = vmatprep.subr.bf16.mxu0 0
  %3875 = vmatpush2.bf16.msra.mxu0 0
  %3876 = vmatprep.subr.bf16.mxu0 0
  %3877 = vmatpush2.bf16.msra.mxu0 0
  %3878 = vmatprep.mubr.bf16.mxu0 0
  %3879 = vmatmul.mubr.bf16.gmra.mxu0 %v3790
  %v3880 = vpop.f32.mrf.mxu0
  %v3881 = vadd.f32 0.0, %v3880
  %v3882 = vpop.f32.mrf.mxu0
  %v3883 = vadd.f32 0.0, %v3882
  %v3884 = vpop.f32.mrf.mxu0
  %v3885 = vadd.f32 0.0, %v3884
  %v3886 = vpop.f32.mrf.mxu0
  %v3887 = vadd.f32 0.0, %v3886
  %3888 = vmatprep.mubr.bf16.mxu0 0
  %3889 = vmatmul.mubr.bf16.gmra.mxu0 %v3793
  %v3890 = vpop.f32.mrf.mxu0
  %v3891 = vadd.f32 0.0, %v3890
  %v3892 = vpop.f32.mrf.mxu0
  %v3893 = vadd.f32 0.0, %v3892
  %v3894 = vpop.f32.mrf.mxu0
  %v3895 = vpop.f32.mrf.mxu0
  %3896 = vdwg.mxu0
  %v3897 = vld [vmem:[%s150] sm:$0xff]
  %v3898 = vld [vmem:[%s150 + $0x8] sm:$0xff]
  %v3899 = vld [vmem:[%s150 + $0x10] sm:$0xff]
  %v3900 = vld [vmem:[%s150 + $0x18] sm:$0xff]
  %v3901 = vld [vmem:[%s150 + $0x20] sm:$0xff]
  %v3902 = vld [vmem:[%s150 + $0x28] sm:$0xff]
  %v3903 = vld [vmem:[%s150 + $0x30] sm:$0xff]
  %v3904 = vld [vmem:[%s150 + $0x38] sm:$0xff]
  %v3905 = vld [vmem:[%s150 + $0x40] sm:$0xff]
  %v3906 = vld [vmem:[%s150 + $0x48] sm:$0xff]
  %v3907 = vld [vmem:[%s150 + $0x50] sm:$0xff]
  %v3908 = vld [vmem:[%s150 + $0x58] sm:$0xff]
  %v3909 = vmul.f32 %v3830, %v3897
  %v3910 = vmul.f32 %v3832, %v3898
  %v3911 = vmul.f32 %v3881, %v3899
  %v3912 = vmul.f32 %v3883, %v3900
  %v3913 = vmul.f32 %v3834, %v3901
  %v3914 = vmul.f32 %v3836, %v3902
  %v3915 = vmul.f32 %v3885, %v3903
  %v3916 = vmul.f32 %v3887, %v3904
  %v3917 = vmul.f32 %v3840, %v3905
  %v3918 = vmul.f32 %v3842, %v3906
  %v3919 = vmul.f32 %v3891, %v3907
  %v3920 = vmul.f32 %v3893, %v3908
  %v3921 = vadd.f32 %v3597, %v3909
  %v3922 = vadd.f32 %v3598, %v3910
  %v3923 = vadd.f32 %v3599, %v3911
  %v3924 = vadd.f32 %v3600, %v3912
  %v3925 = vadd.f32 %v3601, %v3913
  %v3926 = vadd.f32 %v3602, %v3914
  %v3927 = vadd.f32 %v3603, %v3915
  %v3928 = vadd.f32 %v3604, %v3916
  %v3929 = vadd.f32 %v3605, %v3917
  %v3930 = vadd.f32 %v3606, %v3918
  %v3931 = vadd.f32 %v3607, %v3919
  %v3932 = vadd.f32 %v3608, %v3920
  %3933 = vrot.lane.b32.xlu0 %v2121, 113
  %v3934 = vpop.permute.xlu0 %3933
  %3935 = vrot.lane.b32.xlu0 %v2125, 113
  %v3936 = vpop.permute.xlu0 %3935
  %3937 = vrot.lane.b32.xlu0 %v2129, 113
  %v3938 = vpop.permute.xlu0 %3937
  %3939 = vrot.lane.b32.xlu0 %v2133, 113
  %v3940 = vpop.permute.xlu0 %3939
  %3941 = vrot.lane.b32.xlu0 %v2137, 113
  %v3942 = vpop.permute.xlu0 %3941
  %3943 = vrot.lane.b32.xlu0 %v2141, 113
  %v3944 = vpop.permute.xlu0 %3943
  %3945 = vrot.lane.b32.xlu0 %v2145, 113
  %v3946 = vpop.permute.xlu0 %3945
  %3947 = vrot.lane.b32.xlu0 %v2149, 113
  %v3948 = vpop.permute.xlu0 %3947
  %3949 = vrot.lane.b32.xlu0 %v2153, 113
  %v3950 = vpop.permute.xlu0 %3949
  %3951 = vrot.lane.b32.xlu0 %v2157, 113
  %v3952 = vpop.permute.xlu0 %3951
  %3953 = vrot.lane.b32.xlu0 %v2161, 113
  %v3954 = vpop.permute.xlu0 %3953
  %3955 = vrot.lane.b32.xlu0 %v2165, 113
  %v3956 = vpop.permute.xlu0 %3955
  %3957 = vrot.lane.b32.xlu0 %v2122, 113
  %v3958 = vpop.permute.xlu0 %3957
  %3959 = vrot.lane.b32.xlu0 %v2126, 113
  %v3960 = vpop.permute.xlu0 %3959
  %3961 = vrot.lane.b32.xlu0 %v2130, 113
  %v3962 = vpop.permute.xlu0 %3961
  %3963 = vrot.lane.b32.xlu0 %v2134, 113
  %v3964 = vpop.permute.xlu0 %3963
  %3965 = vrot.lane.b32.xlu0 %v2138, 113
  %v3966 = vpop.permute.xlu0 %3965
  %3967 = vrot.lane.b32.xlu0 %v2142, 113
  %v3968 = vpop.permute.xlu0 %3967
  %3969 = vrot.lane.b32.xlu0 %v2146, 113
  %v3970 = vpop.permute.xlu0 %3969
  %3971 = vrot.lane.b32.xlu0 %v2150, 113
  %v3972 = vpop.permute.xlu0 %3971
  %3973 = vrot.lane.b32.xlu0 %v2154, 113
  %v3974 = vpop.permute.xlu0 %3973
  %3975 = vrot.lane.b32.xlu0 %v2158, 113
  %v3976 = vpop.permute.xlu0 %3975
  %3977 = vrot.lane.b32.xlu0 %v2162, 113
  %v3978 = vpop.permute.xlu0 %3977
  %3979 = vrot.lane.b32.xlu0 %v2166, 113
  %v3980 = vpop.permute.xlu0 %3979
  %3981 = vrot.lane.b32.xlu0 %v2123, 113
  %v3982 = vpop.permute.xlu0 %3981
  %3983 = vrot.lane.b32.xlu0 %v2127, 113
  %v3984 = vpop.permute.xlu0 %3983
  %3985 = vrot.lane.b32.xlu0 %v2131, 113
  %v3986 = vpop.permute.xlu0 %3985
  %3987 = vrot.lane.b32.xlu0 %v2135, 113
  %v3988 = vpop.permute.xlu0 %3987
  %3989 = vrot.lane.b32.xlu0 %v2139, 113
  %v3990 = vpop.permute.xlu0 %3989
  %3991 = vrot.lane.b32.xlu0 %v2143, 113
  %v3992 = vpop.permute.xlu0 %3991
  %3993 = vrot.lane.b32.xlu0 %v2147, 113
  %v3994 = vpop.permute.xlu0 %3993
  %3995 = vrot.lane.b32.xlu0 %v2151, 113
  %v3996 = vpop.permute.xlu0 %3995
  %3997 = vrot.lane.b32.xlu0 %v2155, 113
  %v3998 = vpop.permute.xlu0 %3997
  %3999 = vrot.lane.b32.xlu0 %v2159, 113
  %v4000 = vpop.permute.xlu0 %3999
  %4001 = vrot.lane.b32.xlu0 %v2163, 113
  %v4002 = vpop.permute.xlu0 %4001
  %4003 = vrot.lane.b32.xlu0 %v2167, 113
  %v4004 = vpop.permute.xlu0 %4003
  %4005 = vrot.lane.b32.xlu0 %v2124, 113
  %v4006 = vpop.permute.xlu0 %4005
  %4007 = vrot.lane.b32.xlu0 %v2128, 113
  %v4008 = vpop.permute.xlu0 %4007
  %4009 = vrot.lane.b32.xlu0 %v2132, 113
  %v4010 = vpop.permute.xlu0 %4009
  %4011 = vrot.lane.b32.xlu0 %v2136, 113
  %v4012 = vpop.permute.xlu0 %4011
  %4013 = vrot.lane.b32.xlu0 %v2140, 113
  %v4014 = vpop.permute.xlu0 %4013
  %4015 = vrot.lane.b32.xlu0 %v2144, 113
  %v4016 = vpop.permute.xlu0 %4015
  %4017 = vrot.lane.b32.xlu0 %v2148, 113
  %v4018 = vpop.permute.xlu0 %4017
  %4019 = vrot.lane.b32.xlu0 %v2152, 113
  %v4020 = vpop.permute.xlu0 %4019
  %4021 = vrot.lane.b32.xlu0 %v2156, 113
  %v4022 = vpop.permute.xlu0 %4021
  %4023 = vrot.lane.b32.xlu0 %v2160, 113
  %v4024 = vpop.permute.xlu0 %4023
  %4025 = vrot.lane.b32.xlu0 %v2164, 113
  %v4026 = vpop.permute.xlu0 %4025
  %4027 = vrot.lane.b32.xlu0 %v2168, 113
  %v4028 = vpop.permute.xlu0 %4027
  %v4029 = vsel %vm450, %v3982, %v4006
  %v4030 = vsel %vm450, %v3984, %v4008
  %v4031 = vsel %vm450, %v3986, %v4010
  %v4032 = vsel %vm450, %v3988, %v4012
  %v4033 = vsel %vm450, %v3990, %v4014
  %v4034 = vsel %vm450, %v3992, %v4016
  %v4035 = vsel %vm450, %v3994, %v4018
  %v4036 = vsel %vm450, %v3996, %v4020
  %v4037 = vsel %vm450, %v3998, %v4022
  %v4038 = vsel %vm450, %v4000, %v4024
  %v4039 = vsel %vm450, %v4002, %v4026
  %v4040 = vsel %vm450, %v4004, %v4028
  %v4041 = vsel %vm450, %v3958, %v3982
  %v4042 = vsel %vm450, %v3960, %v3984
  %v4043 = vsel %vm450, %v3962, %v3986
  %v4044 = vsel %vm450, %v3964, %v3988
  %v4045 = vsel %vm450, %v3966, %v3990
  %v4046 = vsel %vm450, %v3968, %v3992
  %v4047 = vsel %vm450, %v3970, %v3994
  %v4048 = vsel %vm450, %v3972, %v3996
  %v4049 = vsel %vm450, %v3974, %v3998
  %v4050 = vsel %vm450, %v3976, %v4000
  %v4051 = vsel %vm450, %v3978, %v4002
  %v4052 = vsel %vm450, %v3980, %v4004
  %v4053 = vsel %vm450, %v3934, %v3958
  %v4054 = vsel %vm450, %v3936, %v3960
  %v4055 = vsel %vm450, %v3938, %v3962
  %v4056 = vsel %vm450, %v3940, %v3964
  %v4057 = vsel %vm450, %v3942, %v3966
  %v4058 = vsel %vm450, %v3944, %v3968
  %v4059 = vsel %vm450, %v3946, %v3970
  %v4060 = vsel %vm450, %v3948, %v3972
  %v4061 = vsel %vm450, %v3950, %v3974
  %v4062 = vsel %vm450, %v3952, %v3976
  %v4063 = vsel %vm450, %v3954, %v3978
  %v4064 = vsel %vm450, %v3956, %v3980
  %v4065 = vsel %vm450, %v4006, %v3934
  %v4066 = vsel %vm450, %v4008, %v3936
  %v4067 = vsel %vm450, %v4010, %v3938
  %v4068 = vsel %vm450, %v4012, %v3940
  %v4069 = vsel %vm450, %v4014, %v3942
  %v4070 = vsel %vm450, %v4016, %v3944
  %v4071 = vsel %vm450, %v4018, %v3946
  %v4072 = vsel %vm450, %v4020, %v3948
  %v4073 = vsel %vm450, %v4022, %v3950
  %v4074 = vsel %vm450, %v4024, %v3952
  %v4075 = vsel %vm450, %v4026, %v3954
  %v4076 = vsel %vm450, %v4028, %v3956
  %s4077 = scalar_lea.vmem %s3, 72
  %v4078 = vld [vmem:[%s4077] sm:$0xf]
  %v4079 = vld [vmem:[%s4077 + $0x4] sm:$0xf]
  %v4080 = vld [vmem:[%s4077 + $0x8] sm:$0xf]
  %v4081 = vpack.c.bf16 %v4054, %v4053
  %v4082 = vpack.c.bf16 %v4042, %v4041
  %v4083 = vpack.c.bf16 %v4030, %v4029
  %v4084 = vpack.c.bf16 %v4066, %v4065
  %v4085 = vpack.c.bf16 %v4056, %v4055
  %v4086 = vpack.c.bf16 %v4044, %v4043
  %v4087 = vpack.c.bf16 %v4032, %v4031
  %v4088 = vpack.c.bf16 %v4068, %v4067
  %v4089 = vpack.c.bf16 %v4058, %v4057
  %v4090 = vpack.c.bf16 %v4046, %v4045
  %v4091 = vpack.c.bf16 %v4034, %v4033
  %v4092 = vpack.c.bf16 %v4070, %v4069
  %v4093 = vpack.c.bf16 %v4060, %v4059
  %v4094 = vpack.c.bf16 %v4048, %v4047
  %v4095 = vpack.c.bf16 %v4036, %v4035
  %v4096 = vpack.c.bf16 %v4072, %v4071
  %v4097 = vpack.c.bf16 %v4062, %v4061
  %v4098 = vpack.c.bf16 %v4050, %v4049
  %v4099 = vpack.c.bf16 %v4038, %v4037
  %v4100 = vpack.c.bf16 %v4074, %v4073
  %v4101 = vpack.c.bf16 %v4064, %v4063
  %v4102 = vpack.c.bf16 %v4052, %v4051
  %v4103 = vpack.c.bf16 %v4040, %v4039
  %v4104 = vpack.c.bf16 %v4076, %v4075
  %v4108 = vunpack.c.l.b16 %v4078
  %v4109 = vunpack.c.l.b16 %v4079
  %v4110 = vunpack.c.l.b16 %v4080
  %v4111 = vpack.c.b16 %v4109, %v4108
  %v4112 = vpack.c.b16 %v4110, %v4110
  %v4114 = vsel %vm2348, %v4111, 0
  %v4117 = vsel %vm2348, %v4112, 0
  %4119 = vmatprep.subr.bf16.mxu0 0
  %4120 = vmatpush1.bf16.msra.mxu0 0
  %4121 = vmatprep.subr.bf16.mxu0 0
  %4122 = vmatpush1.bf16.msra.mxu0 0
  %4123 = vmatprep.subr.bf16.mxu0 %v4102
  %4124 = vmatpush1.bf16.msra.mxu0 %v4101
  %4125 = vmatprep.subr.bf16.mxu0 %v4098
  %4126 = vmatpush1.bf16.msra.mxu0 %v4097
  %4127 = vmatprep.subr.bf16.mxu0 %v4094
  %4128 = vmatpush1.bf16.msra.mxu0 %v4093
  %4129 = vmatprep.subr.bf16.mxu0 %v4090
  %4130 = vmatpush1.bf16.msra.mxu0 %v4089
  %4131 = vmatprep.subr.bf16.mxu0 %v4086
  %4132 = vmatpush1.bf16.msra.mxu0 %v4085
  %4133 = vmatprep.subr.bf16.mxu0 %v4082
  %4134 = vmatpush1.bf16.msra.mxu0 %v4081
  %4135 = vmatprep.subr.bf16.mxu0 0
  %4136 = vmatpush2.bf16.msra.mxu0 0
  %4137 = vmatprep.subr.bf16.mxu0 0
  %4138 = vmatpush2.bf16.msra.mxu0 0
  %4139 = vmatprep.subr.bf16.mxu0 0
  %4140 = vmatpush2.bf16.msra.mxu0 0
  %4141 = vmatprep.subr.bf16.mxu0 0
  %4142 = vmatpush2.bf16.msra.mxu0 0
  %4143 = vmatprep.subr.bf16.mxu0 0
  %4144 = vmatpush2.bf16.msra.mxu0 0
  %4145 = vmatprep.subr.bf16.mxu0 0
  %4146 = vmatpush2.bf16.msra.mxu0 0
  %4147 = vmatprep.subr.bf16.mxu0 0
  %4148 = vmatpush2.bf16.msra.mxu0 0
  %4149 = vmatprep.subr.bf16.mxu0 0
  %4150 = vmatpush2.bf16.msra.mxu0 0
  %4151 = vmatprep.mubr.bf16.mxu0 0
  %4152 = vmatmul.mubr.bf16.gmra.mxu0 %v4114
  %v4153 = vpop.f32.mrf.mxu0
  %v4154 = vadd.f32 0.0, %v4153
  %v4155 = vpop.f32.mrf.mxu0
  %v4156 = vadd.f32 0.0, %v4155
  %v4157 = vpop.f32.mrf.mxu0
  %v4158 = vadd.f32 0.0, %v4157
  %v4159 = vpop.f32.mrf.mxu0
  %v4160 = vadd.f32 0.0, %v4159
  %4161 = vmatprep.mubr.bf16.mxu0 0
  %4162 = vmatmul.mubr.bf16.gmra.mxu0 %v4117
  %v4163 = vpop.f32.mrf.mxu0
  %v4164 = vadd.f32 0.0, %v4163
  %v4165 = vpop.f32.mrf.mxu0
  %v4166 = vadd.f32 0.0, %v4165
  %v4167 = vpop.f32.mrf.mxu0
  %v4168 = vpop.f32.mrf.mxu0
  %4169 = vdwg.mxu0
  %4170 = vmatprep.subr.bf16.mxu0 0
  %4171 = vmatpush1.bf16.msra.mxu0 0
  %4172 = vmatprep.subr.bf16.mxu0 0
  %4173 = vmatpush1.bf16.msra.mxu0 0
  %4174 = vmatprep.subr.bf16.mxu0 %v4104
  %4175 = vmatpush1.bf16.msra.mxu0 %v4103
  %4176 = vmatprep.subr.bf16.mxu0 %v4100
  %4177 = vmatpush1.bf16.msra.mxu0 %v4099
  %4178 = vmatprep.subr.bf16.mxu0 %v4096
  %4179 = vmatpush1.bf16.msra.mxu0 %v4095
  %4180 = vmatprep.subr.bf16.mxu0 %v4092
  %4181 = vmatpush1.bf16.msra.mxu0 %v4091
  %4182 = vmatprep.subr.bf16.mxu0 %v4088
  %4183 = vmatpush1.bf16.msra.mxu0 %v4087
  %4184 = vmatprep.subr.bf16.mxu0 %v4084
  %4185 = vmatpush1.bf16.msra.mxu0 %v4083
  %4186 = vmatprep.subr.bf16.mxu0 0
  %4187 = vmatpush2.bf16.msra.mxu0 0
  %4188 = vmatprep.subr.bf16.mxu0 0
  %4189 = vmatpush2.bf16.msra.mxu0 0
  %4190 = vmatprep.subr.bf16.mxu0 0
  %4191 = vmatpush2.bf16.msra.mxu0 0
  %4192 = vmatprep.subr.bf16.mxu0 0
  %4193 = vmatpush2.bf16.msra.mxu0 0
  %4194 = vmatprep.subr.bf16.mxu0 0
  %4195 = vmatpush2.bf16.msra.mxu0 0
  %4196 = vmatprep.subr.bf16.mxu0 0
  %4197 = vmatpush2.bf16.msra.mxu0 0
  %4198 = vmatprep.subr.bf16.mxu0 0
  %4199 = vmatpush2.bf16.msra.mxu0 0
  %4200 = vmatprep.subr.bf16.mxu0 0
  %4201 = vmatpush2.bf16.msra.mxu0 0
  %4202 = vmatprep.mubr.bf16.mxu0 0
  %4203 = vmatmul.mubr.bf16.gmra.mxu0 %v4114
  %v4204 = vpop.f32.mrf.mxu0
  %v4205 = vadd.f32 0.0, %v4204
  %v4206 = vpop.f32.mrf.mxu0
  %v4207 = vadd.f32 0.0, %v4206
  %v4208 = vpop.f32.mrf.mxu0
  %v4209 = vadd.f32 0.0, %v4208
  %v4210 = vpop.f32.mrf.mxu0
  %v4211 = vadd.f32 0.0, %v4210
  %4212 = vmatprep.mubr.bf16.mxu0 0
  %4213 = vmatmul.mubr.bf16.gmra.mxu0 %v4117
  %v4214 = vpop.f32.mrf.mxu0
  %v4215 = vadd.f32 0.0, %v4214
  %v4216 = vpop.f32.mrf.mxu0
  %v4217 = vadd.f32 0.0, %v4216
  %v4218 = vpop.f32.mrf.mxu0
  %v4219 = vpop.f32.mrf.mxu0
  %4220 = vdwg.mxu0
  %v4221 = vld [vmem:[%s455] sm:$0xff]
  %v4222 = vld [vmem:[%s455 + $0x8] sm:$0xff]
  %v4223 = vld [vmem:[%s455 + $0x10] sm:$0xff]
  %v4224 = vld [vmem:[%s455 + $0x18] sm:$0xff]
  %v4225 = vld [vmem:[%s455 + $0x20] sm:$0xff]
  %v4226 = vld [vmem:[%s455 + $0x28] sm:$0xff]
  %v4227 = vld [vmem:[%s455 + $0x30] sm:$0xff]
  %v4228 = vld [vmem:[%s455 + $0x38] sm:$0xff]
  %v4229 = vld [vmem:[%s455 + $0x40] sm:$0xff]
  %v4230 = vld [vmem:[%s455 + $0x48] sm:$0xff]
  %v4231 = vld [vmem:[%s455 + $0x50] sm:$0xff]
  %v4232 = vld [vmem:[%s455 + $0x58] sm:$0xff]
  %v4233 = vmul.f32 %v4154, %v4221
  %v4234 = vmul.f32 %v4156, %v4222
  %v4235 = vmul.f32 %v4205, %v4223
  %v4236 = vmul.f32 %v4207, %v4224
  %v4237 = vmul.f32 %v4158, %v4225
  %v4238 = vmul.f32 %v4160, %v4226
  %v4239 = vmul.f32 %v4209, %v4227
  %v4240 = vmul.f32 %v4211, %v4228
  %v4241 = vmul.f32 %v4164, %v4229
  %v4242 = vmul.f32 %v4166, %v4230
  %v4243 = vmul.f32 %v4215, %v4231
  %v4244 = vmul.f32 %v4217, %v4232
  %v4245 = vadd.f32 %v3921, %v4233
  %v4246 = vadd.f32 %v3922, %v4234
  %v4247 = vadd.f32 %v3923, %v4235
  %v4248 = vadd.f32 %v3924, %v4236
  %v4249 = vadd.f32 %v3925, %v4237
  %v4250 = vadd.f32 %v3926, %v4238
  %v4251 = vadd.f32 %v3927, %v4239
  %v4252 = vadd.f32 %v3928, %v4240
  %v4253 = vadd.f32 %v3929, %v4241
  %v4254 = vadd.f32 %v3930, %v4242
  %v4255 = vadd.f32 %v3931, %v4243
  %v4256 = vadd.f32 %v3932, %v4244
  %4257 = vrot.lane.b32.xlu0 %v2121, 112
  %v4258 = vpop.permute.xlu0 %4257
  %4259 = vrot.lane.b32.xlu0 %v2125, 112
  %v4260 = vpop.permute.xlu0 %4259
  %4261 = vrot.lane.b32.xlu0 %v2129, 112
  %v4262 = vpop.permute.xlu0 %4261
  %4263 = vrot.lane.b32.xlu0 %v2133, 112
  %v4264 = vpop.permute.xlu0 %4263
  %4265 = vrot.lane.b32.xlu0 %v2137, 112
  %v4266 = vpop.permute.xlu0 %4265
  %4267 = vrot.lane.b32.xlu0 %v2141, 112
  %v4268 = vpop.permute.xlu0 %4267
  %4269 = vrot.lane.b32.xlu0 %v2145, 112
  %v4270 = vpop.permute.xlu0 %4269
  %4271 = vrot.lane.b32.xlu0 %v2149, 112
  %v4272 = vpop.permute.xlu0 %4271
  %4273 = vrot.lane.b32.xlu0 %v2153, 112
  %v4274 = vpop.permute.xlu0 %4273
  %4275 = vrot.lane.b32.xlu0 %v2157, 112
  %v4276 = vpop.permute.xlu0 %4275
  %4277 = vrot.lane.b32.xlu0 %v2161, 112
  %v4278 = vpop.permute.xlu0 %4277
  %4279 = vrot.lane.b32.xlu0 %v2165, 112
  %v4280 = vpop.permute.xlu0 %4279
  %4281 = vrot.lane.b32.xlu0 %v2122, 112
  %v4282 = vpop.permute.xlu0 %4281
  %4283 = vrot.lane.b32.xlu0 %v2126, 112
  %v4284 = vpop.permute.xlu0 %4283
  %4285 = vrot.lane.b32.xlu0 %v2130, 112
  %v4286 = vpop.permute.xlu0 %4285
  %4287 = vrot.lane.b32.xlu0 %v2134, 112
  %v4288 = vpop.permute.xlu0 %4287
  %4289 = vrot.lane.b32.xlu0 %v2138, 112
  %v4290 = vpop.permute.xlu0 %4289
  %4291 = vrot.lane.b32.xlu0 %v2142, 112
  %v4292 = vpop.permute.xlu0 %4291
  %4293 = vrot.lane.b32.xlu0 %v2146, 112
  %v4294 = vpop.permute.xlu0 %4293
  %4295 = vrot.lane.b32.xlu0 %v2150, 112
  %v4296 = vpop.permute.xlu0 %4295
  %4297 = vrot.lane.b32.xlu0 %v2154, 112
  %v4298 = vpop.permute.xlu0 %4297
  %4299 = vrot.lane.b32.xlu0 %v2158, 112
  %v4300 = vpop.permute.xlu0 %4299
  %4301 = vrot.lane.b32.xlu0 %v2162, 112
  %v4302 = vpop.permute.xlu0 %4301
  %4303 = vrot.lane.b32.xlu0 %v2166, 112
  %v4304 = vpop.permute.xlu0 %4303
  %4305 = vrot.lane.b32.xlu0 %v2123, 112
  %v4306 = vpop.permute.xlu0 %4305
  %4307 = vrot.lane.b32.xlu0 %v2127, 112
  %v4308 = vpop.permute.xlu0 %4307
  %4309 = vrot.lane.b32.xlu0 %v2131, 112
  %v4310 = vpop.permute.xlu0 %4309
  %4311 = vrot.lane.b32.xlu0 %v2135, 112
  %v4312 = vpop.permute.xlu0 %4311
  %4313 = vrot.lane.b32.xlu0 %v2139, 112
  %v4314 = vpop.permute.xlu0 %4313
  %4315 = vrot.lane.b32.xlu0 %v2143, 112
  %v4316 = vpop.permute.xlu0 %4315
  %4317 = vrot.lane.b32.xlu0 %v2147, 112
  %v4318 = vpop.permute.xlu0 %4317
  %4319 = vrot.lane.b32.xlu0 %v2151, 112
  %v4320 = vpop.permute.xlu0 %4319
  %4321 = vrot.lane.b32.xlu0 %v2155, 112
  %v4322 = vpop.permute.xlu0 %4321
  %4323 = vrot.lane.b32.xlu0 %v2159, 112
  %v4324 = vpop.permute.xlu0 %4323
  %4325 = vrot.lane.b32.xlu0 %v2163, 112
  %v4326 = vpop.permute.xlu0 %4325
  %4327 = vrot.lane.b32.xlu0 %v2167, 112
  %v4328 = vpop.permute.xlu0 %4327
  %4329 = vrot.lane.b32.xlu0 %v2124, 112
  %v4330 = vpop.permute.xlu0 %4329
  %4331 = vrot.lane.b32.xlu0 %v2128, 112
  %v4332 = vpop.permute.xlu0 %4331
  %4333 = vrot.lane.b32.xlu0 %v2132, 112
  %v4334 = vpop.permute.xlu0 %4333
  %4335 = vrot.lane.b32.xlu0 %v2136, 112
  %v4336 = vpop.permute.xlu0 %4335
  %4337 = vrot.lane.b32.xlu0 %v2140, 112
  %v4338 = vpop.permute.xlu0 %4337
  %4339 = vrot.lane.b32.xlu0 %v2144, 112
  %v4340 = vpop.permute.xlu0 %4339
  %4341 = vrot.lane.b32.xlu0 %v2148, 112
  %v4342 = vpop.permute.xlu0 %4341
  %4343 = vrot.lane.b32.xlu0 %v2152, 112
  %v4344 = vpop.permute.xlu0 %4343
  %4345 = vrot.lane.b32.xlu0 %v2156, 112
  %v4346 = vpop.permute.xlu0 %4345
  %4347 = vrot.lane.b32.xlu0 %v2160, 112
  %v4348 = vpop.permute.xlu0 %4347
  %4349 = vrot.lane.b32.xlu0 %v2164, 112
  %v4350 = vpop.permute.xlu0 %4349
  %4351 = vrot.lane.b32.xlu0 %v2168, 112
  %v4352 = vpop.permute.xlu0 %4351
  %v4353 = vsel %vm472, %v4306, %v4330
  %v4354 = vsel %vm472, %v4308, %v4332
  %v4355 = vsel %vm472, %v4310, %v4334
  %v4356 = vsel %vm472, %v4312, %v4336
  %v4357 = vsel %vm472, %v4314, %v4338
  %v4358 = vsel %vm472, %v4316, %v4340
  %v4359 = vsel %vm472, %v4318, %v4342
  %v4360 = vsel %vm472, %v4320, %v4344
  %v4361 = vsel %vm472, %v4322, %v4346
  %v4362 = vsel %vm472, %v4324, %v4348
  %v4363 = vsel %vm472, %v4326, %v4350
  %v4364 = vsel %vm472, %v4328, %v4352
  %v4365 = vsel %vm472, %v4282, %v4306
  %v4366 = vsel %vm472, %v4284, %v4308
  %v4367 = vsel %vm472, %v4286, %v4310
  %v4368 = vsel %vm472, %v4288, %v4312
  %v4369 = vsel %vm472, %v4290, %v4314
  %v4370 = vsel %vm472, %v4292, %v4316
  %v4371 = vsel %vm472, %v4294, %v4318
  %v4372 = vsel %vm472, %v4296, %v4320
  %v4373 = vsel %vm472, %v4298, %v4322
  %v4374 = vsel %vm472, %v4300, %v4324
  %v4375 = vsel %vm472, %v4302, %v4326
  %v4376 = vsel %vm472, %v4304, %v4328
  %v4377 = vsel %vm472, %v4258, %v4282
  %v4378 = vsel %vm472, %v4260, %v4284
  %v4379 = vsel %vm472, %v4262, %v4286
  %v4380 = vsel %vm472, %v4264, %v4288
  %v4381 = vsel %vm472, %v4266, %v4290
  %v4382 = vsel %vm472, %v4268, %v4292
  %v4383 = vsel %vm472, %v4270, %v4294
  %v4384 = vsel %vm472, %v4272, %v4296
  %v4385 = vsel %vm472, %v4274, %v4298
  %v4386 = vsel %vm472, %v4276, %v4300
  %v4387 = vsel %vm472, %v4278, %v4302
  %v4388 = vsel %vm472, %v4280, %v4304
  %v4389 = vsel %vm472, %v4330, %v4258
  %v4390 = vsel %vm472, %v4332, %v4260
  %v4391 = vsel %vm472, %v4334, %v4262
  %v4392 = vsel %vm472, %v4336, %v4264
  %v4393 = vsel %vm472, %v4338, %v4266
  %v4394 = vsel %vm472, %v4340, %v4268
  %v4395 = vsel %vm472, %v4342, %v4270
  %v4396 = vsel %vm472, %v4344, %v4272
  %v4397 = vsel %vm472, %v4346, %v4274
  %v4398 = vsel %vm472, %v4348, %v4276
  %v4399 = vsel %vm472, %v4350, %v4278
  %v4400 = vsel %vm472, %v4352, %v4280
  %s4401 = scalar_lea.vmem %s3, 84
  %v4402 = vld [vmem:[%s4401] sm:$0xf]
  %v4403 = vld [vmem:[%s4401 + $0x4] sm:$0xf]
  %v4404 = vld [vmem:[%s4401 + $0x8] sm:$0xf]
  %v4405 = vpack.c.bf16 %v4378, %v4377
  %v4406 = vpack.c.bf16 %v4366, %v4365
  %v4407 = vpack.c.bf16 %v4354, %v4353
  %v4408 = vpack.c.bf16 %v4390, %v4389
  %v4409 = vpack.c.bf16 %v4380, %v4379
  %v4410 = vpack.c.bf16 %v4368, %v4367
  %v4411 = vpack.c.bf16 %v4356, %v4355
  %v4412 = vpack.c.bf16 %v4392, %v4391
  %v4413 = vpack.c.bf16 %v4382, %v4381
  %v4414 = vpack.c.bf16 %v4370, %v4369
  %v4415 = vpack.c.bf16 %v4358, %v4357
  %v4416 = vpack.c.bf16 %v4394, %v4393
  %v4417 = vpack.c.bf16 %v4384, %v4383
  %v4418 = vpack.c.bf16 %v4372, %v4371
  %v4419 = vpack.c.bf16 %v4360, %v4359
  %v4420 = vpack.c.bf16 %v4396, %v4395
  %v4421 = vpack.c.bf16 %v4386, %v4385
  %v4422 = vpack.c.bf16 %v4374, %v4373
  %v4423 = vpack.c.bf16 %v4362, %v4361
  %v4424 = vpack.c.bf16 %v4398, %v4397
  %v4425 = vpack.c.bf16 %v4388, %v4387
  %v4426 = vpack.c.bf16 %v4376, %v4375
  %v4427 = vpack.c.bf16 %v4364, %v4363
  %v4428 = vpack.c.bf16 %v4400, %v4399
  %v4432 = vunpack.c.l.b16 %v4402
  %v4433 = vunpack.c.l.b16 %v4403
  %v4434 = vunpack.c.l.b16 %v4404
  %v4435 = vpack.c.b16 %v4433, %v4432
  %v4436 = vpack.c.b16 %v4434, %v4434
  %v4438 = vsel %vm2348, %v4435, 0
  %v4441 = vsel %vm2348, %v4436, 0
  %4443 = vmatprep.subr.bf16.mxu0 0
  %4444 = vmatpush1.bf16.msra.mxu0 0
  %4445 = vmatprep.subr.bf16.mxu0 0
  %4446 = vmatpush1.bf16.msra.mxu0 0
  %4447 = vmatprep.subr.bf16.mxu0 %v4426
  %4448 = vmatpush1.bf16.msra.mxu0 %v4425
  %4449 = vmatprep.subr.bf16.mxu0 %v4422
  %4450 = vmatpush1.bf16.msra.mxu0 %v4421
  %4451 = vmatprep.subr.bf16.mxu0 %v4418
  %4452 = vmatpush1.bf16.msra.mxu0 %v4417
  %4453 = vmatprep.subr.bf16.mxu0 %v4414
  %4454 = vmatpush1.bf16.msra.mxu0 %v4413
  %4455 = vmatprep.subr.bf16.mxu0 %v4410
  %4456 = vmatpush1.bf16.msra.mxu0 %v4409
  %4457 = vmatprep.subr.bf16.mxu0 %v4406
  %4458 = vmatpush1.bf16.msra.mxu0 %v4405
  %4459 = vmatprep.subr.bf16.mxu0 0
  %4460 = vmatpush2.bf16.msra.mxu0 0
  %4461 = vmatprep.subr.bf16.mxu0 0
  %4462 = vmatpush2.bf16.msra.mxu0 0
  %4463 = vmatprep.subr.bf16.mxu0 0
  %4464 = vmatpush2.bf16.msra.mxu0 0
  %4465 = vmatprep.subr.bf16.mxu0 0
  %4466 = vmatpush2.bf16.msra.mxu0 0
  %4467 = vmatprep.subr.bf16.mxu0 0
  %4468 = vmatpush2.bf16.msra.mxu0 0
  %4469 = vmatprep.subr.bf16.mxu0 0
  %4470 = vmatpush2.bf16.msra.mxu0 0
  %4471 = vmatprep.subr.bf16.mxu0 0
  %4472 = vmatpush2.bf16.msra.mxu0 0
  %4473 = vmatprep.subr.bf16.mxu0 0
  %4474 = vmatpush2.bf16.msra.mxu0 0
  %4475 = vmatprep.mubr.bf16.mxu0 0
  %4476 = vmatmul.mubr.bf16.gmra.mxu0 %v4438
  %v4477 = vpop.f32.mrf.mxu0
  %v4478 = vadd.f32 0.0, %v4477
  %v4479 = vpop.f32.mrf.mxu0
  %v4480 = vadd.f32 0.0, %v4479
  %v4481 = vpop.f32.mrf.mxu0
  %v4482 = vadd.f32 0.0, %v4481
  %v4483 = vpop.f32.mrf.mxu0
  %v4484 = vadd.f32 0.0, %v4483
  %4485 = vmatprep.mubr.bf16.mxu0 0
  %4486 = vmatmul.mubr.bf16.gmra.mxu0 %v4441
  %v4487 = vpop.f32.mrf.mxu0
  %v4488 = vadd.f32 0.0, %v4487
  %v4489 = vpop.f32.mrf.mxu0
  %v4490 = vadd.f32 0.0, %v4489
  %v4491 = vpop.f32.mrf.mxu0
  %v4492 = vpop.f32.mrf.mxu0
  %4493 = vdwg.mxu0
  %4494 = vmatprep.subr.bf16.mxu0 0
  %4495 = vmatpush1.bf16.msra.mxu0 0
  %4496 = vmatprep.subr.bf16.mxu0 0
  %4497 = vmatpush1.bf16.msra.mxu0 0
  %4498 = vmatprep.subr.bf16.mxu0 %v4428
  %4499 = vmatpush1.bf16.msra.mxu0 %v4427
  %4500 = vmatprep.subr.bf16.mxu0 %v4424
  %4501 = vmatpush1.bf16.msra.mxu0 %v4423
  %4502 = vmatprep.subr.bf16.mxu0 %v4420
  %4503 = vmatpush1.bf16.msra.mxu0 %v4419
  %4504 = vmatprep.subr.bf16.mxu0 %v4416
  %4505 = vmatpush1.bf16.msra.mxu0 %v4415
  %4506 = vmatprep.subr.bf16.mxu0 %v4412
  %4507 = vmatpush1.bf16.msra.mxu0 %v4411
  %4508 = vmatprep.subr.bf16.mxu0 %v4408
  %4509 = vmatpush1.bf16.msra.mxu0 %v4407
  %4510 = vmatprep.subr.bf16.mxu0 0
  %4511 = vmatpush2.bf16.msra.mxu0 0
  %4512 = vmatprep.subr.bf16.mxu0 0
  %4513 = vmatpush2.bf16.msra.mxu0 0
  %4514 = vmatprep.subr.bf16.mxu0 0
  %4515 = vmatpush2.bf16.msra.mxu0 0
  %4516 = vmatprep.subr.bf16.mxu0 0
  %4517 = vmatpush2.bf16.msra.mxu0 0
  %4518 = vmatprep.subr.bf16.mxu0 0
  %4519 = vmatpush2.bf16.msra.mxu0 0
  %4520 = vmatprep.subr.bf16.mxu0 0
  %4521 = vmatpush2.bf16.msra.mxu0 0
  %4522 = vmatprep.subr.bf16.mxu0 0
  %4523 = vmatpush2.bf16.msra.mxu0 0
  %4524 = vmatprep.subr.bf16.mxu0 0
  %4525 = vmatpush2.bf16.msra.mxu0 0
  %4526 = vmatprep.mubr.bf16.mxu0 0
  %4527 = vmatmul.mubr.bf16.gmra.mxu0 %v4438
  %v4528 = vpop.f32.mrf.mxu0
  %v4529 = vadd.f32 0.0, %v4528
  %v4530 = vpop.f32.mrf.mxu0
  %v4531 = vadd.f32 0.0, %v4530
  %v4532 = vpop.f32.mrf.mxu0
  %v4533 = vadd.f32 0.0, %v4532
  %v4534 = vpop.f32.mrf.mxu0
  %v4535 = vadd.f32 0.0, %v4534
  %4536 = vmatprep.mubr.bf16.mxu0 0
  %4537 = vmatmul.mubr.bf16.gmra.mxu0 %v4441
  %v4538 = vpop.f32.mrf.mxu0
  %v4539 = vadd.f32 0.0, %v4538
  %v4540 = vpop.f32.mrf.mxu0
  %v4541 = vadd.f32 0.0, %v4540
  %v4542 = vpop.f32.mrf.mxu0
  %v4543 = vpop.f32.mrf.mxu0
  %4544 = vdwg.mxu0
  %v4545 = vld [vmem:[%s477] sm:$0xff]
  %v4546 = vld [vmem:[%s477 + $0x8] sm:$0xff]
  %v4547 = vld [vmem:[%s477 + $0x10] sm:$0xff]
  %v4548 = vld [vmem:[%s477 + $0x18] sm:$0xff]
  %v4549 = vld [vmem:[%s477 + $0x20] sm:$0xff]
  %v4550 = vld [vmem:[%s477 + $0x28] sm:$0xff]
  %v4551 = vld [vmem:[%s477 + $0x30] sm:$0xff]
  %v4552 = vld [vmem:[%s477 + $0x38] sm:$0xff]
  %v4553 = vld [vmem:[%s477 + $0x40] sm:$0xff]
  %v4554 = vld [vmem:[%s477 + $0x48] sm:$0xff]
  %v4555 = vld [vmem:[%s477 + $0x50] sm:$0xff]
  %v4556 = vld [vmem:[%s477 + $0x58] sm:$0xff]
  %v4557 = vmul.f32 %v4478, %v4545
  %v4558 = vmul.f32 %v4480, %v4546
  %v4559 = vmul.f32 %v4529, %v4547
  %v4560 = vmul.f32 %v4531, %v4548
  %v4561 = vmul.f32 %v4482, %v4549
  %v4562 = vmul.f32 %v4484, %v4550
  %v4563 = vmul.f32 %v4533, %v4551
  %v4564 = vmul.f32 %v4535, %v4552
  %v4565 = vmul.f32 %v4488, %v4553
  %v4566 = vmul.f32 %v4490, %v4554
  %v4567 = vmul.f32 %v4539, %v4555
  %v4568 = vmul.f32 %v4541, %v4556
  %v4569 = vadd.f32 %v4245, %v4557
  %v4570 = vadd.f32 %v4246, %v4558
  %v4571 = vadd.f32 %v4247, %v4559
  %v4572 = vadd.f32 %v4248, %v4560
  %v4573 = vadd.f32 %v4249, %v4561
  %v4574 = vadd.f32 %v4250, %v4562
  %v4575 = vadd.f32 %v4251, %v4563
  %v4576 = vadd.f32 %v4252, %v4564
  %v4577 = vadd.f32 %v4253, %v4565
  %v4578 = vadd.f32 %v4254, %v4566
  %v4579 = vadd.f32 %v4255, %v4567
  %v4580 = vadd.f32 %v4256, %v4568
  %4581 = vrot.lane.b32.xlu0 %v2121, 111
  %v4582 = vpop.permute.xlu0 %4581
  %4583 = vrot.lane.b32.xlu0 %v2125, 111
  %v4584 = vpop.permute.xlu0 %4583
  %4585 = vrot.lane.b32.xlu0 %v2129, 111
  %v4586 = vpop.permute.xlu0 %4585
  %4587 = vrot.lane.b32.xlu0 %v2133, 111
  %v4588 = vpop.permute.xlu0 %4587
  %4589 = vrot.lane.b32.xlu0 %v2137, 111
  %v4590 = vpop.permute.xlu0 %4589
  %4591 = vrot.lane.b32.xlu0 %v2141, 111
  %v4592 = vpop.permute.xlu0 %4591
  %4593 = vrot.lane.b32.xlu0 %v2145, 111
  %v4594 = vpop.permute.xlu0 %4593
  %4595 = vrot.lane.b32.xlu0 %v2149, 111
  %v4596 = vpop.permute.xlu0 %4595
  %4597 = vrot.lane.b32.xlu0 %v2153, 111
  %v4598 = vpop.permute.xlu0 %4597
  %4599 = vrot.lane.b32.xlu0 %v2157, 111
  %v4600 = vpop.permute.xlu0 %4599
  %4601 = vrot.lane.b32.xlu0 %v2161, 111
  %v4602 = vpop.permute.xlu0 %4601
  %4603 = vrot.lane.b32.xlu0 %v2165, 111
  %v4604 = vpop.permute.xlu0 %4603
  %4605 = vrot.lane.b32.xlu0 %v2122, 111
  %v4606 = vpop.permute.xlu0 %4605
  %4607 = vrot.lane.b32.xlu0 %v2126, 111
  %v4608 = vpop.permute.xlu0 %4607
  %4609 = vrot.lane.b32.xlu0 %v2130, 111
  %v4610 = vpop.permute.xlu0 %4609
  %4611 = vrot.lane.b32.xlu0 %v2134, 111
  %v4612 = vpop.permute.xlu0 %4611
  %4613 = vrot.lane.b32.xlu0 %v2138, 111
  %v4614 = vpop.permute.xlu0 %4613
  %4615 = vrot.lane.b32.xlu0 %v2142, 111
  %v4616 = vpop.permute.xlu0 %4615
  %4617 = vrot.lane.b32.xlu0 %v2146, 111
  %v4618 = vpop.permute.xlu0 %4617
  %4619 = vrot.lane.b32.xlu0 %v2150, 111
  %v4620 = vpop.permute.xlu0 %4619
  %4621 = vrot.lane.b32.xlu0 %v2154, 111
  %v4622 = vpop.permute.xlu0 %4621
  %4623 = vrot.lane.b32.xlu0 %v2158, 111
  %v4624 = vpop.permute.xlu0 %4623
  %4625 = vrot.lane.b32.xlu0 %v2162, 111
  %v4626 = vpop.permute.xlu0 %4625
  %4627 = vrot.lane.b32.xlu0 %v2166, 111
  %v4628 = vpop.permute.xlu0 %4627
  %4629 = vrot.lane.b32.xlu0 %v2123, 111
  %v4630 = vpop.permute.xlu0 %4629
  %4631 = vrot.lane.b32.xlu0 %v2127, 111
  %v4632 = vpop.permute.xlu0 %4631
  %4633 = vrot.lane.b32.xlu0 %v2131, 111
  %v4634 = vpop.permute.xlu0 %4633
  %4635 = vrot.lane.b32.xlu0 %v2135, 111
  %v4636 = vpop.permute.xlu0 %4635
  %4637 = vrot.lane.b32.xlu0 %v2139, 111
  %v4638 = vpop.permute.xlu0 %4637
  %4639 = vrot.lane.b32.xlu0 %v2143, 111
  %v4640 = vpop.permute.xlu0 %4639
  %4641 = vrot.lane.b32.xlu0 %v2147, 111
  %v4642 = vpop.permute.xlu0 %4641
  %4643 = vrot.lane.b32.xlu0 %v2151, 111
  %v4644 = vpop.permute.xlu0 %4643
  %4645 = vrot.lane.b32.xlu0 %v2155, 111
  %v4646 = vpop.permute.xlu0 %4645
  %4647 = vrot.lane.b32.xlu0 %v2159, 111
  %v4648 = vpop.permute.xlu0 %4647
  %4649 = vrot.lane.b32.xlu0 %v2163, 111
  %v4650 = vpop.permute.xlu0 %4649
  %4651 = vrot.lane.b32.xlu0 %v2167, 111
  %v4652 = vpop.permute.xlu0 %4651
  %4653 = vrot.lane.b32.xlu0 %v2124, 111
  %v4654 = vpop.permute.xlu0 %4653
  %4655 = vrot.lane.b32.xlu0 %v2128, 111
  %v4656 = vpop.permute.xlu0 %4655
  %4657 = vrot.lane.b32.xlu0 %v2132, 111
  %v4658 = vpop.permute.xlu0 %4657
  %4659 = vrot.lane.b32.xlu0 %v2136, 111
  %v4660 = vpop.permute.xlu0 %4659
  %4661 = vrot.lane.b32.xlu0 %v2140, 111
  %v4662 = vpop.permute.xlu0 %4661
  %4663 = vrot.lane.b32.xlu0 %v2144, 111
  %v4664 = vpop.permute.xlu0 %4663
  %4665 = vrot.lane.b32.xlu0 %v2148, 111
  %v4666 = vpop.permute.xlu0 %4665
  %4667 = vrot.lane.b32.xlu0 %v2152, 111
  %v4668 = vpop.permute.xlu0 %4667
  %4669 = vrot.lane.b32.xlu0 %v2156, 111
  %v4670 = vpop.permute.xlu0 %4669
  %4671 = vrot.lane.b32.xlu0 %v2160, 111
  %v4672 = vpop.permute.xlu0 %4671
  %4673 = vrot.lane.b32.xlu0 %v2164, 111
  %v4674 = vpop.permute.xlu0 %4673
  %4675 = vrot.lane.b32.xlu0 %v2168, 111
  %v4676 = vpop.permute.xlu0 %4675
  %v4677 = vsel %vm494, %v4630, %v4654
  %v4678 = vsel %vm494, %v4632, %v4656
  %v4679 = vsel %vm494, %v4634, %v4658
  %v4680 = vsel %vm494, %v4636, %v4660
  %v4681 = vsel %vm494, %v4638, %v4662
  %v4682 = vsel %vm494, %v4640, %v4664
  %v4683 = vsel %vm494, %v4642, %v4666
  %v4684 = vsel %vm494, %v4644, %v4668
  %v4685 = vsel %vm494, %v4646, %v4670
  %v4686 = vsel %vm494, %v4648, %v4672
  %v4687 = vsel %vm494, %v4650, %v4674
  %v4688 = vsel %vm494, %v4652, %v4676
  %v4689 = vsel %vm494, %v4606, %v4630
  %v4690 = vsel %vm494, %v4608, %v4632
  %v4691 = vsel %vm494, %v4610, %v4634
  %v4692 = vsel %vm494, %v4612, %v4636
  %v4693 = vsel %vm494, %v4614, %v4638
  %v4694 = vsel %vm494, %v4616, %v4640
  %v4695 = vsel %vm494, %v4618, %v4642
  %v4696 = vsel %vm494, %v4620, %v4644
  %v4697 = vsel %vm494, %v4622, %v4646
  %v4698 = vsel %vm494, %v4624, %v4648
  %v4699 = vsel %vm494, %v4626, %v4650
  %v4700 = vsel %vm494, %v4628, %v4652
  %v4701 = vsel %vm494, %v4582, %v4606
  %v4702 = vsel %vm494, %v4584, %v4608
  %v4703 = vsel %vm494, %v4586, %v4610
  %v4704 = vsel %vm494, %v4588, %v4612
  %v4705 = vsel %vm494, %v4590, %v4614
  %v4706 = vsel %vm494, %v4592, %v4616
  %v4707 = vsel %vm494, %v4594, %v4618
  %v4708 = vsel %vm494, %v4596, %v4620
  %v4709 = vsel %vm494, %v4598, %v4622
  %v4710 = vsel %vm494, %v4600, %v4624
  %v4711 = vsel %vm494, %v4602, %v4626
  %v4712 = vsel %vm494, %v4604, %v4628
  %v4713 = vsel %vm494, %v4654, %v4582
  %v4714 = vsel %vm494, %v4656, %v4584
  %v4715 = vsel %vm494, %v4658, %v4586
  %v4716 = vsel %vm494, %v4660, %v4588
  %v4717 = vsel %vm494, %v4662, %v4590
  %v4718 = vsel %vm494, %v4664, %v4592
  %v4719 = vsel %vm494, %v4666, %v4594
  %v4720 = vsel %vm494, %v4668, %v4596
  %v4721 = vsel %vm494, %v4670, %v4598
  %v4722 = vsel %vm494, %v4672, %v4600
  %v4723 = vsel %vm494, %v4674, %v4602
  %v4724 = vsel %vm494, %v4676, %v4604
  %s4725 = scalar_lea.vmem %s3, 96
  %v4726 = vld [vmem:[%s4725] sm:$0xf]
  %v4727 = vld [vmem:[%s4725 + $0x4] sm:$0xf]
  %v4728 = vld [vmem:[%s4725 + $0x8] sm:$0xf]
  %v4729 = vpack.c.bf16 %v4702, %v4701
  %v4730 = vpack.c.bf16 %v4690, %v4689
  %v4731 = vpack.c.bf16 %v4678, %v4677
  %v4732 = vpack.c.bf16 %v4714, %v4713
  %v4733 = vpack.c.bf16 %v4704, %v4703
  %v4734 = vpack.c.bf16 %v4692, %v4691
  %v4735 = vpack.c.bf16 %v4680, %v4679
  %v4736 = vpack.c.bf16 %v4716, %v4715
  %v4737 = vpack.c.bf16 %v4706, %v4705
  %v4738 = vpack.c.bf16 %v4694, %v4693
  %v4739 = vpack.c.bf16 %v4682, %v4681
  %v4740 = vpack.c.bf16 %v4718, %v4717
  %v4741 = vpack.c.bf16 %v4708, %v4707
  %v4742 = vpack.c.bf16 %v4696, %v4695
  %v4743 = vpack.c.bf16 %v4684, %v4683
  %v4744 = vpack.c.bf16 %v4720, %v4719
  %v4745 = vpack.c.bf16 %v4710, %v4709
  %v4746 = vpack.c.bf16 %v4698, %v4697
  %v4747 = vpack.c.bf16 %v4686, %v4685
  %v4748 = vpack.c.bf16 %v4722, %v4721
  %v4749 = vpack.c.bf16 %v4712, %v4711
  %v4750 = vpack.c.bf16 %v4700, %v4699
  %v4751 = vpack.c.bf16 %v4688, %v4687
  %v4752 = vpack.c.bf16 %v4724, %v4723
  %v4756 = vunpack.c.l.b16 %v4726
  %v4757 = vunpack.c.l.b16 %v4727
  %v4758 = vunpack.c.l.b16 %v4728
  %v4759 = vpack.c.b16 %v4757, %v4756
  %v4760 = vpack.c.b16 %v4758, %v4758
  %v4762 = vsel %vm2348, %v4759, 0
  %v4765 = vsel %vm2348, %v4760, 0
  %4767 = vmatprep.subr.bf16.mxu0 0
  %4768 = vmatpush1.bf16.msra.mxu0 0
  %4769 = vmatprep.subr.bf16.mxu0 0
  %4770 = vmatpush1.bf16.msra.mxu0 0
  %4771 = vmatprep.subr.bf16.mxu0 %v4750
  %4772 = vmatpush1.bf16.msra.mxu0 %v4749
  %4773 = vmatprep.subr.bf16.mxu0 %v4746
  %4774 = vmatpush1.bf16.msra.mxu0 %v4745
  %4775 = vmatprep.subr.bf16.mxu0 %v4742
  %4776 = vmatpush1.bf16.msra.mxu0 %v4741
  %4777 = vmatprep.subr.bf16.mxu0 %v4738
  %4778 = vmatpush1.bf16.msra.mxu0 %v4737
  %4779 = vmatprep.subr.bf16.mxu0 %v4734
  %4780 = vmatpush1.bf16.msra.mxu0 %v4733
  %4781 = vmatprep.subr.bf16.mxu0 %v4730
  %4782 = vmatpush1.bf16.msra.mxu0 %v4729
  %4783 = vmatprep.subr.bf16.mxu0 0
  %4784 = vmatpush2.bf16.msra.mxu0 0
  %4785 = vmatprep.subr.bf16.mxu0 0
  %4786 = vmatpush2.bf16.msra.mxu0 0
  %4787 = vmatprep.subr.bf16.mxu0 0
  %4788 = vmatpush2.bf16.msra.mxu0 0
  %4789 = vmatprep.subr.bf16.mxu0 0
  %4790 = vmatpush2.bf16.msra.mxu0 0
  %4791 = vmatprep.subr.bf16.mxu0 0
  %4792 = vmatpush2.bf16.msra.mxu0 0
  %4793 = vmatprep.subr.bf16.mxu0 0
  %4794 = vmatpush2.bf16.msra.mxu0 0
  %4795 = vmatprep.subr.bf16.mxu0 0
  %4796 = vmatpush2.bf16.msra.mxu0 0
  %4797 = vmatprep.subr.bf16.mxu0 0
  %4798 = vmatpush2.bf16.msra.mxu0 0
  %4799 = vmatprep.mubr.bf16.mxu0 0
  %4800 = vmatmul.mubr.bf16.gmra.mxu0 %v4762
  %v4801 = vpop.f32.mrf.mxu0
  %v4802 = vadd.f32 0.0, %v4801
  %v4803 = vpop.f32.mrf.mxu0
  %v4804 = vadd.f32 0.0, %v4803
  %v4805 = vpop.f32.mrf.mxu0
  %v4806 = vadd.f32 0.0, %v4805
  %v4807 = vpop.f32.mrf.mxu0
  %v4808 = vadd.f32 0.0, %v4807
  %4809 = vmatprep.mubr.bf16.mxu0 0
  %4810 = vmatmul.mubr.bf16.gmra.mxu0 %v4765
  %v4811 = vpop.f32.mrf.mxu0
  %v4812 = vadd.f32 0.0, %v4811
  %v4813 = vpop.f32.mrf.mxu0
  %v4814 = vadd.f32 0.0, %v4813
  %v4815 = vpop.f32.mrf.mxu0
  %v4816 = vpop.f32.mrf.mxu0
  %4817 = vdwg.mxu0
  %4818 = vmatprep.subr.bf16.mxu0 0
  %4819 = vmatpush1.bf16.msra.mxu0 0
  %4820 = vmatprep.subr.bf16.mxu0 0
  %4821 = vmatpush1.bf16.msra.mxu0 0
  %4822 = vmatprep.subr.bf16.mxu0 %v4752
  %4823 = vmatpush1.bf16.msra.mxu0 %v4751
  %4824 = vmatprep.subr.bf16.mxu0 %v4748
  %4825 = vmatpush1.bf16.msra.mxu0 %v4747
  %4826 = vmatprep.subr.bf16.mxu0 %v4744
  %4827 = vmatpush1.bf16.msra.mxu0 %v4743
  %4828 = vmatprep.subr.bf16.mxu0 %v4740
  %4829 = vmatpush1.bf16.msra.mxu0 %v4739
  %4830 = vmatprep.subr.bf16.mxu0 %v4736
  %4831 = vmatpush1.bf16.msra.mxu0 %v4735
  %4832 = vmatprep.subr.bf16.mxu0 %v4732
  %4833 = vmatpush1.bf16.msra.mxu0 %v4731
  %4834 = vmatprep.subr.bf16.mxu0 0
  %4835 = vmatpush2.bf16.msra.mxu0 0
  %4836 = vmatprep.subr.bf16.mxu0 0
  %4837 = vmatpush2.bf16.msra.mxu0 0
  %4838 = vmatprep.subr.bf16.mxu0 0
  %4839 = vmatpush2.bf16.msra.mxu0 0
  %4840 = vmatprep.subr.bf16.mxu0 0
  %4841 = vmatpush2.bf16.msra.mxu0 0
  %4842 = vmatprep.subr.bf16.mxu0 0
  %4843 = vmatpush2.bf16.msra.mxu0 0
  %4844 = vmatprep.subr.bf16.mxu0 0
  %4845 = vmatpush2.bf16.msra.mxu0 0
  %4846 = vmatprep.subr.bf16.mxu0 0
  %4847 = vmatpush2.bf16.msra.mxu0 0
  %4848 = vmatprep.subr.bf16.mxu0 0
  %4849 = vmatpush2.bf16.msra.mxu0 0
  %4850 = vmatprep.mubr.bf16.mxu0 0
  %4851 = vmatmul.mubr.bf16.gmra.mxu0 %v4762
  %v4852 = vpop.f32.mrf.mxu0
  %v4853 = vadd.f32 0.0, %v4852
  %v4854 = vpop.f32.mrf.mxu0
  %v4855 = vadd.f32 0.0, %v4854
  %v4856 = vpop.f32.mrf.mxu0
  %v4857 = vadd.f32 0.0, %v4856
  %v4858 = vpop.f32.mrf.mxu0
  %v4859 = vadd.f32 0.0, %v4858
  %4860 = vmatprep.mubr.bf16.mxu0 0
  %4861 = vmatmul.mubr.bf16.gmra.mxu0 %v4765
  %v4862 = vpop.f32.mrf.mxu0
  %v4863 = vadd.f32 0.0, %v4862
  %v4864 = vpop.f32.mrf.mxu0
  %v4865 = vadd.f32 0.0, %v4864
  %v4866 = vpop.f32.mrf.mxu0
  %v4867 = vpop.f32.mrf.mxu0
  %4868 = vdwg.mxu0
  %v4869 = vld [vmem:[%s499] sm:$0xff]
  %v4870 = vld [vmem:[%s499 + $0x8] sm:$0xff]
  %v4871 = vld [vmem:[%s499 + $0x10] sm:$0xff]
  %v4872 = vld [vmem:[%s499 + $0x18] sm:$0xff]
  %v4873 = vld [vmem:[%s499 + $0x20] sm:$0xff]
  %v4874 = vld [vmem:[%s499 + $0x28] sm:$0xff]
  %v4875 = vld [vmem:[%s499 + $0x30] sm:$0xff]
  %v4876 = vld [vmem:[%s499 + $0x38] sm:$0xff]
  %v4877 = vld [vmem:[%s499 + $0x40] sm:$0xff]
  %v4878 = vld [vmem:[%s499 + $0x48] sm:$0xff]
  %v4879 = vld [vmem:[%s499 + $0x50] sm:$0xff]
  %v4880 = vld [vmem:[%s499 + $0x58] sm:$0xff]
  %v4881 = vmul.f32 %v4802, %v4869
  %v4882 = vmul.f32 %v4804, %v4870
  %v4883 = vmul.f32 %v4853, %v4871
  %v4884 = vmul.f32 %v4855, %v4872
  %v4885 = vmul.f32 %v4806, %v4873
  %v4886 = vmul.f32 %v4808, %v4874
  %v4887 = vmul.f32 %v4857, %v4875
  %v4888 = vmul.f32 %v4859, %v4876
  %v4889 = vmul.f32 %v4812, %v4877
  %v4890 = vmul.f32 %v4814, %v4878
  %v4891 = vmul.f32 %v4863, %v4879
  %v4892 = vmul.f32 %v4865, %v4880
  %v4893 = vadd.f32 %v4569, %v4881
  %v4894 = vadd.f32 %v4570, %v4882
  %v4895 = vadd.f32 %v4571, %v4883
  %v4896 = vadd.f32 %v4572, %v4884
  %v4897 = vadd.f32 %v4573, %v4885
  %v4898 = vadd.f32 %v4574, %v4886
  %v4899 = vadd.f32 %v4575, %v4887
  %v4900 = vadd.f32 %v4576, %v4888
  %v4901 = vadd.f32 %v4577, %v4889
  %v4902 = vadd.f32 %v4578, %v4890
  %v4903 = vadd.f32 %v4579, %v4891
  %v4904 = vadd.f32 %v4580, %v4892
  %v4905 = vld [vmem:[%s5 + $0x60] sm:$0xff]
  %v4906 = vld [vmem:[%s5 + $0x68] sm:$0xff]
  %v4907 = vld [vmem:[%s5 + $0x70] sm:$0xff]
  %4909 = vset.pattern.permute.xlu0 0
  %4910 = vperm.xlu0 %4909, %v4905
  %v4911 = vpop.permute.xlu0 %4910
  %4914 = vset.pattern.permute.xlu0 0
  %4915 = vperm.xlu0 %4914, %v4906
  %v4916 = vpop.permute.xlu0 %4915
  %4919 = vset.pattern.permute.xlu0 0
  %4920 = vperm.xlu0 %4919, %v4907
  %v4921 = vpop.permute.xlu0 %4920
  %v4923 = vadd.f32 %v4893, %v4911
  %v4924 = vadd.f32 %v4894, %v4911
  %v4925 = vadd.f32 %v4895, %v4911
  %v4926 = vadd.f32 %v4896, %v4911
  %v4927 = vadd.f32 %v4897, %v4916
  %v4928 = vadd.f32 %v4898, %v4916
  %v4929 = vadd.f32 %v4899, %v4916
  %v4930 = vadd.f32 %v4900, %v4916
  %v4931 = vadd.f32 %v4901, %v4921
  %v4932 = vadd.f32 %v4902, %v4921
  %v4933 = vadd.f32 %v4903, %v4921
  %v4934 = vadd.f32 %v4904, %v4921
  %v4935 = vmax.f32 %v4923, 0.0
  %v4936 = vmax.f32 %v4924, 0.0
  %v4937 = vmax.f32 %v4925, 0.0
  %v4938 = vmax.f32 %v4926, 0.0
  %v4939 = vmax.f32 %v4927, 0.0
  %v4940 = vmax.f32 %v4928, 0.0
  %v4941 = vmax.f32 %v4929, 0.0
  %v4942 = vmax.f32 %v4930, 0.0
  %v4943 = vmax.f32 %v4931, 0.0
  %v4944 = vmax.f32 %v4932, 0.0
  %v4945 = vmax.f32 %v4933, 0.0
  %v4946 = vmax.f32 %v4934, 0.0
  %4947 = vrot.lane.b32.xlu0 %v4935, 17
  %v4948 = vpop.permute.xlu0 %4947
  %4949 = vrot.lane.b32.xlu0 %v4939, 17
  %v4950 = vpop.permute.xlu0 %4949
  %4951 = vrot.lane.b32.xlu0 %v4943, 17
  %v4952 = vpop.permute.xlu0 %4951
  %4953 = vrot.lane.b32.xlu0 %v4936, 17
  %v4954 = vpop.permute.xlu0 %4953
  %4955 = vrot.lane.b32.xlu0 %v4940, 17
  %v4956 = vpop.permute.xlu0 %4955
  %4957 = vrot.lane.b32.xlu0 %v4944, 17
  %v4958 = vpop.permute.xlu0 %4957
  %4959 = vrot.lane.b32.xlu0 %v4937, 17
  %v4960 = vpop.permute.xlu0 %4959
  %4961 = vrot.lane.b32.xlu0 %v4941, 17
  %v4962 = vpop.permute.xlu0 %4961
  %4963 = vrot.lane.b32.xlu0 %v4945, 17
  %v4964 = vpop.permute.xlu0 %4963
  %4965 = vrot.lane.b32.xlu0 %v4938, 17
  %v4966 = vpop.permute.xlu0 %4965
  %4967 = vrot.lane.b32.xlu0 %v4942, 17
  %v4968 = vpop.permute.xlu0 %4967
  %4969 = vrot.lane.b32.xlu0 %v4946, 17
  %v4970 = vpop.permute.xlu0 %4969
  %v4971 = vsel %vm46, %v4960, %v4966
  %v4972 = vsel %vm46, %v4962, %v4968
  %v4973 = vsel %vm46, %v4964, %v4970
  %v4974 = vsel %vm46, %v4954, %v4960
  %v4975 = vsel %vm46, %v4956, %v4962
  %v4976 = vsel %vm46, %v4958, %v4964
  %v4977 = vsel %vm46, %v4948, %v4954
  %v4978 = vsel %vm46, %v4950, %v4956
  %v4979 = vsel %vm46, %v4952, %v4958
  %v4980 = vsel %vm46, %v4966, %v4948
  %v4981 = vsel %vm46, %v4968, %v4950
  %v4982 = vsel %vm46, %v4970, %v4952
  %v4983 = vmul.f32 %v4980, %v2457
  %v4984 = vmul.f32 %v4977, %v2458
  %v4985 = vmul.f32 %v4974, %v2459
  %v4986 = vmul.f32 %v4971, %v2460
  %v4987 = vmul.f32 %v4981, %v2461
  %v4988 = vmul.f32 %v4978, %v2462
  %v4989 = vmul.f32 %v4975, %v2463
  %v4990 = vmul.f32 %v4972, %v2464
  %v4991 = vmul.f32 %v4982, %v2465
  %v4992 = vmul.f32 %v4979, %v2466
  %v4993 = vmul.f32 %v4976, %v2467
  %v4994 = vmul.f32 %v4973, %v2468
  %v4995 = vld [vmem:[%s4] sm:$0xf]
  %v4996 = vld [vmem:[%s4 + $0x4] sm:$0xf]
  %v4997 = vld [vmem:[%s4 + $0x8] sm:$0xf]
  %v4998 = vld [vmem:[%s4 + $0xc] sm:$0xf]
  %v4999 = vpack.c.bf16 %v4987, %v4983
  %v5000 = vpack.c.bf16 %v4988, %v4984
  %v5001 = vpack.c.bf16 %v4989, %v4985
  %v5002 = vpack.c.bf16 %v4990, %v4986
  %v5003 = vpack.c.bf16 %v4991, %v4991
  %v5004 = vpack.c.bf16 %v4992, %v4992
  %v5005 = vpack.c.bf16 %v4993, %v4993
  %v5006 = vpack.c.bf16 %v4994, %v4994
  %5007 = vrot.lane.b32.xlu0 %v4935, 16
  %v5008 = vpop.permute.xlu0 %5007
  %5009 = vrot.lane.b32.xlu0 %v4939, 16
  %v5010 = vpop.permute.xlu0 %5009
  %5011 = vrot.lane.b32.xlu0 %v4943, 16
  %v5012 = vpop.permute.xlu0 %5011
  %5013 = vrot.lane.b32.xlu0 %v4936, 16
  %v5014 = vpop.permute.xlu0 %5013
  %5015 = vrot.lane.b32.xlu0 %v4940, 16
  %v5016 = vpop.permute.xlu0 %5015
  %5017 = vrot.lane.b32.xlu0 %v4944, 16
  %v5018 = vpop.permute.xlu0 %5017
  %5019 = vrot.lane.b32.xlu0 %v4937, 16
  %v5020 = vpop.permute.xlu0 %5019
  %5021 = vrot.lane.b32.xlu0 %v4941, 16
  %v5022 = vpop.permute.xlu0 %5021
  %5023 = vrot.lane.b32.xlu0 %v4945, 16
  %v5024 = vpop.permute.xlu0 %5023
  %5025 = vrot.lane.b32.xlu0 %v4938, 16
  %v5026 = vpop.permute.xlu0 %5025
  %5027 = vrot.lane.b32.xlu0 %v4942, 16
  %v5028 = vpop.permute.xlu0 %5027
  %5029 = vrot.lane.b32.xlu0 %v4946, 16
  %v5030 = vpop.permute.xlu0 %5029
  %v5031 = vsel %vm67, %v5020, %v5026
  %v5032 = vsel %vm67, %v5022, %v5028
  %v5033 = vsel %vm67, %v5024, %v5030
  %v5034 = vsel %vm67, %v5014, %v5020
  %v5035 = vsel %vm67, %v5016, %v5022
  %v5036 = vsel %vm67, %v5018, %v5024
  %v5037 = vsel %vm67, %v5008, %v5014
  %v5038 = vsel %vm67, %v5010, %v5016
  %v5039 = vsel %vm67, %v5012, %v5018
  %v5040 = vsel %vm67, %v5026, %v5008
  %v5041 = vsel %vm67, %v5028, %v5010
  %v5042 = vsel %vm67, %v5030, %v5012
  %v5043 = vmul.f32 %v5040, %v2769
  %v5044 = vmul.f32 %v5037, %v2770
  %v5045 = vmul.f32 %v5034, %v2771
  %v5046 = vmul.f32 %v5031, %v2772
  %v5047 = vmul.f32 %v5041, %v2773
  %v5048 = vmul.f32 %v5038, %v2774
  %v5049 = vmul.f32 %v5035, %v2775
  %v5050 = vmul.f32 %v5032, %v2776
  %v5051 = vmul.f32 %v5042, %v2777
  %v5052 = vmul.f32 %v5039, %v2778
  %v5053 = vmul.f32 %v5036, %v2779
  %v5054 = vmul.f32 %v5033, %v2780
  %s5055 = scalar_lea.vmem %s4, 16
  %v5056 = vld [vmem:[%s5055] sm:$0xf]
  %v5057 = vld [vmem:[%s5055 + $0x4] sm:$0xf]
  %v5058 = vld [vmem:[%s5055 + $0x8] sm:$0xf]
  %v5059 = vld [vmem:[%s5055 + $0xc] sm:$0xf]
  %v5060 = vpack.c.bf16 %v5047, %v5043
  %v5061 = vpack.c.bf16 %v5048, %v5044
  %v5062 = vpack.c.bf16 %v5049, %v5045
  %v5063 = vpack.c.bf16 %v5050, %v5046
  %v5064 = vpack.c.bf16 %v5051, %v5051
  %v5065 = vpack.c.bf16 %v5052, %v5052
  %v5066 = vpack.c.bf16 %v5053, %v5053
  %v5067 = vpack.c.bf16 %v5054, %v5054
  %v5072 = vunpack.c.l.b16 %v5056
  %v5073 = vunpack.c.l.b16 %v5057
  %v5074 = vunpack.c.l.b16 %v5058
  %v5075 = vunpack.c.l.b16 %v5059
  %v5076 = vpack.c.b16 %v5073, %v5072
  %v5077 = vpack.c.b16 %v5075, %v5074
  %v5079 = vsel %vm182, %v5076, 0
  %v5082 = vsel %vm182, %v5077, 0
  %v5085 = vsel %vm189, %v5064, 0
  %v5088 = vsel %vm189, %v5065, 0
  %v5091 = vsel %vm189, %v5066, 0
  %v5094 = vsel %vm189, %v5067, 0
  %5096 = vmatprep.subr.bf16.mxu0 0
  %5097 = vmatpush1.bf16.msra.mxu0 0
  %5098 = vmatprep.subr.bf16.mxu0 0
  %5099 = vmatpush1.bf16.msra.mxu0 0
  %5100 = vmatprep.subr.bf16.mxu0 0
  %5101 = vmatpush1.bf16.msra.mxu0 0
  %5102 = vmatprep.subr.bf16.mxu0 0
  %5103 = vmatpush1.bf16.msra.mxu0 0
  %5104 = vmatprep.subr.bf16.mxu0 0
  %5105 = vmatpush1.bf16.msra.mxu0 0
  %5106 = vmatprep.subr.bf16.mxu0 0
  %5107 = vmatpush1.bf16.msra.mxu0 0
  %5108 = vmatprep.subr.bf16.mxu0 %v5088
  %5109 = vmatpush1.bf16.msra.mxu0 %v5085
  %5110 = vmatprep.subr.bf16.mxu0 %v5061
  %5111 = vmatpush1.bf16.msra.mxu0 %v5060
  %5112 = vmatprep.subr.bf16.mxu0 0
  %5113 = vmatpush2.bf16.msra.mxu0 0
  %5114 = vmatprep.subr.bf16.mxu0 0
  %5115 = vmatpush2.bf16.msra.mxu0 0
  %5116 = vmatprep.subr.bf16.mxu0 0
  %5117 = vmatpush2.bf16.msra.mxu0 0
  %5118 = vmatprep.subr.bf16.mxu0 0
  %5119 = vmatpush2.bf16.msra.mxu0 0
  %5120 = vmatprep.subr.bf16.mxu0 0
  %5121 = vmatpush2.bf16.msra.mxu0 0
  %5122 = vmatprep.subr.bf16.mxu0 0
  %5123 = vmatpush2.bf16.msra.mxu0 0
  %5124 = vmatprep.subr.bf16.mxu0 0
  %5125 = vmatpush2.bf16.msra.mxu0 0
  %5126 = vmatprep.subr.bf16.mxu0 0
  %5127 = vmatpush2.bf16.msra.mxu0 0
  %5128 = vmatprep.mubr.bf16.mxu0 0
  %5129 = vmatmul.mubr.bf16.gmra.mxu0 %v5079
  %v5130 = vpop.f32.mrf.mxu0
  %v5131 = vadd.f32 0.0, %v5130
  %v5132 = vpop.f32.mrf.mxu0
  %v5133 = vadd.f32 0.0, %v5132
  %v5134 = vpop.f32.mrf.mxu0
  %v5135 = vadd.f32 0.0, %v5134
  %v5136 = vpop.f32.mrf.mxu0
  %v5137 = vadd.f32 0.0, %v5136
  %5138 = vmatprep.mubr.bf16.mxu0 0
  %5139 = vmatmul.mubr.bf16.gmra.mxu0 %v5082
  %v5140 = vpop.f32.mrf.mxu0
  %v5141 = vadd.f32 0.0, %v5140
  %v5142 = vpop.f32.mrf.mxu0
  %v5143 = vadd.f32 0.0, %v5142
  %v5144 = vpop.f32.mrf.mxu0
  %v5145 = vadd.f32 0.0, %v5144
  %v5146 = vpop.f32.mrf.mxu0
  %v5147 = vadd.f32 0.0, %v5146
  %5148 = vdwg.mxu0
  %5149 = vmatprep.subr.bf16.mxu0 0
  %5150 = vmatpush1.bf16.msra.mxu0 0
  %5151 = vmatprep.subr.bf16.mxu0 0
  %5152 = vmatpush1.bf16.msra.mxu0 0
  %5153 = vmatprep.subr.bf16.mxu0 0
  %5154 = vmatpush1.bf16.msra.mxu0 0
  %5155 = vmatprep.subr.bf16.mxu0 0
  %5156 = vmatpush1.bf16.msra.mxu0 0
  %5157 = vmatprep.subr.bf16.mxu0 0
  %5158 = vmatpush1.bf16.msra.mxu0 0
  %5159 = vmatprep.subr.bf16.mxu0 0
  %5160 = vmatpush1.bf16.msra.mxu0 0
  %5161 = vmatprep.subr.bf16.mxu0 %v5094
  %5162 = vmatpush1.bf16.msra.mxu0 %v5091
  %5163 = vmatprep.subr.bf16.mxu0 %v5063
  %5164 = vmatpush1.bf16.msra.mxu0 %v5062
  %5165 = vmatprep.subr.bf16.mxu0 0
  %5166 = vmatpush2.bf16.msra.mxu0 0
  %5167 = vmatprep.subr.bf16.mxu0 0
  %5168 = vmatpush2.bf16.msra.mxu0 0
  %5169 = vmatprep.subr.bf16.mxu0 0
  %5170 = vmatpush2.bf16.msra.mxu0 0
  %5171 = vmatprep.subr.bf16.mxu0 0
  %5172 = vmatpush2.bf16.msra.mxu0 0
  %5173 = vmatprep.subr.bf16.mxu0 0
  %5174 = vmatpush2.bf16.msra.mxu0 0
  %5175 = vmatprep.subr.bf16.mxu0 0
  %5176 = vmatpush2.bf16.msra.mxu0 0
  %5177 = vmatprep.subr.bf16.mxu0 0
  %5178 = vmatpush2.bf16.msra.mxu0 0
  %5179 = vmatprep.subr.bf16.mxu0 0
  %5180 = vmatpush2.bf16.msra.mxu0 0
  %5181 = vmatprep.mubr.bf16.mxu0 0
  %5182 = vmatmul.mubr.bf16.gmra.mxu0 %v5079
  %v5183 = vpop.f32.mrf.mxu0
  %v5184 = vadd.f32 0.0, %v5183
  %v5185 = vpop.f32.mrf.mxu0
  %v5186 = vadd.f32 0.0, %v5185
  %v5187 = vpop.f32.mrf.mxu0
  %v5188 = vadd.f32 0.0, %v5187
  %v5189 = vpop.f32.mrf.mxu0
  %v5190 = vadd.f32 0.0, %v5189
  %5191 = vmatprep.mubr.bf16.mxu0 0
  %5192 = vmatmul.mubr.bf16.gmra.mxu0 %v5082
  %v5193 = vpop.f32.mrf.mxu0
  %v5194 = vadd.f32 0.0, %v5193
  %v5195 = vpop.f32.mrf.mxu0
  %v5196 = vadd.f32 0.0, %v5195
  %v5197 = vpop.f32.mrf.mxu0
  %v5198 = vadd.f32 0.0, %v5197
  %v5199 = vpop.f32.mrf.mxu0
  %v5200 = vadd.f32 0.0, %v5199
  %5201 = vdwg.mxu0
  %v5206 = vunpack.c.l.b16 %v4995
  %v5207 = vunpack.c.l.b16 %v4996
  %v5208 = vunpack.c.l.b16 %v4997
  %v5209 = vunpack.c.l.b16 %v4998
  %v5210 = vpack.c.b16 %v5207, %v5206
  %v5211 = vpack.c.b16 %v5209, %v5208
  %v5213 = vsel %vm182, %v5210, 0
  %v5216 = vsel %vm182, %v5211, 0
  %v5219 = vsel %vm189, %v5003, 0
  %v5222 = vsel %vm189, %v5004, 0
  %v5225 = vsel %vm189, %v5005, 0
  %v5228 = vsel %vm189, %v5006, 0
  %5230 = vmatprep.subr.bf16.mxu0 0
  %5231 = vmatpush1.bf16.msra.mxu0 0
  %5232 = vmatprep.subr.bf16.mxu0 0
  %5233 = vmatpush1.bf16.msra.mxu0 0
  %5234 = vmatprep.subr.bf16.mxu0 0
  %5235 = vmatpush1.bf16.msra.mxu0 0
  %5236 = vmatprep.subr.bf16.mxu0 0
  %5237 = vmatpush1.bf16.msra.mxu0 0
  %5238 = vmatprep.subr.bf16.mxu0 0
  %5239 = vmatpush1.bf16.msra.mxu0 0
  %5240 = vmatprep.subr.bf16.mxu0 0
  %5241 = vmatpush1.bf16.msra.mxu0 0
  %5242 = vmatprep.subr.bf16.mxu0 %v5222
  %5243 = vmatpush1.bf16.msra.mxu0 %v5219
  %5244 = vmatprep.subr.bf16.mxu0 %v5000
  %5245 = vmatpush1.bf16.msra.mxu0 %v4999
  %5246 = vmatprep.subr.bf16.mxu0 0
  %5247 = vmatpush2.bf16.msra.mxu0 0
  %5248 = vmatprep.subr.bf16.mxu0 0
  %5249 = vmatpush2.bf16.msra.mxu0 0
  %5250 = vmatprep.subr.bf16.mxu0 0
  %5251 = vmatpush2.bf16.msra.mxu0 0
  %5252 = vmatprep.subr.bf16.mxu0 0
  %5253 = vmatpush2.bf16.msra.mxu0 0
  %5254 = vmatprep.subr.bf16.mxu0 0
  %5255 = vmatpush2.bf16.msra.mxu0 0
  %5256 = vmatprep.subr.bf16.mxu0 0
  %5257 = vmatpush2.bf16.msra.mxu0 0
  %5258 = vmatprep.subr.bf16.mxu0 0
  %5259 = vmatpush2.bf16.msra.mxu0 0
  %5260 = vmatprep.subr.bf16.mxu0 0
  %5261 = vmatpush2.bf16.msra.mxu0 0
  %5262 = vmatprep.mubr.bf16.mxu0 0
  %5263 = vmatmul.mubr.bf16.gmra.mxu0 %v5213
  %v5264 = vpop.f32.mrf.mxu0
  %v5265 = vadd.f32 %v5131, %v5264
  %v5266 = vpop.f32.mrf.mxu0
  %v5267 = vadd.f32 %v5133, %v5266
  %v5268 = vpop.f32.mrf.mxu0
  %v5269 = vadd.f32 %v5135, %v5268
  %v5270 = vpop.f32.mrf.mxu0
  %v5271 = vadd.f32 %v5137, %v5270
  %5272 = vmatprep.mubr.bf16.mxu0 0
  %5273 = vmatmul.mubr.bf16.gmra.mxu0 %v5216
  %v5274 = vpop.f32.mrf.mxu0
  %v5275 = vadd.f32 %v5141, %v5274
  %v5276 = vpop.f32.mrf.mxu0
  %v5277 = vadd.f32 %v5143, %v5276
  %v5278 = vpop.f32.mrf.mxu0
  %v5279 = vadd.f32 %v5145, %v5278
  %v5280 = vpop.f32.mrf.mxu0
  %v5281 = vadd.f32 %v5147, %v5280
  %5282 = vdwg.mxu0
  %5283 = vmatprep.subr.bf16.mxu0 0
  %5284 = vmatpush1.bf16.msra.mxu0 0
  %5285 = vmatprep.subr.bf16.mxu0 0
  %5286 = vmatpush1.bf16.msra.mxu0 0
  %5287 = vmatprep.subr.bf16.mxu0 0
  %5288 = vmatpush1.bf16.msra.mxu0 0
  %5289 = vmatprep.subr.bf16.mxu0 0
  %5290 = vmatpush1.bf16.msra.mxu0 0
  %5291 = vmatprep.subr.bf16.mxu0 0
  %5292 = vmatpush1.bf16.msra.mxu0 0
  %5293 = vmatprep.subr.bf16.mxu0 0
  %5294 = vmatpush1.bf16.msra.mxu0 0
  %5295 = vmatprep.subr.bf16.mxu0 %v5228
  %5296 = vmatpush1.bf16.msra.mxu0 %v5225
  %5297 = vmatprep.subr.bf16.mxu0 %v5002
  %5298 = vmatpush1.bf16.msra.mxu0 %v5001
  %5299 = vmatprep.subr.bf16.mxu0 0
  %5300 = vmatpush2.bf16.msra.mxu0 0
  %5301 = vmatprep.subr.bf16.mxu0 0
  %5302 = vmatpush2.bf16.msra.mxu0 0
  %5303 = vmatprep.subr.bf16.mxu0 0
  %5304 = vmatpush2.bf16.msra.mxu0 0
  %5305 = vmatprep.subr.bf16.mxu0 0
  %5306 = vmatpush2.bf16.msra.mxu0 0
  %5307 = vmatprep.subr.bf16.mxu0 0
  %5308 = vmatpush2.bf16.msra.mxu0 0
  %5309 = vmatprep.subr.bf16.mxu0 0
  %5310 = vmatpush2.bf16.msra.mxu0 0
  %5311 = vmatprep.subr.bf16.mxu0 0
  %5312 = vmatpush2.bf16.msra.mxu0 0
  %5313 = vmatprep.subr.bf16.mxu0 0
  %5314 = vmatpush2.bf16.msra.mxu0 0
  %5315 = vmatprep.mubr.bf16.mxu0 0
  %5316 = vmatmul.mubr.bf16.gmra.mxu0 %v5213
  %v5317 = vpop.f32.mrf.mxu0
  %v5318 = vadd.f32 %v5184, %v5317
  %v5319 = vpop.f32.mrf.mxu0
  %v5320 = vadd.f32 %v5186, %v5319
  %v5321 = vpop.f32.mrf.mxu0
  %v5322 = vadd.f32 %v5188, %v5321
  %v5323 = vpop.f32.mrf.mxu0
  %v5324 = vadd.f32 %v5190, %v5323
  %5325 = vmatprep.mubr.bf16.mxu0 0
  %5326 = vmatmul.mubr.bf16.gmra.mxu0 %v5216
  %v5327 = vpop.f32.mrf.mxu0
  %v5328 = vadd.f32 %v5194, %v5327
  %v5329 = vpop.f32.mrf.mxu0
  %v5330 = vadd.f32 %v5196, %v5329
  %v5331 = vpop.f32.mrf.mxu0
  %v5332 = vadd.f32 %v5198, %v5331
  %v5333 = vpop.f32.mrf.mxu0
  %v5334 = vadd.f32 %v5200, %v5333
  %5335 = vdwg.mxu0
  %5336 = vrot.lane.b32.xlu0 %v4935, 15
  %v5337 = vpop.permute.xlu0 %5336
  %5338 = vrot.lane.b32.xlu0 %v4939, 15
  %v5339 = vpop.permute.xlu0 %5338
  %5340 = vrot.lane.b32.xlu0 %v4943, 15
  %v5341 = vpop.permute.xlu0 %5340
  %5342 = vrot.lane.b32.xlu0 %v4936, 15
  %v5343 = vpop.permute.xlu0 %5342
  %5344 = vrot.lane.b32.xlu0 %v4940, 15
  %v5345 = vpop.permute.xlu0 %5344
  %5346 = vrot.lane.b32.xlu0 %v4944, 15
  %v5347 = vpop.permute.xlu0 %5346
  %5348 = vrot.lane.b32.xlu0 %v4937, 15
  %v5349 = vpop.permute.xlu0 %5348
  %5350 = vrot.lane.b32.xlu0 %v4941, 15
  %v5351 = vpop.permute.xlu0 %5350
  %5352 = vrot.lane.b32.xlu0 %v4945, 15
  %v5353 = vpop.permute.xlu0 %5352
  %5354 = vrot.lane.b32.xlu0 %v4938, 15
  %v5355 = vpop.permute.xlu0 %5354
  %5356 = vrot.lane.b32.xlu0 %v4942, 15
  %v5357 = vpop.permute.xlu0 %5356
  %5358 = vrot.lane.b32.xlu0 %v4946, 15
  %v5359 = vpop.permute.xlu0 %5358
  %v5360 = vsel %vm89, %v5349, %v5355
  %v5361 = vsel %vm89, %v5351, %v5357
  %v5362 = vsel %vm89, %v5353, %v5359
  %v5363 = vsel %vm89, %v5343, %v5349
  %v5364 = vsel %vm89, %v5345, %v5351
  %v5365 = vsel %vm89, %v5347, %v5353
  %v5366 = vsel %vm89, %v5337, %v5343
  %v5367 = vsel %vm89, %v5339, %v5345
  %v5368 = vsel %vm89, %v5341, %v5347
  %v5369 = vsel %vm89, %v5355, %v5337
  %v5370 = vsel %vm89, %v5357, %v5339
  %v5371 = vsel %vm89, %v5359, %v5341
  %v5372 = vmul.f32 %v5369, %v3093
  %v5373 = vmul.f32 %v5366, %v3094
  %v5374 = vmul.f32 %v5363, %v3095
  %v5375 = vmul.f32 %v5360, %v3096
  %v5376 = vmul.f32 %v5370, %v3097
  %v5377 = vmul.f32 %v5367, %v3098
  %v5378 = vmul.f32 %v5364, %v3099
  %v5379 = vmul.f32 %v5361, %v3100
  %v5380 = vmul.f32 %v5371, %v3101
  %v5381 = vmul.f32 %v5368, %v3102
  %v5382 = vmul.f32 %v5365, %v3103
  %v5383 = vmul.f32 %v5362, %v3104
  %s5384 = scalar_lea.vmem %s4, 32
  %v5385 = vld [vmem:[%s5384] sm:$0xf]
  %v5386 = vld [vmem:[%s5384 + $0x4] sm:$0xf]
  %v5387 = vld [vmem:[%s5384 + $0x8] sm:$0xf]
  %v5388 = vld [vmem:[%s5384 + $0xc] sm:$0xf]
  %v5389 = vpack.c.bf16 %v5376, %v5372
  %v5390 = vpack.c.bf16 %v5377, %v5373
  %v5391 = vpack.c.bf16 %v5378, %v5374
  %v5392 = vpack.c.bf16 %v5379, %v5375
  %v5393 = vpack.c.bf16 %v5380, %v5380
  %v5394 = vpack.c.bf16 %v5381, %v5381
  %v5395 = vpack.c.bf16 %v5382, %v5382
  %v5396 = vpack.c.bf16 %v5383, %v5383
  %v5401 = vunpack.c.l.b16 %v5385
  %v5402 = vunpack.c.l.b16 %v5386
  %v5403 = vunpack.c.l.b16 %v5387
  %v5404 = vunpack.c.l.b16 %v5388
  %v5405 = vpack.c.b16 %v5402, %v5401
  %v5406 = vpack.c.b16 %v5404, %v5403
  %v5408 = vsel %vm182, %v5405, 0
  %v5411 = vsel %vm182, %v5406, 0
  %v5414 = vsel %vm189, %v5393, 0
  %v5417 = vsel %vm189, %v5394, 0
  %v5420 = vsel %vm189, %v5395, 0
  %v5423 = vsel %vm189, %v5396, 0
  %5425 = vmatprep.subr.bf16.mxu0 0
  %5426 = vmatpush1.bf16.msra.mxu0 0
  %5427 = vmatprep.subr.bf16.mxu0 0
  %5428 = vmatpush1.bf16.msra.mxu0 0
  %5429 = vmatprep.subr.bf16.mxu0 0
  %5430 = vmatpush1.bf16.msra.mxu0 0
  %5431 = vmatprep.subr.bf16.mxu0 0
  %5432 = vmatpush1.bf16.msra.mxu0 0
  %5433 = vmatprep.subr.bf16.mxu0 0
  %5434 = vmatpush1.bf16.msra.mxu0 0
  %5435 = vmatprep.subr.bf16.mxu0 0
  %5436 = vmatpush1.bf16.msra.mxu0 0
  %5437 = vmatprep.subr.bf16.mxu0 %v5417
  %5438 = vmatpush1.bf16.msra.mxu0 %v5414
  %5439 = vmatprep.subr.bf16.mxu0 %v5390
  %5440 = vmatpush1.bf16.msra.mxu0 %v5389
  %5441 = vmatprep.subr.bf16.mxu0 0
  %5442 = vmatpush2.bf16.msra.mxu0 0
  %5443 = vmatprep.subr.bf16.mxu0 0
  %5444 = vmatpush2.bf16.msra.mxu0 0
  %5445 = vmatprep.subr.bf16.mxu0 0
  %5446 = vmatpush2.bf16.msra.mxu0 0
  %5447 = vmatprep.subr.bf16.mxu0 0
  %5448 = vmatpush2.bf16.msra.mxu0 0
  %5449 = vmatprep.subr.bf16.mxu0 0
  %5450 = vmatpush2.bf16.msra.mxu0 0
  %5451 = vmatprep.subr.bf16.mxu0 0
  %5452 = vmatpush2.bf16.msra.mxu0 0
  %5453 = vmatprep.subr.bf16.mxu0 0
  %5454 = vmatpush2.bf16.msra.mxu0 0
  %5455 = vmatprep.subr.bf16.mxu0 0
  %5456 = vmatpush2.bf16.msra.mxu0 0
  %5457 = vmatprep.mubr.bf16.mxu0 0
  %5458 = vmatmul.mubr.bf16.gmra.mxu0 %v5408
  %v5459 = vpop.f32.mrf.mxu0
  %v5460 = vadd.f32 0.0, %v5459
  %v5461 = vpop.f32.mrf.mxu0
  %v5462 = vadd.f32 0.0, %v5461
  %v5463 = vpop.f32.mrf.mxu0
  %v5464 = vadd.f32 0.0, %v5463
  %v5465 = vpop.f32.mrf.mxu0
  %v5466 = vadd.f32 0.0, %v5465
  %5467 = vmatprep.mubr.bf16.mxu0 0
  %5468 = vmatmul.mubr.bf16.gmra.mxu0 %v5411
  %v5469 = vpop.f32.mrf.mxu0
  %v5470 = vadd.f32 0.0, %v5469
  %v5471 = vpop.f32.mrf.mxu0
  %v5472 = vadd.f32 0.0, %v5471
  %v5473 = vpop.f32.mrf.mxu0
  %v5474 = vadd.f32 0.0, %v5473
  %v5475 = vpop.f32.mrf.mxu0
  %v5476 = vadd.f32 0.0, %v5475
  %5477 = vdwg.mxu0
  %5478 = vmatprep.subr.bf16.mxu0 0
  %5479 = vmatpush1.bf16.msra.mxu0 0
  %5480 = vmatprep.subr.bf16.mxu0 0
  %5481 = vmatpush1.bf16.msra.mxu0 0
  %5482 = vmatprep.subr.bf16.mxu0 0
  %5483 = vmatpush1.bf16.msra.mxu0 0
  %5484 = vmatprep.subr.bf16.mxu0 0
  %5485 = vmatpush1.bf16.msra.mxu0 0
  %5486 = vmatprep.subr.bf16.mxu0 0
  %5487 = vmatpush1.bf16.msra.mxu0 0
  %5488 = vmatprep.subr.bf16.mxu0 0
  %5489 = vmatpush1.bf16.msra.mxu0 0
  %5490 = vmatprep.subr.bf16.mxu0 %v5423
  %5491 = vmatpush1.bf16.msra.mxu0 %v5420
  %5492 = vmatprep.subr.bf16.mxu0 %v5392
  %5493 = vmatpush1.bf16.msra.mxu0 %v5391
  %5494 = vmatprep.subr.bf16.mxu0 0
  %5495 = vmatpush2.bf16.msra.mxu0 0
  %5496 = vmatprep.subr.bf16.mxu0 0
  %5497 = vmatpush2.bf16.msra.mxu0 0
  %5498 = vmatprep.subr.bf16.mxu0 0
  %5499 = vmatpush2.bf16.msra.mxu0 0
  %5500 = vmatprep.subr.bf16.mxu0 0
  %5501 = vmatpush2.bf16.msra.mxu0 0
  %5502 = vmatprep.subr.bf16.mxu0 0
  %5503 = vmatpush2.bf16.msra.mxu0 0
  %5504 = vmatprep.subr.bf16.mxu0 0
  %5505 = vmatpush2.bf16.msra.mxu0 0
  %5506 = vmatprep.subr.bf16.mxu0 0
  %5507 = vmatpush2.bf16.msra.mxu0 0
  %5508 = vmatprep.subr.bf16.mxu0 0
  %5509 = vmatpush2.bf16.msra.mxu0 0
  %5510 = vmatprep.mubr.bf16.mxu0 0
  %5511 = vmatmul.mubr.bf16.gmra.mxu0 %v5408
  %v5512 = vpop.f32.mrf.mxu0
  %v5513 = vadd.f32 0.0, %v5512
  %v5514 = vpop.f32.mrf.mxu0
  %v5515 = vadd.f32 0.0, %v5514
  %v5516 = vpop.f32.mrf.mxu0
  %v5517 = vadd.f32 0.0, %v5516
  %v5518 = vpop.f32.mrf.mxu0
  %v5519 = vadd.f32 0.0, %v5518
  %5520 = vmatprep.mubr.bf16.mxu0 0
  %5521 = vmatmul.mubr.bf16.gmra.mxu0 %v5411
  %v5522 = vpop.f32.mrf.mxu0
  %v5523 = vadd.f32 0.0, %v5522
  %v5524 = vpop.f32.mrf.mxu0
  %v5525 = vadd.f32 0.0, %v5524
  %v5526 = vpop.f32.mrf.mxu0
  %v5527 = vadd.f32 0.0, %v5526
  %v5528 = vpop.f32.mrf.mxu0
  %v5529 = vadd.f32 0.0, %v5528
  %5530 = vdwg.mxu0
  %v5531 = vadd.f32 %v5265, %v5460
  %v5532 = vadd.f32 %v5267, %v5462
  %v5533 = vadd.f32 %v5318, %v5513
  %v5534 = vadd.f32 %v5320, %v5515
  %v5535 = vadd.f32 %v5269, %v5464
  %v5536 = vadd.f32 %v5271, %v5466
  %v5537 = vadd.f32 %v5322, %v5517
  %v5538 = vadd.f32 %v5324, %v5519
  %v5539 = vadd.f32 %v5275, %v5470
  %v5540 = vadd.f32 %v5277, %v5472
  %v5541 = vadd.f32 %v5328, %v5523
  %v5542 = vadd.f32 %v5330, %v5525
  %v5543 = vadd.f32 %v5279, %v5474
  %v5544 = vadd.f32 %v5281, %v5476
  %v5545 = vadd.f32 %v5332, %v5527
  %v5546 = vadd.f32 %v5334, %v5529
  %5547 = vrot.lane.b32.xlu0 %v4935, 1
  %v5548 = vpop.permute.xlu0 %5547
  %5549 = vrot.lane.b32.xlu0 %v4939, 1
  %v5550 = vpop.permute.xlu0 %5549
  %5551 = vrot.lane.b32.xlu0 %v4943, 1
  %v5552 = vpop.permute.xlu0 %5551
  %5553 = vrot.lane.b32.xlu0 %v4936, 1
  %v5554 = vpop.permute.xlu0 %5553
  %5555 = vrot.lane.b32.xlu0 %v4940, 1
  %v5556 = vpop.permute.xlu0 %5555
  %5557 = vrot.lane.b32.xlu0 %v4944, 1
  %v5558 = vpop.permute.xlu0 %5557
  %5559 = vrot.lane.b32.xlu0 %v4937, 1
  %v5560 = vpop.permute.xlu0 %5559
  %5561 = vrot.lane.b32.xlu0 %v4941, 1
  %v5562 = vpop.permute.xlu0 %5561
  %5563 = vrot.lane.b32.xlu0 %v4945, 1
  %v5564 = vpop.permute.xlu0 %5563
  %5565 = vrot.lane.b32.xlu0 %v4938, 1
  %v5566 = vpop.permute.xlu0 %5565
  %5567 = vrot.lane.b32.xlu0 %v4942, 1
  %v5568 = vpop.permute.xlu0 %5567
  %5569 = vrot.lane.b32.xlu0 %v4946, 1
  %v5570 = vpop.permute.xlu0 %5569
  %v5571 = vsel %vm123, %v5560, %v5566
  %v5572 = vsel %vm123, %v5562, %v5568
  %v5573 = vsel %vm123, %v5564, %v5570
  %v5574 = vsel %vm123, %v5554, %v5560
  %v5575 = vsel %vm123, %v5556, %v5562
  %v5576 = vsel %vm123, %v5558, %v5564
  %v5577 = vsel %vm123, %v5548, %v5554
  %v5578 = vsel %vm123, %v5550, %v5556
  %v5579 = vsel %vm123, %v5552, %v5558
  %v5580 = vsel %vm123, %v5566, %v5548
  %v5581 = vsel %vm123, %v5568, %v5550
  %v5582 = vsel %vm123, %v5570, %v5552
  %v5583 = vmul.f32 %v5580, %v3417
  %v5584 = vmul.f32 %v5577, %v3418
  %v5585 = vmul.f32 %v5574, %v3419
  %v5586 = vmul.f32 %v5571, %v3420
  %v5587 = vmul.f32 %v5581, %v3421
  %v5588 = vmul.f32 %v5578, %v3422
  %v5589 = vmul.f32 %v5575, %v3423
  %v5590 = vmul.f32 %v5572, %v3424
  %v5591 = vmul.f32 %v5582, %v3425
  %v5592 = vmul.f32 %v5579, %v3426
  %v5593 = vmul.f32 %v5576, %v3427
  %v5594 = vmul.f32 %v5573, %v3428
  %s5595 = scalar_lea.vmem %s4, 48
  %v5596 = vld [vmem:[%s5595] sm:$0xf]
  %v5597 = vld [vmem:[%s5595 + $0x4] sm:$0xf]
  %v5598 = vld [vmem:[%s5595 + $0x8] sm:$0xf]
  %v5599 = vld [vmem:[%s5595 + $0xc] sm:$0xf]
  %v5600 = vpack.c.bf16 %v5587, %v5583
  %v5601 = vpack.c.bf16 %v5588, %v5584
  %v5602 = vpack.c.bf16 %v5589, %v5585
  %v5603 = vpack.c.bf16 %v5590, %v5586
  %v5604 = vpack.c.bf16 %v5591, %v5591
  %v5605 = vpack.c.bf16 %v5592, %v5592
  %v5606 = vpack.c.bf16 %v5593, %v5593
  %v5607 = vpack.c.bf16 %v5594, %v5594
  %v5612 = vunpack.c.l.b16 %v5596
  %v5613 = vunpack.c.l.b16 %v5597
  %v5614 = vunpack.c.l.b16 %v5598
  %v5615 = vunpack.c.l.b16 %v5599
  %v5616 = vpack.c.b16 %v5613, %v5612
  %v5617 = vpack.c.b16 %v5615, %v5614
  %v5619 = vsel %vm182, %v5616, 0
  %v5622 = vsel %vm182, %v5617, 0
  %v5625 = vsel %vm189, %v5604, 0
  %v5628 = vsel %vm189, %v5605, 0
  %v5631 = vsel %vm189, %v5606, 0
  %v5634 = vsel %vm189, %v5607, 0
  %5636 = vmatprep.subr.bf16.mxu0 0
  %5637 = vmatpush1.bf16.msra.mxu0 0
  %5638 = vmatprep.subr.bf16.mxu0 0
  %5639 = vmatpush1.bf16.msra.mxu0 0
  %5640 = vmatprep.subr.bf16.mxu0 0
  %5641 = vmatpush1.bf16.msra.mxu0 0
  %5642 = vmatprep.subr.bf16.mxu0 0
  %5643 = vmatpush1.bf16.msra.mxu0 0
  %5644 = vmatprep.subr.bf16.mxu0 0
  %5645 = vmatpush1.bf16.msra.mxu0 0
  %5646 = vmatprep.subr.bf16.mxu0 0
  %5647 = vmatpush1.bf16.msra.mxu0 0
  %5648 = vmatprep.subr.bf16.mxu0 %v5628
  %5649 = vmatpush1.bf16.msra.mxu0 %v5625
  %5650 = vmatprep.subr.bf16.mxu0 %v5601
  %5651 = vmatpush1.bf16.msra.mxu0 %v5600
  %5652 = vmatprep.subr.bf16.mxu0 0
  %5653 = vmatpush2.bf16.msra.mxu0 0
  %5654 = vmatprep.subr.bf16.mxu0 0
  %5655 = vmatpush2.bf16.msra.mxu0 0
  %5656 = vmatprep.subr.bf16.mxu0 0
  %5657 = vmatpush2.bf16.msra.mxu0 0
  %5658 = vmatprep.subr.bf16.mxu0 0
  %5659 = vmatpush2.bf16.msra.mxu0 0
  %5660 = vmatprep.subr.bf16.mxu0 0
  %5661 = vmatpush2.bf16.msra.mxu0 0
  %5662 = vmatprep.subr.bf16.mxu0 0
  %5663 = vmatpush2.bf16.msra.mxu0 0
  %5664 = vmatprep.subr.bf16.mxu0 0
  %5665 = vmatpush2.bf16.msra.mxu0 0
  %5666 = vmatprep.subr.bf16.mxu0 0
  %5667 = vmatpush2.bf16.msra.mxu0 0
  %5668 = vmatprep.mubr.bf16.mxu0 0
  %5669 = vmatmul.mubr.bf16.gmra.mxu0 %v5619
  %v5670 = vpop.f32.mrf.mxu0
  %v5671 = vadd.f32 0.0, %v5670
  %v5672 = vpop.f32.mrf.mxu0
  %v5673 = vadd.f32 0.0, %v5672
  %v5674 = vpop.f32.mrf.mxu0
  %v5675 = vadd.f32 0.0, %v5674
  %v5676 = vpop.f32.mrf.mxu0
  %v5677 = vadd.f32 0.0, %v5676
  %5678 = vmatprep.mubr.bf16.mxu0 0
  %5679 = vmatmul.mubr.bf16.gmra.mxu0 %v5622
  %v5680 = vpop.f32.mrf.mxu0
  %v5681 = vadd.f32 0.0, %v5680
  %v5682 = vpop.f32.mrf.mxu0
  %v5683 = vadd.f32 0.0, %v5682
  %v5684 = vpop.f32.mrf.mxu0
  %v5685 = vadd.f32 0.0, %v5684
  %v5686 = vpop.f32.mrf.mxu0
  %v5687 = vadd.f32 0.0, %v5686
  %5688 = vdwg.mxu0
  %5689 = vmatprep.subr.bf16.mxu0 0
  %5690 = vmatpush1.bf16.msra.mxu0 0
  %5691 = vmatprep.subr.bf16.mxu0 0
  %5692 = vmatpush1.bf16.msra.mxu0 0
  %5693 = vmatprep.subr.bf16.mxu0 0
  %5694 = vmatpush1.bf16.msra.mxu0 0
  %5695 = vmatprep.subr.bf16.mxu0 0
  %5696 = vmatpush1.bf16.msra.mxu0 0
  %5697 = vmatprep.subr.bf16.mxu0 0
  %5698 = vmatpush1.bf16.msra.mxu0 0
  %5699 = vmatprep.subr.bf16.mxu0 0
  %5700 = vmatpush1.bf16.msra.mxu0 0
  %5701 = vmatprep.subr.bf16.mxu0 %v5634
  %5702 = vmatpush1.bf16.msra.mxu0 %v5631
  %5703 = vmatprep.subr.bf16.mxu0 %v5603
  %5704 = vmatpush1.bf16.msra.mxu0 %v5602
  %5705 = vmatprep.subr.bf16.mxu0 0
  %5706 = vmatpush2.bf16.msra.mxu0 0
  %5707 = vmatprep.subr.bf16.mxu0 0
  %5708 = vmatpush2.bf16.msra.mxu0 0
  %5709 = vmatprep.subr.bf16.mxu0 0
  %5710 = vmatpush2.bf16.msra.mxu0 0
  %5711 = vmatprep.subr.bf16.mxu0 0
  %5712 = vmatpush2.bf16.msra.mxu0 0
  %5713 = vmatprep.subr.bf16.mxu0 0
  %5714 = vmatpush2.bf16.msra.mxu0 0
  %5715 = vmatprep.subr.bf16.mxu0 0
  %5716 = vmatpush2.bf16.msra.mxu0 0
  %5717 = vmatprep.subr.bf16.mxu0 0
  %5718 = vmatpush2.bf16.msra.mxu0 0
  %5719 = vmatprep.subr.bf16.mxu0 0
  %5720 = vmatpush2.bf16.msra.mxu0 0
  %5721 = vmatprep.mubr.bf16.mxu0 0
  %5722 = vmatmul.mubr.bf16.gmra.mxu0 %v5619
  %v5723 = vpop.f32.mrf.mxu0
  %v5724 = vadd.f32 0.0, %v5723
  %v5725 = vpop.f32.mrf.mxu0
  %v5726 = vadd.f32 0.0, %v5725
  %v5727 = vpop.f32.mrf.mxu0
  %v5728 = vadd.f32 0.0, %v5727
  %v5729 = vpop.f32.mrf.mxu0
  %v5730 = vadd.f32 0.0, %v5729
  %5731 = vmatprep.mubr.bf16.mxu0 0
  %5732 = vmatmul.mubr.bf16.gmra.mxu0 %v5622
  %v5733 = vpop.f32.mrf.mxu0
  %v5734 = vadd.f32 0.0, %v5733
  %v5735 = vpop.f32.mrf.mxu0
  %v5736 = vadd.f32 0.0, %v5735
  %v5737 = vpop.f32.mrf.mxu0
  %v5738 = vadd.f32 0.0, %v5737
  %v5739 = vpop.f32.mrf.mxu0
  %v5740 = vadd.f32 0.0, %v5739
  %5741 = vdwg.mxu0
  %v5742 = vadd.f32 %v5531, %v5671
  %v5743 = vadd.f32 %v5532, %v5673
  %v5744 = vadd.f32 %v5533, %v5724
  %v5745 = vadd.f32 %v5534, %v5726
  %v5746 = vadd.f32 %v5535, %v5675
  %v5747 = vadd.f32 %v5536, %v5677
  %v5748 = vadd.f32 %v5537, %v5728
  %v5749 = vadd.f32 %v5538, %v5730
  %v5750 = vadd.f32 %v5539, %v5681
  %v5751 = vadd.f32 %v5540, %v5683
  %v5752 = vadd.f32 %v5541, %v5734
  %v5753 = vadd.f32 %v5542, %v5736
  %v5754 = vadd.f32 %v5543, %v5685
  %v5755 = vadd.f32 %v5544, %v5687
  %v5756 = vadd.f32 %v5545, %v5738
  %v5757 = vadd.f32 %v5546, %v5740
  %s5758 = scalar_lea.vmem %s4, 64
  %v5759 = vld [vmem:[%s5758] sm:$0xf]
  %v5760 = vld [vmem:[%s5758 + $0x4] sm:$0xf]
  %v5761 = vld [vmem:[%s5758 + $0x8] sm:$0xf]
  %v5762 = vld [vmem:[%s5758 + $0xc] sm:$0xf]
  %v5763 = vpack.c.bf16 %v4939, %v4935
  %v5764 = vpack.c.bf16 %v4940, %v4936
  %v5765 = vpack.c.bf16 %v4941, %v4937
  %v5766 = vpack.c.bf16 %v4942, %v4938
  %v5767 = vpack.c.bf16 %v4943, %v4943
  %v5768 = vpack.c.bf16 %v4944, %v4944
  %v5769 = vpack.c.bf16 %v4945, %v4945
  %v5770 = vpack.c.bf16 %v4946, %v4946
  %v5775 = vunpack.c.l.b16 %v5759
  %v5776 = vunpack.c.l.b16 %v5760
  %v5777 = vunpack.c.l.b16 %v5761
  %v5778 = vunpack.c.l.b16 %v5762
  %v5779 = vpack.c.b16 %v5776, %v5775
  %v5780 = vpack.c.b16 %v5778, %v5777
  %v5782 = vsel %vm182, %v5779, 0
  %v5785 = vsel %vm182, %v5780, 0
  %v5788 = vsel %vm189, %v5767, 0
  %v5791 = vsel %vm189, %v5768, 0
  %v5794 = vsel %vm189, %v5769, 0
  %v5797 = vsel %vm189, %v5770, 0
  %5799 = vmatprep.subr.bf16.mxu0 0
  %5800 = vmatpush1.bf16.msra.mxu0 0
  %5801 = vmatprep.subr.bf16.mxu0 0
  %5802 = vmatpush1.bf16.msra.mxu0 0
  %5803 = vmatprep.subr.bf16.mxu0 0
  %5804 = vmatpush1.bf16.msra.mxu0 0
  %5805 = vmatprep.subr.bf16.mxu0 0
  %5806 = vmatpush1.bf16.msra.mxu0 0
  %5807 = vmatprep.subr.bf16.mxu0 0
  %5808 = vmatpush1.bf16.msra.mxu0 0
  %5809 = vmatprep.subr.bf16.mxu0 0
  %5810 = vmatpush1.bf16.msra.mxu0 0
  %5811 = vmatprep.subr.bf16.mxu0 %v5791
  %5812 = vmatpush1.bf16.msra.mxu0 %v5788
  %5813 = vmatprep.subr.bf16.mxu0 %v5764
  %5814 = vmatpush1.bf16.msra.mxu0 %v5763
  %5815 = vmatprep.subr.bf16.mxu0 0
  %5816 = vmatpush2.bf16.msra.mxu0 0
  %5817 = vmatprep.subr.bf16.mxu0 0
  %5818 = vmatpush2.bf16.msra.mxu0 0
  %5819 = vmatprep.subr.bf16.mxu0 0
  %5820 = vmatpush2.bf16.msra.mxu0 0
  %5821 = vmatprep.subr.bf16.mxu0 0
  %5822 = vmatpush2.bf16.msra.mxu0 0
  %5823 = vmatprep.subr.bf16.mxu0 0
  %5824 = vmatpush2.bf16.msra.mxu0 0
  %5825 = vmatprep.subr.bf16.mxu0 0
  %5826 = vmatpush2.bf16.msra.mxu0 0
  %5827 = vmatprep.subr.bf16.mxu0 0
  %5828 = vmatpush2.bf16.msra.mxu0 0
  %5829 = vmatprep.subr.bf16.mxu0 0
  %5830 = vmatpush2.bf16.msra.mxu0 0
  %5831 = vmatprep.mubr.bf16.mxu0 0
  %5832 = vmatmul.mubr.bf16.gmra.mxu0 %v5782
  %v5833 = vpop.f32.mrf.mxu0
  %v5834 = vadd.f32 0.0, %v5833
  %v5835 = vpop.f32.mrf.mxu0
  %v5836 = vadd.f32 0.0, %v5835
  %v5837 = vpop.f32.mrf.mxu0
  %v5838 = vadd.f32 0.0, %v5837
  %v5839 = vpop.f32.mrf.mxu0
  %v5840 = vadd.f32 0.0, %v5839
  %5841 = vmatprep.mubr.bf16.mxu0 0
  %5842 = vmatmul.mubr.bf16.gmra.mxu0 %v5785
  %v5843 = vpop.f32.mrf.mxu0
  %v5844 = vadd.f32 0.0, %v5843
  %v5845 = vpop.f32.mrf.mxu0
  %v5846 = vadd.f32 0.0, %v5845
  %v5847 = vpop.f32.mrf.mxu0
  %v5848 = vadd.f32 0.0, %v5847
  %v5849 = vpop.f32.mrf.mxu0
  %v5850 = vadd.f32 0.0, %v5849
  %5851 = vdwg.mxu0
  %5852 = vmatprep.subr.bf16.mxu0 0
  %5853 = vmatpush1.bf16.msra.mxu0 0
  %5854 = vmatprep.subr.bf16.mxu0 0
  %5855 = vmatpush1.bf16.msra.mxu0 0
  %5856 = vmatprep.subr.bf16.mxu0 0
  %5857 = vmatpush1.bf16.msra.mxu0 0
  %5858 = vmatprep.subr.bf16.mxu0 0
  %5859 = vmatpush1.bf16.msra.mxu0 0
  %5860 = vmatprep.subr.bf16.mxu0 0
  %5861 = vmatpush1.bf16.msra.mxu0 0
  %5862 = vmatprep.subr.bf16.mxu0 0
  %5863 = vmatpush1.bf16.msra.mxu0 0
  %5864 = vmatprep.subr.bf16.mxu0 %v5797
  %5865 = vmatpush1.bf16.msra.mxu0 %v5794
  %5866 = vmatprep.subr.bf16.mxu0 %v5766
  %5867 = vmatpush1.bf16.msra.mxu0 %v5765
  %5868 = vmatprep.subr.bf16.mxu0 0
  %5869 = vmatpush2.bf16.msra.mxu0 0
  %5870 = vmatprep.subr.bf16.mxu0 0
  %5871 = vmatpush2.bf16.msra.mxu0 0
  %5872 = vmatprep.subr.bf16.mxu0 0
  %5873 = vmatpush2.bf16.msra.mxu0 0
  %5874 = vmatprep.subr.bf16.mxu0 0
  %5875 = vmatpush2.bf16.msra.mxu0 0
  %5876 = vmatprep.subr.bf16.mxu0 0
  %5877 = vmatpush2.bf16.msra.mxu0 0
  %5878 = vmatprep.subr.bf16.mxu0 0
  %5879 = vmatpush2.bf16.msra.mxu0 0
  %5880 = vmatprep.subr.bf16.mxu0 0
  %5881 = vmatpush2.bf16.msra.mxu0 0
  %5882 = vmatprep.subr.bf16.mxu0 0
  %5883 = vmatpush2.bf16.msra.mxu0 0
  %5884 = vmatprep.mubr.bf16.mxu0 0
  %5885 = vmatmul.mubr.bf16.gmra.mxu0 %v5782
  %v5886 = vpop.f32.mrf.mxu0
  %v5887 = vadd.f32 0.0, %v5886
  %v5888 = vpop.f32.mrf.mxu0
  %v5889 = vadd.f32 0.0, %v5888
  %v5890 = vpop.f32.mrf.mxu0
  %v5891 = vadd.f32 0.0, %v5890
  %v5892 = vpop.f32.mrf.mxu0
  %v5893 = vadd.f32 0.0, %v5892
  %5894 = vmatprep.mubr.bf16.mxu0 0
  %5895 = vmatmul.mubr.bf16.gmra.mxu0 %v5785
  %v5896 = vpop.f32.mrf.mxu0
  %v5897 = vadd.f32 0.0, %v5896
  %v5898 = vpop.f32.mrf.mxu0
  %v5899 = vadd.f32 0.0, %v5898
  %v5900 = vpop.f32.mrf.mxu0
  %v5901 = vadd.f32 0.0, %v5900
  %v5902 = vpop.f32.mrf.mxu0
  %v5903 = vadd.f32 0.0, %v5902
  %5904 = vdwg.mxu0
  %v5905 = vadd.f32 %v5742, %v5834
  %v5906 = vadd.f32 %v5743, %v5836
  %v5907 = vadd.f32 %v5744, %v5887
  %v5908 = vadd.f32 %v5745, %v5889
  %v5909 = vadd.f32 %v5746, %v5838
  %v5910 = vadd.f32 %v5747, %v5840
  %v5911 = vadd.f32 %v5748, %v5891
  %v5912 = vadd.f32 %v5749, %v5893
  %v5913 = vadd.f32 %v5750, %v5844
  %v5914 = vadd.f32 %v5751, %v5846
  %v5915 = vadd.f32 %v5752, %v5897
  %v5916 = vadd.f32 %v5753, %v5899
  %v5917 = vadd.f32 %v5754, %v5848
  %v5918 = vadd.f32 %v5755, %v5850
  %v5919 = vadd.f32 %v5756, %v5901
  %v5920 = vadd.f32 %v5757, %v5903
  %5921 = vrot.lane.b32.xlu0 %v4935, 127
  %v5922 = vpop.permute.xlu0 %5921
  %5923 = vrot.lane.b32.xlu0 %v4939, 127
  %v5924 = vpop.permute.xlu0 %5923
  %5925 = vrot.lane.b32.xlu0 %v4943, 127
  %v5926 = vpop.permute.xlu0 %5925
  %5927 = vrot.lane.b32.xlu0 %v4936, 127
  %v5928 = vpop.permute.xlu0 %5927
  %5929 = vrot.lane.b32.xlu0 %v4940, 127
  %v5930 = vpop.permute.xlu0 %5929
  %5931 = vrot.lane.b32.xlu0 %v4944, 127
  %v5932 = vpop.permute.xlu0 %5931
  %5933 = vrot.lane.b32.xlu0 %v4937, 127
  %v5934 = vpop.permute.xlu0 %5933
  %5935 = vrot.lane.b32.xlu0 %v4941, 127
  %v5936 = vpop.permute.xlu0 %5935
  %5937 = vrot.lane.b32.xlu0 %v4945, 127
  %v5938 = vpop.permute.xlu0 %5937
  %5939 = vrot.lane.b32.xlu0 %v4938, 127
  %v5940 = vpop.permute.xlu0 %5939
  %5941 = vrot.lane.b32.xlu0 %v4942, 127
  %v5942 = vpop.permute.xlu0 %5941
  %5943 = vrot.lane.b32.xlu0 %v4946, 127
  %v5944 = vpop.permute.xlu0 %5943
  %v5945 = vsel %vm145, %v5934, %v5940
  %v5946 = vsel %vm145, %v5936, %v5942
  %v5947 = vsel %vm145, %v5938, %v5944
  %v5948 = vsel %vm145, %v5928, %v5934
  %v5949 = vsel %vm145, %v5930, %v5936
  %v5950 = vsel %vm145, %v5932, %v5938
  %v5951 = vsel %vm145, %v5922, %v5928
  %v5952 = vsel %vm145, %v5924, %v5930
  %v5953 = vsel %vm145, %v5926, %v5932
  %v5954 = vsel %vm145, %v5940, %v5922
  %v5955 = vsel %vm145, %v5942, %v5924
  %v5956 = vsel %vm145, %v5944, %v5926
  %v5957 = vmul.f32 %v5951, %v3897
  %v5958 = vmul.f32 %v5948, %v3898
  %v5959 = vmul.f32 %v5945, %v3899
  %v5960 = vmul.f32 %v5954, %v3900
  %v5961 = vmul.f32 %v5952, %v3901
  %v5962 = vmul.f32 %v5949, %v3902
  %v5963 = vmul.f32 %v5946, %v3903
  %v5964 = vmul.f32 %v5955, %v3904
  %v5965 = vmul.f32 %v5953, %v3905
  %v5966 = vmul.f32 %v5950, %v3906
  %v5967 = vmul.f32 %v5947, %v3907
  %v5968 = vmul.f32 %v5956, %v3908
  %s5969 = scalar_lea.vmem %s4, 80
  %v5970 = vld [vmem:[%s5969] sm:$0xf]
  %v5971 = vld [vmem:[%s5969 + $0x4] sm:$0xf]
  %v5972 = vld [vmem:[%s5969 + $0x8] sm:$0xf]
  %v5973 = vld [vmem:[%s5969 + $0xc] sm:$0xf]
  %v5974 = vpack.c.bf16 %v5961, %v5957
  %v5975 = vpack.c.bf16 %v5962, %v5958
  %v5976 = vpack.c.bf16 %v5963, %v5959
  %v5977 = vpack.c.bf16 %v5964, %v5960
  %v5978 = vpack.c.bf16 %v5965, %v5965
  %v5979 = vpack.c.bf16 %v5966, %v5966
  %v5980 = vpack.c.bf16 %v5967, %v5967
  %v5981 = vpack.c.bf16 %v5968, %v5968
  %v5986 = vunpack.c.l.b16 %v5970
  %v5987 = vunpack.c.l.b16 %v5971
  %v5988 = vunpack.c.l.b16 %v5972
  %v5989 = vunpack.c.l.b16 %v5973
  %v5990 = vpack.c.b16 %v5987, %v5986
  %v5991 = vpack.c.b16 %v5989, %v5988
  %v5993 = vsel %vm182, %v5990, 0
  %v5996 = vsel %vm182, %v5991, 0
  %v5999 = vsel %vm189, %v5978, 0
  %v6002 = vsel %vm189, %v5979, 0
  %v6005 = vsel %vm189, %v5980, 0
  %v6008 = vsel %vm189, %v5981, 0
  %6010 = vmatprep.subr.bf16.mxu0 0
  %6011 = vmatpush1.bf16.msra.mxu0 0
  %6012 = vmatprep.subr.bf16.mxu0 0
  %6013 = vmatpush1.bf16.msra.mxu0 0
  %6014 = vmatprep.subr.bf16.mxu0 0
  %6015 = vmatpush1.bf16.msra.mxu0 0
  %6016 = vmatprep.subr.bf16.mxu0 0
  %6017 = vmatpush1.bf16.msra.mxu0 0
  %6018 = vmatprep.subr.bf16.mxu0 0
  %6019 = vmatpush1.bf16.msra.mxu0 0
  %6020 = vmatprep.subr.bf16.mxu0 0
  %6021 = vmatpush1.bf16.msra.mxu0 0
  %6022 = vmatprep.subr.bf16.mxu0 %v6002
  %6023 = vmatpush1.bf16.msra.mxu0 %v5999
  %6024 = vmatprep.subr.bf16.mxu0 %v5975
  %6025 = vmatpush1.bf16.msra.mxu0 %v5974
  %6026 = vmatprep.subr.bf16.mxu0 0
  %6027 = vmatpush2.bf16.msra.mxu0 0
  %6028 = vmatprep.subr.bf16.mxu0 0
  %6029 = vmatpush2.bf16.msra.mxu0 0
  %6030 = vmatprep.subr.bf16.mxu0 0
  %6031 = vmatpush2.bf16.msra.mxu0 0
  %6032 = vmatprep.subr.bf16.mxu0 0
  %6033 = vmatpush2.bf16.msra.mxu0 0
  %6034 = vmatprep.subr.bf16.mxu0 0
  %6035 = vmatpush2.bf16.msra.mxu0 0
  %6036 = vmatprep.subr.bf16.mxu0 0
  %6037 = vmatpush2.bf16.msra.mxu0 0
  %6038 = vmatprep.subr.bf16.mxu0 0
  %6039 = vmatpush2.bf16.msra.mxu0 0
  %6040 = vmatprep.subr.bf16.mxu0 0
  %6041 = vmatpush2.bf16.msra.mxu0 0
  %6042 = vmatprep.mubr.bf16.mxu0 0
  %6043 = vmatmul.mubr.bf16.gmra.mxu0 %v5993
  %v6044 = vpop.f32.mrf.mxu0
  %v6045 = vadd.f32 0.0, %v6044
  %v6046 = vpop.f32.mrf.mxu0
  %v6047 = vadd.f32 0.0, %v6046
  %v6048 = vpop.f32.mrf.mxu0
  %v6049 = vadd.f32 0.0, %v6048
  %v6050 = vpop.f32.mrf.mxu0
  %v6051 = vadd.f32 0.0, %v6050
  %6052 = vmatprep.mubr.bf16.mxu0 0
  %6053 = vmatmul.mubr.bf16.gmra.mxu0 %v5996
  %v6054 = vpop.f32.mrf.mxu0
  %v6055 = vadd.f32 0.0, %v6054
  %v6056 = vpop.f32.mrf.mxu0
  %v6057 = vadd.f32 0.0, %v6056
  %v6058 = vpop.f32.mrf.mxu0
  %v6059 = vadd.f32 0.0, %v6058
  %v6060 = vpop.f32.mrf.mxu0
  %v6061 = vadd.f32 0.0, %v6060
  %6062 = vdwg.mxu0
  %6063 = vmatprep.subr.bf16.mxu0 0
  %6064 = vmatpush1.bf16.msra.mxu0 0
  %6065 = vmatprep.subr.bf16.mxu0 0
  %6066 = vmatpush1.bf16.msra.mxu0 0
  %6067 = vmatprep.subr.bf16.mxu0 0
  %6068 = vmatpush1.bf16.msra.mxu0 0
  %6069 = vmatprep.subr.bf16.mxu0 0
  %6070 = vmatpush1.bf16.msra.mxu0 0
  %6071 = vmatprep.subr.bf16.mxu0 0
  %6072 = vmatpush1.bf16.msra.mxu0 0
  %6073 = vmatprep.subr.bf16.mxu0 0
  %6074 = vmatpush1.bf16.msra.mxu0 0
  %6075 = vmatprep.subr.bf16.mxu0 %v6008
  %6076 = vmatpush1.bf16.msra.mxu0 %v6005
  %6077 = vmatprep.subr.bf16.mxu0 %v5977
  %6078 = vmatpush1.bf16.msra.mxu0 %v5976
  %6079 = vmatprep.subr.bf16.mxu0 0
  %6080 = vmatpush2.bf16.msra.mxu0 0
  %6081 = vmatprep.subr.bf16.mxu0 0
  %6082 = vmatpush2.bf16.msra.mxu0 0
  %6083 = vmatprep.subr.bf16.mxu0 0
  %6084 = vmatpush2.bf16.msra.mxu0 0
  %6085 = vmatprep.subr.bf16.mxu0 0
  %6086 = vmatpush2.bf16.msra.mxu0 0
  %6087 = vmatprep.subr.bf16.mxu0 0
  %6088 = vmatpush2.bf16.msra.mxu0 0
  %6089 = vmatprep.subr.bf16.mxu0 0
  %6090 = vmatpush2.bf16.msra.mxu0 0
  %6091 = vmatprep.subr.bf16.mxu0 0
  %6092 = vmatpush2.bf16.msra.mxu0 0
  %6093 = vmatprep.subr.bf16.mxu0 0
  %6094 = vmatpush2.bf16.msra.mxu0 0
  %6095 = vmatprep.mubr.bf16.mxu0 0
  %6096 = vmatmul.mubr.bf16.gmra.mxu0 %v5993
  %v6097 = vpop.f32.mrf.mxu0
  %v6098 = vadd.f32 0.0, %v6097
  %v6099 = vpop.f32.mrf.mxu0
  %v6100 = vadd.f32 0.0, %v6099
  %v6101 = vpop.f32.mrf.mxu0
  %v6102 = vadd.f32 0.0, %v6101
  %v6103 = vpop.f32.mrf.mxu0
  %v6104 = vadd.f32 0.0, %v6103
  %6105 = vmatprep.mubr.bf16.mxu0 0
  %6106 = vmatmul.mubr.bf16.gmra.mxu0 %v5996
  %v6107 = vpop.f32.mrf.mxu0
  %v6108 = vadd.f32 0.0, %v6107
  %v6109 = vpop.f32.mrf.mxu0
  %v6110 = vadd.f32 0.0, %v6109
  %v6111 = vpop.f32.mrf.mxu0
  %v6112 = vadd.f32 0.0, %v6111
  %v6113 = vpop.f32.mrf.mxu0
  %v6114 = vadd.f32 0.0, %v6113
  %6115 = vdwg.mxu0
  %v6116 = vadd.f32 %v5905, %v6045
  %v6117 = vadd.f32 %v5906, %v6047
  %v6118 = vadd.f32 %v5907, %v6098
  %v6119 = vadd.f32 %v5908, %v6100
  %v6120 = vadd.f32 %v5909, %v6049
  %v6121 = vadd.f32 %v5910, %v6051
  %v6122 = vadd.f32 %v5911, %v6102
  %v6123 = vadd.f32 %v5912, %v6104
  %v6124 = vadd.f32 %v5913, %v6055
  %v6125 = vadd.f32 %v5914, %v6057
  %v6126 = vadd.f32 %v5915, %v6108
  %v6127 = vadd.f32 %v5916, %v6110
  %v6128 = vadd.f32 %v5917, %v6059
  %v6129 = vadd.f32 %v5918, %v6061
  %v6130 = vadd.f32 %v5919, %v6112
  %v6131 = vadd.f32 %v5920, %v6114
  %6132 = vrot.lane.b32.xlu0 %v4935, 113
  %v6133 = vpop.permute.xlu0 %6132
  %6134 = vrot.lane.b32.xlu0 %v4939, 113
  %v6135 = vpop.permute.xlu0 %6134
  %6136 = vrot.lane.b32.xlu0 %v4943, 113
  %v6137 = vpop.permute.xlu0 %6136
  %6138 = vrot.lane.b32.xlu0 %v4936, 113
  %v6139 = vpop.permute.xlu0 %6138
  %6140 = vrot.lane.b32.xlu0 %v4940, 113
  %v6141 = vpop.permute.xlu0 %6140
  %6142 = vrot.lane.b32.xlu0 %v4944, 113
  %v6143 = vpop.permute.xlu0 %6142
  %6144 = vrot.lane.b32.xlu0 %v4937, 113
  %v6145 = vpop.permute.xlu0 %6144
  %6146 = vrot.lane.b32.xlu0 %v4941, 113
  %v6147 = vpop.permute.xlu0 %6146
  %6148 = vrot.lane.b32.xlu0 %v4945, 113
  %v6149 = vpop.permute.xlu0 %6148
  %6150 = vrot.lane.b32.xlu0 %v4938, 113
  %v6151 = vpop.permute.xlu0 %6150
  %6152 = vrot.lane.b32.xlu0 %v4942, 113
  %v6153 = vpop.permute.xlu0 %6152
  %6154 = vrot.lane.b32.xlu0 %v4946, 113
  %v6155 = vpop.permute.xlu0 %6154
  %v6156 = vsel %vm450, %v6145, %v6151
  %v6157 = vsel %vm450, %v6147, %v6153
  %v6158 = vsel %vm450, %v6149, %v6155
  %v6159 = vsel %vm450, %v6139, %v6145
  %v6160 = vsel %vm450, %v6141, %v6147
  %v6161 = vsel %vm450, %v6143, %v6149
  %v6162 = vsel %vm450, %v6133, %v6139
  %v6163 = vsel %vm450, %v6135, %v6141
  %v6164 = vsel %vm450, %v6137, %v6143
  %v6165 = vsel %vm450, %v6151, %v6133
  %v6166 = vsel %vm450, %v6153, %v6135
  %v6167 = vsel %vm450, %v6155, %v6137
  %v6168 = vmul.f32 %v6162, %v4221
  %v6169 = vmul.f32 %v6159, %v4222
  %v6170 = vmul.f32 %v6156, %v4223
  %v6171 = vmul.f32 %v6165, %v4224
  %v6172 = vmul.f32 %v6163, %v4225
  %v6173 = vmul.f32 %v6160, %v4226
  %v6174 = vmul.f32 %v6157, %v4227
  %v6175 = vmul.f32 %v6166, %v4228
  %v6176 = vmul.f32 %v6164, %v4229
  %v6177 = vmul.f32 %v6161, %v4230
  %v6178 = vmul.f32 %v6158, %v4231
  %v6179 = vmul.f32 %v6167, %v4232
  %s6180 = scalar_lea.vmem %s4, 96
  %v6181 = vld [vmem:[%s6180] sm:$0xf]
  %v6182 = vld [vmem:[%s6180 + $0x4] sm:$0xf]
  %v6183 = vld [vmem:[%s6180 + $0x8] sm:$0xf]
  %v6184 = vld [vmem:[%s6180 + $0xc] sm:$0xf]
  %v6185 = vpack.c.bf16 %v6172, %v6168
  %v6186 = vpack.c.bf16 %v6173, %v6169
  %v6187 = vpack.c.bf16 %v6174, %v6170
  %v6188 = vpack.c.bf16 %v6175, %v6171
  %v6189 = vpack.c.bf16 %v6176, %v6176
  %v6190 = vpack.c.bf16 %v6177, %v6177
  %v6191 = vpack.c.bf16 %v6178, %v6178
  %v6192 = vpack.c.bf16 %v6179, %v6179
  %v6197 = vunpack.c.l.b16 %v6181
  %v6198 = vunpack.c.l.b16 %v6182
  %v6199 = vunpack.c.l.b16 %v6183
  %v6200 = vunpack.c.l.b16 %v6184
  %v6201 = vpack.c.b16 %v6198, %v6197
  %v6202 = vpack.c.b16 %v6200, %v6199
  %v6204 = vsel %vm182, %v6201, 0
  %v6207 = vsel %vm182, %v6202, 0
  %v6210 = vsel %vm189, %v6189, 0
  %v6213 = vsel %vm189, %v6190, 0
  %v6216 = vsel %vm189, %v6191, 0
  %v6219 = vsel %vm189, %v6192, 0
  %6221 = vmatprep.subr.bf16.mxu0 0
  %6222 = vmatpush1.bf16.msra.mxu0 0
  %6223 = vmatprep.subr.bf16.mxu0 0
  %6224 = vmatpush1.bf16.msra.mxu0 0
  %6225 = vmatprep.subr.bf16.mxu0 0
  %6226 = vmatpush1.bf16.msra.mxu0 0
  %6227 = vmatprep.subr.bf16.mxu0 0
  %6228 = vmatpush1.bf16.msra.mxu0 0
  %6229 = vmatprep.subr.bf16.mxu0 0
  %6230 = vmatpush1.bf16.msra.mxu0 0
  %6231 = vmatprep.subr.bf16.mxu0 0
  %6232 = vmatpush1.bf16.msra.mxu0 0
  %6233 = vmatprep.subr.bf16.mxu0 %v6213
  %6234 = vmatpush1.bf16.msra.mxu0 %v6210
  %6235 = vmatprep.subr.bf16.mxu0 %v6186
  %6236 = vmatpush1.bf16.msra.mxu0 %v6185
  %6237 = vmatprep.subr.bf16.mxu0 0
  %6238 = vmatpush2.bf16.msra.mxu0 0
  %6239 = vmatprep.subr.bf16.mxu0 0
  %6240 = vmatpush2.bf16.msra.mxu0 0
  %6241 = vmatprep.subr.bf16.mxu0 0
  %6242 = vmatpush2.bf16.msra.mxu0 0
  %6243 = vmatprep.subr.bf16.mxu0 0
  %6244 = vmatpush2.bf16.msra.mxu0 0
  %6245 = vmatprep.subr.bf16.mxu0 0
  %6246 = vmatpush2.bf16.msra.mxu0 0
  %6247 = vmatprep.subr.bf16.mxu0 0
  %6248 = vmatpush2.bf16.msra.mxu0 0
  %6249 = vmatprep.subr.bf16.mxu0 0
  %6250 = vmatpush2.bf16.msra.mxu0 0
  %6251 = vmatprep.subr.bf16.mxu0 0
  %6252 = vmatpush2.bf16.msra.mxu0 0
  %6253 = vmatprep.mubr.bf16.mxu0 0
  %6254 = vmatmul.mubr.bf16.gmra.mxu0 %v6204
  %v6255 = vpop.f32.mrf.mxu0
  %v6256 = vadd.f32 0.0, %v6255
  %v6257 = vpop.f32.mrf.mxu0
  %v6258 = vadd.f32 0.0, %v6257
  %v6259 = vpop.f32.mrf.mxu0
  %v6260 = vadd.f32 0.0, %v6259
  %v6261 = vpop.f32.mrf.mxu0
  %v6262 = vadd.f32 0.0, %v6261
  %6263 = vmatprep.mubr.bf16.mxu0 0
  %6264 = vmatmul.mubr.bf16.gmra.mxu0 %v6207
  %v6265 = vpop.f32.mrf.mxu0
  %v6266 = vadd.f32 0.0, %v6265
  %v6267 = vpop.f32.mrf.mxu0
  %v6268 = vadd.f32 0.0, %v6267
  %v6269 = vpop.f32.mrf.mxu0
  %v6270 = vadd.f32 0.0, %v6269
  %v6271 = vpop.f32.mrf.mxu0
  %v6272 = vadd.f32 0.0, %v6271
  %6273 = vdwg.mxu0
  %6274 = vmatprep.subr.bf16.mxu0 0
  %6275 = vmatpush1.bf16.msra.mxu0 0
  %6276 = vmatprep.subr.bf16.mxu0 0
  %6277 = vmatpush1.bf16.msra.mxu0 0
  %6278 = vmatprep.subr.bf16.mxu0 0
  %6279 = vmatpush1.bf16.msra.mxu0 0
  %6280 = vmatprep.subr.bf16.mxu0 0
  %6281 = vmatpush1.bf16.msra.mxu0 0
  %6282 = vmatprep.subr.bf16.mxu0 0
  %6283 = vmatpush1.bf16.msra.mxu0 0
  %6284 = vmatprep.subr.bf16.mxu0 0
  %6285 = vmatpush1.bf16.msra.mxu0 0
  %6286 = vmatprep.subr.bf16.mxu0 %v6219
  %6287 = vmatpush1.bf16.msra.mxu0 %v6216
  %6288 = vmatprep.subr.bf16.mxu0 %v6188
  %6289 = vmatpush1.bf16.msra.mxu0 %v6187
  %6290 = vmatprep.subr.bf16.mxu0 0
  %6291 = vmatpush2.bf16.msra.mxu0 0
  %6292 = vmatprep.subr.bf16.mxu0 0
  %6293 = vmatpush2.bf16.msra.mxu0 0
  %6294 = vmatprep.subr.bf16.mxu0 0
  %6295 = vmatpush2.bf16.msra.mxu0 0
  %6296 = vmatprep.subr.bf16.mxu0 0
  %6297 = vmatpush2.bf16.msra.mxu0 0
  %6298 = vmatprep.subr.bf16.mxu0 0
  %6299 = vmatpush2.bf16.msra.mxu0 0
  %6300 = vmatprep.subr.bf16.mxu0 0
  %6301 = vmatpush2.bf16.msra.mxu0 0
  %6302 = vmatprep.subr.bf16.mxu0 0
  %6303 = vmatpush2.bf16.msra.mxu0 0
  %6304 = vmatprep.subr.bf16.mxu0 0
  %6305 = vmatpush2.bf16.msra.mxu0 0
  %6306 = vmatprep.mubr.bf16.mxu0 0
  %6307 = vmatmul.mubr.bf16.gmra.mxu0 %v6204
  %v6308 = vpop.f32.mrf.mxu0
  %v6309 = vadd.f32 0.0, %v6308
  %v6310 = vpop.f32.mrf.mxu0
  %v6311 = vadd.f32 0.0, %v6310
  %v6312 = vpop.f32.mrf.mxu0
  %v6313 = vadd.f32 0.0, %v6312
  %v6314 = vpop.f32.mrf.mxu0
  %v6315 = vadd.f32 0.0, %v6314
  %6316 = vmatprep.mubr.bf16.mxu0 0
  %6317 = vmatmul.mubr.bf16.gmra.mxu0 %v6207
  %v6318 = vpop.f32.mrf.mxu0
  %v6319 = vadd.f32 0.0, %v6318
  %v6320 = vpop.f32.mrf.mxu0
  %v6321 = vadd.f32 0.0, %v6320
  %v6322 = vpop.f32.mrf.mxu0
  %v6323 = vadd.f32 0.0, %v6322
  %v6324 = vpop.f32.mrf.mxu0
  %v6325 = vadd.f32 0.0, %v6324
  %6326 = vdwg.mxu0
  %v6327 = vadd.f32 %v6116, %v6256
  %v6328 = vadd.f32 %v6117, %v6258
  %v6329 = vadd.f32 %v6118, %v6309
  %v6330 = vadd.f32 %v6119, %v6311
  %v6331 = vadd.f32 %v6120, %v6260
  %v6332 = vadd.f32 %v6121, %v6262
  %v6333 = vadd.f32 %v6122, %v6313
  %v6334 = vadd.f32 %v6123, %v6315
  %v6335 = vadd.f32 %v6124, %v6266
  %v6336 = vadd.f32 %v6125, %v6268
  %v6337 = vadd.f32 %v6126, %v6319
  %v6338 = vadd.f32 %v6127, %v6321
  %v6339 = vadd.f32 %v6128, %v6270
  %v6340 = vadd.f32 %v6129, %v6272
  %v6341 = vadd.f32 %v6130, %v6323
  %v6342 = vadd.f32 %v6131, %v6325
  %6343 = vrot.lane.b32.xlu0 %v4935, 112
  %v6344 = vpop.permute.xlu0 %6343
  %6345 = vrot.lane.b32.xlu0 %v4939, 112
  %v6346 = vpop.permute.xlu0 %6345
  %6347 = vrot.lane.b32.xlu0 %v4943, 112
  %v6348 = vpop.permute.xlu0 %6347
  %6349 = vrot.lane.b32.xlu0 %v4936, 112
  %v6350 = vpop.permute.xlu0 %6349
  %6351 = vrot.lane.b32.xlu0 %v4940, 112
  %v6352 = vpop.permute.xlu0 %6351
  %6353 = vrot.lane.b32.xlu0 %v4944, 112
  %v6354 = vpop.permute.xlu0 %6353
  %6355 = vrot.lane.b32.xlu0 %v4937, 112
  %v6356 = vpop.permute.xlu0 %6355
  %6357 = vrot.lane.b32.xlu0 %v4941, 112
  %v6358 = vpop.permute.xlu0 %6357
  %6359 = vrot.lane.b32.xlu0 %v4945, 112
  %v6360 = vpop.permute.xlu0 %6359
  %6361 = vrot.lane.b32.xlu0 %v4938, 112
  %v6362 = vpop.permute.xlu0 %6361
  %6363 = vrot.lane.b32.xlu0 %v4942, 112
  %v6364 = vpop.permute.xlu0 %6363
  %6365 = vrot.lane.b32.xlu0 %v4946, 112
  %v6366 = vpop.permute.xlu0 %6365
  %v6367 = vsel %vm472, %v6356, %v6362
  %v6368 = vsel %vm472, %v6358, %v6364
  %v6369 = vsel %vm472, %v6360, %v6366
  %v6370 = vsel %vm472, %v6350, %v6356
  %v6371 = vsel %vm472, %v6352, %v6358
  %v6372 = vsel %vm472, %v6354, %v6360
  %v6373 = vsel %vm472, %v6344, %v6350
  %v6374 = vsel %vm472, %v6346, %v6352
  %v6375 = vsel %vm472, %v6348, %v6354
  %v6376 = vsel %vm472, %v6362, %v6344
  %v6377 = vsel %vm472, %v6364, %v6346
  %v6378 = vsel %vm472, %v6366, %v6348
  %v6379 = vmul.f32 %v6373, %v4545
  %v6380 = vmul.f32 %v6370, %v4546
  %v6381 = vmul.f32 %v6367, %v4547
  %v6382 = vmul.f32 %v6376, %v4548
  %v6383 = vmul.f32 %v6374, %v4549
  %v6384 = vmul.f32 %v6371, %v4550
  %v6385 = vmul.f32 %v6368, %v4551
  %v6386 = vmul.f32 %v6377, %v4552
  %v6387 = vmul.f32 %v6375, %v4553
  %v6388 = vmul.f32 %v6372, %v4554
  %v6389 = vmul.f32 %v6369, %v4555
  %v6390 = vmul.f32 %v6378, %v4556
  %s6391 = scalar_lea.vmem %s4, 112
  %v6392 = vld [vmem:[%s6391] sm:$0xf]
  %v6393 = vld [vmem:[%s6391 + $0x4] sm:$0xf]
  %v6394 = vld [vmem:[%s6391 + $0x8] sm:$0xf]
  %v6395 = vld [vmem:[%s6391 + $0xc] sm:$0xf]
  %v6396 = vpack.c.bf16 %v6383, %v6379
  %v6397 = vpack.c.bf16 %v6384, %v6380
  %v6398 = vpack.c.bf16 %v6385, %v6381
  %v6399 = vpack.c.bf16 %v6386, %v6382
  %v6400 = vpack.c.bf16 %v6387, %v6387
  %v6401 = vpack.c.bf16 %v6388, %v6388
  %v6402 = vpack.c.bf16 %v6389, %v6389
  %v6403 = vpack.c.bf16 %v6390, %v6390
  %v6408 = vunpack.c.l.b16 %v6392
  %v6409 = vunpack.c.l.b16 %v6393
  %v6410 = vunpack.c.l.b16 %v6394
  %v6411 = vunpack.c.l.b16 %v6395
  %v6412 = vpack.c.b16 %v6409, %v6408
  %v6413 = vpack.c.b16 %v6411, %v6410
  %v6415 = vsel %vm182, %v6412, 0
  %v6418 = vsel %vm182, %v6413, 0
  %v6421 = vsel %vm189, %v6400, 0
  %v6424 = vsel %vm189, %v6401, 0
  %v6427 = vsel %vm189, %v6402, 0
  %v6430 = vsel %vm189, %v6403, 0
  %6432 = vmatprep.subr.bf16.mxu0 0
  %6433 = vmatpush1.bf16.msra.mxu0 0
  %6434 = vmatprep.subr.bf16.mxu0 0
  %6435 = vmatpush1.bf16.msra.mxu0 0
  %6436 = vmatprep.subr.bf16.mxu0 0
  %6437 = vmatpush1.bf16.msra.mxu0 0
  %6438 = vmatprep.subr.bf16.mxu0 0
  %6439 = vmatpush1.bf16.msra.mxu0 0
  %6440 = vmatprep.subr.bf16.mxu0 0
  %6441 = vmatpush1.bf16.msra.mxu0 0
  %6442 = vmatprep.subr.bf16.mxu0 0
  %6443 = vmatpush1.bf16.msra.mxu0 0
  %6444 = vmatprep.subr.bf16.mxu0 %v6424
  %6445 = vmatpush1.bf16.msra.mxu0 %v6421
  %6446 = vmatprep.subr.bf16.mxu0 %v6397
  %6447 = vmatpush1.bf16.msra.mxu0 %v6396
  %6448 = vmatprep.subr.bf16.mxu0 0
  %6449 = vmatpush2.bf16.msra.mxu0 0
  %6450 = vmatprep.subr.bf16.mxu0 0
  %6451 = vmatpush2.bf16.msra.mxu0 0
  %6452 = vmatprep.subr.bf16.mxu0 0
  %6453 = vmatpush2.bf16.msra.mxu0 0
  %6454 = vmatprep.subr.bf16.mxu0 0
  %6455 = vmatpush2.bf16.msra.mxu0 0
  %6456 = vmatprep.subr.bf16.mxu0 0
  %6457 = vmatpush2.bf16.msra.mxu0 0
  %6458 = vmatprep.subr.bf16.mxu0 0
  %6459 = vmatpush2.bf16.msra.mxu0 0
  %6460 = vmatprep.subr.bf16.mxu0 0
  %6461 = vmatpush2.bf16.msra.mxu0 0
  %6462 = vmatprep.subr.bf16.mxu0 0
  %6463 = vmatpush2.bf16.msra.mxu0 0
  %6464 = vmatprep.mubr.bf16.mxu0 0
  %6465 = vmatmul.mubr.bf16.gmra.mxu0 %v6415
  %v6466 = vpop.f32.mrf.mxu0
  %v6467 = vadd.f32 0.0, %v6466
  %v6468 = vpop.f32.mrf.mxu0
  %v6469 = vadd.f32 0.0, %v6468
  %v6470 = vpop.f32.mrf.mxu0
  %v6471 = vadd.f32 0.0, %v6470
  %v6472 = vpop.f32.mrf.mxu0
  %v6473 = vadd.f32 0.0, %v6472
  %6474 = vmatprep.mubr.bf16.mxu0 0
  %6475 = vmatmul.mubr.bf16.gmra.mxu0 %v6418
  %v6476 = vpop.f32.mrf.mxu0
  %v6477 = vadd.f32 0.0, %v6476
  %v6478 = vpop.f32.mrf.mxu0
  %v6479 = vadd.f32 0.0, %v6478
  %v6480 = vpop.f32.mrf.mxu0
  %v6481 = vadd.f32 0.0, %v6480
  %v6482 = vpop.f32.mrf.mxu0
  %v6483 = vadd.f32 0.0, %v6482
  %6484 = vdwg.mxu0
  %6485 = vmatprep.subr.bf16.mxu0 0
  %6486 = vmatpush1.bf16.msra.mxu0 0
  %6487 = vmatprep.subr.bf16.mxu0 0
  %6488 = vmatpush1.bf16.msra.mxu0 0
  %6489 = vmatprep.subr.bf16.mxu0 0
  %6490 = vmatpush1.bf16.msra.mxu0 0
  %6491 = vmatprep.subr.bf16.mxu0 0
  %6492 = vmatpush1.bf16.msra.mxu0 0
  %6493 = vmatprep.subr.bf16.mxu0 0
  %6494 = vmatpush1.bf16.msra.mxu0 0
  %6495 = vmatprep.subr.bf16.mxu0 0
  %6496 = vmatpush1.bf16.msra.mxu0 0
  %6497 = vmatprep.subr.bf16.mxu0 %v6430
  %6498 = vmatpush1.bf16.msra.mxu0 %v6427
  %6499 = vmatprep.subr.bf16.mxu0 %v6399
  %6500 = vmatpush1.bf16.msra.mxu0 %v6398
  %6501 = vmatprep.subr.bf16.mxu0 0
  %6502 = vmatpush2.bf16.msra.mxu0 0
  %6503 = vmatprep.subr.bf16.mxu0 0
  %6504 = vmatpush2.bf16.msra.mxu0 0
  %6505 = vmatprep.subr.bf16.mxu0 0
  %6506 = vmatpush2.bf16.msra.mxu0 0
  %6507 = vmatprep.subr.bf16.mxu0 0
  %6508 = vmatpush2.bf16.msra.mxu0 0
  %6509 = vmatprep.subr.bf16.mxu0 0
  %6510 = vmatpush2.bf16.msra.mxu0 0
  %6511 = vmatprep.subr.bf16.mxu0 0
  %6512 = vmatpush2.bf16.msra.mxu0 0
  %6513 = vmatprep.subr.bf16.mxu0 0
  %6514 = vmatpush2.bf16.msra.mxu0 0
  %6515 = vmatprep.subr.bf16.mxu0 0
  %6516 = vmatpush2.bf16.msra.mxu0 0
  %6517 = vmatprep.mubr.bf16.mxu0 0
  %6518 = vmatmul.mubr.bf16.gmra.mxu0 %v6415
  %v6519 = vpop.f32.mrf.mxu0
  %v6520 = vadd.f32 0.0, %v6519
  %v6521 = vpop.f32.mrf.mxu0
  %v6522 = vadd.f32 0.0, %v6521
  %v6523 = vpop.f32.mrf.mxu0
  %v6524 = vadd.f32 0.0, %v6523
  %v6525 = vpop.f32.mrf.mxu0
  %v6526 = vadd.f32 0.0, %v6525
  %6527 = vmatprep.mubr.bf16.mxu0 0
  %6528 = vmatmul.mubr.bf16.gmra.mxu0 %v6418
  %v6529 = vpop.f32.mrf.mxu0
  %v6530 = vadd.f32 0.0, %v6529
  %v6531 = vpop.f32.mrf.mxu0
  %v6532 = vadd.f32 0.0, %v6531
  %v6533 = vpop.f32.mrf.mxu0
  %v6534 = vadd.f32 0.0, %v6533
  %v6535 = vpop.f32.mrf.mxu0
  %v6536 = vadd.f32 0.0, %v6535
  %6537 = vdwg.mxu0
  %v6538 = vadd.f32 %v6327, %v6467
  %v6539 = vadd.f32 %v6328, %v6469
  %v6540 = vadd.f32 %v6329, %v6520
  %v6541 = vadd.f32 %v6330, %v6522
  %v6542 = vadd.f32 %v6331, %v6471
  %v6543 = vadd.f32 %v6332, %v6473
  %v6544 = vadd.f32 %v6333, %v6524
  %v6545 = vadd.f32 %v6334, %v6526
  %v6546 = vadd.f32 %v6335, %v6477
  %v6547 = vadd.f32 %v6336, %v6479
  %v6548 = vadd.f32 %v6337, %v6530
  %v6549 = vadd.f32 %v6338, %v6532
  %v6550 = vadd.f32 %v6339, %v6481
  %v6551 = vadd.f32 %v6340, %v6483
  %v6552 = vadd.f32 %v6341, %v6534
  %v6553 = vadd.f32 %v6342, %v6536
  %6554 = vrot.lane.b32.xlu0 %v4935, 111
  %v6555 = vpop.permute.xlu0 %6554
  %6556 = vrot.lane.b32.xlu0 %v4939, 111
  %v6557 = vpop.permute.xlu0 %6556
  %6558 = vrot.lane.b32.xlu0 %v4943, 111
  %v6559 = vpop.permute.xlu0 %6558
  %6560 = vrot.lane.b32.xlu0 %v4936, 111
  %v6561 = vpop.permute.xlu0 %6560
  %6562 = vrot.lane.b32.xlu0 %v4940, 111
  %v6563 = vpop.permute.xlu0 %6562
  %6564 = vrot.lane.b32.xlu0 %v4944, 111
  %v6565 = vpop.permute.xlu0 %6564
  %6566 = vrot.lane.b32.xlu0 %v4937, 111
  %v6567 = vpop.permute.xlu0 %6566
  %6568 = vrot.lane.b32.xlu0 %v4941, 111
  %v6569 = vpop.permute.xlu0 %6568
  %6570 = vrot.lane.b32.xlu0 %v4945, 111
  %v6571 = vpop.permute.xlu0 %6570
  %6572 = vrot.lane.b32.xlu0 %v4938, 111
  %v6573 = vpop.permute.xlu0 %6572
  %6574 = vrot.lane.b32.xlu0 %v4942, 111
  %v6575 = vpop.permute.xlu0 %6574
  %6576 = vrot.lane.b32.xlu0 %v4946, 111
  %v6577 = vpop.permute.xlu0 %6576
  %v6578 = vsel %vm494, %v6567, %v6573
  %v6579 = vsel %vm494, %v6569, %v6575
  %v6580 = vsel %vm494, %v6571, %v6577
  %v6581 = vsel %vm494, %v6561, %v6567
  %v6582 = vsel %vm494, %v6563, %v6569
  %v6583 = vsel %vm494, %v6565, %v6571
  %v6584 = vsel %vm494, %v6555, %v6561
  %v6585 = vsel %vm494, %v6557, %v6563
  %v6586 = vsel %vm494, %v6559, %v6565
  %v6587 = vsel %vm494, %v6573, %v6555
  %v6588 = vsel %vm494, %v6575, %v6557
  %v6589 = vsel %vm494, %v6577, %v6559
  %v6590 = vmul.f32 %v6584, %v4869
  %v6591 = vmul.f32 %v6581, %v4870
  %v6592 = vmul.f32 %v6578, %v4871
  %v6593 = vmul.f32 %v6587, %v4872
  %v6594 = vmul.f32 %v6585, %v4873
  %v6595 = vmul.f32 %v6582, %v4874
  %v6596 = vmul.f32 %v6579, %v4875
  %v6597 = vmul.f32 %v6588, %v4876
  %v6598 = vmul.f32 %v6586, %v4877
  %v6599 = vmul.f32 %v6583, %v4878
  %v6600 = vmul.f32 %v6580, %v4879
  %v6601 = vmul.f32 %v6589, %v4880
  %s6602 = scalar_lea.vmem %s4, 128
  %v6603 = vld [vmem:[%s6602] sm:$0xf]
  %v6604 = vld [vmem:[%s6602 + $0x4] sm:$0xf]
  %v6605 = vld [vmem:[%s6602 + $0x8] sm:$0xf]
  %v6606 = vld [vmem:[%s6602 + $0xc] sm:$0xf]
  %v6607 = vpack.c.bf16 %v6594, %v6590
  %v6608 = vpack.c.bf16 %v6595, %v6591
  %v6609 = vpack.c.bf16 %v6596, %v6592
  %v6610 = vpack.c.bf16 %v6597, %v6593
  %v6611 = vpack.c.bf16 %v6598, %v6598
  %v6612 = vpack.c.bf16 %v6599, %v6599
  %v6613 = vpack.c.bf16 %v6600, %v6600
  %v6614 = vpack.c.bf16 %v6601, %v6601
  %v6619 = vunpack.c.l.b16 %v6603
  %v6620 = vunpack.c.l.b16 %v6604
  %v6621 = vunpack.c.l.b16 %v6605
  %v6622 = vunpack.c.l.b16 %v6606
  %v6623 = vpack.c.b16 %v6620, %v6619
  %v6624 = vpack.c.b16 %v6622, %v6621
  %v6626 = vsel %vm182, %v6623, 0
  %v6629 = vsel %vm182, %v6624, 0
  %v6632 = vsel %vm189, %v6611, 0
  %v6635 = vsel %vm189, %v6612, 0
  %v6638 = vsel %vm189, %v6613, 0
  %v6641 = vsel %vm189, %v6614, 0
  %6643 = vmatprep.subr.bf16.mxu0 0
  %6644 = vmatpush1.bf16.msra.mxu0 0
  %6645 = vmatprep.subr.bf16.mxu0 0
  %6646 = vmatpush1.bf16.msra.mxu0 0
  %6647 = vmatprep.subr.bf16.mxu0 0
  %6648 = vmatpush1.bf16.msra.mxu0 0
  %6649 = vmatprep.subr.bf16.mxu0 0
  %6650 = vmatpush1.bf16.msra.mxu0 0
  %6651 = vmatprep.subr.bf16.mxu0 0
  %6652 = vmatpush1.bf16.msra.mxu0 0
  %6653 = vmatprep.subr.bf16.mxu0 0
  %6654 = vmatpush1.bf16.msra.mxu0 0
  %6655 = vmatprep.subr.bf16.mxu0 %v6635
  %6656 = vmatpush1.bf16.msra.mxu0 %v6632
  %6657 = vmatprep.subr.bf16.mxu0 %v6608
  %6658 = vmatpush1.bf16.msra.mxu0 %v6607
  %6659 = vmatprep.subr.bf16.mxu0 0
  %6660 = vmatpush2.bf16.msra.mxu0 0
  %6661 = vmatprep.subr.bf16.mxu0 0
  %6662 = vmatpush2.bf16.msra.mxu0 0
  %6663 = vmatprep.subr.bf16.mxu0 0
  %6664 = vmatpush2.bf16.msra.mxu0 0
  %6665 = vmatprep.subr.bf16.mxu0 0
  %6666 = vmatpush2.bf16.msra.mxu0 0
  %6667 = vmatprep.subr.bf16.mxu0 0
  %6668 = vmatpush2.bf16.msra.mxu0 0
  %6669 = vmatprep.subr.bf16.mxu0 0
  %6670 = vmatpush2.bf16.msra.mxu0 0
  %6671 = vmatprep.subr.bf16.mxu0 0
  %6672 = vmatpush2.bf16.msra.mxu0 0
  %6673 = vmatprep.subr.bf16.mxu0 0
  %6674 = vmatpush2.bf16.msra.mxu0 0
  %6675 = vmatprep.mubr.bf16.mxu0 0
  %6676 = vmatmul.mubr.bf16.gmra.mxu0 %v6626
  %v6677 = vpop.f32.mrf.mxu0
  %v6678 = vadd.f32 0.0, %v6677
  %v6679 = vpop.f32.mrf.mxu0
  %v6680 = vadd.f32 0.0, %v6679
  %v6681 = vpop.f32.mrf.mxu0
  %v6682 = vadd.f32 0.0, %v6681
  %v6683 = vpop.f32.mrf.mxu0
  %v6684 = vadd.f32 0.0, %v6683
  %6685 = vmatprep.mubr.bf16.mxu0 0
  %6686 = vmatmul.mubr.bf16.gmra.mxu0 %v6629
  %v6687 = vpop.f32.mrf.mxu0
  %v6688 = vadd.f32 0.0, %v6687
  %v6689 = vpop.f32.mrf.mxu0
  %v6690 = vadd.f32 0.0, %v6689
  %v6691 = vpop.f32.mrf.mxu0
  %v6692 = vadd.f32 0.0, %v6691
  %v6693 = vpop.f32.mrf.mxu0
  %v6694 = vadd.f32 0.0, %v6693
  %6695 = vdwg.mxu0
  %6696 = vmatprep.subr.bf16.mxu0 0
  %6697 = vmatpush1.bf16.msra.mxu0 0
  %6698 = vmatprep.subr.bf16.mxu0 0
  %6699 = vmatpush1.bf16.msra.mxu0 0
  %6700 = vmatprep.subr.bf16.mxu0 0
  %6701 = vmatpush1.bf16.msra.mxu0 0
  %6702 = vmatprep.subr.bf16.mxu0 0
  %6703 = vmatpush1.bf16.msra.mxu0 0
  %6704 = vmatprep.subr.bf16.mxu0 0
  %6705 = vmatpush1.bf16.msra.mxu0 0
  %6706 = vmatprep.subr.bf16.mxu0 0
  %6707 = vmatpush1.bf16.msra.mxu0 0
  %6708 = vmatprep.subr.bf16.mxu0 %v6641
  %6709 = vmatpush1.bf16.msra.mxu0 %v6638
  %6710 = vmatprep.subr.bf16.mxu0 %v6610
  %6711 = vmatpush1.bf16.msra.mxu0 %v6609
  %6712 = vmatprep.subr.bf16.mxu0 0
  %6713 = vmatpush2.bf16.msra.mxu0 0
  %6714 = vmatprep.subr.bf16.mxu0 0
  %6715 = vmatpush2.bf16.msra.mxu0 0
  %6716 = vmatprep.subr.bf16.mxu0 0
  %6717 = vmatpush2.bf16.msra.mxu0 0
  %6718 = vmatprep.subr.bf16.mxu0 0
  %6719 = vmatpush2.bf16.msra.mxu0 0
  %6720 = vmatprep.subr.bf16.mxu0 0
  %6721 = vmatpush2.bf16.msra.mxu0 0
  %6722 = vmatprep.subr.bf16.mxu0 0
  %6723 = vmatpush2.bf16.msra.mxu0 0
  %6724 = vmatprep.subr.bf16.mxu0 0
  %6725 = vmatpush2.bf16.msra.mxu0 0
  %6726 = vmatprep.subr.bf16.mxu0 0
  %6727 = vmatpush2.bf16.msra.mxu0 0
  %6728 = vmatprep.mubr.bf16.mxu0 0
  %6729 = vmatmul.mubr.bf16.gmra.mxu0 %v6626
  %v6730 = vpop.f32.mrf.mxu0
  %v6731 = vadd.f32 0.0, %v6730
  %v6732 = vpop.f32.mrf.mxu0
  %v6733 = vadd.f32 0.0, %v6732
  %v6734 = vpop.f32.mrf.mxu0
  %v6735 = vadd.f32 0.0, %v6734
  %v6736 = vpop.f32.mrf.mxu0
  %v6737 = vadd.f32 0.0, %v6736
  %6738 = vmatprep.mubr.bf16.mxu0 0
  %6739 = vmatmul.mubr.bf16.gmra.mxu0 %v6629
  %v6740 = vpop.f32.mrf.mxu0
  %v6741 = vadd.f32 0.0, %v6740
  %v6742 = vpop.f32.mrf.mxu0
  %v6743 = vadd.f32 0.0, %v6742
  %v6744 = vpop.f32.mrf.mxu0
  %v6745 = vadd.f32 0.0, %v6744
  %v6746 = vpop.f32.mrf.mxu0
  %v6747 = vadd.f32 0.0, %v6746
  %6748 = vdwg.mxu0
  %v6749 = vadd.f32 %v6538, %v6678
  %v6750 = vadd.f32 %v6539, %v6680
  %v6751 = vadd.f32 %v6540, %v6731
  %v6752 = vadd.f32 %v6541, %v6733
  %v6753 = vadd.f32 %v6542, %v6682
  %v6754 = vadd.f32 %v6543, %v6684
  %v6755 = vadd.f32 %v6544, %v6735
  %v6756 = vadd.f32 %v6545, %v6737
  %v6757 = vadd.f32 %v6546, %v6688
  %v6758 = vadd.f32 %v6547, %v6690
  %v6759 = vadd.f32 %v6548, %v6741
  %v6760 = vadd.f32 %v6549, %v6743
  %v6761 = vadd.f32 %v6550, %v6692
  %v6762 = vadd.f32 %v6551, %v6694
  %v6763 = vadd.f32 %v6552, %v6745
  %v6764 = vadd.f32 %v6553, %v6747
  %v6765 = vld [vmem:[%s5 + $0x78] sm:$0xff]
  %v6766 = vld [vmem:[%s5 + $0x80] sm:$0xff]
  %v6767 = vld [vmem:[%s5 + $0x88] sm:$0xff]
  %v6768 = vld [vmem:[%s5 + $0x90] sm:$0xff]
  %6770 = vset.pattern.permute.xlu0 0
  %6771 = vperm.xlu0 %6770, %v6765
  %v6772 = vpop.permute.xlu0 %6771
  %6775 = vset.pattern.permute.xlu0 0
  %6776 = vperm.xlu0 %6775, %v6766
  %v6777 = vpop.permute.xlu0 %6776
  %6780 = vset.pattern.permute.xlu0 0
  %6781 = vperm.xlu0 %6780, %v6767
  %v6782 = vpop.permute.xlu0 %6781
  %6785 = vset.pattern.permute.xlu0 0
  %6786 = vperm.xlu0 %6785, %v6768
  %v6787 = vpop.permute.xlu0 %6786
  %v6789 = vadd.f32 %v6749, %v6772
  %v6790 = vadd.f32 %v6750, %v6772
  %v6791 = vadd.f32 %v6751, %v6772
  %v6792 = vadd.f32 %v6752, %v6772
  %v6793 = vadd.f32 %v6753, %v6777
  %v6794 = vadd.f32 %v6754, %v6777
  %v6795 = vadd.f32 %v6755, %v6777
  %v6796 = vadd.f32 %v6756, %v6777
  %v6797 = vadd.f32 %v6757, %v6782
  %v6798 = vadd.f32 %v6758, %v6782
  %v6799 = vadd.f32 %v6759, %v6782
  %v6800 = vadd.f32 %v6760, %v6782
  %v6801 = vadd.f32 %v6761, %v6787
  %v6802 = vadd.f32 %v6762, %v6787
  %v6803 = vadd.f32 %v6763, %v6787
  %v6804 = vadd.f32 %v6764, %v6787
  %6805 = vst [vmem:[%s6] sm:$0xff] %v6789
  %6806 = vst [vmem:[%s6 + $0x8] sm:$0xff] %v6790
  %6807 = vst [vmem:[%s6 + $0x10] sm:$0xff] %v6791
  %6808 = vst [vmem:[%s6 + $0x18] sm:$0xff] %v6792
  %6809 = vst [vmem:[%s6 + $0x20] sm:$0xff] %v6793
  %6810 = vst [vmem:[%s6 + $0x28] sm:$0xff] %v6794
  %6811 = vst [vmem:[%s6 + $0x30] sm:$0xff] %v6795
  %6812 = vst [vmem:[%s6 + $0x38] sm:$0xff] %v6796
  %6813 = vst [vmem:[%s6 + $0x40] sm:$0xff] %v6797
  %6814 = vst [vmem:[%s6 + $0x48] sm:$0xff] %v6798
  %6815 = vst [vmem:[%s6 + $0x50] sm:$0xff] %v6799
  %6816 = vst [vmem:[%s6 + $0x58] sm:$0xff] %v6800
  %6817 = vst [vmem:[%s6 + $0x60] sm:$0xff] %v6801
  %6818 = vst [vmem:[%s6 + $0x68] sm:$0xff] %v6802
  %6819 = vst [vmem:[%s6 + $0x70] sm:$0xff] %v6803
  %6820 = vst [vmem:[%s6 + $0x78] sm:$0xff] %v6804
  // Predicated region
  $region26: #{_triple_input_impl.1} parent=0 // pred_check
    _
  $region27: #{_triple_input_impl.1} parent=0 // pred_check_branch
    %6822 = sbr.rel (0) target = $region29
  $region28: #{_triple_input_impl.1} parent=0 // pred_region
    _
  $region29: #{_triple_input_impl.1} parent=0 // pred_fallthru
    _
  // Predicated region
  $region30: #{_triple_input_impl.1} parent=0 // pred_check
    _
  $region31: #{_triple_input_impl.1} parent=0 // pred_check_branch
    %6824 = sbr.rel (0) target = $region33
  $region32: #{_triple_input_impl.1} parent=0 // pred_region
    _
  $region33: #{_triple_input_impl.1} parent=0 // pred_fallthru
    _

</llo_original>
